<compile_context>
chip_gen: v7x
topology: tpu7x:2x2x1
jax: 0.10.0
libtpu: 0.0.40
codegen_flags: <defaults>
</compile_context>

<pallas_src>
import functools

import jax
import jax.numpy as jnp
from jax.experimental import pallas as pl
from jax.experimental.pallas import tpu as pltpu

_LANE = 128
# 48 MiB scoped VMEM: leaves headroom on v7x (64 MiB/TC) and is plenty on
# v5e/v6e (128 MiB); the tile working sets below stay under ~20 MiB.
_VMEM_LIMIT = 48 * 1024 * 1024
# Keep S_all fully VMEM-resident (DMA'd once) while its double-buffered footprint
# stays below this budget; otherwise stream (tk, 3*d) blocks per reduction step.
_S_RESIDENT_BUDGET = 12 * 1024 * 1024


def _round_up(x, m):
    return ((x + m - 1) // m) * m


def _pad2(w, rows, cols, dtype=None):
    r, c = w.shape
    w = jnp.pad(w, ((0, rows - r), (0, cols - c)))
    return w if dtype is None else w.astype(dtype)


def _choose_tiles(n, tm=None, tk=None):
    """Pick power-of-two multiples of 128 for (tm, tk) and a padded N both divide.

    Defaults follow the perf review: tm >> tk so the per-k S / z_prev block is
    re-streamed far fewer times than the adjacency rows, while keeping >= 2 row
    blocks so the "parallel" axis can shard across the two TensorCores on v7x.
    """
    n128 = _round_up(max(int(n), 1), _LANE)

    def clamp(t):
        lim = max(_LANE, min(int(t), n128))
        c = _LANE
        while c * 2 <= lim:
            c *= 2
        return c

    tm = clamp(1024 if tm is None else tm)
    tk = clamp(512 if tk is None else tk)
    if tm >= n128 and tm > _LANE:   # keep >= 2 row blocks (v7x megacore)
        tm //= 2
    n_pad = _round_up(int(n), max(tm, tk))
    return n_pad, tm, tk


# ---------------------------------------------------------------------------
# Kernel 1: layer-1 supports (three distinct feature matrices)
#   S = [X1 @ W1 | X2 @ W2 | X3 @ W3]   -> (tm, 3*d_pad) bf16
# ---------------------------------------------------------------------------
def support3_kernel(x1_ref, x2_ref, x3_ref, w1_ref, w2_ref, w3_ref, s_ref):
    d = w1_ref.shape[1]

    def one(x_ref, w_ref):
        return jnp.dot(x_ref[...], w_ref[...],
                       preferred_element_type=jnp.float32).astype(s_ref.dtype)

    s_ref[:, 0:d] = one(x1_ref, w1_ref)
    s_ref[:, d:2 * d] = one(x2_ref, w2_ref)
    s_ref[:, 2 * d:3 * d] = one(x3_ref, w3_ref)


def compute_supports_multi(x1, x2, x3, w1p, w2p, w3p, tm):
    n, d_in = x1.shape
    d_pad = w1p.shape[1]
    return pl.pallas_call(
        support3_kernel,
        grid=(n // tm,),
        in_specs=[pl.BlockSpec((tm, d_in), lambda i: (i, 0)),
                  pl.BlockSpec((tm, d_in), lambda i: (i, 0)),
                  pl.BlockSpec((tm, d_in), lambda i: (i, 0)),
                  pl.BlockSpec((d_in, d_pad), lambda i: (0, 0)),
                  pl.BlockSpec((d_in, d_pad), lambda i: (0, 0)),
                  pl.BlockSpec((d_in, d_pad), lambda i: (0, 0))],
        out_specs=pl.BlockSpec((tm, 3 * d_pad), lambda i: (i, 0)),
        out_shape=jax.ShapeDtypeStruct((n, 3 * d_pad), jnp.bfloat16),
        compiler_params=pltpu.CompilerParams(
            dimension_semantics=("parallel",),
            vmem_limit_bytes=_VMEM_LIMIT),
    )(x1, x2, x3, w1p, w2p, w3p)


# ---------------------------------------------------------------------------
# Kernel 2: layer-1 aggregation + merge (precomputed S, optionally VMEM-resident)
#   Z = ( relu(A1 @ S1) + relu(A2 @ S2) + relu(A3 @ S3) ) / 3
#   grid = (N//tm rows [parallel], N//tk reduction [arbitrary, last])
# ---------------------------------------------------------------------------
def agg_from_s_kernel(s_ref, a1_ref, a2_ref, a3_ref, out_ref,
                      acc1, acc2, acc3, *, d_out, tk, s_resident):
    k = pl.program_id(1)

    @pl.when(k == 0)
    def _init():
        acc1[...] = jnp.zeros_like(acc1)
        acc2[...] = jnp.zeros_like(acc2)
        acc3[...] = jnp.zeros_like(acc3)

    if s_resident:
        off = pl.multiple_of(k * tk, tk)
        s = s_ref[pl.ds(off, tk), :]
    else:
        s = s_ref[...]

    acc1[...] += jnp.dot(a1_ref[...], s[:, 0:d_out],
                         preferred_element_type=jnp.float32)
    acc2[...] += jnp.dot(a2_ref[...], s[:, d_out:2 * d_out],
                         preferred_element_type=jnp.float32)
    acc3[...] += jnp.dot(a3_ref[...], s[:, 2 * d_out:3 * d_out],
                         preferred_element_type=jnp.float32)

    @pl.when(k == pl.num_programs(1) - 1)
    def _finish():
        out_ref[...] = ((jnp.maximum(acc1[...], 0.0)
                         + jnp.maximum(acc2[...], 0.0)
                         + jnp.maximum(acc3[...], 0.0)) * (1.0 / 3.0)
                        ).astype(out_ref.dtype)


def aggregate_from_s(s_all, a1, a2, a3, d_out, tm, tk, out_dtype=jnp.bfloat16):
    n = a1.shape[0]
    s_resident = 2 * s_all.size * s_all.dtype.itemsize <= _S_RESIDENT_BUDGET
    if s_resident:
        s_spec = pl.BlockSpec((n, 3 * d_out), lambda i, k: (0, 0))
    else:
        s_spec = pl.BlockSpec((tk, 3 * d_out), lambda i, k: (k, 0))
    kernel = functools.partial(agg_from_s_kernel, d_out=d_out, tk=tk,
                               s_resident=s_resident)
    cost = pl.CostEstimate(
        flops=int(3 * 2 * n * n * d_out),
        transcendentals=0,
        bytes_accessed=int(3 * n * n * a1.dtype.itemsize
                           + n * 3 * d_out * s_all.dtype.itemsize
                           + n * d_out * jnp.dtype(out_dtype).itemsize))
    return pl.pallas_call(
        kernel,
        grid=(n // tm, n // tk),
        in_specs=[s_spec,
                  pl.BlockSpec((tm, tk), lambda i, k: (i, k)),
                  pl.BlockSpec((tm, tk), lambda i, k: (i, k)),
                  pl.BlockSpec((tm, tk), lambda i, k: (i, k))],
        out_specs=pl.BlockSpec((tm, d_out), lambda i, k: (i, 0)),
        out_shape=jax.ShapeDtypeStruct((n, d_out), out_dtype),
        scratch_shapes=[pltpu.VMEM((tm, d_out), jnp.float32),
                        pltpu.VMEM((tm, d_out), jnp.float32),
                        pltpu.VMEM((tm, d_out), jnp.float32)],
        compiler_params=pltpu.CompilerParams(
            dimension_semantics=("parallel", "arbitrary"),
            vmem_limit_bytes=_VMEM_LIMIT),
        cost_estimate=cost,
    )(s_all, a1, a2, a3)


# ---------------------------------------------------------------------------
# Kernel 3: fused GCN layer for shared activations (layers 2/3)
#   S_k = Zprev_k @ [W1|W2|W3] computed on the fly (Wcat resident, ~0.1 MiB),
#   then the same tiled k-reduction aggregation + relu + merge.
# ---------------------------------------------------------------------------
def fused_layer_kernel(zprev_ref, wcat_ref, a1_ref, a2_ref, a3_ref, out_ref,
                       acc1, acc2, acc3, *, d_out):
    k = pl.program_id(1)

    @pl.when(k == 0)
    def _init():
        acc1[...] = jnp.zeros_like(acc1)
        acc2[...] = jnp.zeros_like(acc2)
        acc3[...] = jnp.zeros_like(acc3)

    # On-the-fly support for this reduction block: (tk, 3*d_out) bf16.
    s = jnp.dot(zprev_ref[...], wcat_ref[...],
                preferred_element_type=jnp.float32).astype(jnp.bfloat16)

    acc1[...] += jnp.dot(a1_ref[...], s[:, 0:d_out],
                         preferred_element_type=jnp.float32)
    acc2[...] += jnp.dot(a2_ref[...], s[:, d_out:2 * d_out],
                         preferred_element_type=jnp.float32)
    acc3[...] += jnp.dot(a3_ref[...], s[:, 2 * d_out:3 * d_out],
                         preferred_element_type=jnp.float32)

    @pl.when(k == pl.num_programs(1) - 1)
    def _finish():
        out_ref[...] = ((jnp.maximum(acc1[...], 0.0)
                         + jnp.maximum(acc2[...], 0.0)
                         + jnp.maximum(acc3[...], 0.0)) * (1.0 / 3.0)
                        ).astype(out_ref.dtype)


def fused_gcn_layer(z_prev, w_cat, a1, a2, a3, d_out, tm, tk,
                    out_dtype=jnp.bfloat16):
    n = a1.shape[0]
    d_prev = z_prev.shape[1]
    kernel = functools.partial(fused_layer_kernel, d_out=d_out)
    cost = pl.CostEstimate(
        flops=int(3 * 2 * n * n * d_out + (n // tm) * 2 * n * d_prev * 3 * d_out),
        transcendentals=0,
        bytes_accessed=int(3 * n * n * a1.dtype.itemsize
                           + (n // tm) * n * d_prev * z_prev.dtype.itemsize
                           + n * d_out * jnp.dtype(out_dtype).itemsize))
    return pl.pallas_call(
        kernel,
        grid=(n // tm, n // tk),
        in_specs=[pl.BlockSpec((tk, d_prev), lambda i, k: (k, 0)),
                  pl.BlockSpec((d_prev, 3 * d_out), lambda i, k: (0, 0)),
                  pl.BlockSpec((tm, tk), lambda i, k: (i, k)),
                  pl.BlockSpec((tm, tk), lambda i, k: (i, k)),
                  pl.BlockSpec((tm, tk), lambda i, k: (i, k))],
        out_specs=pl.BlockSpec((tm, d_out), lambda i, k: (i, 0)),
        out_shape=jax.ShapeDtypeStruct((n, d_out), out_dtype),
        scratch_shapes=[pltpu.VMEM((tm, d_out), jnp.float32),
                        pltpu.VMEM((tm, d_out), jnp.float32),
                        pltpu.VMEM((tm, d_out), jnp.float32)],
        compiler_params=pltpu.CompilerParams(
            dimension_semantics=("parallel", "arbitrary"),
            vmem_limit_bytes=_VMEM_LIMIT),
        cost_estimate=cost,
    )(z_prev, w_cat, a1, a2, a3)


# ---------------------------------------------------------------------------
# Kernel 4: final fused layer = support + aggregation + merge + student-t q
#   Epilogue (k == last): z -> dist = ||z||^2 + ||c||^2 - 2 z@c^T (clamped),
#   q = (1 + dist/v)^(-(v+1)/2), padded cluster columns masked, row-normalized.
# ---------------------------------------------------------------------------
def fused_final_kernel(zprev_ref, wcat_ref, ct_ref, csq_ref,
                       a1_ref, a2_ref, a3_ref, z_ref, q_ref,
                       acc1, acc2, acc3, *, d_out, v, n_clusters, apply_pow):
    k = pl.program_id(1)

    @pl.when(k == 0)
    def _init():
        acc1[...] = jnp.zeros_like(acc1)
        acc2[...] = jnp.zeros_like(acc2)
        acc3[...] = jnp.zeros_like(acc3)

    s = jnp.dot(zprev_ref[...], wcat_ref[...],
                preferred_element_type=jnp.float32).astype(jnp.bfloat16)
    acc1[...] += jnp.dot(a1_ref[...], s[:, 0:d_out],
                         preferred_element_type=jnp.float32)
    acc2[...] += jnp.dot(a2_ref[...], s[:, d_out:2 * d_out],
                         preferred_element_type=jnp.float32)
    acc3[...] += jnp.dot(a3_ref[...], s[:, 2 * d_out:3 * d_out],
                         preferred_element_type=jnp.float32)

    @pl.when(k == pl.num_programs(1) - 1)
    def _finish():
        z = (jnp.maximum(acc1[...], 0.0)
             + jnp.maximum(acc2[...], 0.0)
             + jnp.maximum(acc3[...], 0.0)) * (1.0 / 3.0)          # (tm, d_out) f32
        z_ref[...] = z.astype(z_ref.dtype)

        # Student-t soft assignment (VPU/EUP/MXU epilogue work, hidden behind the
        # memory-bound main loop).
        cross = jnp.dot(z, ct_ref[...], preferred_element_type=jnp.float32)
        z_sq = jnp.sum(z * z, axis=1, keepdims=True)
        dist = jnp.maximum(z_sq + csq_ref[...] - 2.0 * cross, 0.0)
        q = 1.0 / (1.0 + dist * (1.0 / v))
        if apply_pow:   # trace-time skip for the common v == 1
            q = jnp.exp(((v + 1.0) / 2.0) * jnp.log(q))
        col = jax.lax.broadcasted_iota(jnp.int32, q.shape, 1)
        q = jnp.where(col < n_clusters, q, 0.0)     # mask padded cluster columns
        q_ref[...] = q / jnp.sum(q, axis=1, keepdims=True)


def fused_final_layer(z_prev, w_cat, c_t, c_sq, a1, a2, a3, d_out,
                      n_clusters, v, tm, tk):
    n = a1.shape[0]
    d_prev = z_prev.shape[1]
    k_pad = c_t.shape[1]
    kernel = functools.partial(fused_final_kernel, d_out=d_out, v=float(v),
                               n_clusters=int(n_clusters),
                               apply_pow=(float(v) != 1.0))
    cost = pl.CostEstimate(
        flops=int(3 * 2 * n * n * d_out
                  + (n // tm) * 2 * n * d_prev * 3 * d_out
                  + 2 * n * d_out * k_pad),
        transcendentals=0,
        bytes_accessed=int(3 * n * n * a1.dtype.itemsize
                           + (n // tm) * n * d_prev * z_prev.dtype.itemsize
                           + n * (d_out + k_pad) * 4))
    return pl.pallas_call(
        kernel,
        grid=(n // tm, n // tk),
        in_specs=[pl.BlockSpec((tk, d_prev), lambda i, k: (k, 0)),
                  pl.BlockSpec((d_prev, 3 * d_out), lambda i, k: (0, 0)),
                  pl.BlockSpec((d_out, k_pad), lambda i, k: (0, 0)),
                  pl.BlockSpec((1, k_pad), lambda i, k: (0, 0)),
                  pl.BlockSpec((tm, tk), lambda i, k: (i, k)),
                  pl.BlockSpec((tm, tk), lambda i, k: (i, k)),
                  pl.BlockSpec((tm, tk), lambda i, k: (i, k))],
        out_specs=(pl.BlockSpec((tm, d_out), lambda i, k: (i, 0)),
                   pl.BlockSpec((tm, k_pad), lambda i, k: (i, 0))),
        out_shape=(jax.ShapeDtypeStruct((n, d_out), jnp.float32),
                   jax.ShapeDtypeStruct((n, k_pad), jnp.float32)),
        scratch_shapes=[pltpu.VMEM((tm, d_out), jnp.float32),
                        pltpu.VMEM((tm, d_out), jnp.float32),
                        pltpu.VMEM((tm, d_out), jnp.float32)],
        compiler_params=pltpu.CompilerParams(
            dimension_semantics=("parallel", "arbitrary"),
            vmem_limit_bytes=_VMEM_LIMIT),
        cost_estimate=cost,
    )(z_prev, w_cat, c_t, c_sq, a1, a2, a3)


# ---------------------------------------------------------------------------
# Parameter init (deterministic xavier-uniform, mirrors the torch init)
# ---------------------------------------------------------------------------
def xavier_uniform(key, shape):
    fan_in, fan_out = shape
    bound = (6.0 / (fan_in + fan_out)) ** 0.5
    return jax.random.uniform(key, shape, jnp.float32, -bound, bound)


def init_params(key, n_input, enc1, enc2, enc3, n_clusters):
    names_shapes = [
        ("topo_w1", (n_input, enc1)), ("topo_w2", (enc1, enc2)), ("topo_w3", (enc2, enc3)),
        ("geo_w1", (n_input, enc1)), ("geo_w2", (enc1, enc2)), ("geo_w3", (enc2, enc3)),
        ("text_w1", (n_input, enc1)), ("text_w2", (enc1, enc2)), ("text_w3", (enc2, enc3)),
        ("cluster", (n_clusters, enc3)),
    ]
    keys = jax.random.split(key, len(names_shapes))
    return {name: xavier_uniform(k, shp)
            for (name, shp), k in zip(names_shapes, keys)}


# ---------------------------------------------------------------------------
# Full forward pass (matches MultiAttributedModel_Iso_Merge.forward)
# ---------------------------------------------------------------------------
def forward(params, x_topo, x_geo, x_text, a_topo, a_geo, a_text, v,
            tm=None, tk=None):
    n, n_input = x_topo.shape
    enc1 = params["topo_w1"].shape[1]
    enc2 = params["topo_w2"].shape[1]
    enc3 = params["topo_w3"].shape[1]
    n_clusters = params["cluster"].shape[0]
    d1 = _round_up(enc1, _LANE)
    d2 = _round_up(enc2, _LANE)
    d3 = _round_up(enc3, _LANE)
    k_pad = _round_up(n_clusters, _LANE)

    n_pad, tm, tk = _choose_tiles(n, tm, tk)
    pad_n = n_pad - n
    bf = jnp.bfloat16

    def pad_rows(x):
        return jnp.pad(x, ((0, pad_n), (0, 0))) if pad_n else x

    def pad_adj(a):
        a = jnp.pad(a, ((0, pad_n), (0, pad_n))) if pad_n else a
        return a.astype(bf)

    # Cast adjacencies / features / weights to bf16 ONCE; reused by all layers.
    # (In a training loop the bf16 adjacencies could be cached across calls.)
    a1, a2, a3 = pad_adj(a_topo), pad_adj(a_geo), pad_adj(a_text)
    x1, x2, x3 = (pad_rows(x).astype(bf) for x in (x_topo, x_geo, x_text))

    # ---- layer 1 (distinct feature matrix per modality) ----
    s1 = compute_supports_multi(
        x1, x2, x3,
        _pad2(params["topo_w1"], n_input, d1, bf),
        _pad2(params["geo_w1"], n_input, d1, bf),
        _pad2(params["text_w1"], n_input, d1, bf), tm)
    z1 = aggregate_from_s(s1, a1, a2, a3, d1, tm, tk, out_dtype=bf)

    # ---- layer 2 (shared activation; support fused into the aggregation) ----
    wcat2 = jnp.concatenate([_pad2(params["topo_w2"], d1, d2, bf),
                             _pad2(params["geo_w2"], d1, d2, bf),
                             _pad2(params["text_w2"], d1, d2, bf)], axis=1)
    z2 = fused_gcn_layer(z1, wcat2, a1, a2, a3, d2, tm, tk, out_dtype=bf)

    # ---- layer 3 + fused student-t cluster assignment ----
    wcat3 = jnp.concatenate([_pad2(params["topo_w3"], d2, d3, bf),
                             _pad2(params["geo_w3"], d2, d3, bf),
                             _pad2(params["text_w3"], d2, d3, bf)], axis=1)
    c_pad = _pad2(params["cluster"], k_pad, d3)                    # (Kp, d3) f32
    c_t = c_pad.T                                                  # (d3, Kp)
    c_sq = jnp.sum(c_pad * c_pad, axis=1, keepdims=True).T         # (1, Kp)
    z_pad, q_pad = fused_final_layer(z2, wcat3, c_t, c_sq, a1, a2, a3,
                                     d3, n_clusters, v, tm, tk)
    return z_pad[:n, :enc3], q_pad[:n, :n_clusters]


# ---------------------------------------------------------------------------
# References for correctness checks
# ---------------------------------------------------------------------------
def forward_ref_f32(params, x_topo, x_geo, x_text, a_topo, a_geo, a_text, v):
    def gnn(x, a, w):
        return jax.nn.relu(a @ (x @ w))

    z1 = (gnn(x_topo, a_topo, params["topo_w1"]) + gnn(x_geo, a_geo, params["geo_w1"])
          + gnn(x_text, a_text, params["text_w1"])) / 3.0
    z2 = (gnn(z1, a_topo, params["topo_w2"]) + gnn(z1, a_geo, params["geo_w2"])
          + gnn(z1, a_text, params["text_w2"])) / 3.0
    z = (gnn(z2, a_topo, params["topo_w3"]) + gnn(z2, a_geo, params["geo_w3"])
         + gnn(z2, a_text, params["text_w3"])) / 3.0
    c = params["cluster"]
    dist = jnp.sum((z[:, None, :] - c[None, :, :]) ** 2, axis=2)
    q = 1.0 / (1.0 + dist / v)
    q = q ** ((v + 1.0) / 2.0)
    q = q / jnp.sum(q, axis=1, keepdims=True)
    return z, q


def forward_ref_matched(params, x_topo, x_geo, x_text, a_topo, a_geo, a_text, v):
    # Mirrors the kernel's precision policy: bf16 adjacency / features / weights /
    # intermediate activations, f32 accumulation, matmul-form distance.
    bf, f32 = jnp.bfloat16, jnp.float32
    a1, a2, a3 = (a.astype(bf) for a in (a_topo, a_geo, a_text))

    def gnn(xb, ab, w):
        s = jnp.dot(xb, w.astype(bf), preferred_element_type=f32).astype(bf)
        return jax.nn.relu(jnp.dot(ab, s, preferred_element_type=f32))

    x1b, x2b, x3b = (x.astype(bf) for x in (x_topo, x_geo, x_text))
    z1 = (gnn(x1b, a1, params["topo_w1"]) + gnn(x2b, a2, params["geo_w1"])
          + gnn(x3b, a3, params["text_w1"])) * (1.0 / 3.0)
    z1b = z1.astype(bf)
    z2 = (gnn(z1b, a1, params["topo_w2"]) + gnn(z1b, a2, params["geo_w2"])
          + gnn(z1b, a3, params["text_w2"])) * (1.0 / 3.0)
    z2b = z2.astype(bf)
    z = (gnn(z2b, a1, params["topo_w3"]) + gnn(z2b, a2, params["geo_w3"])
         + gnn(z2b, a3, params["text_w3"])) * (1.0 / 3.0)
    c = params["cluster"]
    dist = jnp.maximum(jnp.sum(z * z, axis=1, keepdims=True)
                       + jnp.sum(c * c, axis=1)[None, :] - 2.0 * (z @ c.T), 0.0)
    q = 1.0 / (1.0 + dist / v)
    q = q ** ((v + 1.0) / 2.0)
    q = q / jnp.sum(q, axis=1, keepdims=True)
    return z, q


if __name__ == "__main__":
    n_nodes = 256
    n_input = 32
    enc1, enc2, enc3 = 32, 16, 8
    n_clusters = 4
    v = 1.0

    key = jax.random.PRNGKey(0)
    kp, kx1, kx2, kx3, ka1, ka2, ka3 = jax.random.split(key, 7)

    params = init_params(kp, n_input, enc1, enc2, enc3, n_clusters)

    x_topo = jax.random.normal(kx1, (n_nodes, n_input), jnp.float32)
    x_geo = jax.random.normal(kx2, (n_nodes, n_input), jnp.float32)
    x_text = jax.random.normal(kx3, (n_nodes, n_input), jnp.float32)

    def make_adj(k):
        a = jax.random.uniform(k, (n_nodes, n_nodes), jnp.float32)
        a = (a + a.T) / 2.0 + jnp.eye(n_nodes, dtype=jnp.float32)
        return a / jnp.sum(a, axis=1, keepdims=True)   # row-normalized dense adjacency

    a_topo, a_geo, a_text = make_adj(ka1), make_adj(ka2), make_adj(ka3)

    fwd = jax.jit(forward, static_argnames=("v", "tm", "tk"))

    # ---- run 1: N=256, tm=tk=128 -> 2x2 grid, exercises the k-reduction path ----
    z, q = fwd(params, x_topo, x_geo, x_text, a_topo, a_geo, a_text,
               v=v, tm=128, tk=128)
    z = jax.block_until_ready(z)
    q = jax.block_until_ready(q)

    z_m, q_m = forward_ref_matched(params, x_topo, x_geo, x_text,
                                   a_topo, a_geo, a_text, v)
    _, q_f = forward_ref_f32(params, x_topo, x_geo, x_text,
                             a_topo, a_geo, a_text, v)

    assert z.shape == (n_nodes, enc3) and q.shape == (n_nodes, n_clusters)
    # Structural correctness vs a precision-matched (bf16 MXU) reference.
    assert jnp.allclose(z, z_m, atol=2e-3, rtol=1e-2)
    assert jnp.allclose(q, q_m, atol=2e-3, rtol=1e-2)
    # End-to-end sanity vs the pure-f32 reference (loose: bf16 streaming policy).
    assert jnp.allclose(q, q_f, atol=5e-2, rtol=5e-2)
    assert jnp.allclose(jnp.sum(q, axis=1), 1.0, atol=1e-5)

    # ---- run 2: ragged N=200, default tiles -> exercises N-padding path ----
    n2 = 200
    x1s, x2s, x3s = x_topo[:n2], x_geo[:n2], x_text[:n2]
    a1s, a2s, a3s = a_topo[:n2, :n2], a_geo[:n2, :n2], a_text[:n2, :n2]
    z2_, q2_ = fwd(params, x1s, x2s, x3s, a1s, a2s, a3s, v=v)
    z2_ = jax.block_until_ready(z2_)
    q2_ = jax.block_until_ready(q2_)
    z2m, q2m = forward_ref_matched(params, x1s, x2s, x3s, a1s, a2s, a3s, v)
    assert z2_.shape == (n2, enc3) and q2_.shape == (n2, n_clusters)
    assert jnp.allclose(z2_, z2m, atol=2e-3, rtol=1e-2)
    assert jnp.allclose(q2_, q2m, atol=2e-3, rtol=1e-2)
    assert jnp.allclose(jnp.sum(q2_, axis=1), 1.0, atol=1e-5)

    print("KERNEL_OK")
</pallas_src>

<mosaic_0001>
module attributes {stable_mosaic.version = 11 : i64} {
  func.func @agg_from_s_kernel(%arg0: i32, %arg1: i32, %arg2: memref<256x384xbf16, #tpu.memory_space<vmem>>, %arg3: memref<128x128xbf16, #tpu.memory_space<vmem>>, %arg4: memref<128x128xbf16, #tpu.memory_space<vmem>>, %arg5: memref<128x128xbf16, #tpu.memory_space<vmem>>, %arg6: memref<128x128xbf16, #tpu.memory_space<vmem>>, %arg7: memref<128x128xf32, #tpu.memory_space<vmem>>, %arg8: memref<128x128xf32, #tpu.memory_space<vmem>>, %arg9: memref<128x128xf32, #tpu.memory_space<vmem>>) attributes {dimension_semantics = [#tpu.dimension_semantics<parallel>, #tpu.dimension_semantics<arbitrary>], iteration_bounds = array<i64: 2, 2>, scalar_prefetch = 0 : i64, scratch_operands = 3 : i64, tpu.core_type = #tpu.core_type<tc>, window_params = [{pipeline_mode = #tpu.pipeline_mode<synchronous>, transform_indices = @transform_0, window_bounds = array<i64: 256, 384>}, {transform_indices = @transform_1, window_bounds = array<i64: 128, 128>}, {transform_indices = @transform_2, window_bounds = array<i64: 128, 128>}, {transform_indices = @transform_3, window_bounds = array<i64: 128, 128>}, {transform_indices = @transform_4, window_bounds = array<i64: 128, 128>}]} {
    %c0_i32 = arith.constant 0 : i32
    %0 = arith.cmpi eq, %arg1, %c0_i32 : i32
    %1 = arith.extui %0 : i1 to i32
    %c0_i32_0 = arith.constant 0 : i32
    %2 = arith.cmpi ne, %1, %c0_i32_0 : i32
    scf.if %2 {
      %cst_22 = arith.constant 0.000000e+00 : f32
      %28 = vector.broadcast %cst_22 : f32 to vector<128x128xf32>
      %c0_23 = arith.constant 0 : index
      %c0_24 = arith.constant 0 : index
      %29 = vector.load %arg7[%c0_23, %c0_24] : memref<128x128xf32, #tpu.memory_space<vmem>>, vector<128x128xf32>
      tpu.vector_store %arg7[%c0_23, %c0_24], %28 {strides = array<i32>} : memref<128x128xf32, #tpu.memory_space<vmem>>, vector<128x128xf32>,
      %cst_25 = arith.constant 0.000000e+00 : f32
      %30 = vector.broadcast %cst_25 : f32 to vector<128x128xf32>
      %c0_26 = arith.constant 0 : index
      %c0_27 = arith.constant 0 : index
      %31 = vector.load %arg8[%c0_26, %c0_27] : memref<128x128xf32, #tpu.memory_space<vmem>>, vector<128x128xf32>
      tpu.vector_store %arg8[%c0_26, %c0_27], %30 {strides = array<i32>} : memref<128x128xf32, #tpu.memory_space<vmem>>, vector<128x128xf32>,
      %cst_28 = arith.constant 0.000000e+00 : f32
      %32 = vector.broadcast %cst_28 : f32 to vector<128x128xf32>
      %c0_29 = arith.constant 0 : index
      %c0_30 = arith.constant 0 : index
      %33 = vector.load %arg9[%c0_29, %c0_30] : memref<128x128xf32, #tpu.memory_space<vmem>>, vector<128x128xf32>
      tpu.vector_store %arg9[%c0_29, %c0_30], %32 {strides = array<i32>} : memref<128x128xf32, #tpu.memory_space<vmem>>, vector<128x128xf32>,
    } else {
    }
    %c128_i32 = arith.constant 128 : i32
    %3 = arith.muli %arg1, %c128_i32 : i32
    %4 = tpu.assume_multiple %3, 128 : i32
    %5 = arith.index_cast %4 : i32 to index
    %c0 = arith.constant 0 : index
    %6 = vector.load %arg2[%5, %c0] : memref<256x384xbf16, #tpu.memory_space<vmem>>, vector<128x384xbf16>
    %c0_1 = arith.constant 0 : index
    %c0_2 = arith.constant 0 : index
    %7 = vector.load %arg7[%c0_1, %c0_2] : memref<128x128xf32, #tpu.memory_space<vmem>>, vector<128x128xf32>
    %c0_3 = arith.constant 0 : index
    %c0_4 = arith.constant 0 : index
    %8 = vector.load %arg3[%c0_3, %c0_4] : memref<128x128xbf16, #tpu.memory_space<vmem>>, vector<128x128xbf16>
    %9 = vector.extract_strided_slice %6 {offsets = [0, 0], sizes = [128, 128], strides = [1, 1]} : vector<128x384xbf16> to vector<128x128xbf16>
    %cst = arith.constant dense<0.000000e+00> : vector<128x128xf32>
    %10 = tpu.matmul %8, %9, %cst {dimension_numbers = #tpu.dot_dimension_numbers<[1], [0], [0], [1], [0, 0, 1, 1], [], []>} : vector<128x128xbf16>, vector<128x128xbf16>, vector<128x128xf32> -> vector<128x128xf32>
    %11 = arith.addf %7, %10 : vector<128x128xf32>
    %c0_5 = arith.constant 0 : index
    %c0_6 = arith.constant 0 : index
    %12 = vector.load %arg7[%c0_5, %c0_6] : memref<128x128xf32, #tpu.memory_space<vmem>>, vector<128x128xf32>
    tpu.vector_store %arg7[%c0_5, %c0_6], %11 {strides = array<i32>} : memref<128x128xf32, #tpu.memory_space<vmem>>, vector<128x128xf32>,
    %c0_7 = arith.constant 0 : index
    %c0_8 = arith.constant 0 : index
    %13 = vector.load %arg8[%c0_7, %c0_8] : memref<128x128xf32, #tpu.memory_space<vmem>>, vector<128x128xf32>
    %c0_9 = arith.constant 0 : index
    %c0_10 = arith.constant 0 : index
    %14 = vector.load %arg4[%c0_9, %c0_10] : memref<128x128xbf16, #tpu.memory_space<vmem>>, vector<128x128xbf16>
    %15 = vector.extract_strided_slice %6 {offsets = [0, 128], sizes = [128, 128], strides = [1, 1]} : vector<128x384xbf16> to vector<128x128xbf16>
    %cst_11 = arith.constant dense<0.000000e+00> : vector<128x128xf32>
    %16 = tpu.matmul %14, %15, %cst_11 {dimension_numbers = #tpu.dot_dimension_numbers<[1], [0], [0], [1], [0, 0, 1, 1], [], []>} : vector<128x128xbf16>, vector<128x128xbf16>, vector<128x128xf32> -> vector<128x128xf32>
    %17 = arith.addf %13, %16 : vector<128x128xf32>
    %c0_12 = arith.constant 0 : index
    %c0_13 = arith.constant 0 : index
    %18 = vector.load %arg8[%c0_12, %c0_13] : memref<128x128xf32, #tpu.memory_space<vmem>>, vector<128x128xf32>
    tpu.vector_store %arg8[%c0_12, %c0_13], %17 {strides = array<i32>} : memref<128x128xf32, #tpu.memory_space<vmem>>, vector<128x128xf32>,
    %c0_14 = arith.constant 0 : index
    %c0_15 = arith.constant 0 : index
    %19 = vector.load %arg9[%c0_14, %c0_15] : memref<128x128xf32, #tpu.memory_space<vmem>>, vector<128x128xf32>
    %c0_16 = arith.constant 0 : index
    %c0_17 = arith.constant 0 : index
    %20 = vector.load %arg5[%c0_16, %c0_17] : memref<128x128xbf16, #tpu.memory_space<vmem>>, vector<128x128xbf16>
    %21 = vector.extract_strided_slice %6 {offsets = [0, 256], sizes = [128, 128], strides = [1, 1]} : vector<128x384xbf16> to vector<128x128xbf16>
    %cst_18 = arith.constant dense<0.000000e+00> : vector<128x128xf32>
    %22 = tpu.matmul %20, %21, %cst_18 {dimension_numbers = #tpu.dot_dimension_numbers<[1], [0], [0], [1], [0, 0, 1, 1], [], []>} : vector<128x128xbf16>, vector<128x128xbf16>, vector<128x128xf32> -> vector<128x128xf32>
    %23 = arith.addf %19, %22 : vector<128x128xf32>
    %c0_19 = arith.constant 0 : index
    %c0_20 = arith.constant 0 : index
    %24 = vector.load %arg9[%c0_19, %c0_20] : memref<128x128xf32, #tpu.memory_space<vmem>>, vector<128x128xf32>
    tpu.vector_store %arg9[%c0_19, %c0_20], %23 {strides = array<i32>} : memref<128x128xf32, #tpu.memory_space<vmem>>, vector<128x128xf32>,
    %c1_i32 = arith.constant 1 : i32
    %25 = arith.cmpi eq, %arg1, %c1_i32 : i32
    %26 = arith.extui %25 : i1 to i32
    %c0_i32_21 = arith.constant 0 : i32
    %27 = arith.cmpi ne, %26, %c0_i32_21 : i32
    scf.if %27 {
      %c0_22 = arith.constant 0 : index
      %c0_23 = arith.constant 0 : index
      %28 = vector.load %arg7[%c0_22, %c0_23] : memref<128x128xf32, #tpu.memory_space<vmem>>, vector<128x128xf32>
      %cst_24 = arith.constant 0.000000e+00 : f32
      %29 = vector.broadcast %cst_24 : f32 to vector<128x128xf32>
      %30 = arith.maximumf %28, %29 : vector<128x128xf32>
      %c0_25 = arith.constant 0 : index
      %c0_26 = arith.constant 0 : index
      %31 = vector.load %arg8[%c0_25, %c0_26] : memref<128x128xf32, #tpu.memory_space<vmem>>, vector<128x128xf32>
      %cst_27 = arith.constant 0.000000e+00 : f32
      %32 = vector.broadcast %cst_27 : f32 to vector<128x128xf32>
      %33 = arith.maximumf %31, %32 : vector<128x128xf32>
      %34 = arith.addf %30, %33 : vector<128x128xf32>
      %c0_28 = arith.constant 0 : index
      %c0_29 = arith.constant 0 : index
      %35 = vector.load %arg9[%c0_28, %c0_29] : memref<128x128xf32, #tpu.memory_space<vmem>>, vector<128x128xf32>
      %cst_30 = arith.constant 0.000000e+00 : f32
      %36 = vector.broadcast %cst_30 : f32 to vector<128x128xf32>
      %37 = arith.maximumf %35, %36 : vector<128x128xf32>
      %38 = arith.addf %34, %37 : vector<128x128xf32>
      %cst_31 = arith.constant 0.333333343 : f32
      %39 = vector.broadcast %cst_31 : f32 to vector<128x128xf32>
      %40 = arith.mulf %38, %39 : vector<128x128xf32>
      %41 = arith.truncf %40 : vector<128x128xf32> to vector<128x128xbf16>
      %c0_32 = arith.constant 0 : index
      %c0_33 = arith.constant 0 : index
      %42 = vector.load %arg6[%c0_32, %c0_33] : memref<128x128xbf16, #tpu.memory_space<vmem>>, vector<128x128xbf16>
      tpu.vector_store %arg6[%c0_32, %c0_33], %41 {strides = array<i32>} : memref<128x128xbf16, #tpu.memory_space<vmem>>, vector<128x128xbf16>,
    } else {
    }
    return
  }
  func.func @transform_0(%arg0: i32, %arg1: i32) -> (i32, i32) {
    %c0_i32 = arith.constant 0 : i32
    %c0_i32_0 = arith.constant 0 : i32
    %c0_i32_1 = arith.constant 0 : i32
    return %c0_i32, %c0_i32_0 : i32, i32
  }
  func.func @transform_1(%arg0: i32, %arg1: i32) -> (i32, i32) {
    %c0_i32 = arith.constant 0 : i32
    return %arg0, %arg1 : i32, i32
  }
  func.func @transform_2(%arg0: i32, %arg1: i32) -> (i32, i32) {
    %c0_i32 = arith.constant 0 : i32
    return %arg0, %arg1 : i32, i32
  }
  func.func @transform_3(%arg0: i32, %arg1: i32) -> (i32, i32) {
    %c0_i32 = arith.constant 0 : i32
    return %arg0, %arg1 : i32, i32
  }
  func.func @transform_4(%arg0: i32, %arg1: i32) -> (i32, i32) {
    %c0_i32 = arith.constant 0 : i32
    %c0_i32_0 = arith.constant 0 : i32
    return %arg0, %c0_i32 : i32, i32
  }
}

module attributes {stable_mosaic.version = 11 : i64} {
  func.func @support3_kernel(%arg0: i32, %arg1: memref<128x32xbf16, #tpu.memory_space<vmem>>, %arg2: memref<128x32xbf16, #tpu.memory_space<vmem>>, %arg3: memref<128x32xbf16, #tpu.memory_space<vmem>>, %arg4: memref<32x128xbf16, #tpu.memory_space<vmem>>, %arg5: memref<32x128xbf16, #tpu.memory_space<vmem>>, %arg6: memref<32x128xbf16, #tpu.memory_space<vmem>>, %arg7: memref<128x384xbf16, #tpu.memory_space<vmem>>) attributes {dimension_semantics = [#tpu.dimension_semantics<parallel>], iteration_bounds = array<i64: 2>, scalar_prefetch = 0 : i64, scratch_operands = 0 : i64, tpu.core_type = #tpu.core_type<tc>, window_params = [{transform_indices = @transform_0, window_bounds = array<i64: 128, 32>}, {transform_indices = @transform_1, window_bounds = array<i64: 128, 32>}, {transform_indices = @transform_2, window_bounds = array<i64: 128, 32>}, {pipeline_mode = #tpu.pipeline_mode<synchronous>, transform_indices = @transform_3, window_bounds = array<i64: 32, 128>}, {pipeline_mode = #tpu.pipeline_mode<synchronous>, transform_indices = @transform_4, window_bounds = array<i64: 32, 128>}, {pipeline_mode = #tpu.pipeline_mode<synchronous>, transform_indices = @transform_5, window_bounds = array<i64: 32, 128>}, {transform_indices = @transform_6, window_bounds = array<i64: 128, 384>}]} {
    %c0 = arith.constant 0 : index
    %c0_0 = arith.constant 0 : index
    %0 = vector.load %arg1[%c0, %c0_0] : memref<128x32xbf16, #tpu.memory_space<vmem>>, vector<128x32xbf16>
    %c0_1 = arith.constant 0 : index
    %c0_2 = arith.constant 0 : index
    %1 = vector.load %arg4[%c0_1, %c0_2] : memref<32x128xbf16, #tpu.memory_space<vmem>>, vector<32x128xbf16>
    %cst = arith.constant dense<0.000000e+00> : vector<128x128xf32>
    %2 = tpu.matmul %0, %1, %cst {dimension_numbers = #tpu.dot_dimension_numbers<[1], [0], [0], [1], [0, 0, 1, 1], [], []>} : vector<128x32xbf16>, vector<32x128xbf16>, vector<128x128xf32> -> vector<128x128xf32>
    %3 = arith.truncf %2 : vector<128x128xf32> to vector<128x128xbf16>
    %c0_3 = arith.constant 0 : index
    %c0_4 = arith.constant 0 : index
    %4 = vector.load %arg7[%c0_3, %c0_4] : memref<128x384xbf16, #tpu.memory_space<vmem>>, vector<128x128xbf16>
    tpu.vector_store %arg7[%c0_3, %c0_4], %3 {strides = array<i32>} : memref<128x384xbf16, #tpu.memory_space<vmem>>, vector<128x128xbf16>,
    %c0_5 = arith.constant 0 : index
    %c0_6 = arith.constant 0 : index
    %5 = vector.load %arg2[%c0_5, %c0_6] : memref<128x32xbf16, #tpu.memory_space<vmem>>, vector<128x32xbf16>
    %c0_7 = arith.constant 0 : index
    %c0_8 = arith.constant 0 : index
    %6 = vector.load %arg5[%c0_7, %c0_8] : memref<32x128xbf16, #tpu.memory_space<vmem>>, vector<32x128xbf16>
    %cst_9 = arith.constant dense<0.000000e+00> : vector<128x128xf32>
    %7 = tpu.matmul %5, %6, %cst_9 {dimension_numbers = #tpu.dot_dimension_numbers<[1], [0], [0], [1], [0, 0, 1, 1], [], []>} : vector<128x32xbf16>, vector<32x128xbf16>, vector<128x128xf32> -> vector<128x128xf32>
    %8 = arith.truncf %7 : vector<128x128xf32> to vector<128x128xbf16>
    %c0_10 = arith.constant 0 : index
    %c128 = arith.constant 128 : index
    %9 = vector.load %arg7[%c0_10, %c128] : memref<128x384xbf16, #tpu.memory_space<vmem>>, vector<128x128xbf16>
    tpu.vector_store %arg7[%c0_10, %c128], %8 {strides = array<i32>} : memref<128x384xbf16, #tpu.memory_space<vmem>>, vector<128x128xbf16>,
    %c0_11 = arith.constant 0 : index
    %c0_12 = arith.constant 0 : index
    %10 = vector.load %arg3[%c0_11, %c0_12] : memref<128x32xbf16, #tpu.memory_space<vmem>>, vector<128x32xbf16>
    %c0_13 = arith.constant 0 : index
    %c0_14 = arith.constant 0 : index
    %11 = vector.load %arg6[%c0_13, %c0_14] : memref<32x128xbf16, #tpu.memory_space<vmem>>, vector<32x128xbf16>
    %cst_15 = arith.constant dense<0.000000e+00> : vector<128x128xf32>
    %12 = tpu.matmul %10, %11, %cst_15 {dimension_numbers = #tpu.dot_dimension_numbers<[1], [0], [0], [1], [0, 0, 1, 1], [], []>} : vector<128x32xbf16>, vector<32x128xbf16>, vector<128x128xf32> -> vector<128x128xf32>
    %13 = arith.truncf %12 : vector<128x128xf32> to vector<128x128xbf16>
    %c0_16 = arith.constant 0 : index
    %c256 = arith.constant 256 : index
    %14 = vector.load %arg7[%c0_16, %c256] : memref<128x384xbf16, #tpu.memory_space<vmem>>, vector<128x128xbf16>
    tpu.vector_store %arg7[%c0_16, %c256], %13 {strides = array<i32>} : memref<128x384xbf16, #tpu.memory_space<vmem>>, vector<128x128xbf16>,
    return
  }
  func.func @transform_0(%arg0: i32) -> (i32, i32) {
    %c0_i32 = arith.constant 0 : i32
    %c0_i32_0 = arith.constant 0 : i32
    return %arg0, %c0_i32 : i32, i32
  }
  func.func @transform_1(%arg0: i32) -> (i32, i32) {
    %c0_i32 = arith.constant 0 : i32
    %c0_i32_0 = arith.constant 0 : i32
    return %arg0, %c0_i32 : i32, i32
  }
  func.func @transform_2(%arg0: i32) -> (i32, i32) {
    %c0_i32 = arith.constant 0 : i32
    %c0_i32_0 = arith.constant 0 : i32
    return %arg0, %c0_i32 : i32, i32
  }
  func.func @transform_3(%arg0: i32) -> (i32, i32) {
    %c0_i32 = arith.constant 0 : i32
    %c0_i32_0 = arith.constant 0 : i32
    %c0_i32_1 = arith.constant 0 : i32
    return %c0_i32, %c0_i32_0 : i32, i32
  }
  func.func @transform_4(%arg0: i32) -> (i32, i32) {
    %c0_i32 = arith.constant 0 : i32
    %c0_i32_0 = arith.constant 0 : i32
    %c0_i32_1 = arith.constant 0 : i32
    return %c0_i32, %c0_i32_0 : i32, i32
  }
  func.func @transform_5(%arg0: i32) -> (i32, i32) {
    %c0_i32 = arith.constant 0 : i32
    %c0_i32_0 = arith.constant 0 : i32
    %c0_i32_1 = arith.constant 0 : i32
    return %c0_i32, %c0_i32_0 : i32, i32
  }
  func.func @transform_6(%arg0: i32) -> (i32, i32) {
    %c0_i32 = arith.constant 0 : i32
    %c0_i32_0 = arith.constant 0 : i32
    return %arg0, %c0_i32 : i32, i32
  }
}

module attributes {stable_mosaic.version = 11 : i64} {
  func.func @fused_layer_kernel(%arg0: i32, %arg1: i32, %arg2: memref<128x128xbf16, #tpu.memory_space<vmem>>, %arg3: memref<128x384xbf16, #tpu.memory_space<vmem>>, %arg4: memref<128x128xbf16, #tpu.memory_space<vmem>>, %arg5: memref<128x128xbf16, #tpu.memory_space<vmem>>, %arg6: memref<128x128xbf16, #tpu.memory_space<vmem>>, %arg7: memref<128x128xbf16, #tpu.memory_space<vmem>>, %arg8: memref<128x128xf32, #tpu.memory_space<vmem>>, %arg9: memref<128x128xf32, #tpu.memory_space<vmem>>, %arg10: memref<128x128xf32, #tpu.memory_space<vmem>>) attributes {dimension_semantics = [#tpu.dimension_semantics<parallel>, #tpu.dimension_semantics<arbitrary>], iteration_bounds = array<i64: 2, 2>, scalar_prefetch = 0 : i64, scratch_operands = 3 : i64, tpu.core_type = #tpu.core_type<tc>, window_params = [{transform_indices = @transform_0, window_bounds = array<i64: 128, 128>}, {pipeline_mode = #tpu.pipeline_mode<synchronous>, transform_indices = @transform_1, window_bounds = array<i64: 128, 384>}, {transform_indices = @transform_2, window_bounds = array<i64: 128, 128>}, {transform_indices = @transform_3, window_bounds = array<i64: 128, 128>}, {transform_indices = @transform_4, window_bounds = array<i64: 128, 128>}, {transform_indices = @transform_5, window_bounds = array<i64: 128, 128>}]} {
    %c0_i32 = arith.constant 0 : i32
    %0 = arith.cmpi eq, %arg1, %c0_i32 : i32
    %1 = arith.extui %0 : i1 to i32
    %c0_i32_0 = arith.constant 0 : i32
    %2 = arith.cmpi ne, %1, %c0_i32_0 : i32
    scf.if %2 {
      %cst_26 = arith.constant 0.000000e+00 : f32
      %28 = vector.broadcast %cst_26 : f32 to vector<128x128xf32>
      %c0_27 = arith.constant 0 : index
      %c0_28 = arith.constant 0 : index
      %29 = vector.load %arg8[%c0_27, %c0_28] : memref<128x128xf32, #tpu.memory_space<vmem>>, vector<128x128xf32>
      tpu.vector_store %arg8[%c0_27, %c0_28], %28 {strides = array<i32>} : memref<128x128xf32, #tpu.memory_space<vmem>>, vector<128x128xf32>,
      %cst_29 = arith.constant 0.000000e+00 : f32
      %30 = vector.broadcast %cst_29 : f32 to vector<128x128xf32>
      %c0_30 = arith.constant 0 : index
      %c0_31 = arith.constant 0 : index
      %31 = vector.load %arg9[%c0_30, %c0_31] : memref<128x128xf32, #tpu.memory_space<vmem>>, vector<128x128xf32>
      tpu.vector_store %arg9[%c0_30, %c0_31], %30 {strides = array<i32>} : memref<128x128xf32, #tpu.memory_space<vmem>>, vector<128x128xf32>,
      %cst_32 = arith.constant 0.000000e+00 : f32
      %32 = vector.broadcast %cst_32 : f32 to vector<128x128xf32>
      %c0_33 = arith.constant 0 : index
      %c0_34 = arith.constant 0 : index
      %33 = vector.load %arg10[%c0_33, %c0_34] : memref<128x128xf32, #tpu.memory_space<vmem>>, vector<128x128xf32>
      tpu.vector_store %arg10[%c0_33, %c0_34], %32 {strides = array<i32>} : memref<128x128xf32, #tpu.memory_space<vmem>>, vector<128x128xf32>,
    } else {
    }
    %c0 = arith.constant 0 : index
    %c0_1 = arith.constant 0 : index
    %3 = vector.load %arg2[%c0, %c0_1] : memref<128x128xbf16, #tpu.memory_space<vmem>>, vector<128x128xbf16>
    %c0_2 = arith.constant 0 : index
    %c0_3 = arith.constant 0 : index
    %4 = vector.load %arg3[%c0_2, %c0_3] : memref<128x384xbf16, #tpu.memory_space<vmem>>, vector<128x384xbf16>
    %cst = arith.constant dense<0.000000e+00> : vector<128x384xf32>
    %5 = tpu.matmul %3, %4, %cst {dimension_numbers = #tpu.dot_dimension_numbers<[1], [0], [0], [1], [0, 0, 1, 1], [], []>} : vector<128x128xbf16>, vector<128x384xbf16>, vector<128x384xf32> -> vector<128x384xf32>
    %6 = arith.truncf %5 : vector<128x384xf32> to vector<128x384xbf16>
    %c0_4 = arith.constant 0 : index
    %c0_5 = arith.constant 0 : index
    %7 = vector.load %arg8[%c0_4, %c0_5] : memref<128x128xf32, #tpu.memory_space<vmem>>, vector<128x128xf32>
    %c0_6 = arith.constant 0 : index
    %c0_7 = arith.constant 0 : index
    %8 = vector.load %arg4[%c0_6, %c0_7] : memref<128x128xbf16, #tpu.memory_space<vmem>>, vector<128x128xbf16>
    %9 = vector.extract_strided_slice %6 {offsets = [0, 0], sizes = [128, 128], strides = [1, 1]} : vector<128x384xbf16> to vector<128x128xbf16>
    %cst_8 = arith.constant dense<0.000000e+00> : vector<128x128xf32>
    %10 = tpu.matmul %8, %9, %cst_8 {dimension_numbers = #tpu.dot_dimension_numbers<[1], [0], [0], [1], [0, 0, 1, 1], [], []>} : vector<128x128xbf16>, vector<128x128xbf16>, vector<128x128xf32> -> vector<128x128xf32>
    %11 = arith.addf %7, %10 : vector<128x128xf32>
    %c0_9 = arith.constant 0 : index
    %c0_10 = arith.constant 0 : index
    %12 = vector.load %arg8[%c0_9, %c0_10] : memref<128x128xf32, #tpu.memory_space<vmem>>, vector<128x128xf32>
    tpu.vector_store %arg8[%c0_9, %c0_10], %11 {strides = array<i32>} : memref<128x128xf32, #tpu.memory_space<vmem>>, vector<128x128xf32>,
    %c0_11 = arith.constant 0 : index
    %c0_12 = arith.constant 0 : index
    %13 = vector.load %arg9[%c0_11, %c0_12] : memref<128x128xf32, #tpu.memory_space<vmem>>, vector<128x128xf32>
    %c0_13 = arith.constant 0 : index
    %c0_14 = arith.constant 0 : index
    %14 = vector.load %arg5[%c0_13, %c0_14] : memref<128x128xbf16, #tpu.memory_space<vmem>>, vector<128x128xbf16>
    %15 = vector.extract_strided_slice %6 {offsets = [0, 128], sizes = [128, 128], strides = [1, 1]} : vector<128x384xbf16> to vector<128x128xbf16>
    %cst_15 = arith.constant dense<0.000000e+00> : vector<128x128xf32>
    %16 = tpu.matmul %14, %15, %cst_15 {dimension_numbers = #tpu.dot_dimension_numbers<[1], [0], [0], [1], [0, 0, 1, 1], [], []>} : vector<128x128xbf16>, vector<128x128xbf16>, vector<128x128xf32> -> vector<128x128xf32>
    %17 = arith.addf %13, %16 : vector<128x128xf32>
    %c0_16 = arith.constant 0 : index
    %c0_17 = arith.constant 0 : index
    %18 = vector.load %arg9[%c0_16, %c0_17] : memref<128x128xf32, #tpu.memory_space<vmem>>, vector<128x128xf32>
    tpu.vector_store %arg9[%c0_16, %c0_17], %17 {strides = array<i32>} : memref<128x128xf32, #tpu.memory_space<vmem>>, vector<128x128xf32>,
    %c0_18 = arith.constant 0 : index
    %c0_19 = arith.constant 0 : index
    %19 = vector.load %arg10[%c0_18, %c0_19] : memref<128x128xf32, #tpu.memory_space<vmem>>, vector<128x128xf32>
    %c0_20 = arith.constant 0 : index
    %c0_21 = arith.constant 0 : index
    %20 = vector.load %arg6[%c0_20, %c0_21] : memref<128x128xbf16, #tpu.memory_space<vmem>>, vector<128x128xbf16>
    %21 = vector.extract_strided_slice %6 {offsets = [0, 256], sizes = [128, 128], strides = [1, 1]} : vector<128x384xbf16> to vector<128x128xbf16>
    %cst_22 = arith.constant dense<0.000000e+00> : vector<128x128xf32>
    %22 = tpu.matmul %20, %21, %cst_22 {dimension_numbers = #tpu.dot_dimension_numbers<[1], [0], [0], [1], [0, 0, 1, 1], [], []>} : vector<128x128xbf16>, vector<128x128xbf16>, vector<128x128xf32> -> vector<128x128xf32>
    %23 = arith.addf %19, %22 : vector<128x128xf32>
    %c0_23 = arith.constant 0 : index
    %c0_24 = arith.constant 0 : index
    %24 = vector.load %arg10[%c0_23, %c0_24] : memref<128x128xf32, #tpu.memory_space<vmem>>, vector<128x128xf32>
    tpu.vector_store %arg10[%c0_23, %c0_24], %23 {strides = array<i32>} : memref<128x128xf32, #tpu.memory_space<vmem>>, vector<128x128xf32>,
    %c1_i32 = arith.constant 1 : i32
    %25 = arith.cmpi eq, %arg1, %c1_i32 : i32
    %26 = arith.extui %25 : i1 to i32
    %c0_i32_25 = arith.constant 0 : i32
    %27 = arith.cmpi ne, %26, %c0_i32_25 : i32
    scf.if %27 {
      %c0_26 = arith.constant 0 : index
      %c0_27 = arith.constant 0 : index
      %28 = vector.load %arg8[%c0_26, %c0_27] : memref<128x128xf32, #tpu.memory_space<vmem>>, vector<128x128xf32>
      %cst_28 = arith.constant 0.000000e+00 : f32
      %29 = vector.broadcast %cst_28 : f32 to vector<128x128xf32>
      %30 = arith.maximumf %28, %29 : vector<128x128xf32>
      %c0_29 = arith.constant 0 : index
      %c0_30 = arith.constant 0 : index
      %31 = vector.load %arg9[%c0_29, %c0_30] : memref<128x128xf32, #tpu.memory_space<vmem>>, vector<128x128xf32>
      %cst_31 = arith.constant 0.000000e+00 : f32
      %32 = vector.broadcast %cst_31 : f32 to vector<128x128xf32>
      %33 = arith.maximumf %31, %32 : vector<128x128xf32>
      %34 = arith.addf %30, %33 : vector<128x128xf32>
      %c0_32 = arith.constant 0 : index
      %c0_33 = arith.constant 0 : index
      %35 = vector.load %arg10[%c0_32, %c0_33] : memref<128x128xf32, #tpu.memory_space<vmem>>, vector<128x128xf32>
      %cst_34 = arith.constant 0.000000e+00 : f32
      %36 = vector.broadcast %cst_34 : f32 to vector<128x128xf32>
      %37 = arith.maximumf %35, %36 : vector<128x128xf32>
      %38 = arith.addf %34, %37 : vector<128x128xf32>
      %cst_35 = arith.constant 0.333333343 : f32
      %39 = vector.broadcast %cst_35 : f32 to vector<128x128xf32>
      %40 = arith.mulf %38, %39 : vector<128x128xf32>
      %41 = arith.truncf %40 : vector<128x128xf32> to vector<128x128xbf16>
      %c0_36 = arith.constant 0 : index
      %c0_37 = arith.constant 0 : index
      %42 = vector.load %arg7[%c0_36, %c0_37] : memref<128x128xbf16, #tpu.memory_space<vmem>>, vector<128x128xbf16>
      tpu.vector_store %arg7[%c0_36, %c0_37], %41 {strides = array<i32>} : memref<128x128xbf16, #tpu.memory_space<vmem>>, vector<128x128xbf16>,
    } else {
    }
    return
  }
  func.func @transform_0(%arg0: i32, %arg1: i32) -> (i32, i32) {
    %c0_i32 = arith.constant 0 : i32
    %c0_i32_0 = arith.constant 0 : i32
    return %arg1, %c0_i32 : i32, i32
  }
  func.func @transform_1(%arg0: i32, %arg1: i32) -> (i32, i32) {
    %c0_i32 = arith.constant 0 : i32
    %c0_i32_0 = arith.constant 0 : i32
    %c0_i32_1 = arith.constant 0 : i32
    return %c0_i32, %c0_i32_0 : i32, i32
  }
  func.func @transform_2(%arg0: i32, %arg1: i32) -> (i32, i32) {
    %c0_i32 = arith.constant 0 : i32
    return %arg0, %arg1 : i32, i32
  }
  func.func @transform_3(%arg0: i32, %arg1: i32) -> (i32, i32) {
    %c0_i32 = arith.constant 0 : i32
    return %arg0, %arg1 : i32, i32
  }
  func.func @transform_4(%arg0: i32, %arg1: i32) -> (i32, i32) {
    %c0_i32 = arith.constant 0 : i32
    return %arg0, %arg1 : i32, i32
  }
  func.func @transform_5(%arg0: i32, %arg1: i32) -> (i32, i32) {
    %c0_i32 = arith.constant 0 : i32
    %c0_i32_0 = arith.constant 0 : i32
    return %arg0, %c0_i32 : i32, i32
  }
}

module attributes {stable_mosaic.version = 11 : i64} {
  func.func @fused_final_kernel(%arg0: i32, %arg1: i32, %arg2: memref<128x128xbf16, #tpu.memory_space<vmem>>, %arg3: memref<128x384xbf16, #tpu.memory_space<vmem>>, %arg4: memref<128x128xf32, #tpu.memory_space<vmem>>, %arg5: memref<1x128xf32, #tpu.memory_space<vmem>>, %arg6: memref<128x128xbf16, #tpu.memory_space<vmem>>, %arg7: memref<128x128xbf16, #tpu.memory_space<vmem>>, %arg8: memref<128x128xbf16, #tpu.memory_space<vmem>>, %arg9: memref<128x128xf32, #tpu.memory_space<vmem>>, %arg10: memref<128x128xf32, #tpu.memory_space<vmem>>, %arg11: memref<128x128xf32, #tpu.memory_space<vmem>>, %arg12: memref<128x128xf32, #tpu.memory_space<vmem>>, %arg13: memref<128x128xf32, #tpu.memory_space<vmem>>) attributes {dimension_semantics = [#tpu.dimension_semantics<parallel>, #tpu.dimension_semantics<arbitrary>], iteration_bounds = array<i64: 2, 2>, scalar_prefetch = 0 : i64, scratch_operands = 3 : i64, tpu.core_type = #tpu.core_type<tc>, window_params = [{transform_indices = @transform_0, window_bounds = array<i64: 128, 128>}, {pipeline_mode = #tpu.pipeline_mode<synchronous>, transform_indices = @transform_1, window_bounds = array<i64: 128, 384>}, {pipeline_mode = #tpu.pipeline_mode<synchronous>, transform_indices = @transform_2, window_bounds = array<i64: 128, 128>}, {pipeline_mode = #tpu.pipeline_mode<synchronous>, transform_indices = @transform_3, window_bounds = array<i64: 1, 128>}, {transform_indices = @transform_4, window_bounds = array<i64: 128, 128>}, {transform_indices = @transform_5, window_bounds = array<i64: 128, 128>}, {transform_indices = @transform_6, window_bounds = array<i64: 128, 128>}, {transform_indices = @transform_7, window_bounds = array<i64: 128, 128>}, {transform_indices = @transform_8, window_bounds = array<i64: 128, 128>}]} {
    %c0_i32 = arith.constant 0 : i32
    %0 = arith.cmpi eq, %arg1, %c0_i32 : i32
    %1 = arith.extui %0 : i1 to i32
    %c0_i32_0 = arith.constant 0 : i32
    %2 = arith.cmpi ne, %1, %c0_i32_0 : i32
    scf.if %2 {
      %cst_26 = arith.constant 0.000000e+00 : f32
      %28 = vector.broadcast %cst_26 : f32 to vector<128x128xf32>
      %c0_27 = arith.constant 0 : index
      %c0_28 = arith.constant 0 : index
      %29 = vector.load %arg11[%c0_27, %c0_28] : memref<128x128xf32, #tpu.memory_space<vmem>>, vector<128x128xf32>
      tpu.vector_store %arg11[%c0_27, %c0_28], %28 {strides = array<i32>} : memref<128x128xf32, #tpu.memory_space<vmem>>, vector<128x128xf32>,
      %cst_29 = arith.constant 0.000000e+00 : f32
      %30 = vector.broadcast %cst_29 : f32 to vector<128x128xf32>
      %c0_30 = arith.constant 0 : index
      %c0_31 = arith.constant 0 : index
      %31 = vector.load %arg12[%c0_30, %c0_31] : memref<128x128xf32, #tpu.memory_space<vmem>>, vector<128x128xf32>
      tpu.vector_store %arg12[%c0_30, %c0_31], %30 {strides = array<i32>} : memref<128x128xf32, #tpu.memory_space<vmem>>, vector<128x128xf32>,
      %cst_32 = arith.constant 0.000000e+00 : f32
      %32 = vector.broadcast %cst_32 : f32 to vector<128x128xf32>
      %c0_33 = arith.constant 0 : index
      %c0_34 = arith.constant 0 : index
      %33 = vector.load %arg13[%c0_33, %c0_34] : memref<128x128xf32, #tpu.memory_space<vmem>>, vector<128x128xf32>
      tpu.vector_store %arg13[%c0_33, %c0_34], %32 {strides = array<i32>} : memref<128x128xf32, #tpu.memory_space<vmem>>, vector<128x128xf32>,
    } else {
    }
    %c0 = arith.constant 0 : index
    %c0_1 = arith.constant 0 : index
    %3 = vector.load %arg2[%c0, %c0_1] : memref<128x128xbf16, #tpu.memory_space<vmem>>, vector<128x128xbf16>
    %c0_2 = arith.constant 0 : index
    %c0_3 = arith.constant 0 : index
    %4 = vector.load %arg3[%c0_2, %c0_3] : memref<128x384xbf16, #tpu.memory_space<vmem>>, vector<128x384xbf16>
    %cst = arith.constant dense<0.000000e+00> : vector<128x384xf32>
    %5 = tpu.matmul %3, %4, %cst {dimension_numbers = #tpu.dot_dimension_numbers<[1], [0], [0], [1], [0, 0, 1, 1], [], []>} : vector<128x128xbf16>, vector<128x384xbf16>, vector<128x384xf32> -> vector<128x384xf32>
    %6 = arith.truncf %5 : vector<128x384xf32> to vector<128x384xbf16>
    %c0_4 = arith.constant 0 : index
    %c0_5 = arith.constant 0 : index
    %7 = vector.load %arg11[%c0_4, %c0_5] : memref<128x128xf32, #tpu.memory_space<vmem>>, vector<128x128xf32>
    %c0_6 = arith.constant 0 : index
    %c0_7 = arith.constant 0 : index
    %8 = vector.load %arg6[%c0_6, %c0_7] : memref<128x128xbf16, #tpu.memory_space<vmem>>, vector<128x128xbf16>
    %9 = vector.extract_strided_slice %6 {offsets = [0, 0], sizes = [128, 128], strides = [1, 1]} : vector<128x384xbf16> to vector<128x128xbf16>
    %cst_8 = arith.constant dense<0.000000e+00> : vector<128x128xf32>
    %10 = tpu.matmul %8, %9, %cst_8 {dimension_numbers = #tpu.dot_dimension_numbers<[1], [0], [0], [1], [0, 0, 1, 1], [], []>} : vector<128x128xbf16>, vector<128x128xbf16>, vector<128x128xf32> -> vector<128x128xf32>
    %11 = arith.addf %7, %10 : vector<128x128xf32>
    %c0_9 = arith.constant 0 : index
    %c0_10 = arith.constant 0 : index
    %12 = vector.load %arg11[%c0_9, %c0_10] : memref<128x128xf32, #tpu.memory_space<vmem>>, vector<128x128xf32>
    tpu.vector_store %arg11[%c0_9, %c0_10], %11 {strides = array<i32>} : memref<128x128xf32, #tpu.memory_space<vmem>>, vector<128x128xf32>,
    %c0_11 = arith.constant 0 : index
    %c0_12 = arith.constant 0 : index
    %13 = vector.load %arg12[%c0_11, %c0_12] : memref<128x128xf32, #tpu.memory_space<vmem>>, vector<128x128xf32>
    %c0_13 = arith.constant 0 : index
    %c0_14 = arith.constant 0 : index
    %14 = vector.load %arg7[%c0_13, %c0_14] : memref<128x128xbf16, #tpu.memory_space<vmem>>, vector<128x128xbf16>
    %15 = vector.extract_strided_slice %6 {offsets = [0, 128], sizes = [128, 128], strides = [1, 1]} : vector<128x384xbf16> to vector<128x128xbf16>
    %cst_15 = arith.constant dense<0.000000e+00> : vector<128x128xf32>
    %16 = tpu.matmul %14, %15, %cst_15 {dimension_numbers = #tpu.dot_dimension_numbers<[1], [0], [0], [1], [0, 0, 1, 1], [], []>} : vector<128x128xbf16>, vector<128x128xbf16>, vector<128x128xf32> -> vector<128x128xf32>
    %17 = arith.addf %13, %16 : vector<128x128xf32>
    %c0_16 = arith.constant 0 : index
    %c0_17 = arith.constant 0 : index
    %18 = vector.load %arg12[%c0_16, %c0_17] : memref<128x128xf32, #tpu.memory_space<vmem>>, vector<128x128xf32>
    tpu.vector_store %arg12[%c0_16, %c0_17], %17 {strides = array<i32>} : memref<128x128xf32, #tpu.memory_space<vmem>>, vector<128x128xf32>,
    %c0_18 = arith.constant 0 : index
    %c0_19 = arith.constant 0 : index
    %19 = vector.load %arg13[%c0_18, %c0_19] : memref<128x128xf32, #tpu.memory_space<vmem>>, vector<128x128xf32>
    %c0_20 = arith.constant 0 : index
    %c0_21 = arith.constant 0 : index
    %20 = vector.load %arg8[%c0_20, %c0_21] : memref<128x128xbf16, #tpu.memory_space<vmem>>, vector<128x128xbf16>
    %21 = vector.extract_strided_slice %6 {offsets = [0, 256], sizes = [128, 128], strides = [1, 1]} : vector<128x384xbf16> to vector<128x128xbf16>
    %cst_22 = arith.constant dense<0.000000e+00> : vector<128x128xf32>
    %22 = tpu.matmul %20, %21, %cst_22 {dimension_numbers = #tpu.dot_dimension_numbers<[1], [0], [0], [1], [0, 0, 1, 1], [], []>} : vector<128x128xbf16>, vector<128x128xbf16>, vector<128x128xf32> -> vector<128x128xf32>
    %23 = arith.addf %19, %22 : vector<128x128xf32>
    %c0_23 = arith.constant 0 : index
    %c0_24 = arith.constant 0 : index
    %24 = vector.load %arg13[%c0_23, %c0_24] : memref<128x128xf32, #tpu.memory_space<vmem>>, vector<128x128xf32>
    tpu.vector_store %arg13[%c0_23, %c0_24], %23 {strides = array<i32>} : memref<128x128xf32, #tpu.memory_space<vmem>>, vector<128x128xf32>,
    %c1_i32 = arith.constant 1 : i32
    %25 = arith.cmpi eq, %arg1, %c1_i32 : i32
    %26 = arith.extui %25 : i1 to i32
    %c0_i32_25 = arith.constant 0 : i32
    %27 = arith.cmpi ne, %26, %c0_i32_25 : i32
    scf.if %27 {
      %c0_26 = arith.constant 0 : index
      %c0_27 = arith.constant 0 : index
      %28 = vector.load %arg11[%c0_26, %c0_27] : memref<128x128xf32, #tpu.memory_space<vmem>>, vector<128x128xf32>
      %cst_28 = arith.constant 0.000000e+00 : f32
      %29 = vector.broadcast %cst_28 : f32 to vector<128x128xf32>
      %30 = arith.maximumf %28, %29 : vector<128x128xf32>
      %c0_29 = arith.constant 0 : index
      %c0_30 = arith.constant 0 : index
      %31 = vector.load %arg12[%c0_29, %c0_30] : memref<128x128xf32, #tpu.memory_space<vmem>>, vector<128x128xf32>
      %cst_31 = arith.constant 0.000000e+00 : f32
      %32 = vector.broadcast %cst_31 : f32 to vector<128x128xf32>
      %33 = arith.maximumf %31, %32 : vector<128x128xf32>
      %34 = arith.addf %30, %33 : vector<128x128xf32>
      %c0_32 = arith.constant 0 : index
      %c0_33 = arith.constant 0 : index
      %35 = vector.load %arg13[%c0_32, %c0_33] : memref<128x128xf32, #tpu.memory_space<vmem>>, vector<128x128xf32>
      %cst_34 = arith.constant 0.000000e+00 : f32
      %36 = vector.broadcast %cst_34 : f32 to vector<128x128xf32>
      %37 = arith.maximumf %35, %36 : vector<128x128xf32>
      %38 = arith.addf %34, %37 : vector<128x128xf32>
      %cst_35 = arith.constant 0.333333343 : f32
      %39 = vector.broadcast %cst_35 : f32 to vector<128x128xf32>
      %40 = arith.mulf %38, %39 : vector<128x128xf32>
      %c0_36 = arith.constant 0 : index
      %c0_37 = arith.constant 0 : index
      %41 = vector.load %arg9[%c0_36, %c0_37] : memref<128x128xf32, #tpu.memory_space<vmem>>, vector<128x128xf32>
      tpu.vector_store %arg9[%c0_36, %c0_37], %40 {strides = array<i32>} : memref<128x128xf32, #tpu.memory_space<vmem>>, vector<128x128xf32>,
      %c0_38 = arith.constant 0 : index
      %c0_39 = arith.constant 0 : index
      %42 = vector.load %arg4[%c0_38, %c0_39] : memref<128x128xf32, #tpu.memory_space<vmem>>, vector<128x128xf32>
      %cst_40 = arith.constant dense<0.000000e+00> : vector<128x128xf32>
      %43 = tpu.matmul %40, %42, %cst_40 {dimension_numbers = #tpu.dot_dimension_numbers<[1], [0], [0], [1], [0, 0, 1, 1], [], []>} : vector<128x128xf32>, vector<128x128xf32>, vector<128x128xf32> -> vector<128x128xf32>
      %44 = arith.mulf %40, %40 : vector<128x128xf32>
      %cst_41 = arith.constant dense<0.000000e+00> : vector<128xf32>
      %45 = vector.multi_reduction <add>, %44, %cst_41 [1] : vector<128x128xf32> to vector<128xf32>
      %46 = vector.shape_cast %45 : vector<128xf32> to vector<128x1xf32>
      %c0_42 = arith.constant 0 : index
      %c0_43 = arith.constant 0 : index
      %47 = vector.load %arg5[%c0_42, %c0_43] : memref<1x128xf32, #tpu.memory_space<vmem>>, vector<1x128xf32>
      %48 = vector.broadcast %46 : vector<128x1xf32> to vector<128x128xf32>
      %49 = vector.broadcast %47 : vector<1x128xf32> to vector<128x128xf32>
      %50 = arith.addf %48, %49 : vector<128x128xf32>
      %cst_44 = arith.constant 2.000000e+00 : f32
      %51 = vector.broadcast %cst_44 : f32 to vector<128x128xf32>
      %52 = arith.mulf %51, %43 : vector<128x128xf32>
      %53 = arith.subf %50, %52 : vector<128x128xf32>
      %cst_45 = arith.constant 0.000000e+00 : f32
      %54 = vector.broadcast %cst_45 : f32 to vector<128x128xf32>
      %55 = arith.maximumf %53, %54 : vector<128x128xf32>
      %cst_46 = arith.constant 1.000000e+00 : f32
      %56 = vector.broadcast %cst_46 : f32 to vector<128x128xf32>
      %57 = arith.mulf %55, %56 : vector<128x128xf32>
      %cst_47 = arith.constant 1.000000e+00 : f32
      %58 = vector.broadcast %cst_47 : f32 to vector<128x128xf32>
      %59 = arith.addf %58, %57 : vector<128x128xf32>
      %cst_48 = arith.constant 1.000000e+00 : f32
      %60 = vector.broadcast %cst_48 : f32 to vector<128x128xf32>
      %61 = arith.divf %60, %59 : vector<128x128xf32>
      %62 = tpu.iota {dimensions = array<i32: 1>} : vector<128x128xi32>
      %c4_i32 = arith.constant 4 : i32
      %63 = vector.broadcast %c4_i32 : i32 to vector<128x128xi32>
      %64 = arith.cmpi slt, %62, %63 : vector<128x128xi32>
      %cst_49 = arith.constant 0.000000e+00 : f32
      %65 = vector.broadcast %cst_49 : f32 to vector<128x128xf32>
      %66 = arith.select %64, %61, %65 : vector<128x128xi1>, vector<128x128xf32>
      %cst_50 = arith.constant dense<0.000000e+00> : vector<128xf32>
      %67 = vector.multi_reduction <add>, %66, %cst_50 [1] : vector<128x128xf32> to vector<128xf32>
      %68 = vector.shape_cast %67 : vector<128xf32> to vector<128x1xf32>
      %69 = vector.broadcast %68 : vector<128x1xf32> to vector<128x128xf32>
      %70 = arith.divf %66, %69 : vector<128x128xf32>
      %c0_51 = arith.constant 0 : index
      %c0_52 = arith.constant 0 : index
      %71 = vector.load %arg10[%c0_51, %c0_52] : memref<128x128xf32, #tpu.memory_space<vmem>>, vector<128x128xf32>
      tpu.vector_store %arg10[%c0_51, %c0_52], %70 {strides = array<i32>} : memref<128x128xf32, #tpu.memory_space<vmem>>, vector<128x128xf32>,
    } else {
    }
    return
  }
  func.func @transform_0(%arg0: i32, %arg1: i32) -> (i32, i32) {
    %c0_i32 = arith.constant 0 : i32
    %c0_i32_0 = arith.constant 0 : i32
    return %arg1, %c0_i32 : i32, i32
  }
  func.func @transform_1(%arg0: i32, %arg1: i32) -> (i32, i32) {
    %c0_i32 = arith.constant 0 : i32
    %c0_i32_0 = arith.constant 0 : i32
    %c0_i32_1 = arith.constant 0 : i32
    return %c0_i32, %c0_i32_0 : i32, i32
  }
  func.func @transform_2(%arg0: i32, %arg1: i32) -> (i32, i32) {
    %c0_i32 = arith.constant 0 : i32
    %c0_i32_0 = arith.constant 0 : i32
    %c0_i32_1 = arith.constant 0 : i32
    return %c0_i32, %c0_i32_0 : i32, i32
  }
  func.func @transform_3(%arg0: i32, %arg1: i32) -> (i32, i32) {
    %c0_i32 = arith.constant 0 : i32
    %c0_i32_0 = arith.constant 0 : i32
    %c0_i32_1 = arith.constant 0 : i32
    return %c0_i32, %c0_i32_0 : i32, i32
  }
  func.func @transform_4(%arg0: i32, %arg1: i32) -> (i32, i32) {
    %c0_i32 = arith.constant 0 : i32
    return %arg0, %arg1 : i32, i32
  }
  func.func @transform_5(%arg0: i32, %arg1: i32) -> (i32, i32) {
    %c0_i32 = arith.constant 0 : i32
    return %arg0, %arg1 : i32, i32
  }
  func.func @transform_6(%arg0: i32, %arg1: i32) -> (i32, i32) {
    %c0_i32 = arith.constant 0 : i32
    return %arg0, %arg1 : i32, i32
  }
  func.func @transform_7(%arg0: i32, %arg1: i32) -> (i32, i32) {
    %c0_i32 = arith.constant 0 : i32
    %c0_i32_0 = arith.constant 0 : i32
    return %arg0, %c0_i32 : i32, i32
  }
  func.func @transform_8(%arg0: i32, %arg1: i32) -> (i32, i32) {
    %c0_i32 = arith.constant 0 : i32
    %c0_i32_0 = arith.constant 0 : i32
    return %arg0, %c0_i32 : i32, i32
  }
}

</mosaic_0001>

<llo_original>
// kernel: forward.4
$region0: #{forward.4}
  #allocation0 [shape = 'u32[]', space=smem, size = 0x4, offset = 0x4, fixed_abs, tag = 'smem constant byte address 0x4 - core index']
  #allocation1 [shape = 'u32[144,128]{1,0:T(1,128)}', space=vmem, size = 0x12000, scoped, tag = 'internal scratch']
  %s0 = inlined_call_operand.vmem [shape: bf16[256,32], index: 0, kind: input, shape index: {}]
  %s1 = inlined_call_operand.vmem [shape: bf16[256,32], index: 1, kind: input, shape index: {}]
  %s2 = inlined_call_operand.vmem [shape: bf16[256,32], index: 2, kind: input, shape index: {}]
  %s3 = inlined_call_operand.vmem [shape: bf16[32,128], index: 3, kind: input, shape index: {}]
  %s4 = inlined_call_operand.vmem [shape: bf16[32,128], index: 4, kind: input, shape index: {}]
  %s5 = inlined_call_operand.vmem [shape: bf16[32,128], index: 5, kind: input, shape index: {}]
  %s6 = inlined_call_operand.vmem [shape: bf16[256,384], index: 6, kind: output, shape index: {}]
  %s7 = sld [smem:[#allocation0]]
  $region57: #{forward.4} parent=0
    _
  %s9 = ssub.s32 1, %s7
  %s10 = scalar_select 0, %s9, %s7
  loop: start=0, step=1, limit=4
  $region2: #{forward.4} parent=0 // loop_pre_header
    _
  $region3: #{forward.4} parent=0 // loop_header
    %s12 = sphi 0, %s16
    %p13 = scmp.ge.s32.totalorder %s12, 4
    %s22 = sphi 0, %s24
    %s25 = sphi 0, %s22
    %s26 = sphi 0, %s25
    %s42 = sphi 0, %s26
    %s48 = sphi 0, %s50
    %s51 = sphi 0, %s48
    %s52 = sphi 0, %s51
    %s68 = sphi 0, %s52
    %s74 = sphi 0, %s76
    %s77 = sphi 0, %s74
    %s78 = sphi 0, %s77
    %s94 = sphi 0, %s78
    %s98 = sphi 0, %s98
    %s100 = sphi 0, %s98
    %s101 = sphi 0, %s100
    %s115 = sphi 0, %s101
    %s119 = sphi 0, %s119
    %s121 = sphi 0, %s119
    %s122 = sphi 0, %s121
    %s136 = sphi 0, %s122
    %s140 = sphi 0, %s140
    %s142 = sphi 0, %s140
    %s143 = sphi 0, %s142
    %s157 = sphi 0, %s143
    %s163 = sphi 0, %s165
    %s166 = sphi 0, %s163
    %s167 = sphi 0, %s166
    %s183 = sphi 0, %s167
  $region4: #{forward.4} parent=0 // loop_header_branch
    %15 = sbr.rel (%p13) target = $region8
  $region5: #{forward.4} parent=0 // loop_body
    %s17 = ssub.s32 %s12, 1
    %s18 = ssub.s32 %s12, 2
    %s19 = sadd.s32 %s12, 1
    %s20 = ssub.s32 %s12, %s19
    %p21 = scmp.eq.s32.totalorder %s20, 0
    %s23 = sadd.s32 %s22, 1
    %s24 = scalar_select %p21, %s22, %s23
    %p27 = pneg %p21
    %p28 = scmp.eq.s32.totalorder %s12, 1
    %p29 = por %p27, %p28
    %p30 = scmp.ne.s32.totalorder %s22, %s25
    %p31 = scmp.eq.s32.totalorder %s12, 0
    %p32 = por %p30, %p31
    %p33 = scmp.ne.s32.totalorder %s22, %s25
    %p34 = scmp.eq.s32.totalorder %s17, 1
    %p35 = por %p33, %p34
    %p36 = scmp.ne.s32.totalorder %s25, %s26
    %p37 = scmp.eq.s32.totalorder %s17, 0
    %p38 = por %p36, %p37
    %p39 = scmp.ne.s32.totalorder %s25, %s26
    %p40 = scmp.eq.s32.totalorder %s18, 1
    %p41 = por %p39, %p40
    %p43 = scmp.ne.s32.totalorder %s26, %s42
    %p44 = scmp.eq.s32.totalorder %s18, 0
    %p45 = por %p43, %p44
    %s46 = ssub.s32 %s12, %s19
    %p47 = scmp.eq.s32.totalorder %s46, 0
    %s49 = sadd.s32 %s48, 1
    %s50 = scalar_select %p47, %s48, %s49
    %p53 = pneg %p47
    %p54 = scmp.eq.s32.totalorder %s12, 1
    %p55 = por %p53, %p54
    %p56 = scmp.ne.s32.totalorder %s48, %s51
    %p57 = scmp.eq.s32.totalorder %s12, 0
    %p58 = por %p56, %p57
    %p59 = scmp.ne.s32.totalorder %s48, %s51
    %p60 = scmp.eq.s32.totalorder %s17, 1
    %p61 = por %p59, %p60
    %p62 = scmp.ne.s32.totalorder %s51, %s52
    %p63 = scmp.eq.s32.totalorder %s17, 0
    %p64 = por %p62, %p63
    %p65 = scmp.ne.s32.totalorder %s51, %s52
    %p66 = scmp.eq.s32.totalorder %s18, 1
    %p67 = por %p65, %p66
    %p69 = scmp.ne.s32.totalorder %s52, %s68
    %p70 = scmp.eq.s32.totalorder %s18, 0
    %p71 = por %p69, %p70
    %s72 = ssub.s32 %s12, %s19
    %p73 = scmp.eq.s32.totalorder %s72, 0
    %s75 = sadd.s32 %s74, 1
    %s76 = scalar_select %p73, %s74, %s75
    %p79 = pneg %p73
    %p80 = scmp.eq.s32.totalorder %s12, 1
    %p81 = por %p79, %p80
    %p82 = scmp.ne.s32.totalorder %s74, %s77
    %p83 = scmp.eq.s32.totalorder %s12, 0
    %p84 = por %p82, %p83
    %p85 = scmp.ne.s32.totalorder %s74, %s77
    %p86 = scmp.eq.s32.totalorder %s17, 1
    %p87 = por %p85, %p86
    %p88 = scmp.ne.s32.totalorder %s77, %s78
    %p89 = scmp.eq.s32.totalorder %s17, 0
    %p90 = por %p88, %p89
    %p91 = scmp.ne.s32.totalorder %s77, %s78
    %p92 = scmp.eq.s32.totalorder %s18, 1
    %p93 = por %p91, %p92
    %p95 = scmp.ne.s32.totalorder %s78, %s94
    %p96 = scmp.eq.s32.totalorder %s18, 0
    %p97 = por %p95, %p96
    %s99 = sadd.s32 %s98, 1
    %p102 = scmp.eq.s32.totalorder %s12, 1
    %p103 = scmp.ne.s32.totalorder %s98, %s100
    %p104 = scmp.eq.s32.totalorder %s12, 0
    %p105 = por %p103, %p104
    %p106 = scmp.ne.s32.totalorder %s98, %s100
    %p107 = scmp.eq.s32.totalorder %s17, 1
    %p108 = por %p106, %p107
    %p109 = scmp.ne.s32.totalorder %s100, %s101
    %p110 = scmp.eq.s32.totalorder %s17, 0
    %p111 = por %p109, %p110
    %p112 = scmp.ne.s32.totalorder %s100, %s101
    %p113 = scmp.eq.s32.totalorder %s18, 1
    %p114 = por %p112, %p113
    %p116 = scmp.ne.s32.totalorder %s101, %s115
    %p117 = scmp.eq.s32.totalorder %s18, 0
    %p118 = por %p116, %p117
    %s120 = sadd.s32 %s119, 1
    %p123 = scmp.eq.s32.totalorder %s12, 1
    %p124 = scmp.ne.s32.totalorder %s119, %s121
    %p125 = scmp.eq.s32.totalorder %s12, 0
    %p126 = por %p124, %p125
    %p127 = scmp.ne.s32.totalorder %s119, %s121
    %p128 = scmp.eq.s32.totalorder %s17, 1
    %p129 = por %p127, %p128
    %p130 = scmp.ne.s32.totalorder %s121, %s122
    %p131 = scmp.eq.s32.totalorder %s17, 0
    %p132 = por %p130, %p131
    %p133 = scmp.ne.s32.totalorder %s121, %s122
    %p134 = scmp.eq.s32.totalorder %s18, 1
    %p135 = por %p133, %p134
    %p137 = scmp.ne.s32.totalorder %s122, %s136
    %p138 = scmp.eq.s32.totalorder %s18, 0
    %p139 = por %p137, %p138
    %s141 = sadd.s32 %s140, 1
    %p144 = scmp.eq.s32.totalorder %s12, 1
    %p145 = scmp.ne.s32.totalorder %s140, %s142
    %p146 = scmp.eq.s32.totalorder %s12, 0
    %p147 = por %p145, %p146
    %p148 = scmp.ne.s32.totalorder %s140, %s142
    %p149 = scmp.eq.s32.totalorder %s17, 1
    %p150 = por %p148, %p149
    %p151 = scmp.ne.s32.totalorder %s142, %s143
    %p152 = scmp.eq.s32.totalorder %s17, 0
    %p153 = por %p151, %p152
    %p154 = scmp.ne.s32.totalorder %s142, %s143
    %p155 = scmp.eq.s32.totalorder %s18, 1
    %p156 = por %p154, %p155
    %p158 = scmp.ne.s32.totalorder %s143, %s157
    %p159 = scmp.eq.s32.totalorder %s18, 0
    %p160 = por %p158, %p159
    %s161 = ssub.s32 %s12, %s19
    %p162 = scmp.eq.s32.totalorder %s161, 0
    %s164 = sadd.s32 %s163, 1
    %s165 = scalar_select %p162, %s163, %s164
    %p168 = pneg %p162
    %p169 = scmp.eq.s32.totalorder %s12, 1
    %p170 = por %p168, %p169
    %p171 = scmp.ne.s32.totalorder %s163, %s166
    %p172 = scmp.eq.s32.totalorder %s12, 0
    %p173 = por %p171, %p172
    %p174 = scmp.ne.s32.totalorder %s163, %s166
    %p175 = scmp.eq.s32.totalorder %s17, 1
    %p176 = por %p174, %p175
    %p177 = scmp.ne.s32.totalorder %s166, %s167
    %p178 = scmp.eq.s32.totalorder %s17, 0
    %p179 = por %p177, %p178
    %p180 = scmp.ne.s32.totalorder %s166, %s167
    %p181 = scmp.eq.s32.totalorder %s18, 1
    %p182 = por %p180, %p181
    %p184 = scmp.ne.s32.totalorder %s167, %s183
    %p185 = scmp.eq.s32.totalorder %s18, 0
    %p186 = por %p184, %p185
    %p187 = scmp.le.s32.totalorder 1, %s12
    %p188 = scmp.lt.s32.totalorder %s12, 3
    %p189 = pnand %p187, %p188
    %p190 = pneg %p189
    // Predicated region
    $region9: #{forward.4} parent=5 // pred_check
      _
    $region10: #{forward.4} parent=5 // pred_check_branch
      %192 = sbr.rel (%p189) target = $region12
    $region11: #{forward.4} parent=5 // pred_region
      %s193 = ssub.s32 %s12, 1
      // Predicated region
      $region13: #{forward.4} parent=11 // pred_check
        %p194 = pneg %p111
      $region14: #{forward.4} parent=11 // pred_check_branch
        %196 = sbr.rel (%p194) target = $region16
      $region15: #{forward.4} parent=11 // pred_region
        _
      $region16: #{forward.4} parent=11 // pred_fallthru
        _
      // Predicated region
      $region17: #{forward.4} parent=11 // pred_check
        %p197 = pneg %p132
      $region18: #{forward.4} parent=11 // pred_check_branch
        %199 = sbr.rel (%p197) target = $region20
      $region19: #{forward.4} parent=11 // pred_region
        _
      $region20: #{forward.4} parent=11 // pred_fallthru
        _
      // Predicated region
      $region21: #{forward.4} parent=11 // pred_check
        %p200 = pneg %p153
      $region22: #{forward.4} parent=11 // pred_check_branch
        %202 = sbr.rel (%p200) target = $region24
      $region23: #{forward.4} parent=11 // pred_region
        _
      $region24: #{forward.4} parent=11 // pred_fallthru
        _
    $region12: #{forward.4} parent=5 // pred_fallthru
      _
    %p203 = scmp.lt.s32.totalorder %s12, 2
    // Predicated region
    $region25: #{forward.4} parent=5 // pred_check
      %p204 = pneg %p203
    $region26: #{forward.4} parent=5 // pred_check_branch
      %206 = sbr.rel (%p204) target = $region28
    $region27: #{forward.4} parent=5 // pred_region
      // Predicated region
      $region29: #{forward.4} parent=27 // pred_check
        %p207 = pneg %p32
      $region30: #{forward.4} parent=27 // pred_check_branch
        %209 = sbr.rel (%p207) target = $region32
      $region31: #{forward.4} parent=27 // pred_region
        %s210 = smul.u32 16, %s12
        %p211 = scmp.lt.s32.totalorder %s210, 31
        %s212 = scalar_select %p211, %s210, 31
        %s213 = smul.addr %s212, 4
        %s214 = scalar_lea.vmem %s0, %s213
        %s215 = smul.u32 16, %s12
      $region32: #{forward.4} parent=27 // pred_fallthru
        _
      // Predicated region
      $region33: #{forward.4} parent=27 // pred_check
        %p216 = pneg %p58
      $region34: #{forward.4} parent=27 // pred_check_branch
        %218 = sbr.rel (%p216) target = $region36
      $region35: #{forward.4} parent=27 // pred_region
        %s219 = smul.u32 16, %s12
        %p220 = scmp.lt.s32.totalorder %s219, 31
        %s221 = scalar_select %p220, %s219, 31
        %s222 = smul.addr %s221, 4
        %s223 = scalar_lea.vmem %s1, %s222
        %s224 = smul.u32 16, %s12
      $region36: #{forward.4} parent=27 // pred_fallthru
        _
      // Predicated region
      $region37: #{forward.4} parent=27 // pred_check
        %p225 = pneg %p84
      $region38: #{forward.4} parent=27 // pred_check_branch
        %227 = sbr.rel (%p225) target = $region40
      $region39: #{forward.4} parent=27 // pred_region
        %s228 = smul.u32 16, %s12
        %p229 = scmp.lt.s32.totalorder %s228, 31
        %s230 = scalar_select %p229, %s228, 31
        %s231 = smul.addr %s230, 4
        %s232 = scalar_lea.vmem %s2, %s231
        %s233 = smul.u32 16, %s12
      $region40: #{forward.4} parent=27 // pred_fallthru
        _
    $region28: #{forward.4} parent=5 // pred_fallthru
      _
    %p234 = scmp.le.s32.totalorder 1, %s12
    %p235 = scmp.lt.s32.totalorder %s12, 3
    %p236 = pnand %p234, %p235
    %p237 = pneg %p236
    // Predicated region
    $region41: #{forward.4} parent=5 // pred_check
      _
    $region42: #{forward.4} parent=5 // pred_check_branch
      %239 = sbr.rel (%p236) target = $region44
    $region43: #{forward.4} parent=5 // pred_region
      %s240 = ssub.s32 %s12, 1
      %s241 = smul.u32 16, %s17
      %p242 = scmp.lt.s32.totalorder %s241, 31
      %s243 = scalar_select %p242, %s241, 31
      %s244 = smul.addr %s243, 4
      %s245 = scalar_lea.vmem %s0, %s244
      %p246 = pneg %p38
      %p247 = pneg %p35
      %s248 = smul.u32 16, %s17
      %p249 = scmp.lt.s32.totalorder %s248, 31
      %s250 = scalar_select %p249, %s248, 31
      %s251 = smul.addr %s250, 4
      %s252 = scalar_lea.vmem %s1, %s251
      %p253 = pneg %p64
      %p254 = pneg %p61
      %s255 = smul.u32 16, %s17
      %p256 = scmp.lt.s32.totalorder %s255, 31
      %s257 = scalar_select %p256, %s255, 31
      %s258 = smul.addr %s257, 4
      %s259 = scalar_lea.vmem %s2, %s258
      %p260 = pneg %p90
      %p261 = pneg %p87
      %p262 = pneg %p111
      %p263 = pneg %p108
      %p264 = pneg %p132
      %p265 = pneg %p129
      %p266 = pneg %p153
      %p267 = pneg %p150
      %p268 = pneg %p179
      %p269 = pneg %p176
      %s270 = smul.u32 16, %s17
      %p271 = scmp.lt.s32.totalorder %s270, 31
      %s272 = scalar_select %p271, %s270, 31
      %s273 = smul.addr %s272, 3
      %s274 = smul.addr %s273, 4
      %s275 = scalar_lea.vmem %s6, %s274
      %s276 = smul.u32 16, %s17
      %p277 = scmp.lt.s32.totalorder %s276, 31
      %s278 = scalar_select %p277, %s276, 31
      %s279 = smul.addr %s278, 4
      %s280 = scalar_lea.vmem %s0, %s279
      %s281 = smul.u32 16, %s17
      %s282 = smul.u32 16, %s17
      %p283 = scmp.lt.s32.totalorder %s282, 31
      %s284 = scalar_select %p283, %s282, 31
      %s285 = smul.addr %s284, 4
      %s286 = scalar_lea.vmem %s1, %s285
      %s287 = smul.u32 16, %s17
      %s288 = smul.u32 16, %s17
      %p289 = scmp.lt.s32.totalorder %s288, 31
      %s290 = scalar_select %p289, %s288, 31
      %s291 = smul.addr %s290, 4
      %s292 = scalar_lea.vmem %s2, %s291
      %s293 = smul.u32 16, %s17
      %s294 = smul.u32 16, %s17
      %p295 = scmp.lt.s32.totalorder %s294, 31
      %s296 = scalar_select %p295, %s294, 31
      %s297 = smul.addr %s296, 3
      %s298 = smul.addr %s297, 4
      %s299 = scalar_lea.vmem %s6, %s298
      %s300 = smul.u32 16, %s17
      %v302 = vld [vmem:[%s280] sm:$0xf]
      %v303 = vld [vmem:[%s280 + $0x4] sm:$0xf]
      %v304 = vld [vmem:[%s280 + $0x8] sm:$0xf]
      %v305 = vld [vmem:[%s280 + $0xc] sm:$0xf]
      %v306 = vld [vmem:[%s280 + $0x10] sm:$0xf]
      %v307 = vld [vmem:[%s280 + $0x14] sm:$0xf]
      %v308 = vld [vmem:[%s280 + $0x18] sm:$0xf]
      %v309 = vld [vmem:[%s280 + $0x1c] sm:$0xf]
      %v310 = vld [vmem:[%s280 + $0x20] sm:$0xf]
      %v311 = vld [vmem:[%s280 + $0x24] sm:$0xf]
      %v312 = vld [vmem:[%s280 + $0x28] sm:$0xf]
      %v313 = vld [vmem:[%s280 + $0x2c] sm:$0xf]
      %v314 = vld [vmem:[%s280 + $0x30] sm:$0xf]
      %v315 = vld [vmem:[%s280 + $0x34] sm:$0xf]
      %v316 = vld [vmem:[%s280 + $0x38] sm:$0xf]
      %v317 = vld [vmem:[%s280 + $0x3c] sm:$0xf]
      %v318 = vld [vmem:[%s3] sm:$0xf]
      %v319 = vld [vmem:[%s3 + $0x4] sm:$0xf]
      %v320 = vld [vmem:[%s3 + $0x8] sm:$0xf]
      %v321 = vld [vmem:[%s3 + $0xc] sm:$0xf]
      %v338 = vunpack.c.l.b16 %v302
      %v339 = vunpack.c.l.b16 %v303
      %v340 = vunpack.c.l.b16 %v304
      %v341 = vunpack.c.l.b16 %v305
      %v342 = vunpack.c.l.b16 %v306
      %v343 = vunpack.c.l.b16 %v307
      %v344 = vunpack.c.l.b16 %v308
      %v345 = vunpack.c.l.b16 %v309
      %v346 = vunpack.c.l.b16 %v310
      %v347 = vunpack.c.l.b16 %v311
      %v348 = vunpack.c.l.b16 %v312
      %v349 = vunpack.c.l.b16 %v313
      %v350 = vunpack.c.l.b16 %v314
      %v351 = vunpack.c.l.b16 %v315
      %v352 = vunpack.c.l.b16 %v316
      %v353 = vunpack.c.l.b16 %v317
      %v354 = vpack.c.b16 %v339, %v338
      %v355 = vpack.c.b16 %v341, %v340
      %v356 = vpack.c.b16 %v343, %v342
      %v357 = vpack.c.b16 %v345, %v344
      %v358 = vpack.c.b16 %v347, %v346
      %v359 = vpack.c.b16 %v349, %v348
      %v360 = vpack.c.b16 %v351, %v350
      %v361 = vpack.c.b16 %v353, %v352
      %v366 = vunpack.c.l.b16 %v318
      %v367 = vunpack.c.l.b16 %v319
      %v368 = vunpack.c.l.b16 %v320
      %v369 = vunpack.c.l.b16 %v321
      %v370 = vpack.c.b16 %v367, %v366
      %v371 = vpack.c.b16 %v369, %v368
      %vm374 = vcmask 261120
      %v376 = vsel %vm374, %v354, 0
      %v379 = vsel %vm374, %v355, 0
      %v382 = vsel %vm374, %v356, 0
      %v385 = vsel %vm374, %v357, 0
      %v388 = vsel %vm374, %v358, 0
      %v391 = vsel %vm374, %v359, 0
      %v394 = vsel %vm374, %v360, 0
      %v397 = vsel %vm374, %v361, 0
      %399 = vmatprep.subr.bf16.mxu0 0
      %400 = vmatpush1.bf16.msra.mxu0 %v370
      %401 = vmatprep.subr.bf16.mxu0 0
      %402 = vmatpush1.bf16.msra.mxu0 %v371
      %403 = vmatprep.subr.bf16.mxu0 0
      %404 = vmatpush1.bf16.msra.mxu0 0
      %405 = vmatprep.subr.bf16.mxu0 0
      %406 = vmatpush1.bf16.msra.mxu0 0
      %407 = vmatprep.subr.bf16.mxu0 0
      %408 = vmatpush1.bf16.msra.mxu0 0
      %409 = vmatprep.subr.bf16.mxu0 0
      %410 = vmatpush1.bf16.msra.mxu0 0
      %411 = vmatprep.subr.bf16.mxu0 0
      %412 = vmatpush1.bf16.msra.mxu0 0
      %413 = vmatprep.subr.bf16.mxu0 0
      %414 = vmatpush1.bf16.msra.mxu0 0
      %415 = vmatprep.subr.bf16.mxu0 0
      %416 = vmatpush1.bf16.msra.mxu0 0
      %417 = vmatprep.subr.bf16.mxu0 0
      %418 = vmatpush1.bf16.msra.mxu0 0
      %419 = vmatprep.subr.bf16.mxu0 0
      %420 = vmatpush1.bf16.msra.mxu0 0
      %421 = vmatprep.subr.bf16.mxu0 0
      %422 = vmatpush1.bf16.msra.mxu0 0
      %423 = vmatprep.subr.bf16.mxu0 0
      %424 = vmatpush1.bf16.msra.mxu0 0
      %425 = vmatprep.subr.bf16.mxu0 0
      %426 = vmatpush1.bf16.msra.mxu0 0
      %427 = vmatprep.subr.bf16.mxu0 0
      %428 = vmatpush1.bf16.msra.mxu0 0
      %429 = vmatprep.subr.bf16.mxu0 0
      %430 = vmatpush1.bf16.msra.mxu0 0
      %431 = vmatprep.mubr.bf16.mxu0 0
      %432 = vmatmul.mubr.bf16.gmra.mrb[0].mxu0 %v376
      %v433 = vpop.f32.mrb[0].mxu0
      %v434 = vadd.f32 0.0, %v433
      %v435 = vpop.f32.mrb[0].mxu0
      %v436 = vpop.f32.mrb[0].mxu0
      %v437 = vadd.f32 0.0, %v436
      %v438 = vpop.f32.mrb[0].mxu0
      %439 = vmatprep.mubr.bf16.mxu0 0
      %440 = vmatmul.mubr.bf16.gmra.mrb[0].mxu0 %v379
      %v441 = vpop.f32.mrb[0].mxu0
      %v442 = vadd.f32 0.0, %v441
      %v443 = vpop.f32.mrb[0].mxu0
      %v444 = vpop.f32.mrb[0].mxu0
      %v445 = vadd.f32 0.0, %v444
      %v446 = vpop.f32.mrb[0].mxu0
      %447 = vmatprep.mubr.bf16.mxu0 0
      %448 = vmatmul.mubr.bf16.gmra.mrb[0].mxu0 %v382
      %v449 = vpop.f32.mrb[0].mxu0
      %v450 = vadd.f32 0.0, %v449
      %v451 = vpop.f32.mrb[0].mxu0
      %v452 = vpop.f32.mrb[0].mxu0
      %v453 = vadd.f32 0.0, %v452
      %v454 = vpop.f32.mrb[0].mxu0
      %455 = vmatprep.mubr.bf16.mxu0 0
      %456 = vmatmul.mubr.bf16.gmra.mrb[0].mxu0 %v385
      %v457 = vpop.f32.mrb[0].mxu0
      %v458 = vadd.f32 0.0, %v457
      %v459 = vpop.f32.mrb[0].mxu0
      %v460 = vpop.f32.mrb[0].mxu0
      %v461 = vadd.f32 0.0, %v460
      %v462 = vpop.f32.mrb[0].mxu0
      %463 = vmatprep.mubr.bf16.mxu0 0
      %464 = vmatmul.mubr.bf16.gmra.mrb[0].mxu0 %v388
      %v465 = vpop.f32.mrb[0].mxu0
      %v466 = vadd.f32 0.0, %v465
      %v467 = vpop.f32.mrb[0].mxu0
      %v468 = vpop.f32.mrb[0].mxu0
      %v469 = vadd.f32 0.0, %v468
      %v470 = vpop.f32.mrb[0].mxu0
      %471 = vmatprep.mubr.bf16.mxu0 0
      %472 = vmatmul.mubr.bf16.gmra.mrb[0].mxu0 %v391
      %v473 = vpop.f32.mrb[0].mxu0
      %v474 = vadd.f32 0.0, %v473
      %v475 = vpop.f32.mrb[0].mxu0
      %v476 = vpop.f32.mrb[0].mxu0
      %v477 = vadd.f32 0.0, %v476
      %v478 = vpop.f32.mrb[0].mxu0
      %479 = vmatprep.mubr.bf16.mxu0 0
      %480 = vmatmul.mubr.bf16.gmra.mrb[0].mxu0 %v394
      %v481 = vpop.f32.mrb[0].mxu0
      %v482 = vadd.f32 0.0, %v481
      %v483 = vpop.f32.mrb[0].mxu0
      %v484 = vpop.f32.mrb[0].mxu0
      %v485 = vadd.f32 0.0, %v484
      %v486 = vpop.f32.mrb[0].mxu0
      %487 = vmatprep.mubr.bf16.mxu0 0
      %488 = vmatmul.mubr.bf16.gmra.mrb[0].mxu0 %v397
      %v489 = vpop.f32.mrb[0].mxu0
      %v490 = vadd.f32 0.0, %v489
      %v491 = vpop.f32.mrb[0].mxu0
      %v492 = vpop.f32.mrb[0].mxu0
      %v493 = vadd.f32 0.0, %v492
      %v494 = vpop.f32.mrb[0].mxu0
      %495 = vdwg.mxu0
      %v496 = vpack.c.bf16 %v437, %v434
      %v497 = vpack.c.bf16 %v445, %v442
      %v498 = vpack.c.bf16 %v453, %v450
      %v499 = vpack.c.bf16 %v461, %v458
      %v500 = vpack.c.bf16 %v469, %v466
      %v501 = vpack.c.bf16 %v477, %v474
      %v502 = vpack.c.bf16 %v485, %v482
      %v503 = vpack.c.bf16 %v493, %v490
      %v512 = vunpack.c.l.b16 %v496
      %v513 = vunpack.c.h.b16 %v496
      %v514 = vunpack.c.l.b16 %v497
      %v515 = vunpack.c.h.b16 %v497
      %v516 = vunpack.c.l.b16 %v498
      %v517 = vunpack.c.h.b16 %v498
      %v518 = vunpack.c.l.b16 %v499
      %v519 = vunpack.c.h.b16 %v499
      %v520 = vunpack.c.l.b16 %v500
      %v521 = vunpack.c.h.b16 %v500
      %v522 = vunpack.c.l.b16 %v501
      %v523 = vunpack.c.h.b16 %v501
      %v524 = vunpack.c.l.b16 %v502
      %v525 = vunpack.c.h.b16 %v502
      %v526 = vunpack.c.l.b16 %v503
      %v527 = vunpack.c.h.b16 %v503
      %v528 = vpack.c.b16 %v512, %v512
      %v529 = vpack.c.b16 %v513, %v513
      %v530 = vpack.c.b16 %v514, %v514
      %v531 = vpack.c.b16 %v515, %v515
      %v532 = vpack.c.b16 %v516, %v516
      %v533 = vpack.c.b16 %v517, %v517
      %v534 = vpack.c.b16 %v518, %v518
      %v535 = vpack.c.b16 %v519, %v519
      %v536 = vpack.c.b16 %v520, %v520
      %v537 = vpack.c.b16 %v521, %v521
      %v538 = vpack.c.b16 %v522, %v522
      %v539 = vpack.c.b16 %v523, %v523
      %v540 = vpack.c.b16 %v524, %v524
      %v541 = vpack.c.b16 %v525, %v525
      %v542 = vpack.c.b16 %v526, %v526
      %v543 = vpack.c.b16 %v527, %v527
      %560 = vst [vmem:[%s299] sm:$0xf] %v528
      %561 = vst [vmem:[%s299 + $0xc] sm:$0xf] %v529
      %562 = vst [vmem:[%s299 + $0x18] sm:$0xf] %v530
      %563 = vst [vmem:[%s299 + $0x24] sm:$0xf] %v531
      %564 = vst [vmem:[%s299 + $0x30] sm:$0xf] %v532
      %565 = vst [vmem:[%s299 + $0x3c] sm:$0xf] %v533
      %566 = vst [vmem:[%s299 + $0x48] sm:$0xf] %v534
      %567 = vst [vmem:[%s299 + $0x54] sm:$0xf] %v535
      %568 = vst [vmem:[%s299 + $0x60] sm:$0xf] %v536
      %569 = vst [vmem:[%s299 + $0x6c] sm:$0xf] %v537
      %570 = vst [vmem:[%s299 + $0x78] sm:$0xf] %v538
      %571 = vst [vmem:[%s299 + $0x84] sm:$0xf] %v539
      %572 = vst [vmem:[%s299 + $0x90] sm:$0xf] %v540
      %573 = vst [vmem:[%s299 + $0x9c] sm:$0xf] %v541
      %574 = vst [vmem:[%s299 + $0xa8] sm:$0xf] %v542
      %575 = vst [vmem:[%s299 + $0xb4] sm:$0xf] %v543
      %v576 = vld [vmem:[%s286] sm:$0xf]
      %v577 = vld [vmem:[%s286 + $0x4] sm:$0xf]
      %v578 = vld [vmem:[%s286 + $0x8] sm:$0xf]
      %v579 = vld [vmem:[%s286 + $0xc] sm:$0xf]
      %v580 = vld [vmem:[%s286 + $0x10] sm:$0xf]
      %v581 = vld [vmem:[%s286 + $0x14] sm:$0xf]
      %v582 = vld [vmem:[%s286 + $0x18] sm:$0xf]
      %v583 = vld [vmem:[%s286 + $0x1c] sm:$0xf]
      %v584 = vld [vmem:[%s286 + $0x20] sm:$0xf]
      %v585 = vld [vmem:[%s286 + $0x24] sm:$0xf]
      %v586 = vld [vmem:[%s286 + $0x28] sm:$0xf]
      %v587 = vld [vmem:[%s286 + $0x2c] sm:$0xf]
      %v588 = vld [vmem:[%s286 + $0x30] sm:$0xf]
      %v589 = vld [vmem:[%s286 + $0x34] sm:$0xf]
      %v590 = vld [vmem:[%s286 + $0x38] sm:$0xf]
      %v591 = vld [vmem:[%s286 + $0x3c] sm:$0xf]
      %v592 = vld [vmem:[%s4] sm:$0xf]
      %v593 = vld [vmem:[%s4 + $0x4] sm:$0xf]
      %v594 = vld [vmem:[%s4 + $0x8] sm:$0xf]
      %v595 = vld [vmem:[%s4 + $0xc] sm:$0xf]
      %v612 = vunpack.c.l.b16 %v576
      %v613 = vunpack.c.l.b16 %v577
      %v614 = vunpack.c.l.b16 %v578
      %v615 = vunpack.c.l.b16 %v579
      %v616 = vunpack.c.l.b16 %v580
      %v617 = vunpack.c.l.b16 %v581
      %v618 = vunpack.c.l.b16 %v582
      %v619 = vunpack.c.l.b16 %v583
      %v620 = vunpack.c.l.b16 %v584
      %v621 = vunpack.c.l.b16 %v585
      %v622 = vunpack.c.l.b16 %v586
      %v623 = vunpack.c.l.b16 %v587
      %v624 = vunpack.c.l.b16 %v588
      %v625 = vunpack.c.l.b16 %v589
      %v626 = vunpack.c.l.b16 %v590
      %v627 = vunpack.c.l.b16 %v591
      %v628 = vpack.c.b16 %v613, %v612
      %v629 = vpack.c.b16 %v615, %v614
      %v630 = vpack.c.b16 %v617, %v616
      %v631 = vpack.c.b16 %v619, %v618
      %v632 = vpack.c.b16 %v621, %v620
      %v633 = vpack.c.b16 %v623, %v622
      %v634 = vpack.c.b16 %v625, %v624
      %v635 = vpack.c.b16 %v627, %v626
      %v640 = vunpack.c.l.b16 %v592
      %v641 = vunpack.c.l.b16 %v593
      %v642 = vunpack.c.l.b16 %v594
      %v643 = vunpack.c.l.b16 %v595
      %v644 = vpack.c.b16 %v641, %v640
      %v645 = vpack.c.b16 %v643, %v642
      %v649 = vsel %vm374, %v628, 0
      %v652 = vsel %vm374, %v629, 0
      %v655 = vsel %vm374, %v630, 0
      %v658 = vsel %vm374, %v631, 0
      %v661 = vsel %vm374, %v632, 0
      %v664 = vsel %vm374, %v633, 0
      %v667 = vsel %vm374, %v634, 0
      %v670 = vsel %vm374, %v635, 0
      %672 = vmatprep.subr.bf16.mxu0 0
      %673 = vmatpush1.bf16.msra.mxu0 %v644
      %674 = vmatprep.subr.bf16.mxu0 0
      %675 = vmatpush1.bf16.msra.mxu0 %v645
      %676 = vmatprep.subr.bf16.mxu0 0
      %677 = vmatpush1.bf16.msra.mxu0 0
      %678 = vmatprep.subr.bf16.mxu0 0
      %679 = vmatpush1.bf16.msra.mxu0 0
      %680 = vmatprep.subr.bf16.mxu0 0
      %681 = vmatpush1.bf16.msra.mxu0 0
      %682 = vmatprep.subr.bf16.mxu0 0
      %683 = vmatpush1.bf16.msra.mxu0 0
      %684 = vmatprep.subr.bf16.mxu0 0
      %685 = vmatpush1.bf16.msra.mxu0 0
      %686 = vmatprep.subr.bf16.mxu0 0
      %687 = vmatpush1.bf16.msra.mxu0 0
      %688 = vmatprep.subr.bf16.mxu0 0
      %689 = vmatpush1.bf16.msra.mxu0 0
      %690 = vmatprep.subr.bf16.mxu0 0
      %691 = vmatpush1.bf16.msra.mxu0 0
      %692 = vmatprep.subr.bf16.mxu0 0
      %693 = vmatpush1.bf16.msra.mxu0 0
      %694 = vmatprep.subr.bf16.mxu0 0
      %695 = vmatpush1.bf16.msra.mxu0 0
      %696 = vmatprep.subr.bf16.mxu0 0
      %697 = vmatpush1.bf16.msra.mxu0 0
      %698 = vmatprep.subr.bf16.mxu0 0
      %699 = vmatpush1.bf16.msra.mxu0 0
      %700 = vmatprep.subr.bf16.mxu0 0
      %701 = vmatpush1.bf16.msra.mxu0 0
      %702 = vmatprep.subr.bf16.mxu0 0
      %703 = vmatpush1.bf16.msra.mxu0 0
      %704 = vmatprep.mubr.bf16.mxu0 0
      %705 = vmatmul.mubr.bf16.gmra.mrb[0].mxu0 %v649
      %v706 = vpop.f32.mrb[0].mxu0
      %v707 = vadd.f32 0.0, %v706
      %v708 = vpop.f32.mrb[0].mxu0
      %v709 = vpop.f32.mrb[0].mxu0
      %v710 = vadd.f32 0.0, %v709
      %v711 = vpop.f32.mrb[0].mxu0
      %712 = vmatprep.mubr.bf16.mxu0 0
      %713 = vmatmul.mubr.bf16.gmra.mrb[0].mxu0 %v652
      %v714 = vpop.f32.mrb[0].mxu0
      %v715 = vadd.f32 0.0, %v714
      %v716 = vpop.f32.mrb[0].mxu0
      %v717 = vpop.f32.mrb[0].mxu0
      %v718 = vadd.f32 0.0, %v717
      %v719 = vpop.f32.mrb[0].mxu0
      %720 = vmatprep.mubr.bf16.mxu0 0
      %721 = vmatmul.mubr.bf16.gmra.mrb[0].mxu0 %v655
      %v722 = vpop.f32.mrb[0].mxu0
      %v723 = vadd.f32 0.0, %v722
      %v724 = vpop.f32.mrb[0].mxu0
      %v725 = vpop.f32.mrb[0].mxu0
      %v726 = vadd.f32 0.0, %v725
      %v727 = vpop.f32.mrb[0].mxu0
      %728 = vmatprep.mubr.bf16.mxu0 0
      %729 = vmatmul.mubr.bf16.gmra.mrb[0].mxu0 %v658
      %v730 = vpop.f32.mrb[0].mxu0
      %v731 = vadd.f32 0.0, %v730
      %v732 = vpop.f32.mrb[0].mxu0
      %v733 = vpop.f32.mrb[0].mxu0
      %v734 = vadd.f32 0.0, %v733
      %v735 = vpop.f32.mrb[0].mxu0
      %736 = vmatprep.mubr.bf16.mxu0 0
      %737 = vmatmul.mubr.bf16.gmra.mrb[0].mxu0 %v661
      %v738 = vpop.f32.mrb[0].mxu0
      %v739 = vadd.f32 0.0, %v738
      %v740 = vpop.f32.mrb[0].mxu0
      %v741 = vpop.f32.mrb[0].mxu0
      %v742 = vadd.f32 0.0, %v741
      %v743 = vpop.f32.mrb[0].mxu0
      %744 = vmatprep.mubr.bf16.mxu0 0
      %745 = vmatmul.mubr.bf16.gmra.mrb[0].mxu0 %v664
      %v746 = vpop.f32.mrb[0].mxu0
      %v747 = vadd.f32 0.0, %v746
      %v748 = vpop.f32.mrb[0].mxu0
      %v749 = vpop.f32.mrb[0].mxu0
      %v750 = vadd.f32 0.0, %v749
      %v751 = vpop.f32.mrb[0].mxu0
      %752 = vmatprep.mubr.bf16.mxu0 0
      %753 = vmatmul.mubr.bf16.gmra.mrb[0].mxu0 %v667
      %v754 = vpop.f32.mrb[0].mxu0
      %v755 = vadd.f32 0.0, %v754
      %v756 = vpop.f32.mrb[0].mxu0
      %v757 = vpop.f32.mrb[0].mxu0
      %v758 = vadd.f32 0.0, %v757
      %v759 = vpop.f32.mrb[0].mxu0
      %760 = vmatprep.mubr.bf16.mxu0 0
      %761 = vmatmul.mubr.bf16.gmra.mrb[0].mxu0 %v670
      %v762 = vpop.f32.mrb[0].mxu0
      %v763 = vadd.f32 0.0, %v762
      %v764 = vpop.f32.mrb[0].mxu0
      %v765 = vpop.f32.mrb[0].mxu0
      %v766 = vadd.f32 0.0, %v765
      %v767 = vpop.f32.mrb[0].mxu0
      %768 = vdwg.mxu0
      %v769 = vpack.c.bf16 %v710, %v707
      %v770 = vpack.c.bf16 %v718, %v715
      %v771 = vpack.c.bf16 %v726, %v723
      %v772 = vpack.c.bf16 %v734, %v731
      %v773 = vpack.c.bf16 %v742, %v739
      %v774 = vpack.c.bf16 %v750, %v747
      %v775 = vpack.c.bf16 %v758, %v755
      %v776 = vpack.c.bf16 %v766, %v763
      %v785 = vunpack.c.l.b16 %v769
      %v786 = vunpack.c.h.b16 %v769
      %v787 = vunpack.c.l.b16 %v770
      %v788 = vunpack.c.h.b16 %v770
      %v789 = vunpack.c.l.b16 %v771
      %v790 = vunpack.c.h.b16 %v771
      %v791 = vunpack.c.l.b16 %v772
      %v792 = vunpack.c.h.b16 %v772
      %v793 = vunpack.c.l.b16 %v773
      %v794 = vunpack.c.h.b16 %v773
      %v795 = vunpack.c.l.b16 %v774
      %v796 = vunpack.c.h.b16 %v774
      %v797 = vunpack.c.l.b16 %v775
      %v798 = vunpack.c.h.b16 %v775
      %v799 = vunpack.c.l.b16 %v776
      %v800 = vunpack.c.h.b16 %v776
      %v801 = vpack.c.b16 %v785, %v785
      %v802 = vpack.c.b16 %v786, %v786
      %v803 = vpack.c.b16 %v787, %v787
      %v804 = vpack.c.b16 %v788, %v788
      %v805 = vpack.c.b16 %v789, %v789
      %v806 = vpack.c.b16 %v790, %v790
      %v807 = vpack.c.b16 %v791, %v791
      %v808 = vpack.c.b16 %v792, %v792
      %v809 = vpack.c.b16 %v793, %v793
      %v810 = vpack.c.b16 %v794, %v794
      %v811 = vpack.c.b16 %v795, %v795
      %v812 = vpack.c.b16 %v796, %v796
      %v813 = vpack.c.b16 %v797, %v797
      %v814 = vpack.c.b16 %v798, %v798
      %v815 = vpack.c.b16 %v799, %v799
      %v816 = vpack.c.b16 %v800, %v800
      %833 = vst [vmem:[%s299 + $0x4] sm:$0xf] %v801
      %834 = vst [vmem:[%s299 + $0x10] sm:$0xf] %v802
      %835 = vst [vmem:[%s299 + $0x1c] sm:$0xf] %v803
      %836 = vst [vmem:[%s299 + $0x28] sm:$0xf] %v804
      %837 = vst [vmem:[%s299 + $0x34] sm:$0xf] %v805
      %838 = vst [vmem:[%s299 + $0x40] sm:$0xf] %v806
      %839 = vst [vmem:[%s299 + $0x4c] sm:$0xf] %v807
      %840 = vst [vmem:[%s299 + $0x58] sm:$0xf] %v808
      %841 = vst [vmem:[%s299 + $0x64] sm:$0xf] %v809
      %842 = vst [vmem:[%s299 + $0x70] sm:$0xf] %v810
      %843 = vst [vmem:[%s299 + $0x7c] sm:$0xf] %v811
      %844 = vst [vmem:[%s299 + $0x88] sm:$0xf] %v812
      %845 = vst [vmem:[%s299 + $0x94] sm:$0xf] %v813
      %846 = vst [vmem:[%s299 + $0xa0] sm:$0xf] %v814
      %847 = vst [vmem:[%s299 + $0xac] sm:$0xf] %v815
      %848 = vst [vmem:[%s299 + $0xb8] sm:$0xf] %v816
      %v849 = vld [vmem:[%s292] sm:$0xf]
      %v850 = vld [vmem:[%s292 + $0x4] sm:$0xf]
      %v851 = vld [vmem:[%s292 + $0x8] sm:$0xf]
      %v852 = vld [vmem:[%s292 + $0xc] sm:$0xf]
      %v853 = vld [vmem:[%s292 + $0x10] sm:$0xf]
      %v854 = vld [vmem:[%s292 + $0x14] sm:$0xf]
      %v855 = vld [vmem:[%s292 + $0x18] sm:$0xf]
      %v856 = vld [vmem:[%s292 + $0x1c] sm:$0xf]
      %v857 = vld [vmem:[%s292 + $0x20] sm:$0xf]
      %v858 = vld [vmem:[%s292 + $0x24] sm:$0xf]
      %v859 = vld [vmem:[%s292 + $0x28] sm:$0xf]
      %v860 = vld [vmem:[%s292 + $0x2c] sm:$0xf]
      %v861 = vld [vmem:[%s292 + $0x30] sm:$0xf]
      %v862 = vld [vmem:[%s292 + $0x34] sm:$0xf]
      %v863 = vld [vmem:[%s292 + $0x38] sm:$0xf]
      %v864 = vld [vmem:[%s292 + $0x3c] sm:$0xf]
      %v865 = vld [vmem:[%s5] sm:$0xf]
      %v866 = vld [vmem:[%s5 + $0x4] sm:$0xf]
      %v867 = vld [vmem:[%s5 + $0x8] sm:$0xf]
      %v868 = vld [vmem:[%s5 + $0xc] sm:$0xf]
      %v885 = vunpack.c.l.b16 %v849
      %v886 = vunpack.c.l.b16 %v850
      %v887 = vunpack.c.l.b16 %v851
      %v888 = vunpack.c.l.b16 %v852
      %v889 = vunpack.c.l.b16 %v853
      %v890 = vunpack.c.l.b16 %v854
      %v891 = vunpack.c.l.b16 %v855
      %v892 = vunpack.c.l.b16 %v856
      %v893 = vunpack.c.l.b16 %v857
      %v894 = vunpack.c.l.b16 %v858
      %v895 = vunpack.c.l.b16 %v859
      %v896 = vunpack.c.l.b16 %v860
      %v897 = vunpack.c.l.b16 %v861
      %v898 = vunpack.c.l.b16 %v862
      %v899 = vunpack.c.l.b16 %v863
      %v900 = vunpack.c.l.b16 %v864
      %v901 = vpack.c.b16 %v886, %v885
      %v902 = vpack.c.b16 %v888, %v887
      %v903 = vpack.c.b16 %v890, %v889
      %v904 = vpack.c.b16 %v892, %v891
      %v905 = vpack.c.b16 %v894, %v893
      %v906 = vpack.c.b16 %v896, %v895
      %v907 = vpack.c.b16 %v898, %v897
      %v908 = vpack.c.b16 %v900, %v899
      %v913 = vunpack.c.l.b16 %v865
      %v914 = vunpack.c.l.b16 %v866
      %v915 = vunpack.c.l.b16 %v867
      %v916 = vunpack.c.l.b16 %v868
      %v917 = vpack.c.b16 %v914, %v913
      %v918 = vpack.c.b16 %v916, %v915
      %v922 = vsel %vm374, %v901, 0
      %v925 = vsel %vm374, %v902, 0
      %v928 = vsel %vm374, %v903, 0
      %v931 = vsel %vm374, %v904, 0
      %v934 = vsel %vm374, %v905, 0
      %v937 = vsel %vm374, %v906, 0
      %v940 = vsel %vm374, %v907, 0
      %v943 = vsel %vm374, %v908, 0
      %945 = vmatprep.subr.bf16.mxu0 0
      %946 = vmatpush1.bf16.msra.mxu0 %v917
      %947 = vmatprep.subr.bf16.mxu0 0
      %948 = vmatpush1.bf16.msra.mxu0 %v918
      %949 = vmatprep.subr.bf16.mxu0 0
      %950 = vmatpush1.bf16.msra.mxu0 0
      %951 = vmatprep.subr.bf16.mxu0 0
      %952 = vmatpush1.bf16.msra.mxu0 0
      %953 = vmatprep.subr.bf16.mxu0 0
      %954 = vmatpush1.bf16.msra.mxu0 0
      %955 = vmatprep.subr.bf16.mxu0 0
      %956 = vmatpush1.bf16.msra.mxu0 0
      %957 = vmatprep.subr.bf16.mxu0 0
      %958 = vmatpush1.bf16.msra.mxu0 0
      %959 = vmatprep.subr.bf16.mxu0 0
      %960 = vmatpush1.bf16.msra.mxu0 0
      %961 = vmatprep.subr.bf16.mxu0 0
      %962 = vmatpush1.bf16.msra.mxu0 0
      %963 = vmatprep.subr.bf16.mxu0 0
      %964 = vmatpush1.bf16.msra.mxu0 0
      %965 = vmatprep.subr.bf16.mxu0 0
      %966 = vmatpush1.bf16.msra.mxu0 0
      %967 = vmatprep.subr.bf16.mxu0 0
      %968 = vmatpush1.bf16.msra.mxu0 0
      %969 = vmatprep.subr.bf16.mxu0 0
      %970 = vmatpush1.bf16.msra.mxu0 0
      %971 = vmatprep.subr.bf16.mxu0 0
      %972 = vmatpush1.bf16.msra.mxu0 0
      %973 = vmatprep.subr.bf16.mxu0 0
      %974 = vmatpush1.bf16.msra.mxu0 0
      %975 = vmatprep.subr.bf16.mxu0 0
      %976 = vmatpush1.bf16.msra.mxu0 0
      %977 = vmatprep.mubr.bf16.mxu0 0
      %978 = vmatmul.mubr.bf16.gmra.mrb[0].mxu0 %v922
      %v979 = vpop.f32.mrb[0].mxu0
      %v980 = vadd.f32 0.0, %v979
      %v981 = vpop.f32.mrb[0].mxu0
      %v982 = vpop.f32.mrb[0].mxu0
      %v983 = vadd.f32 0.0, %v982
      %v984 = vpop.f32.mrb[0].mxu0
      %985 = vmatprep.mubr.bf16.mxu0 0
      %986 = vmatmul.mubr.bf16.gmra.mrb[0].mxu0 %v925
      %v987 = vpop.f32.mrb[0].mxu0
      %v988 = vadd.f32 0.0, %v987
      %v989 = vpop.f32.mrb[0].mxu0
      %v990 = vpop.f32.mrb[0].mxu0
      %v991 = vadd.f32 0.0, %v990
      %v992 = vpop.f32.mrb[0].mxu0
      %993 = vmatprep.mubr.bf16.mxu0 0
      %994 = vmatmul.mubr.bf16.gmra.mrb[0].mxu0 %v928
      %v995 = vpop.f32.mrb[0].mxu0
      %v996 = vadd.f32 0.0, %v995
      %v997 = vpop.f32.mrb[0].mxu0
      %v998 = vpop.f32.mrb[0].mxu0
      %v999 = vadd.f32 0.0, %v998
      %v1000 = vpop.f32.mrb[0].mxu0
      %1001 = vmatprep.mubr.bf16.mxu0 0
      %1002 = vmatmul.mubr.bf16.gmra.mrb[0].mxu0 %v931
      %v1003 = vpop.f32.mrb[0].mxu0
      %v1004 = vadd.f32 0.0, %v1003
      %v1005 = vpop.f32.mrb[0].mxu0
      %v1006 = vpop.f32.mrb[0].mxu0
      %v1007 = vadd.f32 0.0, %v1006
      %v1008 = vpop.f32.mrb[0].mxu0
      %1009 = vmatprep.mubr.bf16.mxu0 0
      %1010 = vmatmul.mubr.bf16.gmra.mrb[0].mxu0 %v934
      %v1011 = vpop.f32.mrb[0].mxu0
      %v1012 = vadd.f32 0.0, %v1011
      %v1013 = vpop.f32.mrb[0].mxu0
      %v1014 = vpop.f32.mrb[0].mxu0
      %v1015 = vadd.f32 0.0, %v1014
      %v1016 = vpop.f32.mrb[0].mxu0
      %1017 = vmatprep.mubr.bf16.mxu0 0
      %1018 = vmatmul.mubr.bf16.gmra.mrb[0].mxu0 %v937
      %v1019 = vpop.f32.mrb[0].mxu0
      %v1020 = vadd.f32 0.0, %v1019
      %v1021 = vpop.f32.mrb[0].mxu0
      %v1022 = vpop.f32.mrb[0].mxu0
      %v1023 = vadd.f32 0.0, %v1022
      %v1024 = vpop.f32.mrb[0].mxu0
      %1025 = vmatprep.mubr.bf16.mxu0 0
      %1026 = vmatmul.mubr.bf16.gmra.mrb[0].mxu0 %v940
      %v1027 = vpop.f32.mrb[0].mxu0
      %v1028 = vadd.f32 0.0, %v1027
      %v1029 = vpop.f32.mrb[0].mxu0
      %v1030 = vpop.f32.mrb[0].mxu0
      %v1031 = vadd.f32 0.0, %v1030
      %v1032 = vpop.f32.mrb[0].mxu0
      %1033 = vmatprep.mubr.bf16.mxu0 0
      %1034 = vmatmul.mubr.bf16.gmra.mrb[0].mxu0 %v943
      %v1035 = vpop.f32.mrb[0].mxu0
      %v1036 = vadd.f32 0.0, %v1035
      %v1037 = vpop.f32.mrb[0].mxu0
      %v1038 = vpop.f32.mrb[0].mxu0
      %v1039 = vadd.f32 0.0, %v1038
      %v1040 = vpop.f32.mrb[0].mxu0
      %1041 = vdwg.mxu0
      %v1042 = vpack.c.bf16 %v983, %v980
      %v1043 = vpack.c.bf16 %v991, %v988
      %v1044 = vpack.c.bf16 %v999, %v996
      %v1045 = vpack.c.bf16 %v1007, %v1004
      %v1046 = vpack.c.bf16 %v1015, %v1012
      %v1047 = vpack.c.bf16 %v1023, %v1020
      %v1048 = vpack.c.bf16 %v1031, %v1028
      %v1049 = vpack.c.bf16 %v1039, %v1036
      %v1058 = vunpack.c.l.b16 %v1042
      %v1059 = vunpack.c.h.b16 %v1042
      %v1060 = vunpack.c.l.b16 %v1043
      %v1061 = vunpack.c.h.b16 %v1043
      %v1062 = vunpack.c.l.b16 %v1044
      %v1063 = vunpack.c.h.b16 %v1044
      %v1064 = vunpack.c.l.b16 %v1045
      %v1065 = vunpack.c.h.b16 %v1045
      %v1066 = vunpack.c.l.b16 %v1046
      %v1067 = vunpack.c.h.b16 %v1046
      %v1068 = vunpack.c.l.b16 %v1047
      %v1069 = vunpack.c.h.b16 %v1047
      %v1070 = vunpack.c.l.b16 %v1048
      %v1071 = vunpack.c.h.b16 %v1048
      %v1072 = vunpack.c.l.b16 %v1049
      %v1073 = vunpack.c.h.b16 %v1049
      %v1074 = vpack.c.b16 %v1058, %v1058
      %v1075 = vpack.c.b16 %v1059, %v1059
      %v1076 = vpack.c.b16 %v1060, %v1060
      %v1077 = vpack.c.b16 %v1061, %v1061
      %v1078 = vpack.c.b16 %v1062, %v1062
      %v1079 = vpack.c.b16 %v1063, %v1063
      %v1080 = vpack.c.b16 %v1064, %v1064
      %v1081 = vpack.c.b16 %v1065, %v1065
      %v1082 = vpack.c.b16 %v1066, %v1066
      %v1083 = vpack.c.b16 %v1067, %v1067
      %v1084 = vpack.c.b16 %v1068, %v1068
      %v1085 = vpack.c.b16 %v1069, %v1069
      %v1086 = vpack.c.b16 %v1070, %v1070
      %v1087 = vpack.c.b16 %v1071, %v1071
      %v1088 = vpack.c.b16 %v1072, %v1072
      %v1089 = vpack.c.b16 %v1073, %v1073
      %1106 = vst [vmem:[%s299 + $0x8] sm:$0xf] %v1074
      %1107 = vst [vmem:[%s299 + $0x14] sm:$0xf] %v1075
      %1108 = vst [vmem:[%s299 + $0x20] sm:$0xf] %v1076
      %1109 = vst [vmem:[%s299 + $0x2c] sm:$0xf] %v1077
      %1110 = vst [vmem:[%s299 + $0x38] sm:$0xf] %v1078
      %1111 = vst [vmem:[%s299 + $0x44] sm:$0xf] %v1079
      %1112 = vst [vmem:[%s299 + $0x50] sm:$0xf] %v1080
      %1113 = vst [vmem:[%s299 + $0x5c] sm:$0xf] %v1081
      %1114 = vst [vmem:[%s299 + $0x68] sm:$0xf] %v1082
      %1115 = vst [vmem:[%s299 + $0x74] sm:$0xf] %v1083
      %1116 = vst [vmem:[%s299 + $0x80] sm:$0xf] %v1084
      %1117 = vst [vmem:[%s299 + $0x8c] sm:$0xf] %v1085
      %1118 = vst [vmem:[%s299 + $0x98] sm:$0xf] %v1086
      %1119 = vst [vmem:[%s299 + $0xa4] sm:$0xf] %v1087
      %1120 = vst [vmem:[%s299 + $0xb0] sm:$0xf] %v1088
      %1121 = vst [vmem:[%s299 + $0xbc] sm:$0xf] %v1089
      %s1122 = smul.u32 16, %s17
      %p1123 = scmp.lt.s32.totalorder %s1122, 31
      %s1124 = scalar_select %p1123, %s1122, 31
      %s1125 = smul.addr %s1124, 3
      %s1126 = smul.addr %s1125, 4
      %s1127 = scalar_lea.vmem %s6, %s1126
      // Predicated region
      $region45: #{forward.4} parent=43 // pred_check
        %p1128 = pneg %p176
      $region46: #{forward.4} parent=43 // pred_check_branch
        %1130 = sbr.rel (%p1128) target = $region48
      $region47: #{forward.4} parent=43 // pred_region
        %s1131 = smul.u32 16, %s17
      $region48: #{forward.4} parent=43 // pred_fallthru
        _
    $region44: #{forward.4} parent=5 // pred_fallthru
      _
    %p1132 = scmp.le.s32.totalorder 2, %s12
    // Predicated region
    $region49: #{forward.4} parent=5 // pred_check
      %p1133 = pneg %p1132
    $region50: #{forward.4} parent=5 // pred_check_branch
      %1135 = sbr.rel (%p1133) target = $region52
    $region51: #{forward.4} parent=5 // pred_region
      %s1136 = ssub.s32 %s12, 2
      // Predicated region
      $region53: #{forward.4} parent=51 // pred_check
        %p1137 = pneg %p182
      $region54: #{forward.4} parent=51 // pred_check_branch
        %1139 = sbr.rel (%p1137) target = $region56
      $region55: #{forward.4} parent=51 // pred_region
        %s1140 = smul.u32 16, %s18
        %p1141 = scmp.lt.s32.totalorder %s1140, 31
        %s1142 = scalar_select %p1141, %s1140, 31
        %s1143 = smul.addr %s1142, 3
        %s1144 = smul.addr %s1143, 4
        %s1145 = scalar_lea.vmem %s6, %s1144
      $region56: #{forward.4} parent=51 // pred_fallthru
        _
    $region52: #{forward.4} parent=5 // pred_fallthru
      _
  $region6: #{forward.4} parent=0 // loop_footer
    %s16 = sadd.s32 1, %s12
  $region7: #{forward.4} parent=0 // loop_footer_branch
    %11 = sbr.rel target = $region3
  $region8: #{forward.4} parent=0 // loop_exit
    _

// kernel: forward.5
$region0: #{forward.5}
  #allocation0 [shape = 'u32[]', space=smem, size = 0x4, offset = 0x4, fixed_abs, tag = 'smem constant byte address 0x4 - core index']
  #allocation1 [shape = 'u32[144,128]{1,0:T(1,128)}', space=vmem, size = 0x12000, scoped, tag = 'internal scratch']
  #allocation2 [shape = 'f32[128,128]{1,0:T(8,128)}', space=vmem, size = 0x10000, scoped, tag = 'scratch operand']
  #allocation3 [shape = 'f32[128,128]{1,0:T(8,128)}', space=vmem, size = 0x10000, scoped, tag = 'scratch operand']
  #allocation4 [shape = 'f32[128,128]{1,0:T(8,128)}', space=vmem, size = 0x10000, scoped, tag = 'scratch operand']
  %s0 = inlined_call_operand.vmem [shape: bf16[256,384], index: 0, kind: input, shape index: {}]
  %s1 = inlined_call_operand.vmem [shape: bf16[256,256], index: 1, kind: input, shape index: {}]
  %s2 = inlined_call_operand.vmem [shape: bf16[256,256], index: 2, kind: input, shape index: {}]
  %s3 = inlined_call_operand.vmem [shape: bf16[256,256], index: 3, kind: input, shape index: {}]
  %s4 = inlined_call_operand.vmem [shape: bf16[256,128], index: 4, kind: output, shape index: {}]
  %s5 = sld [smem:[#allocation0]]
  $region180: #{forward.5} parent=0
    _
  %s7 = ssub.s32 1, %s5
  %s8 = scalar_select 0, %s7, %s5
  $region1: #{forward.5} parent=0
    #allocation5 [shape = 'u8[65536]{0}', space=vmem, size = 0x10000, scoped, tag = 'input window, operand 1']
    #allocation6 [shape = 'u8[65536]{0}', space=vmem, size = 0x10000, scoped, tag = 'input window, operand 2']
    #allocation7 [shape = 'u8[65536]{0}', space=vmem, size = 0x10000, scoped, tag = 'input window, operand 3']
    loop: start=0, step=1, limit=6
    $region2: #{forward.5} parent=1 // loop_pre_header
      _
    $region3: #{forward.5} parent=1 // loop_header
      %s10 = sphi 0, %s14
      %p11 = scmp.ge.s32.totalorder %s10, 6
      %s17 = sphi 0, %s29
      %s18 = sphi 0, %s25
      %s19 = sphi 0, %s17
      %s20 = sphi 0, %s18
      %s21 = sphi 0, %s19
      %s22 = sphi 0, %s20
      %s30 = sphi 0, %s30
      %s32 = sphi 0, %s30
      %s33 = sphi 0, %s32
      %s47 = sphi 0, %s33
      %s55 = sphi 0, %s57
      %s58 = sphi 0, %s55
      %s59 = sphi 0, %s58
      %s75 = sphi 0, %s59
      %s83 = sphi 0, %s85
      %s86 = sphi 0, %s83
      %s87 = sphi 0, %s86
      %s103 = sphi 0, %s87
      %s111 = sphi 0, %s113
      %s114 = sphi 0, %s111
      %s115 = sphi 0, %s114
      %s131 = sphi 0, %s115
      %s137 = sphi 0, %s139
      %s140 = sphi 0, %s137
      %s141 = sphi 0, %s140
      %s157 = sphi 0, %s141
    $region4: #{forward.5} parent=1 // loop_header_branch
      %13 = sbr.rel (%p11) target = $region8
    $region5: #{forward.5} parent=1 // loop_body
      %s15 = ssub.s32 %s10, 1
      %s16 = ssub.s32 %s10, 2
      %s23 = sadd.s32 1, %s18
      %p24 = scmp.ge.s32.totalorder %s23, 2
      %s25 = scalar_select %p24, 0, %s23
      %s26 = sadd.s32 1, %s17
      %s27 = scalar_select %p24, %s26, %s17
      %p28 = scmp.ge.s32.totalorder %s27, 2
      %s29 = scalar_select %p28, 0, %s27
      %s31 = sadd.s32 %s30, 1
      %p34 = scmp.eq.s32.totalorder %s10, 3
      %p35 = scmp.ne.s32.totalorder %s30, %s32
      %p36 = scmp.eq.s32.totalorder %s10, 0
      %p37 = por %p35, %p36
      %p38 = scmp.ne.s32.totalorder %s30, %s32
      %p39 = scmp.eq.s32.totalorder %s15, 3
      %p40 = por %p38, %p39
      %p41 = scmp.ne.s32.totalorder %s32, %s33
      %p42 = scmp.eq.s32.totalorder %s15, 0
      %p43 = por %p41, %p42
      %p44 = scmp.ne.s32.totalorder %s32, %s33
      %p45 = scmp.eq.s32.totalorder %s16, 3
      %p46 = por %p44, %p45
      %p48 = scmp.ne.s32.totalorder %s33, %s47
      %p49 = scmp.eq.s32.totalorder %s16, 0
      %p50 = por %p48, %p49
      %s51 = ssub.s32 %s17, %s29
      %s52 = ssub.s32 %s18, %s25
      %s53 = sor.u32 %s51, %s52
      %p54 = scmp.eq.s32.totalorder %s53, 0
      %s56 = sadd.s32 %s55, 1
      %s57 = scalar_select %p54, %s55, %s56
      %p60 = pneg %p54
      %p61 = scmp.eq.s32.totalorder %s10, 3
      %p62 = por %p60, %p61
      %p63 = scmp.ne.s32.totalorder %s55, %s58
      %p64 = scmp.eq.s32.totalorder %s10, 0
      %p65 = por %p63, %p64
      %p66 = scmp.ne.s32.totalorder %s55, %s58
      %p67 = scmp.eq.s32.totalorder %s15, 3
      %p68 = por %p66, %p67
      %p69 = scmp.ne.s32.totalorder %s58, %s59
      %p70 = scmp.eq.s32.totalorder %s15, 0
      %p71 = por %p69, %p70
      %p72 = scmp.ne.s32.totalorder %s58, %s59
      %p73 = scmp.eq.s32.totalorder %s16, 3
      %p74 = por %p72, %p73
      %p76 = scmp.ne.s32.totalorder %s59, %s75
      %p77 = scmp.eq.s32.totalorder %s16, 0
      %p78 = por %p76, %p77
      %s79 = ssub.s32 %s17, %s29
      %s80 = ssub.s32 %s18, %s25
      %s81 = sor.u32 %s79, %s80
      %p82 = scmp.eq.s32.totalorder %s81, 0
      %s84 = sadd.s32 %s83, 1
      %s85 = scalar_select %p82, %s83, %s84
      %p88 = pneg %p82
      %p89 = scmp.eq.s32.totalorder %s10, 3
      %p90 = por %p88, %p89
      %p91 = scmp.ne.s32.totalorder %s83, %s86
      %p92 = scmp.eq.s32.totalorder %s10, 0
      %p93 = por %p91, %p92
      %p94 = scmp.ne.s32.totalorder %s83, %s86
      %p95 = scmp.eq.s32.totalorder %s15, 3
      %p96 = por %p94, %p95
      %p97 = scmp.ne.s32.totalorder %s86, %s87
      %p98 = scmp.eq.s32.totalorder %s15, 0
      %p99 = por %p97, %p98
      %p100 = scmp.ne.s32.totalorder %s86, %s87
      %p101 = scmp.eq.s32.totalorder %s16, 3
      %p102 = por %p100, %p101
      %p104 = scmp.ne.s32.totalorder %s87, %s103
      %p105 = scmp.eq.s32.totalorder %s16, 0
      %p106 = por %p104, %p105
      %s107 = ssub.s32 %s17, %s29
      %s108 = ssub.s32 %s18, %s25
      %s109 = sor.u32 %s107, %s108
      %p110 = scmp.eq.s32.totalorder %s109, 0
      %s112 = sadd.s32 %s111, 1
      %s113 = scalar_select %p110, %s111, %s112
      %p116 = pneg %p110
      %p117 = scmp.eq.s32.totalorder %s10, 3
      %p118 = por %p116, %p117
      %p119 = scmp.ne.s32.totalorder %s111, %s114
      %p120 = scmp.eq.s32.totalorder %s10, 0
      %p121 = por %p119, %p120
      %p122 = scmp.ne.s32.totalorder %s111, %s114
      %p123 = scmp.eq.s32.totalorder %s15, 3
      %p124 = por %p122, %p123
      %p125 = scmp.ne.s32.totalorder %s114, %s115
      %p126 = scmp.eq.s32.totalorder %s15, 0
      %p127 = por %p125, %p126
      %p128 = scmp.ne.s32.totalorder %s114, %s115
      %p129 = scmp.eq.s32.totalorder %s16, 3
      %p130 = por %p128, %p129
      %p132 = scmp.ne.s32.totalorder %s115, %s131
      %p133 = scmp.eq.s32.totalorder %s16, 0
      %p134 = por %p132, %p133
      %s135 = ssub.s32 %s17, %s29
      %p136 = scmp.eq.s32.totalorder %s135, 0
      %s138 = sadd.s32 %s137, 1
      %s139 = scalar_select %p136, %s137, %s138
      %p142 = pneg %p136
      %p143 = scmp.eq.s32.totalorder %s10, 3
      %p144 = por %p142, %p143
      %p145 = scmp.ne.s32.totalorder %s137, %s140
      %p146 = scmp.eq.s32.totalorder %s10, 0
      %p147 = por %p145, %p146
      %p148 = scmp.ne.s32.totalorder %s137, %s140
      %p149 = scmp.eq.s32.totalorder %s15, 3
      %p150 = por %p148, %p149
      %p151 = scmp.ne.s32.totalorder %s140, %s141
      %p152 = scmp.eq.s32.totalorder %s15, 0
      %p153 = por %p151, %p152
      %p154 = scmp.ne.s32.totalorder %s140, %s141
      %p155 = scmp.eq.s32.totalorder %s16, 3
      %p156 = por %p154, %p155
      %p158 = scmp.ne.s32.totalorder %s141, %s157
      %p159 = scmp.eq.s32.totalorder %s16, 0
      %p160 = por %p158, %p159
      %p161 = scmp.le.s32.totalorder 1, %s10
      %p162 = scmp.lt.s32.totalorder %s10, 5
      %p163 = pnand %p161, %p162
      %p164 = pneg %p163
      // Predicated region
      $region9: #{forward.5} parent=5 // pred_check
        _
      $region10: #{forward.5} parent=5 // pred_check_branch
        %166 = sbr.rel (%p163) target = $region12
      $region11: #{forward.5} parent=5 // pred_region
        %s167 = ssub.s32 %s10, 1
        // Predicated region
        $region13: #{forward.5} parent=11 // pred_check
          %p168 = pneg %p43
        $region14: #{forward.5} parent=11 // pred_check_branch
          %170 = sbr.rel (%p168) target = $region16
        $region15: #{forward.5} parent=11 // pred_region
          _
        $region16: #{forward.5} parent=11 // pred_fallthru
          _
      $region12: #{forward.5} parent=5 // pred_fallthru
        _
      %p171 = scmp.lt.s32.totalorder %s10, 4
      // Predicated region
      $region17: #{forward.5} parent=5 // pred_check
        %p172 = pneg %p171
      $region18: #{forward.5} parent=5 // pred_check_branch
        %174 = sbr.rel (%p172) target = $region20
      $region19: #{forward.5} parent=5 // pred_region
        // Predicated region
        $region21: #{forward.5} parent=19 // pred_check
          %p175 = pneg %p65
        $region22: #{forward.5} parent=19 // pred_check_branch
          %177 = sbr.rel (%p175) target = $region24
        $region23: #{forward.5} parent=19 // pred_region
          %s178 = sand.u32 %s55, 1
          %s179 = sand.u32 %s55, 1
          %s180 = smul.addr %s179, 64
          %s181 = scalar_lea.vmem [#allocation5], %s180
          %s182 = smul.u32 16, %s17
          %s183 = smul.addr %s182, 2
          %s184 = sadd.s32 %s18, %s183
          %s185 = smul.addr %s184, 4
          %s186 = scalar_lea.vmem %s1, %s185
          // Predicated region
          $region25: #{forward.5} parent=23 // pred_check
            _
          $region26: #{forward.5} parent=23 // pred_check_branch
            %188 = sbr.rel (0) target = $region28
          $region27: #{forward.5} parent=23 // pred_region
            // Predicated region
            $region29: #{forward.5} parent=27 // pred_check
              _
            $region30: #{forward.5} parent=27 // pred_check_branch
              %190 = sbr.rel target = $region32
            $region31: #{forward.5} parent=27 // pred_region
              // Predicated region
              $region44: #{forward.5} parent=31 // pred_check
                _
              $region45: #{forward.5} parent=31 // pred_check_branch
                %235 = sbr.rel (0) target = $region47
              $region46: #{forward.5} parent=31 // pred_region
                loop: start=0, step=1, limit=1
                $region48: #{forward.5} parent=46 // loop_pre_header
                  _
                $region49: #{forward.5} parent=46 // loop_header
                  %s237 = sphi 0, %s241
                  %p238 = scmp.ge.s32.totalorder %s237, 1
                  %s242 = sphi %s186, %s186
                  %s243 = sphi %s181, %s181
                $region50: #{forward.5} parent=46 // loop_header_branch
                  %240 = sbr.rel (%p238) target = $region54
                $region51: #{forward.5} parent=46 // loop_body
                  _
                $region52: #{forward.5} parent=46 // loop_footer
                  %s241 = sadd.s32 1, %s237
                $region53: #{forward.5} parent=46 // loop_footer_branch
                  %236 = sbr.rel target = $region49
                $region54: #{forward.5} parent=46 // loop_exit
                  _
                loop: start=0, step=1, limit=1
                $region55: #{forward.5} parent=46 // loop_pre_header
                  _
                $region56: #{forward.5} parent=46 // loop_header
                  %s246 = sphi 0, %s250
                  %p247 = scmp.ge.s32.totalorder %s246, 1
                  %s251 = sphi %s186, %s186
                  %s252 = sphi %s181, %s181
                $region57: #{forward.5} parent=46 // loop_header_branch
                  %249 = sbr.rel (%p247) target = $region61
                $region58: #{forward.5} parent=46 // loop_body
                  %v253 = vld [vmem:[%s251] sm:$0xf]
                  %254 = vst [vmem:[%s252] sm:$0xf] %v253
                  %v255 = vld [vmem:[%s251 + $0x8] sm:$0xf]
                  %256 = vst [vmem:[%s252 + $0x4] sm:$0xf] %v255
                  %v257 = vld [vmem:[%s251 + $0x10] sm:$0xf]
                  %258 = vst [vmem:[%s252 + $0x8] sm:$0xf] %v257
                  %v259 = vld [vmem:[%s251 + $0x18] sm:$0xf]
                  %260 = vst [vmem:[%s252 + $0xc] sm:$0xf] %v259
                  %v261 = vld [vmem:[%s251 + $0x20] sm:$0xf]
                  %262 = vst [vmem:[%s252 + $0x10] sm:$0xf] %v261
                  %v263 = vld [vmem:[%s251 + $0x28] sm:$0xf]
                  %264 = vst [vmem:[%s252 + $0x14] sm:$0xf] %v263
                  %v265 = vld [vmem:[%s251 + $0x30] sm:$0xf]
                  %266 = vst [vmem:[%s252 + $0x18] sm:$0xf] %v265
                  %v267 = vld [vmem:[%s251 + $0x38] sm:$0xf]
                  %268 = vst [vmem:[%s252 + $0x1c] sm:$0xf] %v267
                  %v269 = vld [vmem:[%s251 + $0x40] sm:$0xf]
                  %270 = vst [vmem:[%s252 + $0x20] sm:$0xf] %v269
                  %v271 = vld [vmem:[%s251 + $0x48] sm:$0xf]
                  %272 = vst [vmem:[%s252 + $0x24] sm:$0xf] %v271
                  %v273 = vld [vmem:[%s251 + $0x50] sm:$0xf]
                  %274 = vst [vmem:[%s252 + $0x28] sm:$0xf] %v273
                  %v275 = vld [vmem:[%s251 + $0x58] sm:$0xf]
                  %276 = vst [vmem:[%s252 + $0x2c] sm:$0xf] %v275
                  %v277 = vld [vmem:[%s251 + $0x60] sm:$0xf]
                  %278 = vst [vmem:[%s252 + $0x30] sm:$0xf] %v277
                  %v279 = vld [vmem:[%s251 + $0x68] sm:$0xf]
                  %280 = vst [vmem:[%s252 + $0x34] sm:$0xf] %v279
                  %v281 = vld [vmem:[%s251 + $0x70] sm:$0xf]
                  %282 = vst [vmem:[%s252 + $0x38] sm:$0xf] %v281
                  %v283 = vld [vmem:[%s251 + $0x78] sm:$0xf]
                  %284 = vst [vmem:[%s252 + $0x3c] sm:$0xf] %v283
                $region59: #{forward.5} parent=46 // loop_footer
                  %s250 = sadd.s32 1, %s246
                $region60: #{forward.5} parent=46 // loop_footer_branch
                  %245 = sbr.rel target = $region56
                $region61: #{forward.5} parent=46 // loop_exit
                  _
              $region47: #{forward.5} parent=31 // pred_fallthru
                _
            $region32: #{forward.5} parent=27 // pred_fallthru
              _
            // Predicated region
            $region33: #{forward.5} parent=27 // pred_check
              _
            $region34: #{forward.5} parent=27 // pred_check_branch
              %192 = sbr.rel (0) target = $region36
            $region35: #{forward.5} parent=27 // pred_region
              loop: start=0, step=1, limit=1
              $region37: #{forward.5} parent=35 // loop_pre_header
                _
              $region38: #{forward.5} parent=35 // loop_header
                %s195 = sphi 0, %s199
                %p196 = scmp.ge.s32.totalorder %s195, 1
                %s200 = sphi %s186, %s186
                %s201 = sphi %s181, %s181
              $region39: #{forward.5} parent=35 // loop_header_branch
                %198 = sbr.rel (%p196) target = $region43
              $region40: #{forward.5} parent=35 // loop_body
                %v202 = vld [vmem:[%s200] sm:$0xf]
                %203 = vst [vmem:[%s201] sm:$0xf] %v202
                %v204 = vld [vmem:[%s200 + $0x8] sm:$0xf]
                %205 = vst [vmem:[%s201 + $0x4] sm:$0xf] %v204
                %v206 = vld [vmem:[%s200 + $0x10] sm:$0xf]
                %207 = vst [vmem:[%s201 + $0x8] sm:$0xf] %v206
                %v208 = vld [vmem:[%s200 + $0x18] sm:$0xf]
                %209 = vst [vmem:[%s201 + $0xc] sm:$0xf] %v208
                %v210 = vld [vmem:[%s200 + $0x20] sm:$0xf]
                %211 = vst [vmem:[%s201 + $0x10] sm:$0xf] %v210
                %v212 = vld [vmem:[%s200 + $0x28] sm:$0xf]
                %213 = vst [vmem:[%s201 + $0x14] sm:$0xf] %v212
                %v214 = vld [vmem:[%s200 + $0x30] sm:$0xf]
                %215 = vst [vmem:[%s201 + $0x18] sm:$0xf] %v214
                %v216 = vld [vmem:[%s200 + $0x38] sm:$0xf]
                %217 = vst [vmem:[%s201 + $0x1c] sm:$0xf] %v216
                %v218 = vld [vmem:[%s200 + $0x40] sm:$0xf]
                %219 = vst [vmem:[%s201 + $0x20] sm:$0xf] %v218
                %v220 = vld [vmem:[%s200 + $0x48] sm:$0xf]
                %221 = vst [vmem:[%s201 + $0x24] sm:$0xf] %v220
                %v222 = vld [vmem:[%s200 + $0x50] sm:$0xf]
                %223 = vst [vmem:[%s201 + $0x28] sm:$0xf] %v222
                %v224 = vld [vmem:[%s200 + $0x58] sm:$0xf]
                %225 = vst [vmem:[%s201 + $0x2c] sm:$0xf] %v224
                %v226 = vld [vmem:[%s200 + $0x60] sm:$0xf]
                %227 = vst [vmem:[%s201 + $0x30] sm:$0xf] %v226
                %v228 = vld [vmem:[%s200 + $0x68] sm:$0xf]
                %229 = vst [vmem:[%s201 + $0x34] sm:$0xf] %v228
                %v230 = vld [vmem:[%s200 + $0x70] sm:$0xf]
                %231 = vst [vmem:[%s201 + $0x38] sm:$0xf] %v230
                %v232 = vld [vmem:[%s200 + $0x78] sm:$0xf]
                %233 = vst [vmem:[%s201 + $0x3c] sm:$0xf] %v232
              $region41: #{forward.5} parent=35 // loop_footer
                %s199 = sadd.s32 1, %s195
              $region42: #{forward.5} parent=35 // loop_footer_branch
                %194 = sbr.rel target = $region38
              $region43: #{forward.5} parent=35 // loop_exit
                _
            $region36: #{forward.5} parent=27 // pred_fallthru
              _
          $region28: #{forward.5} parent=23 // pred_fallthru
            _
          %285 = vnop
        $region24: #{forward.5} parent=19 // pred_fallthru
          _
        // Predicated region
        $region62: #{forward.5} parent=19 // pred_check
          %p286 = pneg %p93
        $region63: #{forward.5} parent=19 // pred_check_branch
          %288 = sbr.rel (%p286) target = $region65
        $region64: #{forward.5} parent=19 // pred_region
          %s289 = sand.u32 %s83, 1
          %s290 = sand.u32 %s83, 1
          %s291 = smul.addr %s290, 64
          %s292 = scalar_lea.vmem [#allocation6], %s291
          %s293 = smul.u32 16, %s17
          %s294 = smul.addr %s293, 2
          %s295 = sadd.s32 %s18, %s294
          %s296 = smul.addr %s295, 4
          %s297 = scalar_lea.vmem %s2, %s296
          // Predicated region
          $region66: #{forward.5} parent=64 // pred_check
            _
          $region67: #{forward.5} parent=64 // pred_check_branch
            %299 = sbr.rel (0) target = $region69
          $region68: #{forward.5} parent=64 // pred_region
            // Predicated region
            $region70: #{forward.5} parent=68 // pred_check
              _
            $region71: #{forward.5} parent=68 // pred_check_branch
              %301 = sbr.rel target = $region73
            $region72: #{forward.5} parent=68 // pred_region
              // Predicated region
              $region85: #{forward.5} parent=72 // pred_check
                _
              $region86: #{forward.5} parent=72 // pred_check_branch
                %346 = sbr.rel (0) target = $region88
              $region87: #{forward.5} parent=72 // pred_region
                loop: start=0, step=1, limit=1
                $region89: #{forward.5} parent=87 // loop_pre_header
                  _
                $region90: #{forward.5} parent=87 // loop_header
                  %s348 = sphi 0, %s352
                  %p349 = scmp.ge.s32.totalorder %s348, 1
                  %s353 = sphi %s297, %s297
                  %s354 = sphi %s292, %s292
                $region91: #{forward.5} parent=87 // loop_header_branch
                  %351 = sbr.rel (%p349) target = $region95
                $region92: #{forward.5} parent=87 // loop_body
                  _
                $region93: #{forward.5} parent=87 // loop_footer
                  %s352 = sadd.s32 1, %s348
                $region94: #{forward.5} parent=87 // loop_footer_branch
                  %347 = sbr.rel target = $region90
                $region95: #{forward.5} parent=87 // loop_exit
                  _
                loop: start=0, step=1, limit=1
                $region96: #{forward.5} parent=87 // loop_pre_header
                  _
                $region97: #{forward.5} parent=87 // loop_header
                  %s357 = sphi 0, %s361
                  %p358 = scmp.ge.s32.totalorder %s357, 1
                  %s362 = sphi %s297, %s297
                  %s363 = sphi %s292, %s292
                $region98: #{forward.5} parent=87 // loop_header_branch
                  %360 = sbr.rel (%p358) target = $region102
                $region99: #{forward.5} parent=87 // loop_body
                  %v364 = vld [vmem:[%s362] sm:$0xf]
                  %365 = vst [vmem:[%s363] sm:$0xf] %v364
                  %v366 = vld [vmem:[%s362 + $0x8] sm:$0xf]
                  %367 = vst [vmem:[%s363 + $0x4] sm:$0xf] %v366
                  %v368 = vld [vmem:[%s362 + $0x10] sm:$0xf]
                  %369 = vst [vmem:[%s363 + $0x8] sm:$0xf] %v368
                  %v370 = vld [vmem:[%s362 + $0x18] sm:$0xf]
                  %371 = vst [vmem:[%s363 + $0xc] sm:$0xf] %v370
                  %v372 = vld [vmem:[%s362 + $0x20] sm:$0xf]
                  %373 = vst [vmem:[%s363 + $0x10] sm:$0xf] %v372
                  %v374 = vld [vmem:[%s362 + $0x28] sm:$0xf]
                  %375 = vst [vmem:[%s363 + $0x14] sm:$0xf] %v374
                  %v376 = vld [vmem:[%s362 + $0x30] sm:$0xf]
                  %377 = vst [vmem:[%s363 + $0x18] sm:$0xf] %v376
                  %v378 = vld [vmem:[%s362 + $0x38] sm:$0xf]
                  %379 = vst [vmem:[%s363 + $0x1c] sm:$0xf] %v378
                  %v380 = vld [vmem:[%s362 + $0x40] sm:$0xf]
                  %381 = vst [vmem:[%s363 + $0x20] sm:$0xf] %v380
                  %v382 = vld [vmem:[%s362 + $0x48] sm:$0xf]
                  %383 = vst [vmem:[%s363 + $0x24] sm:$0xf] %v382
                  %v384 = vld [vmem:[%s362 + $0x50] sm:$0xf]
                  %385 = vst [vmem:[%s363 + $0x28] sm:$0xf] %v384
                  %v386 = vld [vmem:[%s362 + $0x58] sm:$0xf]
                  %387 = vst [vmem:[%s363 + $0x2c] sm:$0xf] %v386
                  %v388 = vld [vmem:[%s362 + $0x60] sm:$0xf]
                  %389 = vst [vmem:[%s363 + $0x30] sm:$0xf] %v388
                  %v390 = vld [vmem:[%s362 + $0x68] sm:$0xf]
                  %391 = vst [vmem:[%s363 + $0x34] sm:$0xf] %v390
                  %v392 = vld [vmem:[%s362 + $0x70] sm:$0xf]
                  %393 = vst [vmem:[%s363 + $0x38] sm:$0xf] %v392
                  %v394 = vld [vmem:[%s362 + $0x78] sm:$0xf]
                  %395 = vst [vmem:[%s363 + $0x3c] sm:$0xf] %v394
                $region100: #{forward.5} parent=87 // loop_footer
                  %s361 = sadd.s32 1, %s357
                $region101: #{forward.5} parent=87 // loop_footer_branch
                  %356 = sbr.rel target = $region97
                $region102: #{forward.5} parent=87 // loop_exit
                  _
              $region88: #{forward.5} parent=72 // pred_fallthru
                _
            $region73: #{forward.5} parent=68 // pred_fallthru
              _
            // Predicated region
            $region74: #{forward.5} parent=68 // pred_check
              _
            $region75: #{forward.5} parent=68 // pred_check_branch
              %303 = sbr.rel (0) target = $region77
            $region76: #{forward.5} parent=68 // pred_region
              loop: start=0, step=1, limit=1
              $region78: #{forward.5} parent=76 // loop_pre_header
                _
              $region79: #{forward.5} parent=76 // loop_header
                %s306 = sphi 0, %s310
                %p307 = scmp.ge.s32.totalorder %s306, 1
                %s311 = sphi %s297, %s297
                %s312 = sphi %s292, %s292
              $region80: #{forward.5} parent=76 // loop_header_branch
                %309 = sbr.rel (%p307) target = $region84
              $region81: #{forward.5} parent=76 // loop_body
                %v313 = vld [vmem:[%s311] sm:$0xf]
                %314 = vst [vmem:[%s312] sm:$0xf] %v313
                %v315 = vld [vmem:[%s311 + $0x8] sm:$0xf]
                %316 = vst [vmem:[%s312 + $0x4] sm:$0xf] %v315
                %v317 = vld [vmem:[%s311 + $0x10] sm:$0xf]
                %318 = vst [vmem:[%s312 + $0x8] sm:$0xf] %v317
                %v319 = vld [vmem:[%s311 + $0x18] sm:$0xf]
                %320 = vst [vmem:[%s312 + $0xc] sm:$0xf] %v319
                %v321 = vld [vmem:[%s311 + $0x20] sm:$0xf]
                %322 = vst [vmem:[%s312 + $0x10] sm:$0xf] %v321
                %v323 = vld [vmem:[%s311 + $0x28] sm:$0xf]
                %324 = vst [vmem:[%s312 + $0x14] sm:$0xf] %v323
                %v325 = vld [vmem:[%s311 + $0x30] sm:$0xf]
                %326 = vst [vmem:[%s312 + $0x18] sm:$0xf] %v325
                %v327 = vld [vmem:[%s311 + $0x38] sm:$0xf]
                %328 = vst [vmem:[%s312 + $0x1c] sm:$0xf] %v327
                %v329 = vld [vmem:[%s311 + $0x40] sm:$0xf]
                %330 = vst [vmem:[%s312 + $0x20] sm:$0xf] %v329
                %v331 = vld [vmem:[%s311 + $0x48] sm:$0xf]
                %332 = vst [vmem:[%s312 + $0x24] sm:$0xf] %v331
                %v333 = vld [vmem:[%s311 + $0x50] sm:$0xf]
                %334 = vst [vmem:[%s312 + $0x28] sm:$0xf] %v333
                %v335 = vld [vmem:[%s311 + $0x58] sm:$0xf]
                %336 = vst [vmem:[%s312 + $0x2c] sm:$0xf] %v335
                %v337 = vld [vmem:[%s311 + $0x60] sm:$0xf]
                %338 = vst [vmem:[%s312 + $0x30] sm:$0xf] %v337
                %v339 = vld [vmem:[%s311 + $0x68] sm:$0xf]
                %340 = vst [vmem:[%s312 + $0x34] sm:$0xf] %v339
                %v341 = vld [vmem:[%s311 + $0x70] sm:$0xf]
                %342 = vst [vmem:[%s312 + $0x38] sm:$0xf] %v341
                %v343 = vld [vmem:[%s311 + $0x78] sm:$0xf]
                %344 = vst [vmem:[%s312 + $0x3c] sm:$0xf] %v343
              $region82: #{forward.5} parent=76 // loop_footer
                %s310 = sadd.s32 1, %s306
              $region83: #{forward.5} parent=76 // loop_footer_branch
                %305 = sbr.rel target = $region79
              $region84: #{forward.5} parent=76 // loop_exit
                _
            $region77: #{forward.5} parent=68 // pred_fallthru
              _
          $region69: #{forward.5} parent=64 // pred_fallthru
            _
          %396 = vnop
        $region65: #{forward.5} parent=19 // pred_fallthru
          _
        // Predicated region
        $region103: #{forward.5} parent=19 // pred_check
          %p397 = pneg %p121
        $region104: #{forward.5} parent=19 // pred_check_branch
          %399 = sbr.rel (%p397) target = $region106
        $region105: #{forward.5} parent=19 // pred_region
          %s400 = sand.u32 %s111, 1
          %s401 = sand.u32 %s111, 1
          %s402 = smul.addr %s401, 64
          %s403 = scalar_lea.vmem [#allocation7], %s402
          %s404 = smul.u32 16, %s17
          %s405 = smul.addr %s404, 2
          %s406 = sadd.s32 %s18, %s405
          %s407 = smul.addr %s406, 4
          %s408 = scalar_lea.vmem %s3, %s407
          // Predicated region
          $region107: #{forward.5} parent=105 // pred_check
            _
          $region108: #{forward.5} parent=105 // pred_check_branch
            %410 = sbr.rel (0) target = $region110
          $region109: #{forward.5} parent=105 // pred_region
            // Predicated region
            $region111: #{forward.5} parent=109 // pred_check
              _
            $region112: #{forward.5} parent=109 // pred_check_branch
              %412 = sbr.rel target = $region114
            $region113: #{forward.5} parent=109 // pred_region
              // Predicated region
              $region126: #{forward.5} parent=113 // pred_check
                _
              $region127: #{forward.5} parent=113 // pred_check_branch
                %457 = sbr.rel (0) target = $region129
              $region128: #{forward.5} parent=113 // pred_region
                loop: start=0, step=1, limit=1
                $region130: #{forward.5} parent=128 // loop_pre_header
                  _
                $region131: #{forward.5} parent=128 // loop_header
                  %s459 = sphi 0, %s463
                  %p460 = scmp.ge.s32.totalorder %s459, 1
                  %s464 = sphi %s408, %s408
                  %s465 = sphi %s403, %s403
                $region132: #{forward.5} parent=128 // loop_header_branch
                  %462 = sbr.rel (%p460) target = $region136
                $region133: #{forward.5} parent=128 // loop_body
                  _
                $region134: #{forward.5} parent=128 // loop_footer
                  %s463 = sadd.s32 1, %s459
                $region135: #{forward.5} parent=128 // loop_footer_branch
                  %458 = sbr.rel target = $region131
                $region136: #{forward.5} parent=128 // loop_exit
                  _
                loop: start=0, step=1, limit=1
                $region137: #{forward.5} parent=128 // loop_pre_header
                  _
                $region138: #{forward.5} parent=128 // loop_header
                  %s468 = sphi 0, %s472
                  %p469 = scmp.ge.s32.totalorder %s468, 1
                  %s473 = sphi %s408, %s408
                  %s474 = sphi %s403, %s403
                $region139: #{forward.5} parent=128 // loop_header_branch
                  %471 = sbr.rel (%p469) target = $region143
                $region140: #{forward.5} parent=128 // loop_body
                  %v475 = vld [vmem:[%s473] sm:$0xf]
                  %476 = vst [vmem:[%s474] sm:$0xf] %v475
                  %v477 = vld [vmem:[%s473 + $0x8] sm:$0xf]
                  %478 = vst [vmem:[%s474 + $0x4] sm:$0xf] %v477
                  %v479 = vld [vmem:[%s473 + $0x10] sm:$0xf]
                  %480 = vst [vmem:[%s474 + $0x8] sm:$0xf] %v479
                  %v481 = vld [vmem:[%s473 + $0x18] sm:$0xf]
                  %482 = vst [vmem:[%s474 + $0xc] sm:$0xf] %v481
                  %v483 = vld [vmem:[%s473 + $0x20] sm:$0xf]
                  %484 = vst [vmem:[%s474 + $0x10] sm:$0xf] %v483
                  %v485 = vld [vmem:[%s473 + $0x28] sm:$0xf]
                  %486 = vst [vmem:[%s474 + $0x14] sm:$0xf] %v485
                  %v487 = vld [vmem:[%s473 + $0x30] sm:$0xf]
                  %488 = vst [vmem:[%s474 + $0x18] sm:$0xf] %v487
                  %v489 = vld [vmem:[%s473 + $0x38] sm:$0xf]
                  %490 = vst [vmem:[%s474 + $0x1c] sm:$0xf] %v489
                  %v491 = vld [vmem:[%s473 + $0x40] sm:$0xf]
                  %492 = vst [vmem:[%s474 + $0x20] sm:$0xf] %v491
                  %v493 = vld [vmem:[%s473 + $0x48] sm:$0xf]
                  %494 = vst [vmem:[%s474 + $0x24] sm:$0xf] %v493
                  %v495 = vld [vmem:[%s473 + $0x50] sm:$0xf]
                  %496 = vst [vmem:[%s474 + $0x28] sm:$0xf] %v495
                  %v497 = vld [vmem:[%s473 + $0x58] sm:$0xf]
                  %498 = vst [vmem:[%s474 + $0x2c] sm:$0xf] %v497
                  %v499 = vld [vmem:[%s473 + $0x60] sm:$0xf]
                  %500 = vst [vmem:[%s474 + $0x30] sm:$0xf] %v499
                  %v501 = vld [vmem:[%s473 + $0x68] sm:$0xf]
                  %502 = vst [vmem:[%s474 + $0x34] sm:$0xf] %v501
                  %v503 = vld [vmem:[%s473 + $0x70] sm:$0xf]
                  %504 = vst [vmem:[%s474 + $0x38] sm:$0xf] %v503
                  %v505 = vld [vmem:[%s473 + $0x78] sm:$0xf]
                  %506 = vst [vmem:[%s474 + $0x3c] sm:$0xf] %v505
                $region141: #{forward.5} parent=128 // loop_footer
                  %s472 = sadd.s32 1, %s468
                $region142: #{forward.5} parent=128 // loop_footer_branch
                  %467 = sbr.rel target = $region138
                $region143: #{forward.5} parent=128 // loop_exit
                  _
              $region129: #{forward.5} parent=113 // pred_fallthru
                _
            $region114: #{forward.5} parent=109 // pred_fallthru
              _
            // Predicated region
            $region115: #{forward.5} parent=109 // pred_check
              _
            $region116: #{forward.5} parent=109 // pred_check_branch
              %414 = sbr.rel (0) target = $region118
            $region117: #{forward.5} parent=109 // pred_region
              loop: start=0, step=1, limit=1
              $region119: #{forward.5} parent=117 // loop_pre_header
                _
              $region120: #{forward.5} parent=117 // loop_header
                %s417 = sphi 0, %s421
                %p418 = scmp.ge.s32.totalorder %s417, 1
                %s422 = sphi %s408, %s408
                %s423 = sphi %s403, %s403
              $region121: #{forward.5} parent=117 // loop_header_branch
                %420 = sbr.rel (%p418) target = $region125
              $region122: #{forward.5} parent=117 // loop_body
                %v424 = vld [vmem:[%s422] sm:$0xf]
                %425 = vst [vmem:[%s423] sm:$0xf] %v424
                %v426 = vld [vmem:[%s422 + $0x8] sm:$0xf]
                %427 = vst [vmem:[%s423 + $0x4] sm:$0xf] %v426
                %v428 = vld [vmem:[%s422 + $0x10] sm:$0xf]
                %429 = vst [vmem:[%s423 + $0x8] sm:$0xf] %v428
                %v430 = vld [vmem:[%s422 + $0x18] sm:$0xf]
                %431 = vst [vmem:[%s423 + $0xc] sm:$0xf] %v430
                %v432 = vld [vmem:[%s422 + $0x20] sm:$0xf]
                %433 = vst [vmem:[%s423 + $0x10] sm:$0xf] %v432
                %v434 = vld [vmem:[%s422 + $0x28] sm:$0xf]
                %435 = vst [vmem:[%s423 + $0x14] sm:$0xf] %v434
                %v436 = vld [vmem:[%s422 + $0x30] sm:$0xf]
                %437 = vst [vmem:[%s423 + $0x18] sm:$0xf] %v436
                %v438 = vld [vmem:[%s422 + $0x38] sm:$0xf]
                %439 = vst [vmem:[%s423 + $0x1c] sm:$0xf] %v438
                %v440 = vld [vmem:[%s422 + $0x40] sm:$0xf]
                %441 = vst [vmem:[%s423 + $0x20] sm:$0xf] %v440
                %v442 = vld [vmem:[%s422 + $0x48] sm:$0xf]
                %443 = vst [vmem:[%s423 + $0x24] sm:$0xf] %v442
                %v444 = vld [vmem:[%s422 + $0x50] sm:$0xf]
                %445 = vst [vmem:[%s423 + $0x28] sm:$0xf] %v444
                %v446 = vld [vmem:[%s422 + $0x58] sm:$0xf]
                %447 = vst [vmem:[%s423 + $0x2c] sm:$0xf] %v446
                %v448 = vld [vmem:[%s422 + $0x60] sm:$0xf]
                %449 = vst [vmem:[%s423 + $0x30] sm:$0xf] %v448
                %v450 = vld [vmem:[%s422 + $0x68] sm:$0xf]
                %451 = vst [vmem:[%s423 + $0x34] sm:$0xf] %v450
                %v452 = vld [vmem:[%s422 + $0x70] sm:$0xf]
                %453 = vst [vmem:[%s423 + $0x38] sm:$0xf] %v452
                %v454 = vld [vmem:[%s422 + $0x78] sm:$0xf]
                %455 = vst [vmem:[%s423 + $0x3c] sm:$0xf] %v454
              $region123: #{forward.5} parent=117 // loop_footer
                %s421 = sadd.s32 1, %s417
              $region124: #{forward.5} parent=117 // loop_footer_branch
                %416 = sbr.rel target = $region120
              $region125: #{forward.5} parent=117 // loop_exit
                _
            $region118: #{forward.5} parent=109 // pred_fallthru
              _
          $region110: #{forward.5} parent=105 // pred_fallthru
            _
          %507 = vnop
        $region106: #{forward.5} parent=19 // pred_fallthru
          _
      $region20: #{forward.5} parent=5 // pred_fallthru
        _
      %p508 = scmp.le.s32.totalorder 1, %s10
      %p509 = scmp.lt.s32.totalorder %s10, 5
      %p510 = pnand %p508, %p509
      %p511 = pneg %p510
      // Predicated region
      $region144: #{forward.5} parent=5 // pred_check
        _
      $region145: #{forward.5} parent=5 // pred_check_branch
        %513 = sbr.rel (%p510) target = $region147
      $region146: #{forward.5} parent=5 // pred_region
        %s514 = ssub.s32 %s10, 1
        %s515 = sand.u32 %s58, 1
        %s516 = sand.u32 %s58, 1
        %s517 = smul.addr %s516, 64
        %s518 = scalar_lea.vmem [#allocation5], %s517
        // Predicated region
        $region148: #{forward.5} parent=146 // pred_check
          %p519 = pneg %p71
        $region149: #{forward.5} parent=146 // pred_check_branch
          %521 = sbr.rel (%p519) target = $region151
        $region150: #{forward.5} parent=146 // pred_region
          _
        $region151: #{forward.5} parent=146 // pred_fallthru
          _
        %s522 = sand.u32 %s86, 1
        %s523 = sand.u32 %s86, 1
        %s524 = smul.addr %s523, 64
        %s525 = scalar_lea.vmem [#allocation6], %s524
        // Predicated region
        $region152: #{forward.5} parent=146 // pred_check
          %p526 = pneg %p99
        $region153: #{forward.5} parent=146 // pred_check_branch
          %528 = sbr.rel (%p526) target = $region155
        $region154: #{forward.5} parent=146 // pred_region
          _
        $region155: #{forward.5} parent=146 // pred_fallthru
          _
        %s529 = sand.u32 %s114, 1
        %s530 = sand.u32 %s114, 1
        %s531 = smul.addr %s530, 64
        %s532 = scalar_lea.vmem [#allocation7], %s531
        // Predicated region
        $region156: #{forward.5} parent=146 // pred_check
          %p533 = pneg %p127
        $region157: #{forward.5} parent=146 // pred_check_branch
          %535 = sbr.rel (%p533) target = $region159
        $region158: #{forward.5} parent=146 // pred_region
          _
        $region159: #{forward.5} parent=146 // pred_fallthru
          _
        %p536 = pneg %p43
        %p537 = pneg %p40
        %s538 = sand.u32 %s58, 1
        %s539 = sand.u32 %s58, 1
        %s540 = smul.addr %s539, 64
        %s541 = scalar_lea.vmem [#allocation5], %s540
        %p542 = pneg %p71
        %p543 = pneg %p68
        %s544 = sand.u32 %s86, 1
        %s545 = sand.u32 %s86, 1
        %s546 = smul.addr %s545, 64
        %s547 = scalar_lea.vmem [#allocation6], %s546
        %p548 = pneg %p99
        %p549 = pneg %p96
        %s550 = sand.u32 %s114, 1
        %s551 = sand.u32 %s114, 1
        %s552 = smul.addr %s551, 64
        %s553 = scalar_lea.vmem [#allocation7], %s552
        %p554 = pneg %p127
        %p555 = pneg %p124
        %p556 = pneg %p153
        %p557 = pneg %p150
        %s558 = smul.u32 16, %s19
        %p559 = scmp.lt.s32.totalorder %s558, 31
        %s560 = scalar_select %p559, %s558, 31
        %s561 = smul.addr %s560, 4
        %s562 = scalar_lea.vmem %s4, %s561
        %s563 = smul.u32 16, %s19
        %s564 = smul.u32 16, %s19
        %s565 = smul.u32 16, %s19
        %s566 = smul.u32 16, %s19
        %p567 = scmp.lt.s32.totalorder %s566, 31
        %s568 = scalar_select %p567, %s566, 31
        %s569 = smul.addr %s568, 4
        %s570 = scalar_lea.vmem %s4, %s569
        %s571 = smul.u32 16, %s19
        %p573 = scmp.eq.s32.totalorder %s20, 0
        // Predicated region
        $region160: #{forward.5} parent=146 // pred_check
          %p574 = pneg %p573
        $region161: #{forward.5} parent=146 // pred_check_branch
          %576 = sbr.rel (%p574) target = $region163
        $region162: #{forward.5} parent=146 // pred_region
          %577 = vst [vmem:[#allocation2] sm:$0xff] 0.0
          %578 = vst [vmem:[#allocation2 + $0x8] sm:$0xff] 0.0
          %579 = vst [vmem:[#allocation2 + $0x10] sm:$0xff] 0.0
          %580 = vst [vmem:[#allocation2 + $0x18] sm:$0xff] 0.0
          %581 = vst [vmem:[#allocation2 + $0x20] sm:$0xff] 0.0
          %582 = vst [vmem:[#allocation2 + $0x28] sm:$0xff] 0.0
          %583 = vst [vmem:[#allocation2 + $0x30] sm:$0xff] 0.0
          %584 = vst [vmem:[#allocation2 + $0x38] sm:$0xff] 0.0
          %585 = vst [vmem:[#allocation2 + $0x40] sm:$0xff] 0.0
          %586 = vst [vmem:[#allocation2 + $0x48] sm:$0xff] 0.0
          %587 = vst [vmem:[#allocation2 + $0x50] sm:$0xff] 0.0
          %588 = vst [vmem:[#allocation2 + $0x58] sm:$0xff] 0.0
          %589 = vst [vmem:[#allocation2 + $0x60] sm:$0xff] 0.0
          %590 = vst [vmem:[#allocation2 + $0x68] sm:$0xff] 0.0
          %591 = vst [vmem:[#allocation2 + $0x70] sm:$0xff] 0.0
          %592 = vst [vmem:[#allocation2 + $0x78] sm:$0xff] 0.0
          %593 = vst [vmem:[#allocation3] sm:$0xff] 0.0
          %594 = vst [vmem:[#allocation3 + $0x8] sm:$0xff] 0.0
          %595 = vst [vmem:[#allocation3 + $0x10] sm:$0xff] 0.0
          %596 = vst [vmem:[#allocation3 + $0x18] sm:$0xff] 0.0
          %597 = vst [vmem:[#allocation3 + $0x20] sm:$0xff] 0.0
          %598 = vst [vmem:[#allocation3 + $0x28] sm:$0xff] 0.0
          %599 = vst [vmem:[#allocation3 + $0x30] sm:$0xff] 0.0
          %600 = vst [vmem:[#allocation3 + $0x38] sm:$0xff] 0.0
          %601 = vst [vmem:[#allocation3 + $0x40] sm:$0xff] 0.0
          %602 = vst [vmem:[#allocation3 + $0x48] sm:$0xff] 0.0
          %603 = vst [vmem:[#allocation3 + $0x50] sm:$0xff] 0.0
          %604 = vst [vmem:[#allocation3 + $0x58] sm:$0xff] 0.0
          %605 = vst [vmem:[#allocation3 + $0x60] sm:$0xff] 0.0
          %606 = vst [vmem:[#allocation3 + $0x68] sm:$0xff] 0.0
          %607 = vst [vmem:[#allocation3 + $0x70] sm:$0xff] 0.0
          %608 = vst [vmem:[#allocation3 + $0x78] sm:$0xff] 0.0
          %609 = vst [vmem:[#allocation4] sm:$0xff] 0.0
          %610 = vst [vmem:[#allocation4 + $0x8] sm:$0xff] 0.0
          %611 = vst [vmem:[#allocation4 + $0x10] sm:$0xff] 0.0
          %612 = vst [vmem:[#allocation4 + $0x18] sm:$0xff] 0.0
          %613 = vst [vmem:[#allocation4 + $0x20] sm:$0xff] 0.0
          %614 = vst [vmem:[#allocation4 + $0x28] sm:$0xff] 0.0
          %615 = vst [vmem:[#allocation4 + $0x30] sm:$0xff] 0.0
          %616 = vst [vmem:[#allocation4 + $0x38] sm:$0xff] 0.0
          %617 = vst [vmem:[#allocation4 + $0x40] sm:$0xff] 0.0
          %618 = vst [vmem:[#allocation4 + $0x48] sm:$0xff] 0.0
          %619 = vst [vmem:[#allocation4 + $0x50] sm:$0xff] 0.0
          %620 = vst [vmem:[#allocation4 + $0x58] sm:$0xff] 0.0
          %621 = vst [vmem:[#allocation4 + $0x60] sm:$0xff] 0.0
          %622 = vst [vmem:[#allocation4 + $0x68] sm:$0xff] 0.0
          %623 = vst [vmem:[#allocation4 + $0x70] sm:$0xff] 0.0
          %624 = vst [vmem:[#allocation4 + $0x78] sm:$0xff] 0.0
        $region163: #{forward.5} parent=146 // pred_fallthru
          _
        %s625 = smul.u32 %s20, 128
        %s626 = sshra.s32 %s625, 3
        %s627 = sand.u32 %s625, 7
        %s628 = smul.u32 %s626, 3
        %s629 = smul.addr %s628, 4
        %s630 = scalar_lea.vmem %s0, %s629
        %v631 = vld [vmem:[%s630] sm:$0xff]
        %v632 = vld [vmem:[%s630 + $0x8] sm:$0xf]
        %v633 = vld [vmem:[%s630 + $0xc] sm:$0xff]
        %v634 = vld [vmem:[%s630 + $0x14] sm:$0xf]
        %v635 = vld [vmem:[%s630 + $0x18] sm:$0xff]
        %v636 = vld [vmem:[%s630 + $0x20] sm:$0xf]
        %v637 = vld [vmem:[%s630 + $0x24] sm:$0xff]
        %v638 = vld [vmem:[%s630 + $0x2c] sm:$0xf]
        %v639 = vld [vmem:[%s630 + $0x30] sm:$0xff]
        %v640 = vld [vmem:[%s630 + $0x38] sm:$0xf]
        %v641 = vld [vmem:[%s630 + $0x3c] sm:$0xff]
        %v642 = vld [vmem:[%s630 + $0x44] sm:$0xf]
        %v643 = vld [vmem:[%s630 + $0x48] sm:$0xff]
        %v644 = vld [vmem:[%s630 + $0x50] sm:$0xf]
        %v645 = vld [vmem:[%s630 + $0x54] sm:$0xff]
        %v646 = vld [vmem:[%s630 + $0x5c] sm:$0xf]
        %v647 = vld [vmem:[%s630 + $0x60] sm:$0xff]
        %v648 = vld [vmem:[%s630 + $0x68] sm:$0xf]
        %v649 = vld [vmem:[%s630 + $0x6c] sm:$0xff]
        %v650 = vld [vmem:[%s630 + $0x74] sm:$0xf]
        %v651 = vld [vmem:[%s630 + $0x78] sm:$0xff]
        %v652 = vld [vmem:[%s630 + $0x80] sm:$0xf]
        %v653 = vld [vmem:[%s630 + $0x84] sm:$0xff]
        %v654 = vld [vmem:[%s630 + $0x8c] sm:$0xf]
        %v655 = vld [vmem:[%s630 + $0x90] sm:$0xff]
        %v656 = vld [vmem:[%s630 + $0x98] sm:$0xf]
        %v657 = vld [vmem:[%s630 + $0x9c] sm:$0xff]
        %v658 = vld [vmem:[%s630 + $0xa4] sm:$0xf]
        %v659 = vld [vmem:[%s630 + $0xa8] sm:$0xff]
        %v660 = vld [vmem:[%s630 + $0xb0] sm:$0xf]
        %v661 = vld [vmem:[%s630 + $0xb4] sm:$0xff]
        %v662 = vld [vmem:[%s630 + $0xbc] sm:$0xf]
        %v663 = vld [vmem:[#allocation2] sm:$0xff]
        %v664 = vld [vmem:[#allocation2 + $0x8] sm:$0xff]
        %v665 = vld [vmem:[#allocation2 + $0x10] sm:$0xff]
        %v666 = vld [vmem:[#allocation2 + $0x18] sm:$0xff]
        %v667 = vld [vmem:[#allocation2 + $0x20] sm:$0xff]
        %v668 = vld [vmem:[#allocation2 + $0x28] sm:$0xff]
        %v669 = vld [vmem:[#allocation2 + $0x30] sm:$0xff]
        %v670 = vld [vmem:[#allocation2 + $0x38] sm:$0xff]
        %v671 = vld [vmem:[#allocation2 + $0x40] sm:$0xff]
        %v672 = vld [vmem:[#allocation2 + $0x48] sm:$0xff]
        %v673 = vld [vmem:[#allocation2 + $0x50] sm:$0xff]
        %v674 = vld [vmem:[#allocation2 + $0x58] sm:$0xff]
        %v675 = vld [vmem:[#allocation2 + $0x60] sm:$0xff]
        %v676 = vld [vmem:[#allocation2 + $0x68] sm:$0xff]
        %v677 = vld [vmem:[#allocation2 + $0x70] sm:$0xff]
        %v678 = vld [vmem:[#allocation2 + $0x78] sm:$0xff]
        %v679 = vld [vmem:[%s518] sm:$0xf]
        %v680 = vld [vmem:[%s518 + $0x4] sm:$0xf]
        %v681 = vld [vmem:[%s518 + $0x8] sm:$0xf]
        %v682 = vld [vmem:[%s518 + $0xc] sm:$0xf]
        %v683 = vld [vmem:[%s518 + $0x10] sm:$0xf]
        %v684 = vld [vmem:[%s518 + $0x14] sm:$0xf]
        %v685 = vld [vmem:[%s518 + $0x18] sm:$0xf]
        %v686 = vld [vmem:[%s518 + $0x1c] sm:$0xf]
        %v687 = vld [vmem:[%s518 + $0x20] sm:$0xf]
        %v688 = vld [vmem:[%s518 + $0x24] sm:$0xf]
        %v689 = vld [vmem:[%s518 + $0x28] sm:$0xf]
        %v690 = vld [vmem:[%s518 + $0x2c] sm:$0xf]
        %v691 = vld [vmem:[%s518 + $0x30] sm:$0xf]
        %v692 = vld [vmem:[%s518 + $0x34] sm:$0xf]
        %v693 = vld [vmem:[%s518 + $0x38] sm:$0xf]
        %v694 = vld [vmem:[%s518 + $0x3c] sm:$0xf]
        %v711 = vunpack.c.l.b16 %v679
        %v712 = vunpack.c.l.b16 %v680
        %v713 = vunpack.c.l.b16 %v681
        %v714 = vunpack.c.l.b16 %v682
        %v715 = vunpack.c.l.b16 %v683
        %v716 = vunpack.c.l.b16 %v684
        %v717 = vunpack.c.l.b16 %v685
        %v718 = vunpack.c.l.b16 %v686
        %v719 = vunpack.c.l.b16 %v687
        %v720 = vunpack.c.l.b16 %v688
        %v721 = vunpack.c.l.b16 %v689
        %v722 = vunpack.c.l.b16 %v690
        %v723 = vunpack.c.l.b16 %v691
        %v724 = vunpack.c.l.b16 %v692
        %v725 = vunpack.c.l.b16 %v693
        %v726 = vunpack.c.l.b16 %v694
        %v727 = vpack.c.b16 %v712, %v711
        %v728 = vpack.c.b16 %v714, %v713
        %v729 = vpack.c.b16 %v716, %v715
        %v730 = vpack.c.b16 %v718, %v717
        %v731 = vpack.c.b16 %v720, %v719
        %v732 = vpack.c.b16 %v722, %v721
        %v733 = vpack.c.b16 %v724, %v723
        %v734 = vpack.c.b16 %v726, %v725
        %v759 = vunpack.c.l.b16 %v631
        %v760 = vunpack.c.l.b16 %v633
        %v761 = vunpack.c.l.b16 %v635
        %v762 = vunpack.c.l.b16 %v637
        %v763 = vunpack.c.l.b16 %v639
        %v764 = vunpack.c.l.b16 %v641
        %v765 = vunpack.c.l.b16 %v643
        %v766 = vunpack.c.l.b16 %v645
        %v767 = vunpack.c.l.b16 %v647
        %v768 = vunpack.c.l.b16 %v649
        %v769 = vunpack.c.l.b16 %v651
        %v770 = vunpack.c.l.b16 %v653
        %v771 = vunpack.c.l.b16 %v655
        %v772 = vunpack.c.l.b16 %v657
        %v773 = vunpack.c.l.b16 %v659
        %v774 = vunpack.c.l.b16 %v661
        %v775 = vpack.c.b16 %v760, %v759
        %v776 = vpack.c.b16 %v762, %v761
        %v777 = vpack.c.b16 %v764, %v763
        %v778 = vpack.c.b16 %v766, %v765
        %v779 = vpack.c.b16 %v768, %v767
        %v780 = vpack.c.b16 %v770, %v769
        %v781 = vpack.c.b16 %v772, %v771
        %v782 = vpack.c.b16 %v774, %v773
        %791 = vmatprep.subr.bf16.mxu0 0
        %792 = vmatpush1.bf16.msra.mxu0 %v775
        %793 = vmatprep.subr.bf16.mxu0 0
        %794 = vmatpush1.bf16.msra.mxu0 %v776
        %795 = vmatprep.subr.bf16.mxu0 0
        %796 = vmatpush1.bf16.msra.mxu0 %v777
        %797 = vmatprep.subr.bf16.mxu0 0
        %798 = vmatpush1.bf16.msra.mxu0 %v778
        %799 = vmatprep.subr.bf16.mxu0 0
        %800 = vmatpush1.bf16.msra.mxu0 %v779
        %801 = vmatprep.subr.bf16.mxu0 0
        %802 = vmatpush1.bf16.msra.mxu0 %v780
        %803 = vmatprep.subr.bf16.mxu0 0
        %804 = vmatpush1.bf16.msra.mxu0 %v781
        %805 = vmatprep.subr.bf16.mxu0 0
        %806 = vmatpush1.bf16.msra.mxu0 %v782
        %807 = vmatprep.subr.bf16.mxu0 0
        %808 = vmatpush1.bf16.msra.mxu0 0
        %809 = vmatprep.subr.bf16.mxu0 0
        %810 = vmatpush1.bf16.msra.mxu0 0
        %811 = vmatprep.subr.bf16.mxu0 0
        %812 = vmatpush1.bf16.msra.mxu0 0
        %813 = vmatprep.subr.bf16.mxu0 0
        %814 = vmatpush1.bf16.msra.mxu0 0
        %815 = vmatprep.subr.bf16.mxu0 0
        %816 = vmatpush1.bf16.msra.mxu0 0
        %817 = vmatprep.subr.bf16.mxu0 0
        %818 = vmatpush1.bf16.msra.mxu0 0
        %819 = vmatprep.subr.bf16.mxu0 0
        %820 = vmatpush1.bf16.msra.mxu0 0
        %821 = vmatprep.subr.bf16.mxu0 0
        %822 = vmatpush1.bf16.msra.mxu0 0
        %823 = vmatprep.mubr.bf16.mxu0 0
        %824 = vmatmul.mubr.bf16.gmra.mrb[0].mxu0 %v727
        %v825 = vpop.f32.mrb[0].mxu0
        %v826 = vadd.f32 0.0, %v825
        %v827 = vpop.f32.mrb[0].mxu0
        %v828 = vpop.f32.mrb[0].mxu0
        %v829 = vadd.f32 0.0, %v828
        %v830 = vpop.f32.mrb[0].mxu0
        %831 = vmatprep.mubr.bf16.mxu0 0
        %832 = vmatmul.mubr.bf16.gmra.mrb[0].mxu0 %v728
        %v833 = vpop.f32.mrb[0].mxu0
        %v834 = vadd.f32 0.0, %v833
        %v835 = vpop.f32.mrb[0].mxu0
        %v836 = vpop.f32.mrb[0].mxu0
        %v837 = vadd.f32 0.0, %v836
        %v838 = vpop.f32.mrb[0].mxu0
        %839 = vmatprep.mubr.bf16.mxu0 0
        %840 = vmatmul.mubr.bf16.gmra.mrb[0].mxu0 %v729
        %v841 = vpop.f32.mrb[0].mxu0
        %v842 = vadd.f32 0.0, %v841
        %v843 = vpop.f32.mrb[0].mxu0
        %v844 = vpop.f32.mrb[0].mxu0
        %v845 = vadd.f32 0.0, %v844
        %v846 = vpop.f32.mrb[0].mxu0
        %847 = vmatprep.mubr.bf16.mxu0 0
        %848 = vmatmul.mubr.bf16.gmra.mrb[0].mxu0 %v730
        %v849 = vpop.f32.mrb[0].mxu0
        %v850 = vadd.f32 0.0, %v849
        %v851 = vpop.f32.mrb[0].mxu0
        %v852 = vpop.f32.mrb[0].mxu0
        %v853 = vadd.f32 0.0, %v852
        %v854 = vpop.f32.mrb[0].mxu0
        %855 = vmatprep.mubr.bf16.mxu0 0
        %856 = vmatmul.mubr.bf16.gmra.mrb[0].mxu0 %v731
        %v857 = vpop.f32.mrb[0].mxu0
        %v858 = vadd.f32 0.0, %v857
        %v859 = vpop.f32.mrb[0].mxu0
        %v860 = vpop.f32.mrb[0].mxu0
        %v861 = vadd.f32 0.0, %v860
        %v862 = vpop.f32.mrb[0].mxu0
        %863 = vmatprep.mubr.bf16.mxu0 0
        %864 = vmatmul.mubr.bf16.gmra.mrb[0].mxu0 %v732
        %v865 = vpop.f32.mrb[0].mxu0
        %v866 = vadd.f32 0.0, %v865
        %v867 = vpop.f32.mrb[0].mxu0
        %v868 = vpop.f32.mrb[0].mxu0
        %v869 = vadd.f32 0.0, %v868
        %v870 = vpop.f32.mrb[0].mxu0
        %871 = vmatprep.mubr.bf16.mxu0 0
        %872 = vmatmul.mubr.bf16.gmra.mrb[0].mxu0 %v733
        %v873 = vpop.f32.mrb[0].mxu0
        %v874 = vadd.f32 0.0, %v873
        %v875 = vpop.f32.mrb[0].mxu0
        %v876 = vpop.f32.mrb[0].mxu0
        %v877 = vadd.f32 0.0, %v876
        %v878 = vpop.f32.mrb[0].mxu0
        %879 = vmatprep.mubr.bf16.mxu0 0
        %880 = vmatmul.mubr.bf16.gmra.mrb[0].mxu0 %v734
        %v881 = vpop.f32.mrb[0].mxu0
        %v882 = vadd.f32 0.0, %v881
        %v883 = vpop.f32.mrb[0].mxu0
        %v884 = vpop.f32.mrb[0].mxu0
        %v885 = vadd.f32 0.0, %v884
        %v886 = vpop.f32.mrb[0].mxu0
        %887 = vdwg.mxu0
        %v888 = vadd.f32 %v663, %v826
        %v889 = vadd.f32 %v664, %v829
        %v890 = vadd.f32 %v665, %v834
        %v891 = vadd.f32 %v666, %v837
        %v892 = vadd.f32 %v667, %v842
        %v893 = vadd.f32 %v668, %v845
        %v894 = vadd.f32 %v669, %v850
        %v895 = vadd.f32 %v670, %v853
        %v896 = vadd.f32 %v671, %v858
        %v897 = vadd.f32 %v672, %v861
        %v898 = vadd.f32 %v673, %v866
        %v899 = vadd.f32 %v674, %v869
        %v900 = vadd.f32 %v675, %v874
        %v901 = vadd.f32 %v676, %v877
        %v902 = vadd.f32 %v677, %v882
        %v903 = vadd.f32 %v678, %v885
        %904 = vst [vmem:[#allocation2] sm:$0xff] %v888
        %905 = vst [vmem:[#allocation2 + $0x8] sm:$0xff] %v889
        %906 = vst [vmem:[#allocation2 + $0x10] sm:$0xff] %v890
        %907 = vst [vmem:[#allocation2 + $0x18] sm:$0xff] %v891
        %908 = vst [vmem:[#allocation2 + $0x20] sm:$0xff] %v892
        %909 = vst [vmem:[#allocation2 + $0x28] sm:$0xff] %v893
        %910 = vst [vmem:[#allocation2 + $0x30] sm:$0xff] %v894
        %911 = vst [vmem:[#allocation2 + $0x38] sm:$0xff] %v895
        %912 = vst [vmem:[#allocation2 + $0x40] sm:$0xff] %v896
        %913 = vst [vmem:[#allocation2 + $0x48] sm:$0xff] %v897
        %914 = vst [vmem:[#allocation2 + $0x50] sm:$0xff] %v898
        %915 = vst [vmem:[#allocation2 + $0x58] sm:$0xff] %v899
        %916 = vst [vmem:[#allocation2 + $0x60] sm:$0xff] %v900
        %917 = vst [vmem:[#allocation2 + $0x68] sm:$0xff] %v901
        %918 = vst [vmem:[#allocation2 + $0x70] sm:$0xff] %v902
        %919 = vst [vmem:[#allocation2 + $0x78] sm:$0xff] %v903
        %v920 = vld [vmem:[#allocation3] sm:$0xff]
        %v921 = vld [vmem:[#allocation3 + $0x8] sm:$0xff]
        %v922 = vld [vmem:[#allocation3 + $0x10] sm:$0xff]
        %v923 = vld [vmem:[#allocation3 + $0x18] sm:$0xff]
        %v924 = vld [vmem:[#allocation3 + $0x20] sm:$0xff]
        %v925 = vld [vmem:[#allocation3 + $0x28] sm:$0xff]
        %v926 = vld [vmem:[#allocation3 + $0x30] sm:$0xff]
        %v927 = vld [vmem:[#allocation3 + $0x38] sm:$0xff]
        %v928 = vld [vmem:[#allocation3 + $0x40] sm:$0xff]
        %v929 = vld [vmem:[#allocation3 + $0x48] sm:$0xff]
        %v930 = vld [vmem:[#allocation3 + $0x50] sm:$0xff]
        %v931 = vld [vmem:[#allocation3 + $0x58] sm:$0xff]
        %v932 = vld [vmem:[#allocation3 + $0x60] sm:$0xff]
        %v933 = vld [vmem:[#allocation3 + $0x68] sm:$0xff]
        %v934 = vld [vmem:[#allocation3 + $0x70] sm:$0xff]
        %v935 = vld [vmem:[#allocation3 + $0x78] sm:$0xff]
        %v936 = vld [vmem:[%s525] sm:$0xf]
        %v937 = vld [vmem:[%s525 + $0x4] sm:$0xf]
        %v938 = vld [vmem:[%s525 + $0x8] sm:$0xf]
        %v939 = vld [vmem:[%s525 + $0xc] sm:$0xf]
        %v940 = vld [vmem:[%s525 + $0x10] sm:$0xf]
        %v941 = vld [vmem:[%s525 + $0x14] sm:$0xf]
        %v942 = vld [vmem:[%s525 + $0x18] sm:$0xf]
        %v943 = vld [vmem:[%s525 + $0x1c] sm:$0xf]
        %v944 = vld [vmem:[%s525 + $0x20] sm:$0xf]
        %v945 = vld [vmem:[%s525 + $0x24] sm:$0xf]
        %v946 = vld [vmem:[%s525 + $0x28] sm:$0xf]
        %v947 = vld [vmem:[%s525 + $0x2c] sm:$0xf]
        %v948 = vld [vmem:[%s525 + $0x30] sm:$0xf]
        %v949 = vld [vmem:[%s525 + $0x34] sm:$0xf]
        %v950 = vld [vmem:[%s525 + $0x38] sm:$0xf]
        %v951 = vld [vmem:[%s525 + $0x3c] sm:$0xf]
        %v968 = vunpack.c.l.b16 %v936
        %v969 = vunpack.c.l.b16 %v937
        %v970 = vunpack.c.l.b16 %v938
        %v971 = vunpack.c.l.b16 %v939
        %v972 = vunpack.c.l.b16 %v940
        %v973 = vunpack.c.l.b16 %v941
        %v974 = vunpack.c.l.b16 %v942
        %v975 = vunpack.c.l.b16 %v943
        %v976 = vunpack.c.l.b16 %v944
        %v977 = vunpack.c.l.b16 %v945
        %v978 = vunpack.c.l.b16 %v946
        %v979 = vunpack.c.l.b16 %v947
        %v980 = vunpack.c.l.b16 %v948
        %v981 = vunpack.c.l.b16 %v949
        %v982 = vunpack.c.l.b16 %v950
        %v983 = vunpack.c.l.b16 %v951
        %v984 = vpack.c.b16 %v969, %v968
        %v985 = vpack.c.b16 %v971, %v970
        %v986 = vpack.c.b16 %v973, %v972
        %v987 = vpack.c.b16 %v975, %v974
        %v988 = vpack.c.b16 %v977, %v976
        %v989 = vpack.c.b16 %v979, %v978
        %v990 = vpack.c.b16 %v981, %v980
        %v991 = vpack.c.b16 %v983, %v982
        %v1000 = vunpack.c.h.b16 %v631
        %v1001 = vunpack.c.h.b16 %v633
        %v1002 = vunpack.c.h.b16 %v635
        %v1003 = vunpack.c.h.b16 %v637
        %v1004 = vunpack.c.h.b16 %v639
        %v1005 = vunpack.c.h.b16 %v641
        %v1006 = vunpack.c.h.b16 %v643
        %v1007 = vunpack.c.h.b16 %v645
        %v1008 = vunpack.c.h.b16 %v647
        %v1009 = vunpack.c.h.b16 %v649
        %v1010 = vunpack.c.h.b16 %v651
        %v1011 = vunpack.c.h.b16 %v653
        %v1012 = vunpack.c.h.b16 %v655
        %v1013 = vunpack.c.h.b16 %v657
        %v1014 = vunpack.c.h.b16 %v659
        %v1015 = vunpack.c.h.b16 %v661
        %v1016 = vpack.c.b16 %v1001, %v1000
        %v1017 = vpack.c.b16 %v1003, %v1002
        %v1018 = vpack.c.b16 %v1005, %v1004
        %v1019 = vpack.c.b16 %v1007, %v1006
        %v1020 = vpack.c.b16 %v1009, %v1008
        %v1021 = vpack.c.b16 %v1011, %v1010
        %v1022 = vpack.c.b16 %v1013, %v1012
        %v1023 = vpack.c.b16 %v1015, %v1014
        %1032 = vmatprep.subr.bf16.mxu0 0
        %1033 = vmatpush1.bf16.msra.mxu0 %v1016
        %1034 = vmatprep.subr.bf16.mxu0 0
        %1035 = vmatpush1.bf16.msra.mxu0 %v1017
        %1036 = vmatprep.subr.bf16.mxu0 0
        %1037 = vmatpush1.bf16.msra.mxu0 %v1018
        %1038 = vmatprep.subr.bf16.mxu0 0
        %1039 = vmatpush1.bf16.msra.mxu0 %v1019
        %1040 = vmatprep.subr.bf16.mxu0 0
        %1041 = vmatpush1.bf16.msra.mxu0 %v1020
        %1042 = vmatprep.subr.bf16.mxu0 0
        %1043 = vmatpush1.bf16.msra.mxu0 %v1021
        %1044 = vmatprep.subr.bf16.mxu0 0
        %1045 = vmatpush1.bf16.msra.mxu0 %v1022
        %1046 = vmatprep.subr.bf16.mxu0 0
        %1047 = vmatpush1.bf16.msra.mxu0 %v1023
        %1048 = vmatprep.subr.bf16.mxu0 0
        %1049 = vmatpush1.bf16.msra.mxu0 0
        %1050 = vmatprep.subr.bf16.mxu0 0
        %1051 = vmatpush1.bf16.msra.mxu0 0
        %1052 = vmatprep.subr.bf16.mxu0 0
        %1053 = vmatpush1.bf16.msra.mxu0 0
        %1054 = vmatprep.subr.bf16.mxu0 0
        %1055 = vmatpush1.bf16.msra.mxu0 0
        %1056 = vmatprep.subr.bf16.mxu0 0
        %1057 = vmatpush1.bf16.msra.mxu0 0
        %1058 = vmatprep.subr.bf16.mxu0 0
        %1059 = vmatpush1.bf16.msra.mxu0 0
        %1060 = vmatprep.subr.bf16.mxu0 0
        %1061 = vmatpush1.bf16.msra.mxu0 0
        %1062 = vmatprep.subr.bf16.mxu0 0
        %1063 = vmatpush1.bf16.msra.mxu0 0
        %1064 = vmatprep.mubr.bf16.mxu0 0
        %1065 = vmatmul.mubr.bf16.gmra.mrb[0].mxu0 %v984
        %v1066 = vpop.f32.mrb[0].mxu0
        %v1067 = vadd.f32 0.0, %v1066
        %v1068 = vpop.f32.mrb[0].mxu0
        %v1069 = vpop.f32.mrb[0].mxu0
        %v1070 = vadd.f32 0.0, %v1069
        %v1071 = vpop.f32.mrb[0].mxu0
        %1072 = vmatprep.mubr.bf16.mxu0 0
        %1073 = vmatmul.mubr.bf16.gmra.mrb[0].mxu0 %v985
        %v1074 = vpop.f32.mrb[0].mxu0
        %v1075 = vadd.f32 0.0, %v1074
        %v1076 = vpop.f32.mrb[0].mxu0
        %v1077 = vpop.f32.mrb[0].mxu0
        %v1078 = vadd.f32 0.0, %v1077
        %v1079 = vpop.f32.mrb[0].mxu0
        %1080 = vmatprep.mubr.bf16.mxu0 0
        %1081 = vmatmul.mubr.bf16.gmra.mrb[0].mxu0 %v986
        %v1082 = vpop.f32.mrb[0].mxu0
        %v1083 = vadd.f32 0.0, %v1082
        %v1084 = vpop.f32.mrb[0].mxu0
        %v1085 = vpop.f32.mrb[0].mxu0
        %v1086 = vadd.f32 0.0, %v1085
        %v1087 = vpop.f32.mrb[0].mxu0
        %1088 = vmatprep.mubr.bf16.mxu0 0
        %1089 = vmatmul.mubr.bf16.gmra.mrb[0].mxu0 %v987
        %v1090 = vpop.f32.mrb[0].mxu0
        %v1091 = vadd.f32 0.0, %v1090
        %v1092 = vpop.f32.mrb[0].mxu0
        %v1093 = vpop.f32.mrb[0].mxu0
        %v1094 = vadd.f32 0.0, %v1093
        %v1095 = vpop.f32.mrb[0].mxu0
        %1096 = vmatprep.mubr.bf16.mxu0 0
        %1097 = vmatmul.mubr.bf16.gmra.mrb[0].mxu0 %v988
        %v1098 = vpop.f32.mrb[0].mxu0
        %v1099 = vadd.f32 0.0, %v1098
        %v1100 = vpop.f32.mrb[0].mxu0
        %v1101 = vpop.f32.mrb[0].mxu0
        %v1102 = vadd.f32 0.0, %v1101
        %v1103 = vpop.f32.mrb[0].mxu0
        %1104 = vmatprep.mubr.bf16.mxu0 0
        %1105 = vmatmul.mubr.bf16.gmra.mrb[0].mxu0 %v989
        %v1106 = vpop.f32.mrb[0].mxu0
        %v1107 = vadd.f32 0.0, %v1106
        %v1108 = vpop.f32.mrb[0].mxu0
        %v1109 = vpop.f32.mrb[0].mxu0
        %v1110 = vadd.f32 0.0, %v1109
        %v1111 = vpop.f32.mrb[0].mxu0
        %1112 = vmatprep.mubr.bf16.mxu0 0
        %1113 = vmatmul.mubr.bf16.gmra.mrb[0].mxu0 %v990
        %v1114 = vpop.f32.mrb[0].mxu0
        %v1115 = vadd.f32 0.0, %v1114
        %v1116 = vpop.f32.mrb[0].mxu0
        %v1117 = vpop.f32.mrb[0].mxu0
        %v1118 = vadd.f32 0.0, %v1117
        %v1119 = vpop.f32.mrb[0].mxu0
        %1120 = vmatprep.mubr.bf16.mxu0 0
        %1121 = vmatmul.mubr.bf16.gmra.mrb[0].mxu0 %v991
        %v1122 = vpop.f32.mrb[0].mxu0
        %v1123 = vadd.f32 0.0, %v1122
        %v1124 = vpop.f32.mrb[0].mxu0
        %v1125 = vpop.f32.mrb[0].mxu0
        %v1126 = vadd.f32 0.0, %v1125
        %v1127 = vpop.f32.mrb[0].mxu0
        %1128 = vdwg.mxu0
        %v1129 = vadd.f32 %v920, %v1067
        %v1130 = vadd.f32 %v921, %v1070
        %v1131 = vadd.f32 %v922, %v1075
        %v1132 = vadd.f32 %v923, %v1078
        %v1133 = vadd.f32 %v924, %v1083
        %v1134 = vadd.f32 %v925, %v1086
        %v1135 = vadd.f32 %v926, %v1091
        %v1136 = vadd.f32 %v927, %v1094
        %v1137 = vadd.f32 %v928, %v1099
        %v1138 = vadd.f32 %v929, %v1102
        %v1139 = vadd.f32 %v930, %v1107
        %v1140 = vadd.f32 %v931, %v1110
        %v1141 = vadd.f32 %v932, %v1115
        %v1142 = vadd.f32 %v933, %v1118
        %v1143 = vadd.f32 %v934, %v1123
        %v1144 = vadd.f32 %v935, %v1126
        %1145 = vst [vmem:[#allocation3] sm:$0xff] %v1129
        %1146 = vst [vmem:[#allocation3 + $0x8] sm:$0xff] %v1130
        %1147 = vst [vmem:[#allocation3 + $0x10] sm:$0xff] %v1131
        %1148 = vst [vmem:[#allocation3 + $0x18] sm:$0xff] %v1132
        %1149 = vst [vmem:[#allocation3 + $0x20] sm:$0xff] %v1133
        %1150 = vst [vmem:[#allocation3 + $0x28] sm:$0xff] %v1134
        %1151 = vst [vmem:[#allocation3 + $0x30] sm:$0xff] %v1135
        %1152 = vst [vmem:[#allocation3 + $0x38] sm:$0xff] %v1136
        %1153 = vst [vmem:[#allocation3 + $0x40] sm:$0xff] %v1137
        %1154 = vst [vmem:[#allocation3 + $0x48] sm:$0xff] %v1138
        %1155 = vst [vmem:[#allocation3 + $0x50] sm:$0xff] %v1139
        %1156 = vst [vmem:[#allocation3 + $0x58] sm:$0xff] %v1140
        %1157 = vst [vmem:[#allocation3 + $0x60] sm:$0xff] %v1141
        %1158 = vst [vmem:[#allocation3 + $0x68] sm:$0xff] %v1142
        %1159 = vst [vmem:[#allocation3 + $0x70] sm:$0xff] %v1143
        %1160 = vst [vmem:[#allocation3 + $0x78] sm:$0xff] %v1144
        %v1161 = vld [vmem:[#allocation4] sm:$0xff]
        %v1162 = vld [vmem:[#allocation4 + $0x8] sm:$0xff]
        %v1163 = vld [vmem:[#allocation4 + $0x10] sm:$0xff]
        %v1164 = vld [vmem:[#allocation4 + $0x18] sm:$0xff]
        %v1165 = vld [vmem:[#allocation4 + $0x20] sm:$0xff]
        %v1166 = vld [vmem:[#allocation4 + $0x28] sm:$0xff]
        %v1167 = vld [vmem:[#allocation4 + $0x30] sm:$0xff]
        %v1168 = vld [vmem:[#allocation4 + $0x38] sm:$0xff]
        %v1169 = vld [vmem:[#allocation4 + $0x40] sm:$0xff]
        %v1170 = vld [vmem:[#allocation4 + $0x48] sm:$0xff]
        %v1171 = vld [vmem:[#allocation4 + $0x50] sm:$0xff]
        %v1172 = vld [vmem:[#allocation4 + $0x58] sm:$0xff]
        %v1173 = vld [vmem:[#allocation4 + $0x60] sm:$0xff]
        %v1174 = vld [vmem:[#allocation4 + $0x68] sm:$0xff]
        %v1175 = vld [vmem:[#allocation4 + $0x70] sm:$0xff]
        %v1176 = vld [vmem:[#allocation4 + $0x78] sm:$0xff]
        %v1177 = vld [vmem:[%s532] sm:$0xf]
        %v1178 = vld [vmem:[%s532 + $0x4] sm:$0xf]
        %v1179 = vld [vmem:[%s532 + $0x8] sm:$0xf]
        %v1180 = vld [vmem:[%s532 + $0xc] sm:$0xf]
        %v1181 = vld [vmem:[%s532 + $0x10] sm:$0xf]
        %v1182 = vld [vmem:[%s532 + $0x14] sm:$0xf]
        %v1183 = vld [vmem:[%s532 + $0x18] sm:$0xf]
        %v1184 = vld [vmem:[%s532 + $0x1c] sm:$0xf]
        %v1185 = vld [vmem:[%s532 + $0x20] sm:$0xf]
        %v1186 = vld [vmem:[%s532 + $0x24] sm:$0xf]
        %v1187 = vld [vmem:[%s532 + $0x28] sm:$0xf]
        %v1188 = vld [vmem:[%s532 + $0x2c] sm:$0xf]
        %v1189 = vld [vmem:[%s532 + $0x30] sm:$0xf]
        %v1190 = vld [vmem:[%s532 + $0x34] sm:$0xf]
        %v1191 = vld [vmem:[%s532 + $0x38] sm:$0xf]
        %v1192 = vld [vmem:[%s532 + $0x3c] sm:$0xf]
        %v1209 = vunpack.c.l.b16 %v1177
        %v1210 = vunpack.c.l.b16 %v1178
        %v1211 = vunpack.c.l.b16 %v1179
        %v1212 = vunpack.c.l.b16 %v1180
        %v1213 = vunpack.c.l.b16 %v1181
        %v1214 = vunpack.c.l.b16 %v1182
        %v1215 = vunpack.c.l.b16 %v1183
        %v1216 = vunpack.c.l.b16 %v1184
        %v1217 = vunpack.c.l.b16 %v1185
        %v1218 = vunpack.c.l.b16 %v1186
        %v1219 = vunpack.c.l.b16 %v1187
        %v1220 = vunpack.c.l.b16 %v1188
        %v1221 = vunpack.c.l.b16 %v1189
        %v1222 = vunpack.c.l.b16 %v1190
        %v1223 = vunpack.c.l.b16 %v1191
        %v1224 = vunpack.c.l.b16 %v1192
        %v1225 = vpack.c.b16 %v1210, %v1209
        %v1226 = vpack.c.b16 %v1212, %v1211
        %v1227 = vpack.c.b16 %v1214, %v1213
        %v1228 = vpack.c.b16 %v1216, %v1215
        %v1229 = vpack.c.b16 %v1218, %v1217
        %v1230 = vpack.c.b16 %v1220, %v1219
        %v1231 = vpack.c.b16 %v1222, %v1221
        %v1232 = vpack.c.b16 %v1224, %v1223
        %v1257 = vunpack.c.l.b16 %v632
        %v1258 = vunpack.c.l.b16 %v634
        %v1259 = vunpack.c.l.b16 %v636
        %v1260 = vunpack.c.l.b16 %v638
        %v1261 = vunpack.c.l.b16 %v640
        %v1262 = vunpack.c.l.b16 %v642
        %v1263 = vunpack.c.l.b16 %v644
        %v1264 = vunpack.c.l.b16 %v646
        %v1265 = vunpack.c.l.b16 %v648
        %v1266 = vunpack.c.l.b16 %v650
        %v1267 = vunpack.c.l.b16 %v652
        %v1268 = vunpack.c.l.b16 %v654
        %v1269 = vunpack.c.l.b16 %v656
        %v1270 = vunpack.c.l.b16 %v658
        %v1271 = vunpack.c.l.b16 %v660
        %v1272 = vunpack.c.l.b16 %v662
        %v1273 = vpack.c.b16 %v1258, %v1257
        %v1274 = vpack.c.b16 %v1260, %v1259
        %v1275 = vpack.c.b16 %v1262, %v1261
        %v1276 = vpack.c.b16 %v1264, %v1263
        %v1277 = vpack.c.b16 %v1266, %v1265
        %v1278 = vpack.c.b16 %v1268, %v1267
        %v1279 = vpack.c.b16 %v1270, %v1269
        %v1280 = vpack.c.b16 %v1272, %v1271
        %1289 = vmatprep.subr.bf16.mxu0 0
        %1290 = vmatpush1.bf16.msra.mxu0 %v1273
        %1291 = vmatprep.subr.bf16.mxu0 0
        %1292 = vmatpush1.bf16.msra.mxu0 %v1274
        %1293 = vmatprep.subr.bf16.mxu0 0
        %1294 = vmatpush1.bf16.msra.mxu0 %v1275
        %1295 = vmatprep.subr.bf16.mxu0 0
        %1296 = vmatpush1.bf16.msra.mxu0 %v1276
        %1297 = vmatprep.subr.bf16.mxu0 0
        %1298 = vmatpush1.bf16.msra.mxu0 %v1277
        %1299 = vmatprep.subr.bf16.mxu0 0
        %1300 = vmatpush1.bf16.msra.mxu0 %v1278
        %1301 = vmatprep.subr.bf16.mxu0 0
        %1302 = vmatpush1.bf16.msra.mxu0 %v1279
        %1303 = vmatprep.subr.bf16.mxu0 0
        %1304 = vmatpush1.bf16.msra.mxu0 %v1280
        %1305 = vmatprep.subr.bf16.mxu0 0
        %1306 = vmatpush1.bf16.msra.mxu0 0
        %1307 = vmatprep.subr.bf16.mxu0 0
        %1308 = vmatpush1.bf16.msra.mxu0 0
        %1309 = vmatprep.subr.bf16.mxu0 0
        %1310 = vmatpush1.bf16.msra.mxu0 0
        %1311 = vmatprep.subr.bf16.mxu0 0
        %1312 = vmatpush1.bf16.msra.mxu0 0
        %1313 = vmatprep.subr.bf16.mxu0 0
        %1314 = vmatpush1.bf16.msra.mxu0 0
        %1315 = vmatprep.subr.bf16.mxu0 0
        %1316 = vmatpush1.bf16.msra.mxu0 0
        %1317 = vmatprep.subr.bf16.mxu0 0
        %1318 = vmatpush1.bf16.msra.mxu0 0
        %1319 = vmatprep.subr.bf16.mxu0 0
        %1320 = vmatpush1.bf16.msra.mxu0 0
        %1321 = vmatprep.mubr.bf16.mxu0 0
        %1322 = vmatmul.mubr.bf16.gmra.mrb[0].mxu0 %v1225
        %v1323 = vpop.f32.mrb[0].mxu0
        %v1324 = vadd.f32 0.0, %v1323
        %v1325 = vpop.f32.mrb[0].mxu0
        %v1326 = vpop.f32.mrb[0].mxu0
        %v1327 = vadd.f32 0.0, %v1326
        %v1328 = vpop.f32.mrb[0].mxu0
        %1329 = vmatprep.mubr.bf16.mxu0 0
        %1330 = vmatmul.mubr.bf16.gmra.mrb[0].mxu0 %v1226
        %v1331 = vpop.f32.mrb[0].mxu0
        %v1332 = vadd.f32 0.0, %v1331
        %v1333 = vpop.f32.mrb[0].mxu0
        %v1334 = vpop.f32.mrb[0].mxu0
        %v1335 = vadd.f32 0.0, %v1334
        %v1336 = vpop.f32.mrb[0].mxu0
        %1337 = vmatprep.mubr.bf16.mxu0 0
        %1338 = vmatmul.mubr.bf16.gmra.mrb[0].mxu0 %v1227
        %v1339 = vpop.f32.mrb[0].mxu0
        %v1340 = vadd.f32 0.0, %v1339
        %v1341 = vpop.f32.mrb[0].mxu0
        %v1342 = vpop.f32.mrb[0].mxu0
        %v1343 = vadd.f32 0.0, %v1342
        %v1344 = vpop.f32.mrb[0].mxu0
        %1345 = vmatprep.mubr.bf16.mxu0 0
        %1346 = vmatmul.mubr.bf16.gmra.mrb[0].mxu0 %v1228
        %v1347 = vpop.f32.mrb[0].mxu0
        %v1348 = vadd.f32 0.0, %v1347
        %v1349 = vpop.f32.mrb[0].mxu0
        %v1350 = vpop.f32.mrb[0].mxu0
        %v1351 = vadd.f32 0.0, %v1350
        %v1352 = vpop.f32.mrb[0].mxu0
        %1353 = vmatprep.mubr.bf16.mxu0 0
        %1354 = vmatmul.mubr.bf16.gmra.mrb[0].mxu0 %v1229
        %v1355 = vpop.f32.mrb[0].mxu0
        %v1356 = vadd.f32 0.0, %v1355
        %v1357 = vpop.f32.mrb[0].mxu0
        %v1358 = vpop.f32.mrb[0].mxu0
        %v1359 = vadd.f32 0.0, %v1358
        %v1360 = vpop.f32.mrb[0].mxu0
        %1361 = vmatprep.mubr.bf16.mxu0 0
        %1362 = vmatmul.mubr.bf16.gmra.mrb[0].mxu0 %v1230
        %v1363 = vpop.f32.mrb[0].mxu0
        %v1364 = vadd.f32 0.0, %v1363
        %v1365 = vpop.f32.mrb[0].mxu0
        %v1366 = vpop.f32.mrb[0].mxu0
        %v1367 = vadd.f32 0.0, %v1366
        %v1368 = vpop.f32.mrb[0].mxu0
        %1369 = vmatprep.mubr.bf16.mxu0 0
        %1370 = vmatmul.mubr.bf16.gmra.mrb[0].mxu0 %v1231
        %v1371 = vpop.f32.mrb[0].mxu0
        %v1372 = vadd.f32 0.0, %v1371
        %v1373 = vpop.f32.mrb[0].mxu0
        %v1374 = vpop.f32.mrb[0].mxu0
        %v1375 = vadd.f32 0.0, %v1374
        %v1376 = vpop.f32.mrb[0].mxu0
        %1377 = vmatprep.mubr.bf16.mxu0 0
        %1378 = vmatmul.mubr.bf16.gmra.mrb[0].mxu0 %v1232
        %v1379 = vpop.f32.mrb[0].mxu0
        %v1380 = vadd.f32 0.0, %v1379
        %v1381 = vpop.f32.mrb[0].mxu0
        %v1382 = vpop.f32.mrb[0].mxu0
        %v1383 = vadd.f32 0.0, %v1382
        %v1384 = vpop.f32.mrb[0].mxu0
        %1385 = vdwg.mxu0
        %v1386 = vadd.f32 %v1161, %v1324
        %v1387 = vadd.f32 %v1162, %v1327
        %v1388 = vadd.f32 %v1163, %v1332
        %v1389 = vadd.f32 %v1164, %v1335
        %v1390 = vadd.f32 %v1165, %v1340
        %v1391 = vadd.f32 %v1166, %v1343
        %v1392 = vadd.f32 %v1167, %v1348
        %v1393 = vadd.f32 %v1168, %v1351
        %v1394 = vadd.f32 %v1169, %v1356
        %v1395 = vadd.f32 %v1170, %v1359
        %v1396 = vadd.f32 %v1171, %v1364
        %v1397 = vadd.f32 %v1172, %v1367
        %v1398 = vadd.f32 %v1173, %v1372
        %v1399 = vadd.f32 %v1174, %v1375
        %v1400 = vadd.f32 %v1175, %v1380
        %v1401 = vadd.f32 %v1176, %v1383
        %1402 = vst [vmem:[#allocation4] sm:$0xff] %v1386
        %1403 = vst [vmem:[#allocation4 + $0x8] sm:$0xff] %v1387
        %1404 = vst [vmem:[#allocation4 + $0x10] sm:$0xff] %v1388
        %1405 = vst [vmem:[#allocation4 + $0x18] sm:$0xff] %v1389
        %1406 = vst [vmem:[#allocation4 + $0x20] sm:$0xff] %v1390
        %1407 = vst [vmem:[#allocation4 + $0x28] sm:$0xff] %v1391
        %1408 = vst [vmem:[#allocation4 + $0x30] sm:$0xff] %v1392
        %1409 = vst [vmem:[#allocation4 + $0x38] sm:$0xff] %v1393
        %1410 = vst [vmem:[#allocation4 + $0x40] sm:$0xff] %v1394
        %1411 = vst [vmem:[#allocation4 + $0x48] sm:$0xff] %v1395
        %1412 = vst [vmem:[#allocation4 + $0x50] sm:$0xff] %v1396
        %1413 = vst [vmem:[#allocation4 + $0x58] sm:$0xff] %v1397
        %1414 = vst [vmem:[#allocation4 + $0x60] sm:$0xff] %v1398
        %1415 = vst [vmem:[#allocation4 + $0x68] sm:$0xff] %v1399
        %1416 = vst [vmem:[#allocation4 + $0x70] sm:$0xff] %v1400
        %1417 = vst [vmem:[#allocation4 + $0x78] sm:$0xff] %v1401
        %p1418 = scmp.eq.s32.totalorder %s20, 1
        // Predicated region
        $region164: #{forward.5} parent=146 // pred_check
          %p1419 = pneg %p1418
        $region165: #{forward.5} parent=146 // pred_check_branch
          %1421 = sbr.rel (%p1419) target = $region167
        $region166: #{forward.5} parent=146 // pred_region
          %v1422 = vld [vmem:[#allocation2] sm:$0xff]
          %v1423 = vld [vmem:[#allocation2 + $0x8] sm:$0xff]
          %v1424 = vld [vmem:[#allocation2 + $0x10] sm:$0xff]
          %v1425 = vld [vmem:[#allocation2 + $0x18] sm:$0xff]
          %v1426 = vld [vmem:[#allocation2 + $0x20] sm:$0xff]
          %v1427 = vld [vmem:[#allocation2 + $0x28] sm:$0xff]
          %v1428 = vld [vmem:[#allocation2 + $0x30] sm:$0xff]
          %v1429 = vld [vmem:[#allocation2 + $0x38] sm:$0xff]
          %v1430 = vld [vmem:[#allocation2 + $0x40] sm:$0xff]
          %v1431 = vld [vmem:[#allocation2 + $0x48] sm:$0xff]
          %v1432 = vld [vmem:[#allocation2 + $0x50] sm:$0xff]
          %v1433 = vld [vmem:[#allocation2 + $0x58] sm:$0xff]
          %v1434 = vld [vmem:[#allocation2 + $0x60] sm:$0xff]
          %v1435 = vld [vmem:[#allocation2 + $0x68] sm:$0xff]
          %v1436 = vld [vmem:[#allocation2 + $0x70] sm:$0xff]
          %v1437 = vld [vmem:[#allocation2 + $0x78] sm:$0xff]
          %v1438 = vmax.f32 %v1422, 0.0
          %v1439 = vmax.f32 %v1423, 0.0
          %v1440 = vmax.f32 %v1424, 0.0
          %v1441 = vmax.f32 %v1425, 0.0
          %v1442 = vmax.f32 %v1426, 0.0
          %v1443 = vmax.f32 %v1427, 0.0
          %v1444 = vmax.f32 %v1428, 0.0
          %v1445 = vmax.f32 %v1429, 0.0
          %v1446 = vmax.f32 %v1430, 0.0
          %v1447 = vmax.f32 %v1431, 0.0
          %v1448 = vmax.f32 %v1432, 0.0
          %v1449 = vmax.f32 %v1433, 0.0
          %v1450 = vmax.f32 %v1434, 0.0
          %v1451 = vmax.f32 %v1435, 0.0
          %v1452 = vmax.f32 %v1436, 0.0
          %v1453 = vmax.f32 %v1437, 0.0
          %v1454 = vld [vmem:[#allocation3] sm:$0xff]
          %v1455 = vld [vmem:[#allocation3 + $0x8] sm:$0xff]
          %v1456 = vld [vmem:[#allocation3 + $0x10] sm:$0xff]
          %v1457 = vld [vmem:[#allocation3 + $0x18] sm:$0xff]
          %v1458 = vld [vmem:[#allocation3 + $0x20] sm:$0xff]
          %v1459 = vld [vmem:[#allocation3 + $0x28] sm:$0xff]
          %v1460 = vld [vmem:[#allocation3 + $0x30] sm:$0xff]
          %v1461 = vld [vmem:[#allocation3 + $0x38] sm:$0xff]
          %v1462 = vld [vmem:[#allocation3 + $0x40] sm:$0xff]
          %v1463 = vld [vmem:[#allocation3 + $0x48] sm:$0xff]
          %v1464 = vld [vmem:[#allocation3 + $0x50] sm:$0xff]
          %v1465 = vld [vmem:[#allocation3 + $0x58] sm:$0xff]
          %v1466 = vld [vmem:[#allocation3 + $0x60] sm:$0xff]
          %v1467 = vld [vmem:[#allocation3 + $0x68] sm:$0xff]
          %v1468 = vld [vmem:[#allocation3 + $0x70] sm:$0xff]
          %v1469 = vld [vmem:[#allocation3 + $0x78] sm:$0xff]
          %v1470 = vmax.f32 %v1454, 0.0
          %v1471 = vmax.f32 %v1455, 0.0
          %v1472 = vmax.f32 %v1456, 0.0
          %v1473 = vmax.f32 %v1457, 0.0
          %v1474 = vmax.f32 %v1458, 0.0
          %v1475 = vmax.f32 %v1459, 0.0
          %v1476 = vmax.f32 %v1460, 0.0
          %v1477 = vmax.f32 %v1461, 0.0
          %v1478 = vmax.f32 %v1462, 0.0
          %v1479 = vmax.f32 %v1463, 0.0
          %v1480 = vmax.f32 %v1464, 0.0
          %v1481 = vmax.f32 %v1465, 0.0
          %v1482 = vmax.f32 %v1466, 0.0
          %v1483 = vmax.f32 %v1467, 0.0
          %v1484 = vmax.f32 %v1468, 0.0
          %v1485 = vmax.f32 %v1469, 0.0
          %v1486 = vadd.f32 %v1438, %v1470
          %v1487 = vadd.f32 %v1439, %v1471
          %v1488 = vadd.f32 %v1440, %v1472
          %v1489 = vadd.f32 %v1441, %v1473
          %v1490 = vadd.f32 %v1442, %v1474
          %v1491 = vadd.f32 %v1443, %v1475
          %v1492 = vadd.f32 %v1444, %v1476
          %v1493 = vadd.f32 %v1445, %v1477
          %v1494 = vadd.f32 %v1446, %v1478
          %v1495 = vadd.f32 %v1447, %v1479
          %v1496 = vadd.f32 %v1448, %v1480
          %v1497 = vadd.f32 %v1449, %v1481
          %v1498 = vadd.f32 %v1450, %v1482
          %v1499 = vadd.f32 %v1451, %v1483
          %v1500 = vadd.f32 %v1452, %v1484
          %v1501 = vadd.f32 %v1453, %v1485
          %v1502 = vld [vmem:[#allocation4] sm:$0xff]
          %v1503 = vld [vmem:[#allocation4 + $0x8] sm:$0xff]
          %v1504 = vld [vmem:[#allocation4 + $0x10] sm:$0xff]
          %v1505 = vld [vmem:[#allocation4 + $0x18] sm:$0xff]
          %v1506 = vld [vmem:[#allocation4 + $0x20] sm:$0xff]
          %v1507 = vld [vmem:[#allocation4 + $0x28] sm:$0xff]
          %v1508 = vld [vmem:[#allocation4 + $0x30] sm:$0xff]
          %v1509 = vld [vmem:[#allocation4 + $0x38] sm:$0xff]
          %v1510 = vld [vmem:[#allocation4 + $0x40] sm:$0xff]
          %v1511 = vld [vmem:[#allocation4 + $0x48] sm:$0xff]
          %v1512 = vld [vmem:[#allocation4 + $0x50] sm:$0xff]
          %v1513 = vld [vmem:[#allocation4 + $0x58] sm:$0xff]
          %v1514 = vld [vmem:[#allocation4 + $0x60] sm:$0xff]
          %v1515 = vld [vmem:[#allocation4 + $0x68] sm:$0xff]
          %v1516 = vld [vmem:[#allocation4 + $0x70] sm:$0xff]
          %v1517 = vld [vmem:[#allocation4 + $0x78] sm:$0xff]
          %v1518 = vmax.f32 %v1502, 0.0
          %v1519 = vmax.f32 %v1503, 0.0
          %v1520 = vmax.f32 %v1504, 0.0
          %v1521 = vmax.f32 %v1505, 0.0
          %v1522 = vmax.f32 %v1506, 0.0
          %v1523 = vmax.f32 %v1507, 0.0
          %v1524 = vmax.f32 %v1508, 0.0
          %v1525 = vmax.f32 %v1509, 0.0
          %v1526 = vmax.f32 %v1510, 0.0
          %v1527 = vmax.f32 %v1511, 0.0
          %v1528 = vmax.f32 %v1512, 0.0
          %v1529 = vmax.f32 %v1513, 0.0
          %v1530 = vmax.f32 %v1514, 0.0
          %v1531 = vmax.f32 %v1515, 0.0
          %v1532 = vmax.f32 %v1516, 0.0
          %v1533 = vmax.f32 %v1517, 0.0
          %v1534 = vadd.f32 %v1486, %v1518
          %v1535 = vadd.f32 %v1487, %v1519
          %v1536 = vadd.f32 %v1488, %v1520
          %v1537 = vadd.f32 %v1489, %v1521
          %v1538 = vadd.f32 %v1490, %v1522
          %v1539 = vadd.f32 %v1491, %v1523
          %v1540 = vadd.f32 %v1492, %v1524
          %v1541 = vadd.f32 %v1493, %v1525
          %v1542 = vadd.f32 %v1494, %v1526
          %v1543 = vadd.f32 %v1495, %v1527
          %v1544 = vadd.f32 %v1496, %v1528
          %v1545 = vadd.f32 %v1497, %v1529
          %v1546 = vadd.f32 %v1498, %v1530
          %v1547 = vadd.f32 %v1499, %v1531
          %v1548 = vadd.f32 %v1500, %v1532
          %v1549 = vadd.f32 %v1501, %v1533
          %v1550 = vmul.f32 %v1534, 0.33333334
          %v1551 = vmul.f32 %v1535, 0.33333334
          %v1552 = vmul.f32 %v1536, 0.33333334
          %v1553 = vmul.f32 %v1537, 0.33333334
          %v1554 = vmul.f32 %v1538, 0.33333334
          %v1555 = vmul.f32 %v1539, 0.33333334
          %v1556 = vmul.f32 %v1540, 0.33333334
          %v1557 = vmul.f32 %v1541, 0.33333334
          %v1558 = vmul.f32 %v1542, 0.33333334
          %v1559 = vmul.f32 %v1543, 0.33333334
          %v1560 = vmul.f32 %v1544, 0.33333334
          %v1561 = vmul.f32 %v1545, 0.33333334
          %v1562 = vmul.f32 %v1546, 0.33333334
          %v1563 = vmul.f32 %v1547, 0.33333334
          %v1564 = vmul.f32 %v1548, 0.33333334
          %v1565 = vmul.f32 %v1549, 0.33333334
          %v1566 = vpack.c.bf16 %v1551, %v1550
          %v1567 = vpack.c.bf16 %v1553, %v1552
          %v1568 = vpack.c.bf16 %v1555, %v1554
          %v1569 = vpack.c.bf16 %v1557, %v1556
          %v1570 = vpack.c.bf16 %v1559, %v1558
          %v1571 = vpack.c.bf16 %v1561, %v1560
          %v1572 = vpack.c.bf16 %v1563, %v1562
          %v1573 = vpack.c.bf16 %v1565, %v1564
          %v1582 = vunpack.c.l.b16 %v1566
          %v1583 = vunpack.c.h.b16 %v1566
          %v1584 = vunpack.c.l.b16 %v1567
          %v1585 = vunpack.c.h.b16 %v1567
          %v1586 = vunpack.c.l.b16 %v1568
          %v1587 = vunpack.c.h.b16 %v1568
          %v1588 = vunpack.c.l.b16 %v1569
          %v1589 = vunpack.c.h.b16 %v1569
          %v1590 = vunpack.c.l.b16 %v1570
          %v1591 = vunpack.c.h.b16 %v1570
          %v1592 = vunpack.c.l.b16 %v1571
          %v1593 = vunpack.c.h.b16 %v1571
          %v1594 = vunpack.c.l.b16 %v1572
          %v1595 = vunpack.c.h.b16 %v1572
          %v1596 = vunpack.c.l.b16 %v1573
          %v1597 = vunpack.c.h.b16 %v1573
          %v1598 = vpack.c.b16 %v1582, %v1582
          %v1599 = vpack.c.b16 %v1583, %v1583
          %v1600 = vpack.c.b16 %v1584, %v1584
          %v1601 = vpack.c.b16 %v1585, %v1585
          %v1602 = vpack.c.b16 %v1586, %v1586
          %v1603 = vpack.c.b16 %v1587, %v1587
          %v1604 = vpack.c.b16 %v1588, %v1588
          %v1605 = vpack.c.b16 %v1589, %v1589
          %v1606 = vpack.c.b16 %v1590, %v1590
          %v1607 = vpack.c.b16 %v1591, %v1591
          %v1608 = vpack.c.b16 %v1592, %v1592
          %v1609 = vpack.c.b16 %v1593, %v1593
          %v1610 = vpack.c.b16 %v1594, %v1594
          %v1611 = vpack.c.b16 %v1595, %v1595
          %v1612 = vpack.c.b16 %v1596, %v1596
          %v1613 = vpack.c.b16 %v1597, %v1597
          %1630 = vst [vmem:[%s570] sm:$0xf] %v1598
          %1631 = vst [vmem:[%s570 + $0x4] sm:$0xf] %v1599
          %1632 = vst [vmem:[%s570 + $0x8] sm:$0xf] %v1600
          %1633 = vst [vmem:[%s570 + $0xc] sm:$0xf] %v1601
          %1634 = vst [vmem:[%s570 + $0x10] sm:$0xf] %v1602
          %1635 = vst [vmem:[%s570 + $0x14] sm:$0xf] %v1603
          %1636 = vst [vmem:[%s570 + $0x18] sm:$0xf] %v1604
          %1637 = vst [vmem:[%s570 + $0x1c] sm:$0xf] %v1605
          %1638 = vst [vmem:[%s570 + $0x20] sm:$0xf] %v1606
          %1639 = vst [vmem:[%s570 + $0x24] sm:$0xf] %v1607
          %1640 = vst [vmem:[%s570 + $0x28] sm:$0xf] %v1608
          %1641 = vst [vmem:[%s570 + $0x2c] sm:$0xf] %v1609
          %1642 = vst [vmem:[%s570 + $0x30] sm:$0xf] %v1610
          %1643 = vst [vmem:[%s570 + $0x34] sm:$0xf] %v1611
          %1644 = vst [vmem:[%s570 + $0x38] sm:$0xf] %v1612
          %1645 = vst [vmem:[%s570 + $0x3c] sm:$0xf] %v1613
        $region167: #{forward.5} parent=146 // pred_fallthru
          _
        %s1646 = smul.u32 16, %s19
        %p1647 = scmp.lt.s32.totalorder %s1646, 31
        %s1648 = scalar_select %p1647, %s1646, 31
        %s1649 = smul.addr %s1648, 4
        %s1650 = scalar_lea.vmem %s4, %s1649
        // Predicated region
        $region168: #{forward.5} parent=146 // pred_check
          %p1651 = pneg %p150
        $region169: #{forward.5} parent=146 // pred_check_branch
          %1653 = sbr.rel (%p1651) target = $region171
        $region170: #{forward.5} parent=146 // pred_region
          %s1654 = smul.u32 16, %s19
        $region171: #{forward.5} parent=146 // pred_fallthru
          _
      $region147: #{forward.5} parent=5 // pred_fallthru
        _
      %p1655 = scmp.le.s32.totalorder 2, %s10
      // Predicated region
      $region172: #{forward.5} parent=5 // pred_check
        %p1656 = pneg %p1655
      $region173: #{forward.5} parent=5 // pred_check_branch
        %1658 = sbr.rel (%p1656) target = $region175
      $region174: #{forward.5} parent=5 // pred_region
        %s1659 = ssub.s32 %s10, 2
        // Predicated region
        $region176: #{forward.5} parent=174 // pred_check
          %p1660 = pneg %p156
        $region177: #{forward.5} parent=174 // pred_check_branch
          %1662 = sbr.rel (%p1660) target = $region179
        $region178: #{forward.5} parent=174 // pred_region
          %s1663 = smul.u32 16, %s21
          %p1664 = scmp.lt.s32.totalorder %s1663, 31
          %s1665 = scalar_select %p1664, %s1663, 31
          %s1666 = smul.addr %s1665, 4
          %s1667 = scalar_lea.vmem %s4, %s1666
        $region179: #{forward.5} parent=174 // pred_fallthru
          _
      $region175: #{forward.5} parent=5 // pred_fallthru
        _
    $region6: #{forward.5} parent=1 // loop_footer
      %s14 = sadd.s32 1, %s10
    $region7: #{forward.5} parent=1 // loop_footer_branch
      %9 = sbr.rel target = $region3
    $region8: #{forward.5} parent=1 // loop_exit
      _

// kernel: forward.6
$region0: #{forward.6}
  #allocation0 [shape = 'u32[]', space=smem, size = 0x4, offset = 0x4, fixed_abs, tag = 'smem constant byte address 0x4 - core index']
  #allocation1 [shape = 'u32[144,128]{1,0:T(1,128)}', space=vmem, size = 0x12000, scoped, tag = 'internal scratch']
  #allocation2 [shape = 'f32[128,128]{1,0:T(8,128)}', space=vmem, size = 0x10000, scoped, tag = 'scratch operand']
  #allocation3 [shape = 'f32[128,128]{1,0:T(8,128)}', space=vmem, size = 0x10000, scoped, tag = 'scratch operand']
  #allocation4 [shape = 'f32[128,128]{1,0:T(8,128)}', space=vmem, size = 0x10000, scoped, tag = 'scratch operand']
  %s0 = inlined_call_operand.vmem [shape: bf16[256,128], index: 0, kind: input, shape index: {}]
  %s1 = inlined_call_operand.vmem [shape: bf16[128,384], index: 1, kind: input, shape index: {}]
  %s2 = inlined_call_operand.vmem [shape: bf16[256,256], index: 2, kind: input, shape index: {}]
  %s3 = inlined_call_operand.vmem [shape: bf16[256,256], index: 3, kind: input, shape index: {}]
  %s4 = inlined_call_operand.vmem [shape: bf16[256,256], index: 4, kind: input, shape index: {}]
  %s5 = inlined_call_operand.vmem [shape: bf16[256,128], index: 5, kind: output, shape index: {}]
  %s6 = sld [smem:[#allocation0]]
  $region184: #{forward.6} parent=0
    _
  %s8 = ssub.s32 1, %s6
  %s9 = scalar_select 0, %s8, %s6
  $region1: #{forward.6} parent=0
    #allocation5 [shape = 'u8[65536]{0}', space=vmem, size = 0x10000, scoped, tag = 'input window, operand 2']
    #allocation6 [shape = 'u8[65536]{0}', space=vmem, size = 0x10000, scoped, tag = 'input window, operand 3']
    #allocation7 [shape = 'u8[65536]{0}', space=vmem, size = 0x10000, scoped, tag = 'input window, operand 4']
    loop: start=0, step=1, limit=6
    $region2: #{forward.6} parent=1 // loop_pre_header
      _
    $region3: #{forward.6} parent=1 // loop_header
      %s11 = sphi 0, %s15
      %p12 = scmp.ge.s32.totalorder %s11, 6
      %s18 = sphi 0, %s30
      %s19 = sphi 0, %s26
      %s20 = sphi 0, %s18
      %s21 = sphi 0, %s19
      %s22 = sphi 0, %s20
      %s23 = sphi 0, %s21
      %s33 = sphi 0, %s35
      %s36 = sphi 0, %s33
      %s37 = sphi 0, %s36
      %s53 = sphi 0, %s37
      %s57 = sphi 0, %s57
      %s59 = sphi 0, %s57
      %s60 = sphi 0, %s59
      %s74 = sphi 0, %s60
      %s82 = sphi 0, %s84
      %s85 = sphi 0, %s82
      %s86 = sphi 0, %s85
      %s102 = sphi 0, %s86
      %s110 = sphi 0, %s112
      %s113 = sphi 0, %s110
      %s114 = sphi 0, %s113
      %s130 = sphi 0, %s114
      %s138 = sphi 0, %s140
      %s141 = sphi 0, %s138
      %s142 = sphi 0, %s141
      %s158 = sphi 0, %s142
      %s164 = sphi 0, %s166
      %s167 = sphi 0, %s164
      %s168 = sphi 0, %s167
      %s184 = sphi 0, %s168
    $region4: #{forward.6} parent=1 // loop_header_branch
      %14 = sbr.rel (%p12) target = $region8
    $region5: #{forward.6} parent=1 // loop_body
      %s16 = ssub.s32 %s11, 1
      %s17 = ssub.s32 %s11, 2
      %s24 = sadd.s32 1, %s19
      %p25 = scmp.ge.s32.totalorder %s24, 2
      %s26 = scalar_select %p25, 0, %s24
      %s27 = sadd.s32 1, %s18
      %s28 = scalar_select %p25, %s27, %s18
      %p29 = scmp.ge.s32.totalorder %s28, 2
      %s30 = scalar_select %p29, 0, %s28
      %s31 = ssub.s32 %s19, %s26
      %p32 = scmp.eq.s32.totalorder %s31, 0
      %s34 = sadd.s32 %s33, 1
      %s35 = scalar_select %p32, %s33, %s34
      %p38 = pneg %p32
      %p39 = scmp.eq.s32.totalorder %s11, 3
      %p40 = por %p38, %p39
      %p41 = scmp.ne.s32.totalorder %s33, %s36
      %p42 = scmp.eq.s32.totalorder %s11, 0
      %p43 = por %p41, %p42
      %p44 = scmp.ne.s32.totalorder %s33, %s36
      %p45 = scmp.eq.s32.totalorder %s16, 3
      %p46 = por %p44, %p45
      %p47 = scmp.ne.s32.totalorder %s36, %s37
      %p48 = scmp.eq.s32.totalorder %s16, 0
      %p49 = por %p47, %p48
      %p50 = scmp.ne.s32.totalorder %s36, %s37
      %p51 = scmp.eq.s32.totalorder %s17, 3
      %p52 = por %p50, %p51
      %p54 = scmp.ne.s32.totalorder %s37, %s53
      %p55 = scmp.eq.s32.totalorder %s17, 0
      %p56 = por %p54, %p55
      %s58 = sadd.s32 %s57, 1
      %p61 = scmp.eq.s32.totalorder %s11, 3
      %p62 = scmp.ne.s32.totalorder %s57, %s59
      %p63 = scmp.eq.s32.totalorder %s11, 0
      %p64 = por %p62, %p63
      %p65 = scmp.ne.s32.totalorder %s57, %s59
      %p66 = scmp.eq.s32.totalorder %s16, 3
      %p67 = por %p65, %p66
      %p68 = scmp.ne.s32.totalorder %s59, %s60
      %p69 = scmp.eq.s32.totalorder %s16, 0
      %p70 = por %p68, %p69
      %p71 = scmp.ne.s32.totalorder %s59, %s60
      %p72 = scmp.eq.s32.totalorder %s17, 3
      %p73 = por %p71, %p72
      %p75 = scmp.ne.s32.totalorder %s60, %s74
      %p76 = scmp.eq.s32.totalorder %s17, 0
      %p77 = por %p75, %p76
      %s78 = ssub.s32 %s18, %s30
      %s79 = ssub.s32 %s19, %s26
      %s80 = sor.u32 %s78, %s79
      %p81 = scmp.eq.s32.totalorder %s80, 0
      %s83 = sadd.s32 %s82, 1
      %s84 = scalar_select %p81, %s82, %s83
      %p87 = pneg %p81
      %p88 = scmp.eq.s32.totalorder %s11, 3
      %p89 = por %p87, %p88
      %p90 = scmp.ne.s32.totalorder %s82, %s85
      %p91 = scmp.eq.s32.totalorder %s11, 0
      %p92 = por %p90, %p91
      %p93 = scmp.ne.s32.totalorder %s82, %s85
      %p94 = scmp.eq.s32.totalorder %s16, 3
      %p95 = por %p93, %p94
      %p96 = scmp.ne.s32.totalorder %s85, %s86
      %p97 = scmp.eq.s32.totalorder %s16, 0
      %p98 = por %p96, %p97
      %p99 = scmp.ne.s32.totalorder %s85, %s86
      %p100 = scmp.eq.s32.totalorder %s17, 3
      %p101 = por %p99, %p100
      %p103 = scmp.ne.s32.totalorder %s86, %s102
      %p104 = scmp.eq.s32.totalorder %s17, 0
      %p105 = por %p103, %p104
      %s106 = ssub.s32 %s18, %s30
      %s107 = ssub.s32 %s19, %s26
      %s108 = sor.u32 %s106, %s107
      %p109 = scmp.eq.s32.totalorder %s108, 0
      %s111 = sadd.s32 %s110, 1
      %s112 = scalar_select %p109, %s110, %s111
      %p115 = pneg %p109
      %p116 = scmp.eq.s32.totalorder %s11, 3
      %p117 = por %p115, %p116
      %p118 = scmp.ne.s32.totalorder %s110, %s113
      %p119 = scmp.eq.s32.totalorder %s11, 0
      %p120 = por %p118, %p119
      %p121 = scmp.ne.s32.totalorder %s110, %s113
      %p122 = scmp.eq.s32.totalorder %s16, 3
      %p123 = por %p121, %p122
      %p124 = scmp.ne.s32.totalorder %s113, %s114
      %p125 = scmp.eq.s32.totalorder %s16, 0
      %p126 = por %p124, %p125
      %p127 = scmp.ne.s32.totalorder %s113, %s114
      %p128 = scmp.eq.s32.totalorder %s17, 3
      %p129 = por %p127, %p128
      %p131 = scmp.ne.s32.totalorder %s114, %s130
      %p132 = scmp.eq.s32.totalorder %s17, 0
      %p133 = por %p131, %p132
      %s134 = ssub.s32 %s18, %s30
      %s135 = ssub.s32 %s19, %s26
      %s136 = sor.u32 %s134, %s135
      %p137 = scmp.eq.s32.totalorder %s136, 0
      %s139 = sadd.s32 %s138, 1
      %s140 = scalar_select %p137, %s138, %s139
      %p143 = pneg %p137
      %p144 = scmp.eq.s32.totalorder %s11, 3
      %p145 = por %p143, %p144
      %p146 = scmp.ne.s32.totalorder %s138, %s141
      %p147 = scmp.eq.s32.totalorder %s11, 0
      %p148 = por %p146, %p147
      %p149 = scmp.ne.s32.totalorder %s138, %s141
      %p150 = scmp.eq.s32.totalorder %s16, 3
      %p151 = por %p149, %p150
      %p152 = scmp.ne.s32.totalorder %s141, %s142
      %p153 = scmp.eq.s32.totalorder %s16, 0
      %p154 = por %p152, %p153
      %p155 = scmp.ne.s32.totalorder %s141, %s142
      %p156 = scmp.eq.s32.totalorder %s17, 3
      %p157 = por %p155, %p156
      %p159 = scmp.ne.s32.totalorder %s142, %s158
      %p160 = scmp.eq.s32.totalorder %s17, 0
      %p161 = por %p159, %p160
      %s162 = ssub.s32 %s18, %s30
      %p163 = scmp.eq.s32.totalorder %s162, 0
      %s165 = sadd.s32 %s164, 1
      %s166 = scalar_select %p163, %s164, %s165
      %p169 = pneg %p163
      %p170 = scmp.eq.s32.totalorder %s11, 3
      %p171 = por %p169, %p170
      %p172 = scmp.ne.s32.totalorder %s164, %s167
      %p173 = scmp.eq.s32.totalorder %s11, 0
      %p174 = por %p172, %p173
      %p175 = scmp.ne.s32.totalorder %s164, %s167
      %p176 = scmp.eq.s32.totalorder %s16, 3
      %p177 = por %p175, %p176
      %p178 = scmp.ne.s32.totalorder %s167, %s168
      %p179 = scmp.eq.s32.totalorder %s16, 0
      %p180 = por %p178, %p179
      %p181 = scmp.ne.s32.totalorder %s167, %s168
      %p182 = scmp.eq.s32.totalorder %s17, 3
      %p183 = por %p181, %p182
      %p185 = scmp.ne.s32.totalorder %s168, %s184
      %p186 = scmp.eq.s32.totalorder %s17, 0
      %p187 = por %p185, %p186
      %p188 = scmp.le.s32.totalorder 1, %s11
      %p189 = scmp.lt.s32.totalorder %s11, 5
      %p190 = pnand %p188, %p189
      %p191 = pneg %p190
      // Predicated region
      $region9: #{forward.6} parent=5 // pred_check
        _
      $region10: #{forward.6} parent=5 // pred_check_branch
        %193 = sbr.rel (%p190) target = $region12
      $region11: #{forward.6} parent=5 // pred_region
        %s194 = ssub.s32 %s11, 1
        // Predicated region
        $region13: #{forward.6} parent=11 // pred_check
          %p195 = pneg %p70
        $region14: #{forward.6} parent=11 // pred_check_branch
          %197 = sbr.rel (%p195) target = $region16
        $region15: #{forward.6} parent=11 // pred_region
          _
        $region16: #{forward.6} parent=11 // pred_fallthru
          _
      $region12: #{forward.6} parent=5 // pred_fallthru
        _
      %p198 = scmp.lt.s32.totalorder %s11, 4
      // Predicated region
      $region17: #{forward.6} parent=5 // pred_check
        %p199 = pneg %p198
      $region18: #{forward.6} parent=5 // pred_check_branch
        %201 = sbr.rel (%p199) target = $region20
      $region19: #{forward.6} parent=5 // pred_region
        // Predicated region
        $region21: #{forward.6} parent=19 // pred_check
          %p202 = pneg %p43
        $region22: #{forward.6} parent=19 // pred_check_branch
          %204 = sbr.rel (%p202) target = $region24
        $region23: #{forward.6} parent=19 // pred_region
          %s205 = smul.u32 16, %s19
          %p206 = scmp.lt.s32.totalorder %s205, 31
          %s207 = scalar_select %p206, %s205, 31
          %s208 = smul.addr %s207, 4
          %s209 = scalar_lea.vmem %s0, %s208
          %s210 = smul.u32 16, %s19
        $region24: #{forward.6} parent=19 // pred_fallthru
          _
        // Predicated region
        $region25: #{forward.6} parent=19 // pred_check
          %p211 = pneg %p92
        $region26: #{forward.6} parent=19 // pred_check_branch
          %213 = sbr.rel (%p211) target = $region28
        $region27: #{forward.6} parent=19 // pred_region
          %s214 = sand.u32 %s82, 1
          %s215 = sand.u32 %s82, 1
          %s216 = smul.addr %s215, 64
          %s217 = scalar_lea.vmem [#allocation5], %s216
          %s218 = smul.u32 16, %s18
          %s219 = smul.addr %s218, 2
          %s220 = sadd.s32 %s19, %s219
          %s221 = smul.addr %s220, 4
          %s222 = scalar_lea.vmem %s2, %s221
          // Predicated region
          $region29: #{forward.6} parent=27 // pred_check
            _
          $region30: #{forward.6} parent=27 // pred_check_branch
            %224 = sbr.rel (0) target = $region32
          $region31: #{forward.6} parent=27 // pred_region
            // Predicated region
            $region33: #{forward.6} parent=31 // pred_check
              _
            $region34: #{forward.6} parent=31 // pred_check_branch
              %226 = sbr.rel target = $region36
            $region35: #{forward.6} parent=31 // pred_region
              // Predicated region
              $region48: #{forward.6} parent=35 // pred_check
                _
              $region49: #{forward.6} parent=35 // pred_check_branch
                %271 = sbr.rel (0) target = $region51
              $region50: #{forward.6} parent=35 // pred_region
                loop: start=0, step=1, limit=1
                $region52: #{forward.6} parent=50 // loop_pre_header
                  _
                $region53: #{forward.6} parent=50 // loop_header
                  %s273 = sphi 0, %s277
                  %p274 = scmp.ge.s32.totalorder %s273, 1
                  %s278 = sphi %s222, %s222
                  %s279 = sphi %s217, %s217
                $region54: #{forward.6} parent=50 // loop_header_branch
                  %276 = sbr.rel (%p274) target = $region58
                $region55: #{forward.6} parent=50 // loop_body
                  _
                $region56: #{forward.6} parent=50 // loop_footer
                  %s277 = sadd.s32 1, %s273
                $region57: #{forward.6} parent=50 // loop_footer_branch
                  %272 = sbr.rel target = $region53
                $region58: #{forward.6} parent=50 // loop_exit
                  _
                loop: start=0, step=1, limit=1
                $region59: #{forward.6} parent=50 // loop_pre_header
                  _
                $region60: #{forward.6} parent=50 // loop_header
                  %s282 = sphi 0, %s286
                  %p283 = scmp.ge.s32.totalorder %s282, 1
                  %s287 = sphi %s222, %s222
                  %s288 = sphi %s217, %s217
                $region61: #{forward.6} parent=50 // loop_header_branch
                  %285 = sbr.rel (%p283) target = $region65
                $region62: #{forward.6} parent=50 // loop_body
                  %v289 = vld [vmem:[%s287] sm:$0xf]
                  %290 = vst [vmem:[%s288] sm:$0xf] %v289
                  %v291 = vld [vmem:[%s287 + $0x8] sm:$0xf]
                  %292 = vst [vmem:[%s288 + $0x4] sm:$0xf] %v291
                  %v293 = vld [vmem:[%s287 + $0x10] sm:$0xf]
                  %294 = vst [vmem:[%s288 + $0x8] sm:$0xf] %v293
                  %v295 = vld [vmem:[%s287 + $0x18] sm:$0xf]
                  %296 = vst [vmem:[%s288 + $0xc] sm:$0xf] %v295
                  %v297 = vld [vmem:[%s287 + $0x20] sm:$0xf]
                  %298 = vst [vmem:[%s288 + $0x10] sm:$0xf] %v297
                  %v299 = vld [vmem:[%s287 + $0x28] sm:$0xf]
                  %300 = vst [vmem:[%s288 + $0x14] sm:$0xf] %v299
                  %v301 = vld [vmem:[%s287 + $0x30] sm:$0xf]
                  %302 = vst [vmem:[%s288 + $0x18] sm:$0xf] %v301
                  %v303 = vld [vmem:[%s287 + $0x38] sm:$0xf]
                  %304 = vst [vmem:[%s288 + $0x1c] sm:$0xf] %v303
                  %v305 = vld [vmem:[%s287 + $0x40] sm:$0xf]
                  %306 = vst [vmem:[%s288 + $0x20] sm:$0xf] %v305
                  %v307 = vld [vmem:[%s287 + $0x48] sm:$0xf]
                  %308 = vst [vmem:[%s288 + $0x24] sm:$0xf] %v307
                  %v309 = vld [vmem:[%s287 + $0x50] sm:$0xf]
                  %310 = vst [vmem:[%s288 + $0x28] sm:$0xf] %v309
                  %v311 = vld [vmem:[%s287 + $0x58] sm:$0xf]
                  %312 = vst [vmem:[%s288 + $0x2c] sm:$0xf] %v311
                  %v313 = vld [vmem:[%s287 + $0x60] sm:$0xf]
                  %314 = vst [vmem:[%s288 + $0x30] sm:$0xf] %v313
                  %v315 = vld [vmem:[%s287 + $0x68] sm:$0xf]
                  %316 = vst [vmem:[%s288 + $0x34] sm:$0xf] %v315
                  %v317 = vld [vmem:[%s287 + $0x70] sm:$0xf]
                  %318 = vst [vmem:[%s288 + $0x38] sm:$0xf] %v317
                  %v319 = vld [vmem:[%s287 + $0x78] sm:$0xf]
                  %320 = vst [vmem:[%s288 + $0x3c] sm:$0xf] %v319
                $region63: #{forward.6} parent=50 // loop_footer
                  %s286 = sadd.s32 1, %s282
                $region64: #{forward.6} parent=50 // loop_footer_branch
                  %281 = sbr.rel target = $region60
                $region65: #{forward.6} parent=50 // loop_exit
                  _
              $region51: #{forward.6} parent=35 // pred_fallthru
                _
            $region36: #{forward.6} parent=31 // pred_fallthru
              _
            // Predicated region
            $region37: #{forward.6} parent=31 // pred_check
              _
            $region38: #{forward.6} parent=31 // pred_check_branch
              %228 = sbr.rel (0) target = $region40
            $region39: #{forward.6} parent=31 // pred_region
              loop: start=0, step=1, limit=1
              $region41: #{forward.6} parent=39 // loop_pre_header
                _
              $region42: #{forward.6} parent=39 // loop_header
                %s231 = sphi 0, %s235
                %p232 = scmp.ge.s32.totalorder %s231, 1
                %s236 = sphi %s222, %s222
                %s237 = sphi %s217, %s217
              $region43: #{forward.6} parent=39 // loop_header_branch
                %234 = sbr.rel (%p232) target = $region47
              $region44: #{forward.6} parent=39 // loop_body
                %v238 = vld [vmem:[%s236] sm:$0xf]
                %239 = vst [vmem:[%s237] sm:$0xf] %v238
                %v240 = vld [vmem:[%s236 + $0x8] sm:$0xf]
                %241 = vst [vmem:[%s237 + $0x4] sm:$0xf] %v240
                %v242 = vld [vmem:[%s236 + $0x10] sm:$0xf]
                %243 = vst [vmem:[%s237 + $0x8] sm:$0xf] %v242
                %v244 = vld [vmem:[%s236 + $0x18] sm:$0xf]
                %245 = vst [vmem:[%s237 + $0xc] sm:$0xf] %v244
                %v246 = vld [vmem:[%s236 + $0x20] sm:$0xf]
                %247 = vst [vmem:[%s237 + $0x10] sm:$0xf] %v246
                %v248 = vld [vmem:[%s236 + $0x28] sm:$0xf]
                %249 = vst [vmem:[%s237 + $0x14] sm:$0xf] %v248
                %v250 = vld [vmem:[%s236 + $0x30] sm:$0xf]
                %251 = vst [vmem:[%s237 + $0x18] sm:$0xf] %v250
                %v252 = vld [vmem:[%s236 + $0x38] sm:$0xf]
                %253 = vst [vmem:[%s237 + $0x1c] sm:$0xf] %v252
                %v254 = vld [vmem:[%s236 + $0x40] sm:$0xf]
                %255 = vst [vmem:[%s237 + $0x20] sm:$0xf] %v254
                %v256 = vld [vmem:[%s236 + $0x48] sm:$0xf]
                %257 = vst [vmem:[%s237 + $0x24] sm:$0xf] %v256
                %v258 = vld [vmem:[%s236 + $0x50] sm:$0xf]
                %259 = vst [vmem:[%s237 + $0x28] sm:$0xf] %v258
                %v260 = vld [vmem:[%s236 + $0x58] sm:$0xf]
                %261 = vst [vmem:[%s237 + $0x2c] sm:$0xf] %v260
                %v262 = vld [vmem:[%s236 + $0x60] sm:$0xf]
                %263 = vst [vmem:[%s237 + $0x30] sm:$0xf] %v262
                %v264 = vld [vmem:[%s236 + $0x68] sm:$0xf]
                %265 = vst [vmem:[%s237 + $0x34] sm:$0xf] %v264
                %v266 = vld [vmem:[%s236 + $0x70] sm:$0xf]
                %267 = vst [vmem:[%s237 + $0x38] sm:$0xf] %v266
                %v268 = vld [vmem:[%s236 + $0x78] sm:$0xf]
                %269 = vst [vmem:[%s237 + $0x3c] sm:$0xf] %v268
              $region45: #{forward.6} parent=39 // loop_footer
                %s235 = sadd.s32 1, %s231
              $region46: #{forward.6} parent=39 // loop_footer_branch
                %230 = sbr.rel target = $region42
              $region47: #{forward.6} parent=39 // loop_exit
                _
            $region40: #{forward.6} parent=31 // pred_fallthru
              _
          $region32: #{forward.6} parent=27 // pred_fallthru
            _
          %321 = vnop
        $region28: #{forward.6} parent=19 // pred_fallthru
          _
        // Predicated region
        $region66: #{forward.6} parent=19 // pred_check
          %p322 = pneg %p120
        $region67: #{forward.6} parent=19 // pred_check_branch
          %324 = sbr.rel (%p322) target = $region69
        $region68: #{forward.6} parent=19 // pred_region
          %s325 = sand.u32 %s110, 1
          %s326 = sand.u32 %s110, 1
          %s327 = smul.addr %s326, 64
          %s328 = scalar_lea.vmem [#allocation6], %s327
          %s329 = smul.u32 16, %s18
          %s330 = smul.addr %s329, 2
          %s331 = sadd.s32 %s19, %s330
          %s332 = smul.addr %s331, 4
          %s333 = scalar_lea.vmem %s3, %s332
          // Predicated region
          $region70: #{forward.6} parent=68 // pred_check
            _
          $region71: #{forward.6} parent=68 // pred_check_branch
            %335 = sbr.rel (0) target = $region73
          $region72: #{forward.6} parent=68 // pred_region
            // Predicated region
            $region74: #{forward.6} parent=72 // pred_check
              _
            $region75: #{forward.6} parent=72 // pred_check_branch
              %337 = sbr.rel target = $region77
            $region76: #{forward.6} parent=72 // pred_region
              // Predicated region
              $region89: #{forward.6} parent=76 // pred_check
                _
              $region90: #{forward.6} parent=76 // pred_check_branch
                %382 = sbr.rel (0) target = $region92
              $region91: #{forward.6} parent=76 // pred_region
                loop: start=0, step=1, limit=1
                $region93: #{forward.6} parent=91 // loop_pre_header
                  _
                $region94: #{forward.6} parent=91 // loop_header
                  %s384 = sphi 0, %s388
                  %p385 = scmp.ge.s32.totalorder %s384, 1
                  %s389 = sphi %s333, %s333
                  %s390 = sphi %s328, %s328
                $region95: #{forward.6} parent=91 // loop_header_branch
                  %387 = sbr.rel (%p385) target = $region99
                $region96: #{forward.6} parent=91 // loop_body
                  _
                $region97: #{forward.6} parent=91 // loop_footer
                  %s388 = sadd.s32 1, %s384
                $region98: #{forward.6} parent=91 // loop_footer_branch
                  %383 = sbr.rel target = $region94
                $region99: #{forward.6} parent=91 // loop_exit
                  _
                loop: start=0, step=1, limit=1
                $region100: #{forward.6} parent=91 // loop_pre_header
                  _
                $region101: #{forward.6} parent=91 // loop_header
                  %s393 = sphi 0, %s397
                  %p394 = scmp.ge.s32.totalorder %s393, 1
                  %s398 = sphi %s333, %s333
                  %s399 = sphi %s328, %s328
                $region102: #{forward.6} parent=91 // loop_header_branch
                  %396 = sbr.rel (%p394) target = $region106
                $region103: #{forward.6} parent=91 // loop_body
                  %v400 = vld [vmem:[%s398] sm:$0xf]
                  %401 = vst [vmem:[%s399] sm:$0xf] %v400
                  %v402 = vld [vmem:[%s398 + $0x8] sm:$0xf]
                  %403 = vst [vmem:[%s399 + $0x4] sm:$0xf] %v402
                  %v404 = vld [vmem:[%s398 + $0x10] sm:$0xf]
                  %405 = vst [vmem:[%s399 + $0x8] sm:$0xf] %v404
                  %v406 = vld [vmem:[%s398 + $0x18] sm:$0xf]
                  %407 = vst [vmem:[%s399 + $0xc] sm:$0xf] %v406
                  %v408 = vld [vmem:[%s398 + $0x20] sm:$0xf]
                  %409 = vst [vmem:[%s399 + $0x10] sm:$0xf] %v408
                  %v410 = vld [vmem:[%s398 + $0x28] sm:$0xf]
                  %411 = vst [vmem:[%s399 + $0x14] sm:$0xf] %v410
                  %v412 = vld [vmem:[%s398 + $0x30] sm:$0xf]
                  %413 = vst [vmem:[%s399 + $0x18] sm:$0xf] %v412
                  %v414 = vld [vmem:[%s398 + $0x38] sm:$0xf]
                  %415 = vst [vmem:[%s399 + $0x1c] sm:$0xf] %v414
                  %v416 = vld [vmem:[%s398 + $0x40] sm:$0xf]
                  %417 = vst [vmem:[%s399 + $0x20] sm:$0xf] %v416
                  %v418 = vld [vmem:[%s398 + $0x48] sm:$0xf]
                  %419 = vst [vmem:[%s399 + $0x24] sm:$0xf] %v418
                  %v420 = vld [vmem:[%s398 + $0x50] sm:$0xf]
                  %421 = vst [vmem:[%s399 + $0x28] sm:$0xf] %v420
                  %v422 = vld [vmem:[%s398 + $0x58] sm:$0xf]
                  %423 = vst [vmem:[%s399 + $0x2c] sm:$0xf] %v422
                  %v424 = vld [vmem:[%s398 + $0x60] sm:$0xf]
                  %425 = vst [vmem:[%s399 + $0x30] sm:$0xf] %v424
                  %v426 = vld [vmem:[%s398 + $0x68] sm:$0xf]
                  %427 = vst [vmem:[%s399 + $0x34] sm:$0xf] %v426
                  %v428 = vld [vmem:[%s398 + $0x70] sm:$0xf]
                  %429 = vst [vmem:[%s399 + $0x38] sm:$0xf] %v428
                  %v430 = vld [vmem:[%s398 + $0x78] sm:$0xf]
                  %431 = vst [vmem:[%s399 + $0x3c] sm:$0xf] %v430
                $region104: #{forward.6} parent=91 // loop_footer
                  %s397 = sadd.s32 1, %s393
                $region105: #{forward.6} parent=91 // loop_footer_branch
                  %392 = sbr.rel target = $region101
                $region106: #{forward.6} parent=91 // loop_exit
                  _
              $region92: #{forward.6} parent=76 // pred_fallthru
                _
            $region77: #{forward.6} parent=72 // pred_fallthru
              _
            // Predicated region
            $region78: #{forward.6} parent=72 // pred_check
              _
            $region79: #{forward.6} parent=72 // pred_check_branch
              %339 = sbr.rel (0) target = $region81
            $region80: #{forward.6} parent=72 // pred_region
              loop: start=0, step=1, limit=1
              $region82: #{forward.6} parent=80 // loop_pre_header
                _
              $region83: #{forward.6} parent=80 // loop_header
                %s342 = sphi 0, %s346
                %p343 = scmp.ge.s32.totalorder %s342, 1
                %s347 = sphi %s333, %s333
                %s348 = sphi %s328, %s328
              $region84: #{forward.6} parent=80 // loop_header_branch
                %345 = sbr.rel (%p343) target = $region88
              $region85: #{forward.6} parent=80 // loop_body
                %v349 = vld [vmem:[%s347] sm:$0xf]
                %350 = vst [vmem:[%s348] sm:$0xf] %v349
                %v351 = vld [vmem:[%s347 + $0x8] sm:$0xf]
                %352 = vst [vmem:[%s348 + $0x4] sm:$0xf] %v351
                %v353 = vld [vmem:[%s347 + $0x10] sm:$0xf]
                %354 = vst [vmem:[%s348 + $0x8] sm:$0xf] %v353
                %v355 = vld [vmem:[%s347 + $0x18] sm:$0xf]
                %356 = vst [vmem:[%s348 + $0xc] sm:$0xf] %v355
                %v357 = vld [vmem:[%s347 + $0x20] sm:$0xf]
                %358 = vst [vmem:[%s348 + $0x10] sm:$0xf] %v357
                %v359 = vld [vmem:[%s347 + $0x28] sm:$0xf]
                %360 = vst [vmem:[%s348 + $0x14] sm:$0xf] %v359
                %v361 = vld [vmem:[%s347 + $0x30] sm:$0xf]
                %362 = vst [vmem:[%s348 + $0x18] sm:$0xf] %v361
                %v363 = vld [vmem:[%s347 + $0x38] sm:$0xf]
                %364 = vst [vmem:[%s348 + $0x1c] sm:$0xf] %v363
                %v365 = vld [vmem:[%s347 + $0x40] sm:$0xf]
                %366 = vst [vmem:[%s348 + $0x20] sm:$0xf] %v365
                %v367 = vld [vmem:[%s347 + $0x48] sm:$0xf]
                %368 = vst [vmem:[%s348 + $0x24] sm:$0xf] %v367
                %v369 = vld [vmem:[%s347 + $0x50] sm:$0xf]
                %370 = vst [vmem:[%s348 + $0x28] sm:$0xf] %v369
                %v371 = vld [vmem:[%s347 + $0x58] sm:$0xf]
                %372 = vst [vmem:[%s348 + $0x2c] sm:$0xf] %v371
                %v373 = vld [vmem:[%s347 + $0x60] sm:$0xf]
                %374 = vst [vmem:[%s348 + $0x30] sm:$0xf] %v373
                %v375 = vld [vmem:[%s347 + $0x68] sm:$0xf]
                %376 = vst [vmem:[%s348 + $0x34] sm:$0xf] %v375
                %v377 = vld [vmem:[%s347 + $0x70] sm:$0xf]
                %378 = vst [vmem:[%s348 + $0x38] sm:$0xf] %v377
                %v379 = vld [vmem:[%s347 + $0x78] sm:$0xf]
                %380 = vst [vmem:[%s348 + $0x3c] sm:$0xf] %v379
              $region86: #{forward.6} parent=80 // loop_footer
                %s346 = sadd.s32 1, %s342
              $region87: #{forward.6} parent=80 // loop_footer_branch
                %341 = sbr.rel target = $region83
              $region88: #{forward.6} parent=80 // loop_exit
                _
            $region81: #{forward.6} parent=72 // pred_fallthru
              _
          $region73: #{forward.6} parent=68 // pred_fallthru
            _
          %432 = vnop
        $region69: #{forward.6} parent=19 // pred_fallthru
          _
        // Predicated region
        $region107: #{forward.6} parent=19 // pred_check
          %p433 = pneg %p148
        $region108: #{forward.6} parent=19 // pred_check_branch
          %435 = sbr.rel (%p433) target = $region110
        $region109: #{forward.6} parent=19 // pred_region
          %s436 = sand.u32 %s138, 1
          %s437 = sand.u32 %s138, 1
          %s438 = smul.addr %s437, 64
          %s439 = scalar_lea.vmem [#allocation7], %s438
          %s440 = smul.u32 16, %s18
          %s441 = smul.addr %s440, 2
          %s442 = sadd.s32 %s19, %s441
          %s443 = smul.addr %s442, 4
          %s444 = scalar_lea.vmem %s4, %s443
          // Predicated region
          $region111: #{forward.6} parent=109 // pred_check
            _
          $region112: #{forward.6} parent=109 // pred_check_branch
            %446 = sbr.rel (0) target = $region114
          $region113: #{forward.6} parent=109 // pred_region
            // Predicated region
            $region115: #{forward.6} parent=113 // pred_check
              _
            $region116: #{forward.6} parent=113 // pred_check_branch
              %448 = sbr.rel target = $region118
            $region117: #{forward.6} parent=113 // pred_region
              // Predicated region
              $region130: #{forward.6} parent=117 // pred_check
                _
              $region131: #{forward.6} parent=117 // pred_check_branch
                %493 = sbr.rel (0) target = $region133
              $region132: #{forward.6} parent=117 // pred_region
                loop: start=0, step=1, limit=1
                $region134: #{forward.6} parent=132 // loop_pre_header
                  _
                $region135: #{forward.6} parent=132 // loop_header
                  %s495 = sphi 0, %s499
                  %p496 = scmp.ge.s32.totalorder %s495, 1
                  %s500 = sphi %s444, %s444
                  %s501 = sphi %s439, %s439
                $region136: #{forward.6} parent=132 // loop_header_branch
                  %498 = sbr.rel (%p496) target = $region140
                $region137: #{forward.6} parent=132 // loop_body
                  _
                $region138: #{forward.6} parent=132 // loop_footer
                  %s499 = sadd.s32 1, %s495
                $region139: #{forward.6} parent=132 // loop_footer_branch
                  %494 = sbr.rel target = $region135
                $region140: #{forward.6} parent=132 // loop_exit
                  _
                loop: start=0, step=1, limit=1
                $region141: #{forward.6} parent=132 // loop_pre_header
                  _
                $region142: #{forward.6} parent=132 // loop_header
                  %s504 = sphi 0, %s508
                  %p505 = scmp.ge.s32.totalorder %s504, 1
                  %s509 = sphi %s444, %s444
                  %s510 = sphi %s439, %s439
                $region143: #{forward.6} parent=132 // loop_header_branch
                  %507 = sbr.rel (%p505) target = $region147
                $region144: #{forward.6} parent=132 // loop_body
                  %v511 = vld [vmem:[%s509] sm:$0xf]
                  %512 = vst [vmem:[%s510] sm:$0xf] %v511
                  %v513 = vld [vmem:[%s509 + $0x8] sm:$0xf]
                  %514 = vst [vmem:[%s510 + $0x4] sm:$0xf] %v513
                  %v515 = vld [vmem:[%s509 + $0x10] sm:$0xf]
                  %516 = vst [vmem:[%s510 + $0x8] sm:$0xf] %v515
                  %v517 = vld [vmem:[%s509 + $0x18] sm:$0xf]
                  %518 = vst [vmem:[%s510 + $0xc] sm:$0xf] %v517
                  %v519 = vld [vmem:[%s509 + $0x20] sm:$0xf]
                  %520 = vst [vmem:[%s510 + $0x10] sm:$0xf] %v519
                  %v521 = vld [vmem:[%s509 + $0x28] sm:$0xf]
                  %522 = vst [vmem:[%s510 + $0x14] sm:$0xf] %v521
                  %v523 = vld [vmem:[%s509 + $0x30] sm:$0xf]
                  %524 = vst [vmem:[%s510 + $0x18] sm:$0xf] %v523
                  %v525 = vld [vmem:[%s509 + $0x38] sm:$0xf]
                  %526 = vst [vmem:[%s510 + $0x1c] sm:$0xf] %v525
                  %v527 = vld [vmem:[%s509 + $0x40] sm:$0xf]
                  %528 = vst [vmem:[%s510 + $0x20] sm:$0xf] %v527
                  %v529 = vld [vmem:[%s509 + $0x48] sm:$0xf]
                  %530 = vst [vmem:[%s510 + $0x24] sm:$0xf] %v529
                  %v531 = vld [vmem:[%s509 + $0x50] sm:$0xf]
                  %532 = vst [vmem:[%s510 + $0x28] sm:$0xf] %v531
                  %v533 = vld [vmem:[%s509 + $0x58] sm:$0xf]
                  %534 = vst [vmem:[%s510 + $0x2c] sm:$0xf] %v533
                  %v535 = vld [vmem:[%s509 + $0x60] sm:$0xf]
                  %536 = vst [vmem:[%s510 + $0x30] sm:$0xf] %v535
                  %v537 = vld [vmem:[%s509 + $0x68] sm:$0xf]
                  %538 = vst [vmem:[%s510 + $0x34] sm:$0xf] %v537
                  %v539 = vld [vmem:[%s509 + $0x70] sm:$0xf]
                  %540 = vst [vmem:[%s510 + $0x38] sm:$0xf] %v539
                  %v541 = vld [vmem:[%s509 + $0x78] sm:$0xf]
                  %542 = vst [vmem:[%s510 + $0x3c] sm:$0xf] %v541
                $region145: #{forward.6} parent=132 // loop_footer
                  %s508 = sadd.s32 1, %s504
                $region146: #{forward.6} parent=132 // loop_footer_branch
                  %503 = sbr.rel target = $region142
                $region147: #{forward.6} parent=132 // loop_exit
                  _
              $region133: #{forward.6} parent=117 // pred_fallthru
                _
            $region118: #{forward.6} parent=113 // pred_fallthru
              _
            // Predicated region
            $region119: #{forward.6} parent=113 // pred_check
              _
            $region120: #{forward.6} parent=113 // pred_check_branch
              %450 = sbr.rel (0) target = $region122
            $region121: #{forward.6} parent=113 // pred_region
              loop: start=0, step=1, limit=1
              $region123: #{forward.6} parent=121 // loop_pre_header
                _
              $region124: #{forward.6} parent=121 // loop_header
                %s453 = sphi 0, %s457
                %p454 = scmp.ge.s32.totalorder %s453, 1
                %s458 = sphi %s444, %s444
                %s459 = sphi %s439, %s439
              $region125: #{forward.6} parent=121 // loop_header_branch
                %456 = sbr.rel (%p454) target = $region129
              $region126: #{forward.6} parent=121 // loop_body
                %v460 = vld [vmem:[%s458] sm:$0xf]
                %461 = vst [vmem:[%s459] sm:$0xf] %v460
                %v462 = vld [vmem:[%s458 + $0x8] sm:$0xf]
                %463 = vst [vmem:[%s459 + $0x4] sm:$0xf] %v462
                %v464 = vld [vmem:[%s458 + $0x10] sm:$0xf]
                %465 = vst [vmem:[%s459 + $0x8] sm:$0xf] %v464
                %v466 = vld [vmem:[%s458 + $0x18] sm:$0xf]
                %467 = vst [vmem:[%s459 + $0xc] sm:$0xf] %v466
                %v468 = vld [vmem:[%s458 + $0x20] sm:$0xf]
                %469 = vst [vmem:[%s459 + $0x10] sm:$0xf] %v468
                %v470 = vld [vmem:[%s458 + $0x28] sm:$0xf]
                %471 = vst [vmem:[%s459 + $0x14] sm:$0xf] %v470
                %v472 = vld [vmem:[%s458 + $0x30] sm:$0xf]
                %473 = vst [vmem:[%s459 + $0x18] sm:$0xf] %v472
                %v474 = vld [vmem:[%s458 + $0x38] sm:$0xf]
                %475 = vst [vmem:[%s459 + $0x1c] sm:$0xf] %v474
                %v476 = vld [vmem:[%s458 + $0x40] sm:$0xf]
                %477 = vst [vmem:[%s459 + $0x20] sm:$0xf] %v476
                %v478 = vld [vmem:[%s458 + $0x48] sm:$0xf]
                %479 = vst [vmem:[%s459 + $0x24] sm:$0xf] %v478
                %v480 = vld [vmem:[%s458 + $0x50] sm:$0xf]
                %481 = vst [vmem:[%s459 + $0x28] sm:$0xf] %v480
                %v482 = vld [vmem:[%s458 + $0x58] sm:$0xf]
                %483 = vst [vmem:[%s459 + $0x2c] sm:$0xf] %v482
                %v484 = vld [vmem:[%s458 + $0x60] sm:$0xf]
                %485 = vst [vmem:[%s459 + $0x30] sm:$0xf] %v484
                %v486 = vld [vmem:[%s458 + $0x68] sm:$0xf]
                %487 = vst [vmem:[%s459 + $0x34] sm:$0xf] %v486
                %v488 = vld [vmem:[%s458 + $0x70] sm:$0xf]
                %489 = vst [vmem:[%s459 + $0x38] sm:$0xf] %v488
                %v490 = vld [vmem:[%s458 + $0x78] sm:$0xf]
                %491 = vst [vmem:[%s459 + $0x3c] sm:$0xf] %v490
              $region127: #{forward.6} parent=121 // loop_footer
                %s457 = sadd.s32 1, %s453
              $region128: #{forward.6} parent=121 // loop_footer_branch
                %452 = sbr.rel target = $region124
              $region129: #{forward.6} parent=121 // loop_exit
                _
            $region122: #{forward.6} parent=113 // pred_fallthru
              _
          $region114: #{forward.6} parent=109 // pred_fallthru
            _
          %543 = vnop
        $region110: #{forward.6} parent=19 // pred_fallthru
          _
      $region20: #{forward.6} parent=5 // pred_fallthru
        _
      %p544 = scmp.le.s32.totalorder 1, %s11
      %p545 = scmp.lt.s32.totalorder %s11, 5
      %p546 = pnand %p544, %p545
      %p547 = pneg %p546
      // Predicated region
      $region148: #{forward.6} parent=5 // pred_check
        _
      $region149: #{forward.6} parent=5 // pred_check_branch
        %549 = sbr.rel (%p546) target = $region151
      $region150: #{forward.6} parent=5 // pred_region
        %s550 = ssub.s32 %s11, 1
        %s551 = sand.u32 %s85, 1
        %s552 = sand.u32 %s85, 1
        %s553 = smul.addr %s552, 64
        %s554 = scalar_lea.vmem [#allocation5], %s553
        // Predicated region
        $region152: #{forward.6} parent=150 // pred_check
          %p555 = pneg %p98
        $region153: #{forward.6} parent=150 // pred_check_branch
          %557 = sbr.rel (%p555) target = $region155
        $region154: #{forward.6} parent=150 // pred_region
          _
        $region155: #{forward.6} parent=150 // pred_fallthru
          _
        %s558 = sand.u32 %s113, 1
        %s559 = sand.u32 %s113, 1
        %s560 = smul.addr %s559, 64
        %s561 = scalar_lea.vmem [#allocation6], %s560
        // Predicated region
        $region156: #{forward.6} parent=150 // pred_check
          %p562 = pneg %p126
        $region157: #{forward.6} parent=150 // pred_check_branch
          %564 = sbr.rel (%p562) target = $region159
        $region158: #{forward.6} parent=150 // pred_region
          _
        $region159: #{forward.6} parent=150 // pred_fallthru
          _
        %s565 = sand.u32 %s141, 1
        %s566 = sand.u32 %s141, 1
        %s567 = smul.addr %s566, 64
        %s568 = scalar_lea.vmem [#allocation7], %s567
        // Predicated region
        $region160: #{forward.6} parent=150 // pred_check
          %p569 = pneg %p154
        $region161: #{forward.6} parent=150 // pred_check_branch
          %571 = sbr.rel (%p569) target = $region163
        $region162: #{forward.6} parent=150 // pred_region
          _
        $region163: #{forward.6} parent=150 // pred_fallthru
          _
        %s572 = smul.u32 16, %s21
        %p573 = scmp.lt.s32.totalorder %s572, 31
        %s574 = scalar_select %p573, %s572, 31
        %s575 = smul.addr %s574, 4
        %s576 = scalar_lea.vmem %s0, %s575
        %p577 = pneg %p49
        %p578 = pneg %p46
        %p579 = pneg %p70
        %p580 = pneg %p67
        %s581 = sand.u32 %s85, 1
        %s582 = sand.u32 %s85, 1
        %s583 = smul.addr %s582, 64
        %s584 = scalar_lea.vmem [#allocation5], %s583
        %p585 = pneg %p98
        %p586 = pneg %p95
        %s587 = sand.u32 %s113, 1
        %s588 = sand.u32 %s113, 1
        %s589 = smul.addr %s588, 64
        %s590 = scalar_lea.vmem [#allocation6], %s589
        %p591 = pneg %p126
        %p592 = pneg %p123
        %s593 = sand.u32 %s141, 1
        %s594 = sand.u32 %s141, 1
        %s595 = smul.addr %s594, 64
        %s596 = scalar_lea.vmem [#allocation7], %s595
        %p597 = pneg %p154
        %p598 = pneg %p151
        %p599 = pneg %p180
        %p600 = pneg %p177
        %s601 = smul.u32 16, %s20
        %p602 = scmp.lt.s32.totalorder %s601, 31
        %s603 = scalar_select %p602, %s601, 31
        %s604 = smul.addr %s603, 4
        %s605 = scalar_lea.vmem %s5, %s604
        %s606 = smul.u32 16, %s21
        %p607 = scmp.lt.s32.totalorder %s606, 31
        %s608 = scalar_select %p607, %s606, 31
        %s609 = smul.addr %s608, 4
        %s610 = scalar_lea.vmem %s0, %s609
        %s611 = smul.u32 16, %s21
        %s612 = smul.u32 16, %s20
        %s613 = smul.u32 16, %s20
        %s614 = smul.u32 16, %s20
        %s615 = smul.u32 16, %s20
        %p616 = scmp.lt.s32.totalorder %s615, 31
        %s617 = scalar_select %p616, %s615, 31
        %s618 = smul.addr %s617, 4
        %s619 = scalar_lea.vmem %s5, %s618
        %s620 = smul.u32 16, %s20
        %p622 = scmp.eq.s32.totalorder %s21, 0
        // Predicated region
        $region164: #{forward.6} parent=150 // pred_check
          %p623 = pneg %p622
        $region165: #{forward.6} parent=150 // pred_check_branch
          %625 = sbr.rel (%p623) target = $region167
        $region166: #{forward.6} parent=150 // pred_region
          %626 = vst [vmem:[#allocation2] sm:$0xff] 0.0
          %627 = vst [vmem:[#allocation2 + $0x8] sm:$0xff] 0.0
          %628 = vst [vmem:[#allocation2 + $0x10] sm:$0xff] 0.0
          %629 = vst [vmem:[#allocation2 + $0x18] sm:$0xff] 0.0
          %630 = vst [vmem:[#allocation2 + $0x20] sm:$0xff] 0.0
          %631 = vst [vmem:[#allocation2 + $0x28] sm:$0xff] 0.0
          %632 = vst [vmem:[#allocation2 + $0x30] sm:$0xff] 0.0
          %633 = vst [vmem:[#allocation2 + $0x38] sm:$0xff] 0.0
          %634 = vst [vmem:[#allocation2 + $0x40] sm:$0xff] 0.0
          %635 = vst [vmem:[#allocation2 + $0x48] sm:$0xff] 0.0
          %636 = vst [vmem:[#allocation2 + $0x50] sm:$0xff] 0.0
          %637 = vst [vmem:[#allocation2 + $0x58] sm:$0xff] 0.0
          %638 = vst [vmem:[#allocation2 + $0x60] sm:$0xff] 0.0
          %639 = vst [vmem:[#allocation2 + $0x68] sm:$0xff] 0.0
          %640 = vst [vmem:[#allocation2 + $0x70] sm:$0xff] 0.0
          %641 = vst [vmem:[#allocation2 + $0x78] sm:$0xff] 0.0
          %642 = vst [vmem:[#allocation3] sm:$0xff] 0.0
          %643 = vst [vmem:[#allocation3 + $0x8] sm:$0xff] 0.0
          %644 = vst [vmem:[#allocation3 + $0x10] sm:$0xff] 0.0
          %645 = vst [vmem:[#allocation3 + $0x18] sm:$0xff] 0.0
          %646 = vst [vmem:[#allocation3 + $0x20] sm:$0xff] 0.0
          %647 = vst [vmem:[#allocation3 + $0x28] sm:$0xff] 0.0
          %648 = vst [vmem:[#allocation3 + $0x30] sm:$0xff] 0.0
          %649 = vst [vmem:[#allocation3 + $0x38] sm:$0xff] 0.0
          %650 = vst [vmem:[#allocation3 + $0x40] sm:$0xff] 0.0
          %651 = vst [vmem:[#allocation3 + $0x48] sm:$0xff] 0.0
          %652 = vst [vmem:[#allocation3 + $0x50] sm:$0xff] 0.0
          %653 = vst [vmem:[#allocation3 + $0x58] sm:$0xff] 0.0
          %654 = vst [vmem:[#allocation3 + $0x60] sm:$0xff] 0.0
          %655 = vst [vmem:[#allocation3 + $0x68] sm:$0xff] 0.0
          %656 = vst [vmem:[#allocation3 + $0x70] sm:$0xff] 0.0
          %657 = vst [vmem:[#allocation3 + $0x78] sm:$0xff] 0.0
          %658 = vst [vmem:[#allocation4] sm:$0xff] 0.0
          %659 = vst [vmem:[#allocation4 + $0x8] sm:$0xff] 0.0
          %660 = vst [vmem:[#allocation4 + $0x10] sm:$0xff] 0.0
          %661 = vst [vmem:[#allocation4 + $0x18] sm:$0xff] 0.0
          %662 = vst [vmem:[#allocation4 + $0x20] sm:$0xff] 0.0
          %663 = vst [vmem:[#allocation4 + $0x28] sm:$0xff] 0.0
          %664 = vst [vmem:[#allocation4 + $0x30] sm:$0xff] 0.0
          %665 = vst [vmem:[#allocation4 + $0x38] sm:$0xff] 0.0
          %666 = vst [vmem:[#allocation4 + $0x40] sm:$0xff] 0.0
          %667 = vst [vmem:[#allocation4 + $0x48] sm:$0xff] 0.0
          %668 = vst [vmem:[#allocation4 + $0x50] sm:$0xff] 0.0
          %669 = vst [vmem:[#allocation4 + $0x58] sm:$0xff] 0.0
          %670 = vst [vmem:[#allocation4 + $0x60] sm:$0xff] 0.0
          %671 = vst [vmem:[#allocation4 + $0x68] sm:$0xff] 0.0
          %672 = vst [vmem:[#allocation4 + $0x70] sm:$0xff] 0.0
          %673 = vst [vmem:[#allocation4 + $0x78] sm:$0xff] 0.0
        $region167: #{forward.6} parent=150 // pred_fallthru
          _
        %v674 = vld [vmem:[%s610] sm:$0xf]
        %v675 = vld [vmem:[%s610 + $0x4] sm:$0xf]
        %v676 = vld [vmem:[%s610 + $0x8] sm:$0xf]
        %v677 = vld [vmem:[%s610 + $0xc] sm:$0xf]
        %v678 = vld [vmem:[%s610 + $0x10] sm:$0xf]
        %v679 = vld [vmem:[%s610 + $0x14] sm:$0xf]
        %v680 = vld [vmem:[%s610 + $0x18] sm:$0xf]
        %v681 = vld [vmem:[%s610 + $0x1c] sm:$0xf]
        %v682 = vld [vmem:[%s610 + $0x20] sm:$0xf]
        %v683 = vld [vmem:[%s610 + $0x24] sm:$0xf]
        %v684 = vld [vmem:[%s610 + $0x28] sm:$0xf]
        %v685 = vld [vmem:[%s610 + $0x2c] sm:$0xf]
        %v686 = vld [vmem:[%s610 + $0x30] sm:$0xf]
        %v687 = vld [vmem:[%s610 + $0x34] sm:$0xf]
        %v688 = vld [vmem:[%s610 + $0x38] sm:$0xf]
        %v689 = vld [vmem:[%s610 + $0x3c] sm:$0xf]
        %v690 = vld [vmem:[%s1] sm:$0xff]
        %v691 = vld [vmem:[%s1 + $0x8] sm:$0xf]
        %v692 = vld [vmem:[%s1 + $0xc] sm:$0xff]
        %v693 = vld [vmem:[%s1 + $0x14] sm:$0xf]
        %v694 = vld [vmem:[%s1 + $0x18] sm:$0xff]
        %v695 = vld [vmem:[%s1 + $0x20] sm:$0xf]
        %v696 = vld [vmem:[%s1 + $0x24] sm:$0xff]
        %v697 = vld [vmem:[%s1 + $0x2c] sm:$0xf]
        %v698 = vld [vmem:[%s1 + $0x30] sm:$0xff]
        %v699 = vld [vmem:[%s1 + $0x38] sm:$0xf]
        %v700 = vld [vmem:[%s1 + $0x3c] sm:$0xff]
        %v701 = vld [vmem:[%s1 + $0x44] sm:$0xf]
        %v702 = vld [vmem:[%s1 + $0x48] sm:$0xff]
        %v703 = vld [vmem:[%s1 + $0x50] sm:$0xf]
        %v704 = vld [vmem:[%s1 + $0x54] sm:$0xff]
        %v705 = vld [vmem:[%s1 + $0x5c] sm:$0xf]
        %v706 = vld [vmem:[%s1 + $0x60] sm:$0xff]
        %v707 = vld [vmem:[%s1 + $0x68] sm:$0xf]
        %v708 = vld [vmem:[%s1 + $0x6c] sm:$0xff]
        %v709 = vld [vmem:[%s1 + $0x74] sm:$0xf]
        %v710 = vld [vmem:[%s1 + $0x78] sm:$0xff]
        %v711 = vld [vmem:[%s1 + $0x80] sm:$0xf]
        %v712 = vld [vmem:[%s1 + $0x84] sm:$0xff]
        %v713 = vld [vmem:[%s1 + $0x8c] sm:$0xf]
        %v714 = vld [vmem:[%s1 + $0x90] sm:$0xff]
        %v715 = vld [vmem:[%s1 + $0x98] sm:$0xf]
        %v716 = vld [vmem:[%s1 + $0x9c] sm:$0xff]
        %v717 = vld [vmem:[%s1 + $0xa4] sm:$0xf]
        %v718 = vld [vmem:[%s1 + $0xa8] sm:$0xff]
        %v719 = vld [vmem:[%s1 + $0xb0] sm:$0xf]
        %v720 = vld [vmem:[%s1 + $0xb4] sm:$0xff]
        %v721 = vld [vmem:[%s1 + $0xbc] sm:$0xf]
        %v738 = vunpack.c.l.b16 %v674
        %v739 = vunpack.c.l.b16 %v675
        %v740 = vunpack.c.l.b16 %v676
        %v741 = vunpack.c.l.b16 %v677
        %v742 = vunpack.c.l.b16 %v678
        %v743 = vunpack.c.l.b16 %v679
        %v744 = vunpack.c.l.b16 %v680
        %v745 = vunpack.c.l.b16 %v681
        %v746 = vunpack.c.l.b16 %v682
        %v747 = vunpack.c.l.b16 %v683
        %v748 = vunpack.c.l.b16 %v684
        %v749 = vunpack.c.l.b16 %v685
        %v750 = vunpack.c.l.b16 %v686
        %v751 = vunpack.c.l.b16 %v687
        %v752 = vunpack.c.l.b16 %v688
        %v753 = vunpack.c.l.b16 %v689
        %v754 = vpack.c.b16 %v739, %v738
        %v755 = vpack.c.b16 %v741, %v740
        %v756 = vpack.c.b16 %v743, %v742
        %v757 = vpack.c.b16 %v745, %v744
        %v758 = vpack.c.b16 %v747, %v746
        %v759 = vpack.c.b16 %v749, %v748
        %v760 = vpack.c.b16 %v751, %v750
        %v761 = vpack.c.b16 %v753, %v752
        %v802 = vunpack.c.l.b16 %v690
        %v803 = vunpack.c.h.b16 %v690
        %v804 = vunpack.c.l.b16 %v691
        %v805 = vunpack.c.l.b16 %v692
        %v806 = vunpack.c.h.b16 %v692
        %v807 = vunpack.c.l.b16 %v693
        %v808 = vunpack.c.l.b16 %v694
        %v809 = vunpack.c.h.b16 %v694
        %v810 = vunpack.c.l.b16 %v695
        %v811 = vunpack.c.l.b16 %v696
        %v812 = vunpack.c.h.b16 %v696
        %v813 = vunpack.c.l.b16 %v697
        %v814 = vunpack.c.l.b16 %v698
        %v815 = vunpack.c.h.b16 %v698
        %v816 = vunpack.c.l.b16 %v699
        %v817 = vunpack.c.l.b16 %v700
        %v818 = vunpack.c.h.b16 %v700
        %v819 = vunpack.c.l.b16 %v701
        %v820 = vunpack.c.l.b16 %v702
        %v821 = vunpack.c.h.b16 %v702
        %v822 = vunpack.c.l.b16 %v703
        %v823 = vunpack.c.l.b16 %v704
        %v824 = vunpack.c.h.b16 %v704
        %v825 = vunpack.c.l.b16 %v705
        %v826 = vunpack.c.l.b16 %v706
        %v827 = vunpack.c.h.b16 %v706
        %v828 = vunpack.c.l.b16 %v707
        %v829 = vunpack.c.l.b16 %v708
        %v830 = vunpack.c.h.b16 %v708
        %v831 = vunpack.c.l.b16 %v709
        %v832 = vunpack.c.l.b16 %v710
        %v833 = vunpack.c.h.b16 %v710
        %v834 = vunpack.c.l.b16 %v711
        %v835 = vunpack.c.l.b16 %v712
        %v836 = vunpack.c.h.b16 %v712
        %v837 = vunpack.c.l.b16 %v713
        %v838 = vunpack.c.l.b16 %v714
        %v839 = vunpack.c.h.b16 %v714
        %v840 = vunpack.c.l.b16 %v715
        %v841 = vunpack.c.l.b16 %v716
        %v842 = vunpack.c.h.b16 %v716
        %v843 = vunpack.c.l.b16 %v717
        %v844 = vunpack.c.l.b16 %v718
        %v845 = vunpack.c.h.b16 %v718
        %v846 = vunpack.c.l.b16 %v719
        %v847 = vunpack.c.l.b16 %v720
        %v848 = vunpack.c.h.b16 %v720
        %v849 = vunpack.c.l.b16 %v721
        %v850 = vpack.c.b16 %v805, %v802
        %v851 = vpack.c.b16 %v806, %v803
        %v852 = vpack.c.b16 %v807, %v804
        %v853 = vpack.c.b16 %v811, %v808
        %v854 = vpack.c.b16 %v812, %v809
        %v855 = vpack.c.b16 %v813, %v810
        %v856 = vpack.c.b16 %v817, %v814
        %v857 = vpack.c.b16 %v818, %v815
        %v858 = vpack.c.b16 %v819, %v816
        %v859 = vpack.c.b16 %v823, %v820
        %v860 = vpack.c.b16 %v824, %v821
        %v861 = vpack.c.b16 %v825, %v822
        %v862 = vpack.c.b16 %v829, %v826
        %v863 = vpack.c.b16 %v830, %v827
        %v864 = vpack.c.b16 %v831, %v828
        %v865 = vpack.c.b16 %v835, %v832
        %v866 = vpack.c.b16 %v836, %v833
        %v867 = vpack.c.b16 %v837, %v834
        %v868 = vpack.c.b16 %v841, %v838
        %v869 = vpack.c.b16 %v842, %v839
        %v870 = vpack.c.b16 %v843, %v840
        %v871 = vpack.c.b16 %v847, %v844
        %v872 = vpack.c.b16 %v848, %v845
        %v873 = vpack.c.b16 %v849, %v846
        %898 = vmatprep.subr.bf16.mxu0 %v851
        %899 = vmatpush1.bf16.msra.mxu0 %v850
        %900 = vmatprep.subr.bf16.mxu0 %v854
        %901 = vmatpush1.bf16.msra.mxu0 %v853
        %902 = vmatprep.subr.bf16.mxu0 %v857
        %903 = vmatpush1.bf16.msra.mxu0 %v856
        %904 = vmatprep.subr.bf16.mxu0 %v860
        %905 = vmatpush1.bf16.msra.mxu0 %v859
        %906 = vmatprep.subr.bf16.mxu0 %v863
        %907 = vmatpush1.bf16.msra.mxu0 %v862
        %908 = vmatprep.subr.bf16.mxu0 %v866
        %909 = vmatpush1.bf16.msra.mxu0 %v865
        %910 = vmatprep.subr.bf16.mxu0 %v869
        %911 = vmatpush1.bf16.msra.mxu0 %v868
        %912 = vmatprep.subr.bf16.mxu0 %v872
        %913 = vmatpush1.bf16.msra.mxu0 %v871
        %914 = vmatprep.subr.bf16.mxu0 0
        %915 = vmatpush1.bf16.msra.mxu0 0
        %916 = vmatprep.subr.bf16.mxu0 0
        %917 = vmatpush1.bf16.msra.mxu0 0
        %918 = vmatprep.subr.bf16.mxu0 0
        %919 = vmatpush1.bf16.msra.mxu0 0
        %920 = vmatprep.subr.bf16.mxu0 0
        %921 = vmatpush1.bf16.msra.mxu0 0
        %922 = vmatprep.subr.bf16.mxu0 0
        %923 = vmatpush1.bf16.msra.mxu0 0
        %924 = vmatprep.subr.bf16.mxu0 0
        %925 = vmatpush1.bf16.msra.mxu0 0
        %926 = vmatprep.subr.bf16.mxu0 0
        %927 = vmatpush1.bf16.msra.mxu0 0
        %928 = vmatprep.subr.bf16.mxu0 0
        %929 = vmatpush1.bf16.msra.mxu0 0
        %930 = vmatprep.mubr.bf16.mxu0 0
        %931 = vmatmul.mubr.bf16.gmra.mrb[0].mxu0 %v754
        %v932 = vpop.f32.mrb[0].mxu0
        %v933 = vadd.f32 0.0, %v932
        %v934 = vpop.f32.mrb[0].mxu0
        %v935 = vadd.f32 0.0, %v934
        %v936 = vpop.f32.mrb[0].mxu0
        %v937 = vadd.f32 0.0, %v936
        %v938 = vpop.f32.mrb[0].mxu0
        %v939 = vadd.f32 0.0, %v938
        %940 = vmatprep.mubr.bf16.mxu0 0
        %941 = vmatmul.mubr.bf16.gmra.mrb[0].mxu0 %v755
        %v942 = vpop.f32.mrb[0].mxu0
        %v943 = vadd.f32 0.0, %v942
        %v944 = vpop.f32.mrb[0].mxu0
        %v945 = vadd.f32 0.0, %v944
        %v946 = vpop.f32.mrb[0].mxu0
        %v947 = vadd.f32 0.0, %v946
        %v948 = vpop.f32.mrb[0].mxu0
        %v949 = vadd.f32 0.0, %v948
        %950 = vmatprep.mubr.bf16.mxu0 0
        %951 = vmatmul.mubr.bf16.gmra.mrb[0].mxu0 %v756
        %v952 = vpop.f32.mrb[0].mxu0
        %v953 = vadd.f32 0.0, %v952
        %v954 = vpop.f32.mrb[0].mxu0
        %v955 = vadd.f32 0.0, %v954
        %v956 = vpop.f32.mrb[0].mxu0
        %v957 = vadd.f32 0.0, %v956
        %v958 = vpop.f32.mrb[0].mxu0
        %v959 = vadd.f32 0.0, %v958
        %960 = vmatprep.mubr.bf16.mxu0 0
        %961 = vmatmul.mubr.bf16.gmra.mrb[0].mxu0 %v757
        %v962 = vpop.f32.mrb[0].mxu0
        %v963 = vadd.f32 0.0, %v962
        %v964 = vpop.f32.mrb[0].mxu0
        %v965 = vadd.f32 0.0, %v964
        %v966 = vpop.f32.mrb[0].mxu0
        %v967 = vadd.f32 0.0, %v966
        %v968 = vpop.f32.mrb[0].mxu0
        %v969 = vadd.f32 0.0, %v968
        %970 = vmatprep.mubr.bf16.mxu0 0
        %971 = vmatmul.mubr.bf16.gmra.mrb[0].mxu0 %v758
        %v972 = vpop.f32.mrb[0].mxu0
        %v973 = vadd.f32 0.0, %v972
        %v974 = vpop.f32.mrb[0].mxu0
        %v975 = vadd.f32 0.0, %v974
        %v976 = vpop.f32.mrb[0].mxu0
        %v977 = vadd.f32 0.0, %v976
        %v978 = vpop.f32.mrb[0].mxu0
        %v979 = vadd.f32 0.0, %v978
        %980 = vmatprep.mubr.bf16.mxu0 0
        %981 = vmatmul.mubr.bf16.gmra.mrb[0].mxu0 %v759
        %v982 = vpop.f32.mrb[0].mxu0
        %v983 = vadd.f32 0.0, %v982
        %v984 = vpop.f32.mrb[0].mxu0
        %v985 = vadd.f32 0.0, %v984
        %v986 = vpop.f32.mrb[0].mxu0
        %v987 = vadd.f32 0.0, %v986
        %v988 = vpop.f32.mrb[0].mxu0
        %v989 = vadd.f32 0.0, %v988
        %990 = vmatprep.mubr.bf16.mxu0 0
        %991 = vmatmul.mubr.bf16.gmra.mrb[0].mxu0 %v760
        %v992 = vpop.f32.mrb[0].mxu0
        %v993 = vadd.f32 0.0, %v992
        %v994 = vpop.f32.mrb[0].mxu0
        %v995 = vadd.f32 0.0, %v994
        %v996 = vpop.f32.mrb[0].mxu0
        %v997 = vadd.f32 0.0, %v996
        %v998 = vpop.f32.mrb[0].mxu0
        %v999 = vadd.f32 0.0, %v998
        %1000 = vmatprep.mubr.bf16.mxu0 0
        %1001 = vmatmul.mubr.bf16.gmra.mrb[0].mxu0 %v761
        %v1002 = vpop.f32.mrb[0].mxu0
        %v1003 = vadd.f32 0.0, %v1002
        %v1004 = vpop.f32.mrb[0].mxu0
        %v1005 = vadd.f32 0.0, %v1004
        %v1006 = vpop.f32.mrb[0].mxu0
        %v1007 = vadd.f32 0.0, %v1006
        %v1008 = vpop.f32.mrb[0].mxu0
        %v1009 = vadd.f32 0.0, %v1008
        %1010 = vdwg.mxu0
        %1011 = vmatprep.subr.bf16.mxu0 0
        %1012 = vmatpush1.bf16.msra.mxu0 %v852
        %1013 = vmatprep.subr.bf16.mxu0 0
        %1014 = vmatpush1.bf16.msra.mxu0 %v855
        %1015 = vmatprep.subr.bf16.mxu0 0
        %1016 = vmatpush1.bf16.msra.mxu0 %v858
        %1017 = vmatprep.subr.bf16.mxu0 0
        %1018 = vmatpush1.bf16.msra.mxu0 %v861
        %1019 = vmatprep.subr.bf16.mxu0 0
        %1020 = vmatpush1.bf16.msra.mxu0 %v864
        %1021 = vmatprep.subr.bf16.mxu0 0
        %1022 = vmatpush1.bf16.msra.mxu0 %v867
        %1023 = vmatprep.subr.bf16.mxu0 0
        %1024 = vmatpush1.bf16.msra.mxu0 %v870
        %1025 = vmatprep.subr.bf16.mxu0 0
        %1026 = vmatpush1.bf16.msra.mxu0 %v873
        %1027 = vmatprep.subr.bf16.mxu0 0
        %1028 = vmatpush1.bf16.msra.mxu0 0
        %1029 = vmatprep.subr.bf16.mxu0 0
        %1030 = vmatpush1.bf16.msra.mxu0 0
        %1031 = vmatprep.subr.bf16.mxu0 0
        %1032 = vmatpush1.bf16.msra.mxu0 0
        %1033 = vmatprep.subr.bf16.mxu0 0
        %1034 = vmatpush1.bf16.msra.mxu0 0
        %1035 = vmatprep.subr.bf16.mxu0 0
        %1036 = vmatpush1.bf16.msra.mxu0 0
        %1037 = vmatprep.subr.bf16.mxu0 0
        %1038 = vmatpush1.bf16.msra.mxu0 0
        %1039 = vmatprep.subr.bf16.mxu0 0
        %1040 = vmatpush1.bf16.msra.mxu0 0
        %1041 = vmatprep.subr.bf16.mxu0 0
        %1042 = vmatpush1.bf16.msra.mxu0 0
        %1043 = vmatprep.mubr.bf16.mxu0 0
        %1044 = vmatmul.mubr.bf16.gmra.mrb[0].mxu0 %v754
        %v1045 = vpop.f32.mrb[0].mxu0
        %v1046 = vadd.f32 0.0, %v1045
        %v1047 = vpop.f32.mrb[0].mxu0
        %v1048 = vpop.f32.mrb[0].mxu0
        %v1049 = vadd.f32 0.0, %v1048
        %v1050 = vpop.f32.mrb[0].mxu0
        %1051 = vmatprep.mubr.bf16.mxu0 0
        %1052 = vmatmul.mubr.bf16.gmra.mrb[0].mxu0 %v755
        %v1053 = vpop.f32.mrb[0].mxu0
        %v1054 = vadd.f32 0.0, %v1053
        %v1055 = vpop.f32.mrb[0].mxu0
        %v1056 = vpop.f32.mrb[0].mxu0
        %v1057 = vadd.f32 0.0, %v1056
        %v1058 = vpop.f32.mrb[0].mxu0
        %1059 = vmatprep.mubr.bf16.mxu0 0
        %1060 = vmatmul.mubr.bf16.gmra.mrb[0].mxu0 %v756
        %v1061 = vpop.f32.mrb[0].mxu0
        %v1062 = vadd.f32 0.0, %v1061
        %v1063 = vpop.f32.mrb[0].mxu0
        %v1064 = vpop.f32.mrb[0].mxu0
        %v1065 = vadd.f32 0.0, %v1064
        %v1066 = vpop.f32.mrb[0].mxu0
        %1067 = vmatprep.mubr.bf16.mxu0 0
        %1068 = vmatmul.mubr.bf16.gmra.mrb[0].mxu0 %v757
        %v1069 = vpop.f32.mrb[0].mxu0
        %v1070 = vadd.f32 0.0, %v1069
        %v1071 = vpop.f32.mrb[0].mxu0
        %v1072 = vpop.f32.mrb[0].mxu0
        %v1073 = vadd.f32 0.0, %v1072
        %v1074 = vpop.f32.mrb[0].mxu0
        %1075 = vmatprep.mubr.bf16.mxu0 0
        %1076 = vmatmul.mubr.bf16.gmra.mrb[0].mxu0 %v758
        %v1077 = vpop.f32.mrb[0].mxu0
        %v1078 = vadd.f32 0.0, %v1077
        %v1079 = vpop.f32.mrb[0].mxu0
        %v1080 = vpop.f32.mrb[0].mxu0
        %v1081 = vadd.f32 0.0, %v1080
        %v1082 = vpop.f32.mrb[0].mxu0
        %1083 = vmatprep.mubr.bf16.mxu0 0
        %1084 = vmatmul.mubr.bf16.gmra.mrb[0].mxu0 %v759
        %v1085 = vpop.f32.mrb[0].mxu0
        %v1086 = vadd.f32 0.0, %v1085
        %v1087 = vpop.f32.mrb[0].mxu0
        %v1088 = vpop.f32.mrb[0].mxu0
        %v1089 = vadd.f32 0.0, %v1088
        %v1090 = vpop.f32.mrb[0].mxu0
        %1091 = vmatprep.mubr.bf16.mxu0 0
        %1092 = vmatmul.mubr.bf16.gmra.mrb[0].mxu0 %v760
        %v1093 = vpop.f32.mrb[0].mxu0
        %v1094 = vadd.f32 0.0, %v1093
        %v1095 = vpop.f32.mrb[0].mxu0
        %v1096 = vpop.f32.mrb[0].mxu0
        %v1097 = vadd.f32 0.0, %v1096
        %v1098 = vpop.f32.mrb[0].mxu0
        %1099 = vmatprep.mubr.bf16.mxu0 0
        %1100 = vmatmul.mubr.bf16.gmra.mrb[0].mxu0 %v761
        %v1101 = vpop.f32.mrb[0].mxu0
        %v1102 = vadd.f32 0.0, %v1101
        %v1103 = vpop.f32.mrb[0].mxu0
        %v1104 = vpop.f32.mrb[0].mxu0
        %v1105 = vadd.f32 0.0, %v1104
        %v1106 = vpop.f32.mrb[0].mxu0
        %1107 = vdwg.mxu0
        %v1108 = vpack.c.bf16 %v937, %v933
        %v1109 = vpack.c.bf16 %v939, %v935
        %v1110 = vpack.c.bf16 %v1049, %v1046
        %v1111 = vpack.c.bf16 %v947, %v943
        %v1112 = vpack.c.bf16 %v949, %v945
        %v1113 = vpack.c.bf16 %v1057, %v1054
        %v1114 = vpack.c.bf16 %v957, %v953
        %v1115 = vpack.c.bf16 %v959, %v955
        %v1116 = vpack.c.bf16 %v1065, %v1062
        %v1117 = vpack.c.bf16 %v967, %v963
        %v1118 = vpack.c.bf16 %v969, %v965
        %v1119 = vpack.c.bf16 %v1073, %v1070
        %v1120 = vpack.c.bf16 %v977, %v973
        %v1121 = vpack.c.bf16 %v979, %v975
        %v1122 = vpack.c.bf16 %v1081, %v1078
        %v1123 = vpack.c.bf16 %v987, %v983
        %v1124 = vpack.c.bf16 %v989, %v985
        %v1125 = vpack.c.bf16 %v1089, %v1086
        %v1126 = vpack.c.bf16 %v997, %v993
        %v1127 = vpack.c.bf16 %v999, %v995
        %v1128 = vpack.c.bf16 %v1097, %v1094
        %v1129 = vpack.c.bf16 %v1007, %v1003
        %v1130 = vpack.c.bf16 %v1009, %v1005
        %v1131 = vpack.c.bf16 %v1105, %v1102
        %v1132 = vld [vmem:[#allocation2] sm:$0xff]
        %v1133 = vld [vmem:[#allocation2 + $0x8] sm:$0xff]
        %v1134 = vld [vmem:[#allocation2 + $0x10] sm:$0xff]
        %v1135 = vld [vmem:[#allocation2 + $0x18] sm:$0xff]
        %v1136 = vld [vmem:[#allocation2 + $0x20] sm:$0xff]
        %v1137 = vld [vmem:[#allocation2 + $0x28] sm:$0xff]
        %v1138 = vld [vmem:[#allocation2 + $0x30] sm:$0xff]
        %v1139 = vld [vmem:[#allocation2 + $0x38] sm:$0xff]
        %v1140 = vld [vmem:[#allocation2 + $0x40] sm:$0xff]
        %v1141 = vld [vmem:[#allocation2 + $0x48] sm:$0xff]
        %v1142 = vld [vmem:[#allocation2 + $0x50] sm:$0xff]
        %v1143 = vld [vmem:[#allocation2 + $0x58] sm:$0xff]
        %v1144 = vld [vmem:[#allocation2 + $0x60] sm:$0xff]
        %v1145 = vld [vmem:[#allocation2 + $0x68] sm:$0xff]
        %v1146 = vld [vmem:[#allocation2 + $0x70] sm:$0xff]
        %v1147 = vld [vmem:[#allocation2 + $0x78] sm:$0xff]
        %v1148 = vld [vmem:[%s554] sm:$0xf]
        %v1149 = vld [vmem:[%s554 + $0x4] sm:$0xf]
        %v1150 = vld [vmem:[%s554 + $0x8] sm:$0xf]
        %v1151 = vld [vmem:[%s554 + $0xc] sm:$0xf]
        %v1152 = vld [vmem:[%s554 + $0x10] sm:$0xf]
        %v1153 = vld [vmem:[%s554 + $0x14] sm:$0xf]
        %v1154 = vld [vmem:[%s554 + $0x18] sm:$0xf]
        %v1155 = vld [vmem:[%s554 + $0x1c] sm:$0xf]
        %v1156 = vld [vmem:[%s554 + $0x20] sm:$0xf]
        %v1157 = vld [vmem:[%s554 + $0x24] sm:$0xf]
        %v1158 = vld [vmem:[%s554 + $0x28] sm:$0xf]
        %v1159 = vld [vmem:[%s554 + $0x2c] sm:$0xf]
        %v1160 = vld [vmem:[%s554 + $0x30] sm:$0xf]
        %v1161 = vld [vmem:[%s554 + $0x34] sm:$0xf]
        %v1162 = vld [vmem:[%s554 + $0x38] sm:$0xf]
        %v1163 = vld [vmem:[%s554 + $0x3c] sm:$0xf]
        %v1180 = vunpack.c.l.b16 %v1148
        %v1181 = vunpack.c.l.b16 %v1149
        %v1182 = vunpack.c.l.b16 %v1150
        %v1183 = vunpack.c.l.b16 %v1151
        %v1184 = vunpack.c.l.b16 %v1152
        %v1185 = vunpack.c.l.b16 %v1153
        %v1186 = vunpack.c.l.b16 %v1154
        %v1187 = vunpack.c.l.b16 %v1155
        %v1188 = vunpack.c.l.b16 %v1156
        %v1189 = vunpack.c.l.b16 %v1157
        %v1190 = vunpack.c.l.b16 %v1158
        %v1191 = vunpack.c.l.b16 %v1159
        %v1192 = vunpack.c.l.b16 %v1160
        %v1193 = vunpack.c.l.b16 %v1161
        %v1194 = vunpack.c.l.b16 %v1162
        %v1195 = vunpack.c.l.b16 %v1163
        %v1196 = vpack.c.b16 %v1181, %v1180
        %v1197 = vpack.c.b16 %v1183, %v1182
        %v1198 = vpack.c.b16 %v1185, %v1184
        %v1199 = vpack.c.b16 %v1187, %v1186
        %v1200 = vpack.c.b16 %v1189, %v1188
        %v1201 = vpack.c.b16 %v1191, %v1190
        %v1202 = vpack.c.b16 %v1193, %v1192
        %v1203 = vpack.c.b16 %v1195, %v1194
        %1212 = vmatprep.subr.bf16.mxu0 0
        %1213 = vmatpush1.bf16.msra.mxu0 %v1108
        %1214 = vmatprep.subr.bf16.mxu0 0
        %1215 = vmatpush1.bf16.msra.mxu0 %v1111
        %1216 = vmatprep.subr.bf16.mxu0 0
        %1217 = vmatpush1.bf16.msra.mxu0 %v1114
        %1218 = vmatprep.subr.bf16.mxu0 0
        %1219 = vmatpush1.bf16.msra.mxu0 %v1117
        %1220 = vmatprep.subr.bf16.mxu0 0
        %1221 = vmatpush1.bf16.msra.mxu0 %v1120
        %1222 = vmatprep.subr.bf16.mxu0 0
        %1223 = vmatpush1.bf16.msra.mxu0 %v1123
        %1224 = vmatprep.subr.bf16.mxu0 0
        %1225 = vmatpush1.bf16.msra.mxu0 %v1126
        %1226 = vmatprep.subr.bf16.mxu0 0
        %1227 = vmatpush1.bf16.msra.mxu0 %v1129
        %1228 = vmatprep.subr.bf16.mxu0 0
        %1229 = vmatpush1.bf16.msra.mxu0 0
        %1230 = vmatprep.subr.bf16.mxu0 0
        %1231 = vmatpush1.bf16.msra.mxu0 0
        %1232 = vmatprep.subr.bf16.mxu0 0
        %1233 = vmatpush1.bf16.msra.mxu0 0
        %1234 = vmatprep.subr.bf16.mxu0 0
        %1235 = vmatpush1.bf16.msra.mxu0 0
        %1236 = vmatprep.subr.bf16.mxu0 0
        %1237 = vmatpush1.bf16.msra.mxu0 0
        %1238 = vmatprep.subr.bf16.mxu0 0
        %1239 = vmatpush1.bf16.msra.mxu0 0
        %1240 = vmatprep.subr.bf16.mxu0 0
        %1241 = vmatpush1.bf16.msra.mxu0 0
        %1242 = vmatprep.subr.bf16.mxu0 0
        %1243 = vmatpush1.bf16.msra.mxu0 0
        %1244 = vmatprep.mubr.bf16.mxu0 0
        %1245 = vmatmul.mubr.bf16.gmra.mrb[0].mxu0 %v1196
        %v1246 = vpop.f32.mrb[0].mxu0
        %v1247 = vadd.f32 0.0, %v1246
        %v1248 = vpop.f32.mrb[0].mxu0
        %v1249 = vpop.f32.mrb[0].mxu0
        %v1250 = vadd.f32 0.0, %v1249
        %v1251 = vpop.f32.mrb[0].mxu0
        %1252 = vmatprep.mubr.bf16.mxu0 0
        %1253 = vmatmul.mubr.bf16.gmra.mrb[0].mxu0 %v1197
        %v1254 = vpop.f32.mrb[0].mxu0
        %v1255 = vadd.f32 0.0, %v1254
        %v1256 = vpop.f32.mrb[0].mxu0
        %v1257 = vpop.f32.mrb[0].mxu0
        %v1258 = vadd.f32 0.0, %v1257
        %v1259 = vpop.f32.mrb[0].mxu0
        %1260 = vmatprep.mubr.bf16.mxu0 0
        %1261 = vmatmul.mubr.bf16.gmra.mrb[0].mxu0 %v1198
        %v1262 = vpop.f32.mrb[0].mxu0
        %v1263 = vadd.f32 0.0, %v1262
        %v1264 = vpop.f32.mrb[0].mxu0
        %v1265 = vpop.f32.mrb[0].mxu0
        %v1266 = vadd.f32 0.0, %v1265
        %v1267 = vpop.f32.mrb[0].mxu0
        %1268 = vmatprep.mubr.bf16.mxu0 0
        %1269 = vmatmul.mubr.bf16.gmra.mrb[0].mxu0 %v1199
        %v1270 = vpop.f32.mrb[0].mxu0
        %v1271 = vadd.f32 0.0, %v1270
        %v1272 = vpop.f32.mrb[0].mxu0
        %v1273 = vpop.f32.mrb[0].mxu0
        %v1274 = vadd.f32 0.0, %v1273
        %v1275 = vpop.f32.mrb[0].mxu0
        %1276 = vmatprep.mubr.bf16.mxu0 0
        %1277 = vmatmul.mubr.bf16.gmra.mrb[0].mxu0 %v1200
        %v1278 = vpop.f32.mrb[0].mxu0
        %v1279 = vadd.f32 0.0, %v1278
        %v1280 = vpop.f32.mrb[0].mxu0
        %v1281 = vpop.f32.mrb[0].mxu0
        %v1282 = vadd.f32 0.0, %v1281
        %v1283 = vpop.f32.mrb[0].mxu0
        %1284 = vmatprep.mubr.bf16.mxu0 0
        %1285 = vmatmul.mubr.bf16.gmra.mrb[0].mxu0 %v1201
        %v1286 = vpop.f32.mrb[0].mxu0
        %v1287 = vadd.f32 0.0, %v1286
        %v1288 = vpop.f32.mrb[0].mxu0
        %v1289 = vpop.f32.mrb[0].mxu0
        %v1290 = vadd.f32 0.0, %v1289
        %v1291 = vpop.f32.mrb[0].mxu0
        %1292 = vmatprep.mubr.bf16.mxu0 0
        %1293 = vmatmul.mubr.bf16.gmra.mrb[0].mxu0 %v1202
        %v1294 = vpop.f32.mrb[0].mxu0
        %v1295 = vadd.f32 0.0, %v1294
        %v1296 = vpop.f32.mrb[0].mxu0
        %v1297 = vpop.f32.mrb[0].mxu0
        %v1298 = vadd.f32 0.0, %v1297
        %v1299 = vpop.f32.mrb[0].mxu0
        %1300 = vmatprep.mubr.bf16.mxu0 0
        %1301 = vmatmul.mubr.bf16.gmra.mrb[0].mxu0 %v1203
        %v1302 = vpop.f32.mrb[0].mxu0
        %v1303 = vadd.f32 0.0, %v1302
        %v1304 = vpop.f32.mrb[0].mxu0
        %v1305 = vpop.f32.mrb[0].mxu0
        %v1306 = vadd.f32 0.0, %v1305
        %v1307 = vpop.f32.mrb[0].mxu0
        %1308 = vdwg.mxu0
        %v1309 = vadd.f32 %v1132, %v1247
        %v1310 = vadd.f32 %v1133, %v1250
        %v1311 = vadd.f32 %v1134, %v1255
        %v1312 = vadd.f32 %v1135, %v1258
        %v1313 = vadd.f32 %v1136, %v1263
        %v1314 = vadd.f32 %v1137, %v1266
        %v1315 = vadd.f32 %v1138, %v1271
        %v1316 = vadd.f32 %v1139, %v1274
        %v1317 = vadd.f32 %v1140, %v1279
        %v1318 = vadd.f32 %v1141, %v1282
        %v1319 = vadd.f32 %v1142, %v1287
        %v1320 = vadd.f32 %v1143, %v1290
        %v1321 = vadd.f32 %v1144, %v1295
        %v1322 = vadd.f32 %v1145, %v1298
        %v1323 = vadd.f32 %v1146, %v1303
        %v1324 = vadd.f32 %v1147, %v1306
        %1325 = vst [vmem:[#allocation2] sm:$0xff] %v1309
        %1326 = vst [vmem:[#allocation2 + $0x8] sm:$0xff] %v1310
        %1327 = vst [vmem:[#allocation2 + $0x10] sm:$0xff] %v1311
        %1328 = vst [vmem:[#allocation2 + $0x18] sm:$0xff] %v1312
        %1329 = vst [vmem:[#allocation2 + $0x20] sm:$0xff] %v1313
        %1330 = vst [vmem:[#allocation2 + $0x28] sm:$0xff] %v1314
        %1331 = vst [vmem:[#allocation2 + $0x30] sm:$0xff] %v1315
        %1332 = vst [vmem:[#allocation2 + $0x38] sm:$0xff] %v1316
        %1333 = vst [vmem:[#allocation2 + $0x40] sm:$0xff] %v1317
        %1334 = vst [vmem:[#allocation2 + $0x48] sm:$0xff] %v1318
        %1335 = vst [vmem:[#allocation2 + $0x50] sm:$0xff] %v1319
        %1336 = vst [vmem:[#allocation2 + $0x58] sm:$0xff] %v1320
        %1337 = vst [vmem:[#allocation2 + $0x60] sm:$0xff] %v1321
        %1338 = vst [vmem:[#allocation2 + $0x68] sm:$0xff] %v1322
        %1339 = vst [vmem:[#allocation2 + $0x70] sm:$0xff] %v1323
        %1340 = vst [vmem:[#allocation2 + $0x78] sm:$0xff] %v1324
        %v1341 = vld [vmem:[#allocation3] sm:$0xff]
        %v1342 = vld [vmem:[#allocation3 + $0x8] sm:$0xff]
        %v1343 = vld [vmem:[#allocation3 + $0x10] sm:$0xff]
        %v1344 = vld [vmem:[#allocation3 + $0x18] sm:$0xff]
        %v1345 = vld [vmem:[#allocation3 + $0x20] sm:$0xff]
        %v1346 = vld [vmem:[#allocation3 + $0x28] sm:$0xff]
        %v1347 = vld [vmem:[#allocation3 + $0x30] sm:$0xff]
        %v1348 = vld [vmem:[#allocation3 + $0x38] sm:$0xff]
        %v1349 = vld [vmem:[#allocation3 + $0x40] sm:$0xff]
        %v1350 = vld [vmem:[#allocation3 + $0x48] sm:$0xff]
        %v1351 = vld [vmem:[#allocation3 + $0x50] sm:$0xff]
        %v1352 = vld [vmem:[#allocation3 + $0x58] sm:$0xff]
        %v1353 = vld [vmem:[#allocation3 + $0x60] sm:$0xff]
        %v1354 = vld [vmem:[#allocation3 + $0x68] sm:$0xff]
        %v1355 = vld [vmem:[#allocation3 + $0x70] sm:$0xff]
        %v1356 = vld [vmem:[#allocation3 + $0x78] sm:$0xff]
        %v1357 = vld [vmem:[%s561] sm:$0xf]
        %v1358 = vld [vmem:[%s561 + $0x4] sm:$0xf]
        %v1359 = vld [vmem:[%s561 + $0x8] sm:$0xf]
        %v1360 = vld [vmem:[%s561 + $0xc] sm:$0xf]
        %v1361 = vld [vmem:[%s561 + $0x10] sm:$0xf]
        %v1362 = vld [vmem:[%s561 + $0x14] sm:$0xf]
        %v1363 = vld [vmem:[%s561 + $0x18] sm:$0xf]
        %v1364 = vld [vmem:[%s561 + $0x1c] sm:$0xf]
        %v1365 = vld [vmem:[%s561 + $0x20] sm:$0xf]
        %v1366 = vld [vmem:[%s561 + $0x24] sm:$0xf]
        %v1367 = vld [vmem:[%s561 + $0x28] sm:$0xf]
        %v1368 = vld [vmem:[%s561 + $0x2c] sm:$0xf]
        %v1369 = vld [vmem:[%s561 + $0x30] sm:$0xf]
        %v1370 = vld [vmem:[%s561 + $0x34] sm:$0xf]
        %v1371 = vld [vmem:[%s561 + $0x38] sm:$0xf]
        %v1372 = vld [vmem:[%s561 + $0x3c] sm:$0xf]
        %v1389 = vunpack.c.l.b16 %v1357
        %v1390 = vunpack.c.l.b16 %v1358
        %v1391 = vunpack.c.l.b16 %v1359
        %v1392 = vunpack.c.l.b16 %v1360
        %v1393 = vunpack.c.l.b16 %v1361
        %v1394 = vunpack.c.l.b16 %v1362
        %v1395 = vunpack.c.l.b16 %v1363
        %v1396 = vunpack.c.l.b16 %v1364
        %v1397 = vunpack.c.l.b16 %v1365
        %v1398 = vunpack.c.l.b16 %v1366
        %v1399 = vunpack.c.l.b16 %v1367
        %v1400 = vunpack.c.l.b16 %v1368
        %v1401 = vunpack.c.l.b16 %v1369
        %v1402 = vunpack.c.l.b16 %v1370
        %v1403 = vunpack.c.l.b16 %v1371
        %v1404 = vunpack.c.l.b16 %v1372
        %v1405 = vpack.c.b16 %v1390, %v1389
        %v1406 = vpack.c.b16 %v1392, %v1391
        %v1407 = vpack.c.b16 %v1394, %v1393
        %v1408 = vpack.c.b16 %v1396, %v1395
        %v1409 = vpack.c.b16 %v1398, %v1397
        %v1410 = vpack.c.b16 %v1400, %v1399
        %v1411 = vpack.c.b16 %v1402, %v1401
        %v1412 = vpack.c.b16 %v1404, %v1403
        %1421 = vmatprep.subr.bf16.mxu0 0
        %1422 = vmatpush1.bf16.msra.mxu0 %v1109
        %1423 = vmatprep.subr.bf16.mxu0 0
        %1424 = vmatpush1.bf16.msra.mxu0 %v1112
        %1425 = vmatprep.subr.bf16.mxu0 0
        %1426 = vmatpush1.bf16.msra.mxu0 %v1115
        %1427 = vmatprep.subr.bf16.mxu0 0
        %1428 = vmatpush1.bf16.msra.mxu0 %v1118
        %1429 = vmatprep.subr.bf16.mxu0 0
        %1430 = vmatpush1.bf16.msra.mxu0 %v1121
        %1431 = vmatprep.subr.bf16.mxu0 0
        %1432 = vmatpush1.bf16.msra.mxu0 %v1124
        %1433 = vmatprep.subr.bf16.mxu0 0
        %1434 = vmatpush1.bf16.msra.mxu0 %v1127
        %1435 = vmatprep.subr.bf16.mxu0 0
        %1436 = vmatpush1.bf16.msra.mxu0 %v1130
        %1437 = vmatprep.subr.bf16.mxu0 0
        %1438 = vmatpush1.bf16.msra.mxu0 0
        %1439 = vmatprep.subr.bf16.mxu0 0
        %1440 = vmatpush1.bf16.msra.mxu0 0
        %1441 = vmatprep.subr.bf16.mxu0 0
        %1442 = vmatpush1.bf16.msra.mxu0 0
        %1443 = vmatprep.subr.bf16.mxu0 0
        %1444 = vmatpush1.bf16.msra.mxu0 0
        %1445 = vmatprep.subr.bf16.mxu0 0
        %1446 = vmatpush1.bf16.msra.mxu0 0
        %1447 = vmatprep.subr.bf16.mxu0 0
        %1448 = vmatpush1.bf16.msra.mxu0 0
        %1449 = vmatprep.subr.bf16.mxu0 0
        %1450 = vmatpush1.bf16.msra.mxu0 0
        %1451 = vmatprep.subr.bf16.mxu0 0
        %1452 = vmatpush1.bf16.msra.mxu0 0
        %1453 = vmatprep.mubr.bf16.mxu0 0
        %1454 = vmatmul.mubr.bf16.gmra.mrb[0].mxu0 %v1405
        %v1455 = vpop.f32.mrb[0].mxu0
        %v1456 = vadd.f32 0.0, %v1455
        %v1457 = vpop.f32.mrb[0].mxu0
        %v1458 = vpop.f32.mrb[0].mxu0
        %v1459 = vadd.f32 0.0, %v1458
        %v1460 = vpop.f32.mrb[0].mxu0
        %1461 = vmatprep.mubr.bf16.mxu0 0
        %1462 = vmatmul.mubr.bf16.gmra.mrb[0].mxu0 %v1406
        %v1463 = vpop.f32.mrb[0].mxu0
        %v1464 = vadd.f32 0.0, %v1463
        %v1465 = vpop.f32.mrb[0].mxu0
        %v1466 = vpop.f32.mrb[0].mxu0
        %v1467 = vadd.f32 0.0, %v1466
        %v1468 = vpop.f32.mrb[0].mxu0
        %1469 = vmatprep.mubr.bf16.mxu0 0
        %1470 = vmatmul.mubr.bf16.gmra.mrb[0].mxu0 %v1407
        %v1471 = vpop.f32.mrb[0].mxu0
        %v1472 = vadd.f32 0.0, %v1471
        %v1473 = vpop.f32.mrb[0].mxu0
        %v1474 = vpop.f32.mrb[0].mxu0
        %v1475 = vadd.f32 0.0, %v1474
        %v1476 = vpop.f32.mrb[0].mxu0
        %1477 = vmatprep.mubr.bf16.mxu0 0
        %1478 = vmatmul.mubr.bf16.gmra.mrb[0].mxu0 %v1408
        %v1479 = vpop.f32.mrb[0].mxu0
        %v1480 = vadd.f32 0.0, %v1479
        %v1481 = vpop.f32.mrb[0].mxu0
        %v1482 = vpop.f32.mrb[0].mxu0
        %v1483 = vadd.f32 0.0, %v1482
        %v1484 = vpop.f32.mrb[0].mxu0
        %1485 = vmatprep.mubr.bf16.mxu0 0
        %1486 = vmatmul.mubr.bf16.gmra.mrb[0].mxu0 %v1409
        %v1487 = vpop.f32.mrb[0].mxu0
        %v1488 = vadd.f32 0.0, %v1487
        %v1489 = vpop.f32.mrb[0].mxu0
        %v1490 = vpop.f32.mrb[0].mxu0
        %v1491 = vadd.f32 0.0, %v1490
        %v1492 = vpop.f32.mrb[0].mxu0
        %1493 = vmatprep.mubr.bf16.mxu0 0
        %1494 = vmatmul.mubr.bf16.gmra.mrb[0].mxu0 %v1410
        %v1495 = vpop.f32.mrb[0].mxu0
        %v1496 = vadd.f32 0.0, %v1495
        %v1497 = vpop.f32.mrb[0].mxu0
        %v1498 = vpop.f32.mrb[0].mxu0
        %v1499 = vadd.f32 0.0, %v1498
        %v1500 = vpop.f32.mrb[0].mxu0
        %1501 = vmatprep.mubr.bf16.mxu0 0
        %1502 = vmatmul.mubr.bf16.gmra.mrb[0].mxu0 %v1411
        %v1503 = vpop.f32.mrb[0].mxu0
        %v1504 = vadd.f32 0.0, %v1503
        %v1505 = vpop.f32.mrb[0].mxu0
        %v1506 = vpop.f32.mrb[0].mxu0
        %v1507 = vadd.f32 0.0, %v1506
        %v1508 = vpop.f32.mrb[0].mxu0
        %1509 = vmatprep.mubr.bf16.mxu0 0
        %1510 = vmatmul.mubr.bf16.gmra.mrb[0].mxu0 %v1412
        %v1511 = vpop.f32.mrb[0].mxu0
        %v1512 = vadd.f32 0.0, %v1511
        %v1513 = vpop.f32.mrb[0].mxu0
        %v1514 = vpop.f32.mrb[0].mxu0
        %v1515 = vadd.f32 0.0, %v1514
        %v1516 = vpop.f32.mrb[0].mxu0
        %1517 = vdwg.mxu0
        %v1518 = vadd.f32 %v1341, %v1456
        %v1519 = vadd.f32 %v1342, %v1459
        %v1520 = vadd.f32 %v1343, %v1464
        %v1521 = vadd.f32 %v1344, %v1467
        %v1522 = vadd.f32 %v1345, %v1472
        %v1523 = vadd.f32 %v1346, %v1475
        %v1524 = vadd.f32 %v1347, %v1480
        %v1525 = vadd.f32 %v1348, %v1483
        %v1526 = vadd.f32 %v1349, %v1488
        %v1527 = vadd.f32 %v1350, %v1491
        %v1528 = vadd.f32 %v1351, %v1496
        %v1529 = vadd.f32 %v1352, %v1499
        %v1530 = vadd.f32 %v1353, %v1504
        %v1531 = vadd.f32 %v1354, %v1507
        %v1532 = vadd.f32 %v1355, %v1512
        %v1533 = vadd.f32 %v1356, %v1515
        %1534 = vst [vmem:[#allocation3] sm:$0xff] %v1518
        %1535 = vst [vmem:[#allocation3 + $0x8] sm:$0xff] %v1519
        %1536 = vst [vmem:[#allocation3 + $0x10] sm:$0xff] %v1520
        %1537 = vst [vmem:[#allocation3 + $0x18] sm:$0xff] %v1521
        %1538 = vst [vmem:[#allocation3 + $0x20] sm:$0xff] %v1522
        %1539 = vst [vmem:[#allocation3 + $0x28] sm:$0xff] %v1523
        %1540 = vst [vmem:[#allocation3 + $0x30] sm:$0xff] %v1524
        %1541 = vst [vmem:[#allocation3 + $0x38] sm:$0xff] %v1525
        %1542 = vst [vmem:[#allocation3 + $0x40] sm:$0xff] %v1526
        %1543 = vst [vmem:[#allocation3 + $0x48] sm:$0xff] %v1527
        %1544 = vst [vmem:[#allocation3 + $0x50] sm:$0xff] %v1528
        %1545 = vst [vmem:[#allocation3 + $0x58] sm:$0xff] %v1529
        %1546 = vst [vmem:[#allocation3 + $0x60] sm:$0xff] %v1530
        %1547 = vst [vmem:[#allocation3 + $0x68] sm:$0xff] %v1531
        %1548 = vst [vmem:[#allocation3 + $0x70] sm:$0xff] %v1532
        %1549 = vst [vmem:[#allocation3 + $0x78] sm:$0xff] %v1533
        %v1550 = vld [vmem:[#allocation4] sm:$0xff]
        %v1551 = vld [vmem:[#allocation4 + $0x8] sm:$0xff]
        %v1552 = vld [vmem:[#allocation4 + $0x10] sm:$0xff]
        %v1553 = vld [vmem:[#allocation4 + $0x18] sm:$0xff]
        %v1554 = vld [vmem:[#allocation4 + $0x20] sm:$0xff]
        %v1555 = vld [vmem:[#allocation4 + $0x28] sm:$0xff]
        %v1556 = vld [vmem:[#allocation4 + $0x30] sm:$0xff]
        %v1557 = vld [vmem:[#allocation4 + $0x38] sm:$0xff]
        %v1558 = vld [vmem:[#allocation4 + $0x40] sm:$0xff]
        %v1559 = vld [vmem:[#allocation4 + $0x48] sm:$0xff]
        %v1560 = vld [vmem:[#allocation4 + $0x50] sm:$0xff]
        %v1561 = vld [vmem:[#allocation4 + $0x58] sm:$0xff]
        %v1562 = vld [vmem:[#allocation4 + $0x60] sm:$0xff]
        %v1563 = vld [vmem:[#allocation4 + $0x68] sm:$0xff]
        %v1564 = vld [vmem:[#allocation4 + $0x70] sm:$0xff]
        %v1565 = vld [vmem:[#allocation4 + $0x78] sm:$0xff]
        %v1566 = vld [vmem:[%s568] sm:$0xf]
        %v1567 = vld [vmem:[%s568 + $0x4] sm:$0xf]
        %v1568 = vld [vmem:[%s568 + $0x8] sm:$0xf]
        %v1569 = vld [vmem:[%s568 + $0xc] sm:$0xf]
        %v1570 = vld [vmem:[%s568 + $0x10] sm:$0xf]
        %v1571 = vld [vmem:[%s568 + $0x14] sm:$0xf]
        %v1572 = vld [vmem:[%s568 + $0x18] sm:$0xf]
        %v1573 = vld [vmem:[%s568 + $0x1c] sm:$0xf]
        %v1574 = vld [vmem:[%s568 + $0x20] sm:$0xf]
        %v1575 = vld [vmem:[%s568 + $0x24] sm:$0xf]
        %v1576 = vld [vmem:[%s568 + $0x28] sm:$0xf]
        %v1577 = vld [vmem:[%s568 + $0x2c] sm:$0xf]
        %v1578 = vld [vmem:[%s568 + $0x30] sm:$0xf]
        %v1579 = vld [vmem:[%s568 + $0x34] sm:$0xf]
        %v1580 = vld [vmem:[%s568 + $0x38] sm:$0xf]
        %v1581 = vld [vmem:[%s568 + $0x3c] sm:$0xf]
        %v1598 = vunpack.c.l.b16 %v1566
        %v1599 = vunpack.c.l.b16 %v1567
        %v1600 = vunpack.c.l.b16 %v1568
        %v1601 = vunpack.c.l.b16 %v1569
        %v1602 = vunpack.c.l.b16 %v1570
        %v1603 = vunpack.c.l.b16 %v1571
        %v1604 = vunpack.c.l.b16 %v1572
        %v1605 = vunpack.c.l.b16 %v1573
        %v1606 = vunpack.c.l.b16 %v1574
        %v1607 = vunpack.c.l.b16 %v1575
        %v1608 = vunpack.c.l.b16 %v1576
        %v1609 = vunpack.c.l.b16 %v1577
        %v1610 = vunpack.c.l.b16 %v1578
        %v1611 = vunpack.c.l.b16 %v1579
        %v1612 = vunpack.c.l.b16 %v1580
        %v1613 = vunpack.c.l.b16 %v1581
        %v1614 = vpack.c.b16 %v1599, %v1598
        %v1615 = vpack.c.b16 %v1601, %v1600
        %v1616 = vpack.c.b16 %v1603, %v1602
        %v1617 = vpack.c.b16 %v1605, %v1604
        %v1618 = vpack.c.b16 %v1607, %v1606
        %v1619 = vpack.c.b16 %v1609, %v1608
        %v1620 = vpack.c.b16 %v1611, %v1610
        %v1621 = vpack.c.b16 %v1613, %v1612
        %1630 = vmatprep.subr.bf16.mxu0 0
        %1631 = vmatpush1.bf16.msra.mxu0 %v1110
        %1632 = vmatprep.subr.bf16.mxu0 0
        %1633 = vmatpush1.bf16.msra.mxu0 %v1113
        %1634 = vmatprep.subr.bf16.mxu0 0
        %1635 = vmatpush1.bf16.msra.mxu0 %v1116
        %1636 = vmatprep.subr.bf16.mxu0 0
        %1637 = vmatpush1.bf16.msra.mxu0 %v1119
        %1638 = vmatprep.subr.bf16.mxu0 0
        %1639 = vmatpush1.bf16.msra.mxu0 %v1122
        %1640 = vmatprep.subr.bf16.mxu0 0
        %1641 = vmatpush1.bf16.msra.mxu0 %v1125
        %1642 = vmatprep.subr.bf16.mxu0 0
        %1643 = vmatpush1.bf16.msra.mxu0 %v1128
        %1644 = vmatprep.subr.bf16.mxu0 0
        %1645 = vmatpush1.bf16.msra.mxu0 %v1131
        %1646 = vmatprep.subr.bf16.mxu0 0
        %1647 = vmatpush1.bf16.msra.mxu0 0
        %1648 = vmatprep.subr.bf16.mxu0 0
        %1649 = vmatpush1.bf16.msra.mxu0 0
        %1650 = vmatprep.subr.bf16.mxu0 0
        %1651 = vmatpush1.bf16.msra.mxu0 0
        %1652 = vmatprep.subr.bf16.mxu0 0
        %1653 = vmatpush1.bf16.msra.mxu0 0
        %1654 = vmatprep.subr.bf16.mxu0 0
        %1655 = vmatpush1.bf16.msra.mxu0 0
        %1656 = vmatprep.subr.bf16.mxu0 0
        %1657 = vmatpush1.bf16.msra.mxu0 0
        %1658 = vmatprep.subr.bf16.mxu0 0
        %1659 = vmatpush1.bf16.msra.mxu0 0
        %1660 = vmatprep.subr.bf16.mxu0 0
        %1661 = vmatpush1.bf16.msra.mxu0 0
        %1662 = vmatprep.mubr.bf16.mxu0 0
        %1663 = vmatmul.mubr.bf16.gmra.mrb[0].mxu0 %v1614
        %v1664 = vpop.f32.mrb[0].mxu0
        %v1665 = vadd.f32 0.0, %v1664
        %v1666 = vpop.f32.mrb[0].mxu0
        %v1667 = vpop.f32.mrb[0].mxu0
        %v1668 = vadd.f32 0.0, %v1667
        %v1669 = vpop.f32.mrb[0].mxu0
        %1670 = vmatprep.mubr.bf16.mxu0 0
        %1671 = vmatmul.mubr.bf16.gmra.mrb[0].mxu0 %v1615
        %v1672 = vpop.f32.mrb[0].mxu0
        %v1673 = vadd.f32 0.0, %v1672
        %v1674 = vpop.f32.mrb[0].mxu0
        %v1675 = vpop.f32.mrb[0].mxu0
        %v1676 = vadd.f32 0.0, %v1675
        %v1677 = vpop.f32.mrb[0].mxu0
        %1678 = vmatprep.mubr.bf16.mxu0 0
        %1679 = vmatmul.mubr.bf16.gmra.mrb[0].mxu0 %v1616
        %v1680 = vpop.f32.mrb[0].mxu0
        %v1681 = vadd.f32 0.0, %v1680
        %v1682 = vpop.f32.mrb[0].mxu0
        %v1683 = vpop.f32.mrb[0].mxu0
        %v1684 = vadd.f32 0.0, %v1683
        %v1685 = vpop.f32.mrb[0].mxu0
        %1686 = vmatprep.mubr.bf16.mxu0 0
        %1687 = vmatmul.mubr.bf16.gmra.mrb[0].mxu0 %v1617
        %v1688 = vpop.f32.mrb[0].mxu0
        %v1689 = vadd.f32 0.0, %v1688
        %v1690 = vpop.f32.mrb[0].mxu0
        %v1691 = vpop.f32.mrb[0].mxu0
        %v1692 = vadd.f32 0.0, %v1691
        %v1693 = vpop.f32.mrb[0].mxu0
        %1694 = vmatprep.mubr.bf16.mxu0 0
        %1695 = vmatmul.mubr.bf16.gmra.mrb[0].mxu0 %v1618
        %v1696 = vpop.f32.mrb[0].mxu0
        %v1697 = vadd.f32 0.0, %v1696
        %v1698 = vpop.f32.mrb[0].mxu0
        %v1699 = vpop.f32.mrb[0].mxu0
        %v1700 = vadd.f32 0.0, %v1699
        %v1701 = vpop.f32.mrb[0].mxu0
        %1702 = vmatprep.mubr.bf16.mxu0 0
        %1703 = vmatmul.mubr.bf16.gmra.mrb[0].mxu0 %v1619
        %v1704 = vpop.f32.mrb[0].mxu0
        %v1705 = vadd.f32 0.0, %v1704
        %v1706 = vpop.f32.mrb[0].mxu0
        %v1707 = vpop.f32.mrb[0].mxu0
        %v1708 = vadd.f32 0.0, %v1707
        %v1709 = vpop.f32.mrb[0].mxu0
        %1710 = vmatprep.mubr.bf16.mxu0 0
        %1711 = vmatmul.mubr.bf16.gmra.mrb[0].mxu0 %v1620
        %v1712 = vpop.f32.mrb[0].mxu0
        %v1713 = vadd.f32 0.0, %v1712
        %v1714 = vpop.f32.mrb[0].mxu0
        %v1715 = vpop.f32.mrb[0].mxu0
        %v1716 = vadd.f32 0.0, %v1715
        %v1717 = vpop.f32.mrb[0].mxu0
        %1718 = vmatprep.mubr.bf16.mxu0 0
        %1719 = vmatmul.mubr.bf16.gmra.mrb[0].mxu0 %v1621
        %v1720 = vpop.f32.mrb[0].mxu0
        %v1721 = vadd.f32 0.0, %v1720
        %v1722 = vpop.f32.mrb[0].mxu0
        %v1723 = vpop.f32.mrb[0].mxu0
        %v1724 = vadd.f32 0.0, %v1723
        %v1725 = vpop.f32.mrb[0].mxu0
        %1726 = vdwg.mxu0
        %v1727 = vadd.f32 %v1550, %v1665
        %v1728 = vadd.f32 %v1551, %v1668
        %v1729 = vadd.f32 %v1552, %v1673
        %v1730 = vadd.f32 %v1553, %v1676
        %v1731 = vadd.f32 %v1554, %v1681
        %v1732 = vadd.f32 %v1555, %v1684
        %v1733 = vadd.f32 %v1556, %v1689
        %v1734 = vadd.f32 %v1557, %v1692
        %v1735 = vadd.f32 %v1558, %v1697
        %v1736 = vadd.f32 %v1559, %v1700
        %v1737 = vadd.f32 %v1560, %v1705
        %v1738 = vadd.f32 %v1561, %v1708
        %v1739 = vadd.f32 %v1562, %v1713
        %v1740 = vadd.f32 %v1563, %v1716
        %v1741 = vadd.f32 %v1564, %v1721
        %v1742 = vadd.f32 %v1565, %v1724
        %1743 = vst [vmem:[#allocation4] sm:$0xff] %v1727
        %1744 = vst [vmem:[#allocation4 + $0x8] sm:$0xff] %v1728
        %1745 = vst [vmem:[#allocation4 + $0x10] sm:$0xff] %v1729
        %1746 = vst [vmem:[#allocation4 + $0x18] sm:$0xff] %v1730
        %1747 = vst [vmem:[#allocation4 + $0x20] sm:$0xff] %v1731
        %1748 = vst [vmem:[#allocation4 + $0x28] sm:$0xff] %v1732
        %1749 = vst [vmem:[#allocation4 + $0x30] sm:$0xff] %v1733
        %1750 = vst [vmem:[#allocation4 + $0x38] sm:$0xff] %v1734
        %1751 = vst [vmem:[#allocation4 + $0x40] sm:$0xff] %v1735
        %1752 = vst [vmem:[#allocation4 + $0x48] sm:$0xff] %v1736
        %1753 = vst [vmem:[#allocation4 + $0x50] sm:$0xff] %v1737
        %1754 = vst [vmem:[#allocation4 + $0x58] sm:$0xff] %v1738
        %1755 = vst [vmem:[#allocation4 + $0x60] sm:$0xff] %v1739
        %1756 = vst [vmem:[#allocation4 + $0x68] sm:$0xff] %v1740
        %1757 = vst [vmem:[#allocation4 + $0x70] sm:$0xff] %v1741
        %1758 = vst [vmem:[#allocation4 + $0x78] sm:$0xff] %v1742
        %p1759 = scmp.eq.s32.totalorder %s21, 1
        // Predicated region
        $region168: #{forward.6} parent=150 // pred_check
          %p1760 = pneg %p1759
        $region169: #{forward.6} parent=150 // pred_check_branch
          %1762 = sbr.rel (%p1760) target = $region171
        $region170: #{forward.6} parent=150 // pred_region
          %v1763 = vld [vmem:[#allocation2] sm:$0xff]
          %v1764 = vld [vmem:[#allocation2 + $0x8] sm:$0xff]
          %v1765 = vld [vmem:[#allocation2 + $0x10] sm:$0xff]
          %v1766 = vld [vmem:[#allocation2 + $0x18] sm:$0xff]
          %v1767 = vld [vmem:[#allocation2 + $0x20] sm:$0xff]
          %v1768 = vld [vmem:[#allocation2 + $0x28] sm:$0xff]
          %v1769 = vld [vmem:[#allocation2 + $0x30] sm:$0xff]
          %v1770 = vld [vmem:[#allocation2 + $0x38] sm:$0xff]
          %v1771 = vld [vmem:[#allocation2 + $0x40] sm:$0xff]
          %v1772 = vld [vmem:[#allocation2 + $0x48] sm:$0xff]
          %v1773 = vld [vmem:[#allocation2 + $0x50] sm:$0xff]
          %v1774 = vld [vmem:[#allocation2 + $0x58] sm:$0xff]
          %v1775 = vld [vmem:[#allocation2 + $0x60] sm:$0xff]
          %v1776 = vld [vmem:[#allocation2 + $0x68] sm:$0xff]
          %v1777 = vld [vmem:[#allocation2 + $0x70] sm:$0xff]
          %v1778 = vld [vmem:[#allocation2 + $0x78] sm:$0xff]
          %v1779 = vmax.f32 %v1763, 0.0
          %v1780 = vmax.f32 %v1764, 0.0
          %v1781 = vmax.f32 %v1765, 0.0
          %v1782 = vmax.f32 %v1766, 0.0
          %v1783 = vmax.f32 %v1767, 0.0
          %v1784 = vmax.f32 %v1768, 0.0
          %v1785 = vmax.f32 %v1769, 0.0
          %v1786 = vmax.f32 %v1770, 0.0
          %v1787 = vmax.f32 %v1771, 0.0
          %v1788 = vmax.f32 %v1772, 0.0
          %v1789 = vmax.f32 %v1773, 0.0
          %v1790 = vmax.f32 %v1774, 0.0
          %v1791 = vmax.f32 %v1775, 0.0
          %v1792 = vmax.f32 %v1776, 0.0
          %v1793 = vmax.f32 %v1777, 0.0
          %v1794 = vmax.f32 %v1778, 0.0
          %v1795 = vld [vmem:[#allocation3] sm:$0xff]
          %v1796 = vld [vmem:[#allocation3 + $0x8] sm:$0xff]
          %v1797 = vld [vmem:[#allocation3 + $0x10] sm:$0xff]
          %v1798 = vld [vmem:[#allocation3 + $0x18] sm:$0xff]
          %v1799 = vld [vmem:[#allocation3 + $0x20] sm:$0xff]
          %v1800 = vld [vmem:[#allocation3 + $0x28] sm:$0xff]
          %v1801 = vld [vmem:[#allocation3 + $0x30] sm:$0xff]
          %v1802 = vld [vmem:[#allocation3 + $0x38] sm:$0xff]
          %v1803 = vld [vmem:[#allocation3 + $0x40] sm:$0xff]
          %v1804 = vld [vmem:[#allocation3 + $0x48] sm:$0xff]
          %v1805 = vld [vmem:[#allocation3 + $0x50] sm:$0xff]
          %v1806 = vld [vmem:[#allocation3 + $0x58] sm:$0xff]
          %v1807 = vld [vmem:[#allocation3 + $0x60] sm:$0xff]
          %v1808 = vld [vmem:[#allocation3 + $0x68] sm:$0xff]
          %v1809 = vld [vmem:[#allocation3 + $0x70] sm:$0xff]
          %v1810 = vld [vmem:[#allocation3 + $0x78] sm:$0xff]
          %v1811 = vmax.f32 %v1795, 0.0
          %v1812 = vmax.f32 %v1796, 0.0
          %v1813 = vmax.f32 %v1797, 0.0
          %v1814 = vmax.f32 %v1798, 0.0
          %v1815 = vmax.f32 %v1799, 0.0
          %v1816 = vmax.f32 %v1800, 0.0
          %v1817 = vmax.f32 %v1801, 0.0
          %v1818 = vmax.f32 %v1802, 0.0
          %v1819 = vmax.f32 %v1803, 0.0
          %v1820 = vmax.f32 %v1804, 0.0
          %v1821 = vmax.f32 %v1805, 0.0
          %v1822 = vmax.f32 %v1806, 0.0
          %v1823 = vmax.f32 %v1807, 0.0
          %v1824 = vmax.f32 %v1808, 0.0
          %v1825 = vmax.f32 %v1809, 0.0
          %v1826 = vmax.f32 %v1810, 0.0
          %v1827 = vadd.f32 %v1779, %v1811
          %v1828 = vadd.f32 %v1780, %v1812
          %v1829 = vadd.f32 %v1781, %v1813
          %v1830 = vadd.f32 %v1782, %v1814
          %v1831 = vadd.f32 %v1783, %v1815
          %v1832 = vadd.f32 %v1784, %v1816
          %v1833 = vadd.f32 %v1785, %v1817
          %v1834 = vadd.f32 %v1786, %v1818
          %v1835 = vadd.f32 %v1787, %v1819
          %v1836 = vadd.f32 %v1788, %v1820
          %v1837 = vadd.f32 %v1789, %v1821
          %v1838 = vadd.f32 %v1790, %v1822
          %v1839 = vadd.f32 %v1791, %v1823
          %v1840 = vadd.f32 %v1792, %v1824
          %v1841 = vadd.f32 %v1793, %v1825
          %v1842 = vadd.f32 %v1794, %v1826
          %v1843 = vld [vmem:[#allocation4] sm:$0xff]
          %v1844 = vld [vmem:[#allocation4 + $0x8] sm:$0xff]
          %v1845 = vld [vmem:[#allocation4 + $0x10] sm:$0xff]
          %v1846 = vld [vmem:[#allocation4 + $0x18] sm:$0xff]
          %v1847 = vld [vmem:[#allocation4 + $0x20] sm:$0xff]
          %v1848 = vld [vmem:[#allocation4 + $0x28] sm:$0xff]
          %v1849 = vld [vmem:[#allocation4 + $0x30] sm:$0xff]
          %v1850 = vld [vmem:[#allocation4 + $0x38] sm:$0xff]
          %v1851 = vld [vmem:[#allocation4 + $0x40] sm:$0xff]
          %v1852 = vld [vmem:[#allocation4 + $0x48] sm:$0xff]
          %v1853 = vld [vmem:[#allocation4 + $0x50] sm:$0xff]
          %v1854 = vld [vmem:[#allocation4 + $0x58] sm:$0xff]
          %v1855 = vld [vmem:[#allocation4 + $0x60] sm:$0xff]
          %v1856 = vld [vmem:[#allocation4 + $0x68] sm:$0xff]
          %v1857 = vld [vmem:[#allocation4 + $0x70] sm:$0xff]
          %v1858 = vld [vmem:[#allocation4 + $0x78] sm:$0xff]
          %v1859 = vmax.f32 %v1843, 0.0
          %v1860 = vmax.f32 %v1844, 0.0
          %v1861 = vmax.f32 %v1845, 0.0
          %v1862 = vmax.f32 %v1846, 0.0
          %v1863 = vmax.f32 %v1847, 0.0
          %v1864 = vmax.f32 %v1848, 0.0
          %v1865 = vmax.f32 %v1849, 0.0
          %v1866 = vmax.f32 %v1850, 0.0
          %v1867 = vmax.f32 %v1851, 0.0
          %v1868 = vmax.f32 %v1852, 0.0
          %v1869 = vmax.f32 %v1853, 0.0
          %v1870 = vmax.f32 %v1854, 0.0
          %v1871 = vmax.f32 %v1855, 0.0
          %v1872 = vmax.f32 %v1856, 0.0
          %v1873 = vmax.f32 %v1857, 0.0
          %v1874 = vmax.f32 %v1858, 0.0
          %v1875 = vadd.f32 %v1827, %v1859
          %v1876 = vadd.f32 %v1828, %v1860
          %v1877 = vadd.f32 %v1829, %v1861
          %v1878 = vadd.f32 %v1830, %v1862
          %v1879 = vadd.f32 %v1831, %v1863
          %v1880 = vadd.f32 %v1832, %v1864
          %v1881 = vadd.f32 %v1833, %v1865
          %v1882 = vadd.f32 %v1834, %v1866
          %v1883 = vadd.f32 %v1835, %v1867
          %v1884 = vadd.f32 %v1836, %v1868
          %v1885 = vadd.f32 %v1837, %v1869
          %v1886 = vadd.f32 %v1838, %v1870
          %v1887 = vadd.f32 %v1839, %v1871
          %v1888 = vadd.f32 %v1840, %v1872
          %v1889 = vadd.f32 %v1841, %v1873
          %v1890 = vadd.f32 %v1842, %v1874
          %v1891 = vmul.f32 %v1875, 0.33333334
          %v1892 = vmul.f32 %v1876, 0.33333334
          %v1893 = vmul.f32 %v1877, 0.33333334
          %v1894 = vmul.f32 %v1878, 0.33333334
          %v1895 = vmul.f32 %v1879, 0.33333334
          %v1896 = vmul.f32 %v1880, 0.33333334
          %v1897 = vmul.f32 %v1881, 0.33333334
          %v1898 = vmul.f32 %v1882, 0.33333334
          %v1899 = vmul.f32 %v1883, 0.33333334
          %v1900 = vmul.f32 %v1884, 0.33333334
          %v1901 = vmul.f32 %v1885, 0.33333334
          %v1902 = vmul.f32 %v1886, 0.33333334
          %v1903 = vmul.f32 %v1887, 0.33333334
          %v1904 = vmul.f32 %v1888, 0.33333334
          %v1905 = vmul.f32 %v1889, 0.33333334
          %v1906 = vmul.f32 %v1890, 0.33333334
          %v1907 = vpack.c.bf16 %v1892, %v1891
          %v1908 = vpack.c.bf16 %v1894, %v1893
          %v1909 = vpack.c.bf16 %v1896, %v1895
          %v1910 = vpack.c.bf16 %v1898, %v1897
          %v1911 = vpack.c.bf16 %v1900, %v1899
          %v1912 = vpack.c.bf16 %v1902, %v1901
          %v1913 = vpack.c.bf16 %v1904, %v1903
          %v1914 = vpack.c.bf16 %v1906, %v1905
          %v1923 = vunpack.c.l.b16 %v1907
          %v1924 = vunpack.c.h.b16 %v1907
          %v1925 = vunpack.c.l.b16 %v1908
          %v1926 = vunpack.c.h.b16 %v1908
          %v1927 = vunpack.c.l.b16 %v1909
          %v1928 = vunpack.c.h.b16 %v1909
          %v1929 = vunpack.c.l.b16 %v1910
          %v1930 = vunpack.c.h.b16 %v1910
          %v1931 = vunpack.c.l.b16 %v1911
          %v1932 = vunpack.c.h.b16 %v1911
          %v1933 = vunpack.c.l.b16 %v1912
          %v1934 = vunpack.c.h.b16 %v1912
          %v1935 = vunpack.c.l.b16 %v1913
          %v1936 = vunpack.c.h.b16 %v1913
          %v1937 = vunpack.c.l.b16 %v1914
          %v1938 = vunpack.c.h.b16 %v1914
          %v1939 = vpack.c.b16 %v1923, %v1923
          %v1940 = vpack.c.b16 %v1924, %v1924
          %v1941 = vpack.c.b16 %v1925, %v1925
          %v1942 = vpack.c.b16 %v1926, %v1926
          %v1943 = vpack.c.b16 %v1927, %v1927
          %v1944 = vpack.c.b16 %v1928, %v1928
          %v1945 = vpack.c.b16 %v1929, %v1929
          %v1946 = vpack.c.b16 %v1930, %v1930
          %v1947 = vpack.c.b16 %v1931, %v1931
          %v1948 = vpack.c.b16 %v1932, %v1932
          %v1949 = vpack.c.b16 %v1933, %v1933
          %v1950 = vpack.c.b16 %v1934, %v1934
          %v1951 = vpack.c.b16 %v1935, %v1935
          %v1952 = vpack.c.b16 %v1936, %v1936
          %v1953 = vpack.c.b16 %v1937, %v1937
          %v1954 = vpack.c.b16 %v1938, %v1938
          %1971 = vst [vmem:[%s619] sm:$0xf] %v1939
          %1972 = vst [vmem:[%s619 + $0x4] sm:$0xf] %v1940
          %1973 = vst [vmem:[%s619 + $0x8] sm:$0xf] %v1941
          %1974 = vst [vmem:[%s619 + $0xc] sm:$0xf] %v1942
          %1975 = vst [vmem:[%s619 + $0x10] sm:$0xf] %v1943
          %1976 = vst [vmem:[%s619 + $0x14] sm:$0xf] %v1944
          %1977 = vst [vmem:[%s619 + $0x18] sm:$0xf] %v1945
          %1978 = vst [vmem:[%s619 + $0x1c] sm:$0xf] %v1946
          %1979 = vst [vmem:[%s619 + $0x20] sm:$0xf] %v1947
          %1980 = vst [vmem:[%s619 + $0x24] sm:$0xf] %v1948
          %1981 = vst [vmem:[%s619 + $0x28] sm:$0xf] %v1949
          %1982 = vst [vmem:[%s619 + $0x2c] sm:$0xf] %v1950
          %1983 = vst [vmem:[%s619 + $0x30] sm:$0xf] %v1951
          %1984 = vst [vmem:[%s619 + $0x34] sm:$0xf] %v1952
          %1985 = vst [vmem:[%s619 + $0x38] sm:$0xf] %v1953
          %1986 = vst [vmem:[%s619 + $0x3c] sm:$0xf] %v1954
        $region171: #{forward.6} parent=150 // pred_fallthru
          _
        %s1987 = smul.u32 16, %s20
        %p1988 = scmp.lt.s32.totalorder %s1987, 31
        %s1989 = scalar_select %p1988, %s1987, 31
        %s1990 = smul.addr %s1989, 4
        %s1991 = scalar_lea.vmem %s5, %s1990
        // Predicated region
        $region172: #{forward.6} parent=150 // pred_check
          %p1992 = pneg %p177
        $region173: #{forward.6} parent=150 // pred_check_branch
          %1994 = sbr.rel (%p1992) target = $region175
        $region174: #{forward.6} parent=150 // pred_region
          %s1995 = smul.u32 16, %s20
        $region175: #{forward.6} parent=150 // pred_fallthru
          _
      $region151: #{forward.6} parent=5 // pred_fallthru
        _
      %p1996 = scmp.le.s32.totalorder 2, %s11
      // Predicated region
      $region176: #{forward.6} parent=5 // pred_check
        %p1997 = pneg %p1996
      $region177: #{forward.6} parent=5 // pred_check_branch
        %1999 = sbr.rel (%p1997) target = $region179
      $region178: #{forward.6} parent=5 // pred_region
        %s2000 = ssub.s32 %s11, 2
        // Predicated region
        $region180: #{forward.6} parent=178 // pred_check
          %p2001 = pneg %p183
        $region181: #{forward.6} parent=178 // pred_check_branch
          %2003 = sbr.rel (%p2001) target = $region183
        $region182: #{forward.6} parent=178 // pred_region
          %s2004 = smul.u32 16, %s22
          %p2005 = scmp.lt.s32.totalorder %s2004, 31
          %s2006 = scalar_select %p2005, %s2004, 31
          %s2007 = smul.addr %s2006, 4
          %s2008 = scalar_lea.vmem %s5, %s2007
        $region183: #{forward.6} parent=178 // pred_fallthru
          _
      $region179: #{forward.6} parent=5 // pred_fallthru
        _
    $region6: #{forward.6} parent=1 // loop_footer
      %s15 = sadd.s32 1, %s11
    $region7: #{forward.6} parent=1 // loop_footer_branch
      %10 = sbr.rel target = $region3
    $region8: #{forward.6} parent=1 // loop_exit
      _

// kernel: forward.7
$region0: #{forward.7}
  #allocation0 [shape = 'u32[]', space=smem, size = 0x4, offset = 0x4, fixed_abs, tag = 'smem constant byte address 0x4 - core index']
  #allocation1 [shape = 'u32[144,128]{1,0:T(1,128)}', space=vmem, size = 0x12000, scoped, tag = 'internal scratch']
  #allocation2 [shape = 'f32[128,128]{1,0:T(8,128)}', space=vmem, size = 0x10000, scoped, tag = 'scratch operand']
  #allocation3 [shape = 'f32[128,128]{1,0:T(8,128)}', space=vmem, size = 0x10000, scoped, tag = 'scratch operand']
  #allocation4 [shape = 'f32[128,128]{1,0:T(8,128)}', space=vmem, size = 0x10000, scoped, tag = 'scratch operand']
  %s0 = inlined_call_operand.vmem [shape: bf16[256,128], index: 0, kind: input, shape index: {}]
  %s1 = inlined_call_operand.vmem [shape: bf16[128,384], index: 1, kind: input, shape index: {}]
  %s2 = inlined_call_operand.vmem [shape: f32[128,128], index: 2, kind: input, shape index: {}]
  %s3 = inlined_call_operand.vmem [shape: f32[1,128], index: 3, kind: input, shape index: {}]
  %s4 = inlined_call_operand.vmem [shape: bf16[256,256], index: 4, kind: input, shape index: {}]
  %s5 = inlined_call_operand.vmem [shape: bf16[256,256], index: 5, kind: input, shape index: {}]
  %s6 = inlined_call_operand.vmem [shape: bf16[256,256], index: 6, kind: input, shape index: {}]
  %s7 = inlined_call_operand.vmem [shape: f32[256,128], index: 7, kind: output, shape index: {0}]
  %s8 = inlined_call_operand.vmem [shape: f32[256,128], index: 8, kind: output, shape index: {1}]
  %9 = xla_tuple %s7, %s8
  %s10 = sld [smem:[#allocation0]]
  $region200: #{forward.7} parent=0
    _
  %s12 = ssub.s32 1, %s10
  %s13 = scalar_select 0, %s12, %s10
  $region1: #{forward.7} parent=0
    #allocation5 [shape = 'u8[65536]{0}', space=vmem, size = 0x10000, scoped, tag = 'input window, operand 4']
    #allocation6 [shape = 'u8[65536]{0}', space=vmem, size = 0x10000, scoped, tag = 'input window, operand 5']
    #allocation7 [shape = 'u8[65536]{0}', space=vmem, size = 0x10000, scoped, tag = 'input window, operand 6']
    loop: start=0, step=1, limit=6
    $region2: #{forward.7} parent=1 // loop_pre_header
      _
    $region3: #{forward.7} parent=1 // loop_header
      %s15 = sphi 0, %s19
      %p16 = scmp.ge.s32.totalorder %s15, 6
      %s22 = sphi 0, %s34
      %s23 = sphi 0, %s30
      %s24 = sphi 0, %s22
      %s25 = sphi 0, %s23
      %s26 = sphi 0, %s24
      %s27 = sphi 0, %s25
      %s37 = sphi 0, %s39
      %s40 = sphi 0, %s37
      %s41 = sphi 0, %s40
      %s57 = sphi 0, %s41
      %s61 = sphi 0, %s61
      %s63 = sphi 0, %s61
      %s64 = sphi 0, %s63
      %s78 = sphi 0, %s64
      %s82 = sphi 0, %s82
      %s84 = sphi 0, %s82
      %s85 = sphi 0, %s84
      %s99 = sphi 0, %s85
      %s103 = sphi 0, %s103
      %s105 = sphi 0, %s103
      %s106 = sphi 0, %s105
      %s120 = sphi 0, %s106
      %s128 = sphi 0, %s130
      %s131 = sphi 0, %s128
      %s132 = sphi 0, %s131
      %s148 = sphi 0, %s132
      %s156 = sphi 0, %s158
      %s159 = sphi 0, %s156
      %s160 = sphi 0, %s159
      %s176 = sphi 0, %s160
      %s184 = sphi 0, %s186
      %s187 = sphi 0, %s184
      %s188 = sphi 0, %s187
      %s204 = sphi 0, %s188
      %s210 = sphi 0, %s212
      %s213 = sphi 0, %s210
      %s214 = sphi 0, %s213
      %s230 = sphi 0, %s214
      %s236 = sphi 0, %s238
      %s239 = sphi 0, %s236
      %s240 = sphi 0, %s239
      %s256 = sphi 0, %s240
    $region4: #{forward.7} parent=1 // loop_header_branch
      %18 = sbr.rel (%p16) target = $region8
    $region5: #{forward.7} parent=1 // loop_body
      %s20 = ssub.s32 %s15, 1
      %s21 = ssub.s32 %s15, 2
      %s28 = sadd.s32 1, %s23
      %p29 = scmp.ge.s32.totalorder %s28, 2
      %s30 = scalar_select %p29, 0, %s28
      %s31 = sadd.s32 1, %s22
      %s32 = scalar_select %p29, %s31, %s22
      %p33 = scmp.ge.s32.totalorder %s32, 2
      %s34 = scalar_select %p33, 0, %s32
      %s35 = ssub.s32 %s23, %s30
      %p36 = scmp.eq.s32.totalorder %s35, 0
      %s38 = sadd.s32 %s37, 1
      %s39 = scalar_select %p36, %s37, %s38
      %p42 = pneg %p36
      %p43 = scmp.eq.s32.totalorder %s15, 3
      %p44 = por %p42, %p43
      %p45 = scmp.ne.s32.totalorder %s37, %s40
      %p46 = scmp.eq.s32.totalorder %s15, 0
      %p47 = por %p45, %p46
      %p48 = scmp.ne.s32.totalorder %s37, %s40
      %p49 = scmp.eq.s32.totalorder %s20, 3
      %p50 = por %p48, %p49
      %p51 = scmp.ne.s32.totalorder %s40, %s41
      %p52 = scmp.eq.s32.totalorder %s20, 0
      %p53 = por %p51, %p52
      %p54 = scmp.ne.s32.totalorder %s40, %s41
      %p55 = scmp.eq.s32.totalorder %s21, 3
      %p56 = por %p54, %p55
      %p58 = scmp.ne.s32.totalorder %s41, %s57
      %p59 = scmp.eq.s32.totalorder %s21, 0
      %p60 = por %p58, %p59
      %s62 = sadd.s32 %s61, 1
      %p65 = scmp.eq.s32.totalorder %s15, 3
      %p66 = scmp.ne.s32.totalorder %s61, %s63
      %p67 = scmp.eq.s32.totalorder %s15, 0
      %p68 = por %p66, %p67
      %p69 = scmp.ne.s32.totalorder %s61, %s63
      %p70 = scmp.eq.s32.totalorder %s20, 3
      %p71 = por %p69, %p70
      %p72 = scmp.ne.s32.totalorder %s63, %s64
      %p73 = scmp.eq.s32.totalorder %s20, 0
      %p74 = por %p72, %p73
      %p75 = scmp.ne.s32.totalorder %s63, %s64
      %p76 = scmp.eq.s32.totalorder %s21, 3
      %p77 = por %p75, %p76
      %p79 = scmp.ne.s32.totalorder %s64, %s78
      %p80 = scmp.eq.s32.totalorder %s21, 0
      %p81 = por %p79, %p80
      %s83 = sadd.s32 %s82, 1
      %p86 = scmp.eq.s32.totalorder %s15, 3
      %p87 = scmp.ne.s32.totalorder %s82, %s84
      %p88 = scmp.eq.s32.totalorder %s15, 0
      %p89 = por %p87, %p88
      %p90 = scmp.ne.s32.totalorder %s82, %s84
      %p91 = scmp.eq.s32.totalorder %s20, 3
      %p92 = por %p90, %p91
      %p93 = scmp.ne.s32.totalorder %s84, %s85
      %p94 = scmp.eq.s32.totalorder %s20, 0
      %p95 = por %p93, %p94
      %p96 = scmp.ne.s32.totalorder %s84, %s85
      %p97 = scmp.eq.s32.totalorder %s21, 3
      %p98 = por %p96, %p97
      %p100 = scmp.ne.s32.totalorder %s85, %s99
      %p101 = scmp.eq.s32.totalorder %s21, 0
      %p102 = por %p100, %p101
      %s104 = sadd.s32 %s103, 1
      %p107 = scmp.eq.s32.totalorder %s15, 3
      %p108 = scmp.ne.s32.totalorder %s103, %s105
      %p109 = scmp.eq.s32.totalorder %s15, 0
      %p110 = por %p108, %p109
      %p111 = scmp.ne.s32.totalorder %s103, %s105
      %p112 = scmp.eq.s32.totalorder %s20, 3
      %p113 = por %p111, %p112
      %p114 = scmp.ne.s32.totalorder %s105, %s106
      %p115 = scmp.eq.s32.totalorder %s20, 0
      %p116 = por %p114, %p115
      %p117 = scmp.ne.s32.totalorder %s105, %s106
      %p118 = scmp.eq.s32.totalorder %s21, 3
      %p119 = por %p117, %p118
      %p121 = scmp.ne.s32.totalorder %s106, %s120
      %p122 = scmp.eq.s32.totalorder %s21, 0
      %p123 = por %p121, %p122
      %s124 = ssub.s32 %s22, %s34
      %s125 = ssub.s32 %s23, %s30
      %s126 = sor.u32 %s124, %s125
      %p127 = scmp.eq.s32.totalorder %s126, 0
      %s129 = sadd.s32 %s128, 1
      %s130 = scalar_select %p127, %s128, %s129
      %p133 = pneg %p127
      %p134 = scmp.eq.s32.totalorder %s15, 3
      %p135 = por %p133, %p134
      %p136 = scmp.ne.s32.totalorder %s128, %s131
      %p137 = scmp.eq.s32.totalorder %s15, 0
      %p138 = por %p136, %p137
      %p139 = scmp.ne.s32.totalorder %s128, %s131
      %p140 = scmp.eq.s32.totalorder %s20, 3
      %p141 = por %p139, %p140
      %p142 = scmp.ne.s32.totalorder %s131, %s132
      %p143 = scmp.eq.s32.totalorder %s20, 0
      %p144 = por %p142, %p143
      %p145 = scmp.ne.s32.totalorder %s131, %s132
      %p146 = scmp.eq.s32.totalorder %s21, 3
      %p147 = por %p145, %p146
      %p149 = scmp.ne.s32.totalorder %s132, %s148
      %p150 = scmp.eq.s32.totalorder %s21, 0
      %p151 = por %p149, %p150
      %s152 = ssub.s32 %s22, %s34
      %s153 = ssub.s32 %s23, %s30
      %s154 = sor.u32 %s152, %s153
      %p155 = scmp.eq.s32.totalorder %s154, 0
      %s157 = sadd.s32 %s156, 1
      %s158 = scalar_select %p155, %s156, %s157
      %p161 = pneg %p155
      %p162 = scmp.eq.s32.totalorder %s15, 3
      %p163 = por %p161, %p162
      %p164 = scmp.ne.s32.totalorder %s156, %s159
      %p165 = scmp.eq.s32.totalorder %s15, 0
      %p166 = por %p164, %p165
      %p167 = scmp.ne.s32.totalorder %s156, %s159
      %p168 = scmp.eq.s32.totalorder %s20, 3
      %p169 = por %p167, %p168
      %p170 = scmp.ne.s32.totalorder %s159, %s160
      %p171 = scmp.eq.s32.totalorder %s20, 0
      %p172 = por %p170, %p171
      %p173 = scmp.ne.s32.totalorder %s159, %s160
      %p174 = scmp.eq.s32.totalorder %s21, 3
      %p175 = por %p173, %p174
      %p177 = scmp.ne.s32.totalorder %s160, %s176
      %p178 = scmp.eq.s32.totalorder %s21, 0
      %p179 = por %p177, %p178
      %s180 = ssub.s32 %s22, %s34
      %s181 = ssub.s32 %s23, %s30
      %s182 = sor.u32 %s180, %s181
      %p183 = scmp.eq.s32.totalorder %s182, 0
      %s185 = sadd.s32 %s184, 1
      %s186 = scalar_select %p183, %s184, %s185
      %p189 = pneg %p183
      %p190 = scmp.eq.s32.totalorder %s15, 3
      %p191 = por %p189, %p190
      %p192 = scmp.ne.s32.totalorder %s184, %s187
      %p193 = scmp.eq.s32.totalorder %s15, 0
      %p194 = por %p192, %p193
      %p195 = scmp.ne.s32.totalorder %s184, %s187
      %p196 = scmp.eq.s32.totalorder %s20, 3
      %p197 = por %p195, %p196
      %p198 = scmp.ne.s32.totalorder %s187, %s188
      %p199 = scmp.eq.s32.totalorder %s20, 0
      %p200 = por %p198, %p199
      %p201 = scmp.ne.s32.totalorder %s187, %s188
      %p202 = scmp.eq.s32.totalorder %s21, 3
      %p203 = por %p201, %p202
      %p205 = scmp.ne.s32.totalorder %s188, %s204
      %p206 = scmp.eq.s32.totalorder %s21, 0
      %p207 = por %p205, %p206
      %s208 = ssub.s32 %s22, %s34
      %p209 = scmp.eq.s32.totalorder %s208, 0
      %s211 = sadd.s32 %s210, 1
      %s212 = scalar_select %p209, %s210, %s211
      %p215 = pneg %p209
      %p216 = scmp.eq.s32.totalorder %s15, 3
      %p217 = por %p215, %p216
      %p218 = scmp.ne.s32.totalorder %s210, %s213
      %p219 = scmp.eq.s32.totalorder %s15, 0
      %p220 = por %p218, %p219
      %p221 = scmp.ne.s32.totalorder %s210, %s213
      %p222 = scmp.eq.s32.totalorder %s20, 3
      %p223 = por %p221, %p222
      %p224 = scmp.ne.s32.totalorder %s213, %s214
      %p225 = scmp.eq.s32.totalorder %s20, 0
      %p226 = por %p224, %p225
      %p227 = scmp.ne.s32.totalorder %s213, %s214
      %p228 = scmp.eq.s32.totalorder %s21, 3
      %p229 = por %p227, %p228
      %p231 = scmp.ne.s32.totalorder %s214, %s230
      %p232 = scmp.eq.s32.totalorder %s21, 0
      %p233 = por %p231, %p232
      %s234 = ssub.s32 %s22, %s34
      %p235 = scmp.eq.s32.totalorder %s234, 0
      %s237 = sadd.s32 %s236, 1
      %s238 = scalar_select %p235, %s236, %s237
      %p241 = pneg %p235
      %p242 = scmp.eq.s32.totalorder %s15, 3
      %p243 = por %p241, %p242
      %p244 = scmp.ne.s32.totalorder %s236, %s239
      %p245 = scmp.eq.s32.totalorder %s15, 0
      %p246 = por %p244, %p245
      %p247 = scmp.ne.s32.totalorder %s236, %s239
      %p248 = scmp.eq.s32.totalorder %s20, 3
      %p249 = por %p247, %p248
      %p250 = scmp.ne.s32.totalorder %s239, %s240
      %p251 = scmp.eq.s32.totalorder %s20, 0
      %p252 = por %p250, %p251
      %p253 = scmp.ne.s32.totalorder %s239, %s240
      %p254 = scmp.eq.s32.totalorder %s21, 3
      %p255 = por %p253, %p254
      %p257 = scmp.ne.s32.totalorder %s240, %s256
      %p258 = scmp.eq.s32.totalorder %s21, 0
      %p259 = por %p257, %p258
      %p260 = scmp.le.s32.totalorder 1, %s15
      %p261 = scmp.lt.s32.totalorder %s15, 5
      %p262 = pnand %p260, %p261
      %p263 = pneg %p262
      // Predicated region
      $region9: #{forward.7} parent=5 // pred_check
        _
      $region10: #{forward.7} parent=5 // pred_check_branch
        %265 = sbr.rel (%p262) target = $region12
      $region11: #{forward.7} parent=5 // pred_region
        %s266 = ssub.s32 %s15, 1
        // Predicated region
        $region13: #{forward.7} parent=11 // pred_check
          %p267 = pneg %p74
        $region14: #{forward.7} parent=11 // pred_check_branch
          %269 = sbr.rel (%p267) target = $region16
        $region15: #{forward.7} parent=11 // pred_region
          _
        $region16: #{forward.7} parent=11 // pred_fallthru
          _
        // Predicated region
        $region17: #{forward.7} parent=11 // pred_check
          %p270 = pneg %p95
        $region18: #{forward.7} parent=11 // pred_check_branch
          %272 = sbr.rel (%p270) target = $region20
        $region19: #{forward.7} parent=11 // pred_region
          _
        $region20: #{forward.7} parent=11 // pred_fallthru
          _
        // Predicated region
        $region21: #{forward.7} parent=11 // pred_check
          %p273 = pneg %p116
        $region22: #{forward.7} parent=11 // pred_check_branch
          %275 = sbr.rel (%p273) target = $region24
        $region23: #{forward.7} parent=11 // pred_region
          _
        $region24: #{forward.7} parent=11 // pred_fallthru
          _
      $region12: #{forward.7} parent=5 // pred_fallthru
        _
      %p276 = scmp.lt.s32.totalorder %s15, 4
      // Predicated region
      $region25: #{forward.7} parent=5 // pred_check
        %p277 = pneg %p276
      $region26: #{forward.7} parent=5 // pred_check_branch
        %279 = sbr.rel (%p277) target = $region28
      $region27: #{forward.7} parent=5 // pred_region
        // Predicated region
        $region29: #{forward.7} parent=27 // pred_check
          %p280 = pneg %p47
        $region30: #{forward.7} parent=27 // pred_check_branch
          %282 = sbr.rel (%p280) target = $region32
        $region31: #{forward.7} parent=27 // pred_region
          %s283 = smul.u32 16, %s23
          %p284 = scmp.lt.s32.totalorder %s283, 31
          %s285 = scalar_select %p284, %s283, 31
          %s286 = smul.addr %s285, 4
          %s287 = scalar_lea.vmem %s0, %s286
          %s288 = smul.u32 16, %s23
        $region32: #{forward.7} parent=27 // pred_fallthru
          _
        // Predicated region
        $region33: #{forward.7} parent=27 // pred_check
          %p289 = pneg %p138
        $region34: #{forward.7} parent=27 // pred_check_branch
          %291 = sbr.rel (%p289) target = $region36
        $region35: #{forward.7} parent=27 // pred_region
          %s292 = sand.u32 %s128, 1
          %s293 = sand.u32 %s128, 1
          %s294 = smul.addr %s293, 64
          %s295 = scalar_lea.vmem [#allocation5], %s294
          %s296 = smul.u32 16, %s22
          %s297 = smul.addr %s296, 2
          %s298 = sadd.s32 %s23, %s297
          %s299 = smul.addr %s298, 4
          %s300 = scalar_lea.vmem %s4, %s299
          // Predicated region
          $region37: #{forward.7} parent=35 // pred_check
            _
          $region38: #{forward.7} parent=35 // pred_check_branch
            %302 = sbr.rel (0) target = $region40
          $region39: #{forward.7} parent=35 // pred_region
            // Predicated region
            $region41: #{forward.7} parent=39 // pred_check
              _
            $region42: #{forward.7} parent=39 // pred_check_branch
              %304 = sbr.rel target = $region44
            $region43: #{forward.7} parent=39 // pred_region
              // Predicated region
              $region56: #{forward.7} parent=43 // pred_check
                _
              $region57: #{forward.7} parent=43 // pred_check_branch
                %349 = sbr.rel (0) target = $region59
              $region58: #{forward.7} parent=43 // pred_region
                loop: start=0, step=1, limit=1
                $region60: #{forward.7} parent=58 // loop_pre_header
                  _
                $region61: #{forward.7} parent=58 // loop_header
                  %s351 = sphi 0, %s355
                  %p352 = scmp.ge.s32.totalorder %s351, 1
                  %s356 = sphi %s300, %s300
                  %s357 = sphi %s295, %s295
                $region62: #{forward.7} parent=58 // loop_header_branch
                  %354 = sbr.rel (%p352) target = $region66
                $region63: #{forward.7} parent=58 // loop_body
                  _
                $region64: #{forward.7} parent=58 // loop_footer
                  %s355 = sadd.s32 1, %s351
                $region65: #{forward.7} parent=58 // loop_footer_branch
                  %350 = sbr.rel target = $region61
                $region66: #{forward.7} parent=58 // loop_exit
                  _
                loop: start=0, step=1, limit=1
                $region67: #{forward.7} parent=58 // loop_pre_header
                  _
                $region68: #{forward.7} parent=58 // loop_header
                  %s360 = sphi 0, %s364
                  %p361 = scmp.ge.s32.totalorder %s360, 1
                  %s365 = sphi %s300, %s300
                  %s366 = sphi %s295, %s295
                $region69: #{forward.7} parent=58 // loop_header_branch
                  %363 = sbr.rel (%p361) target = $region73
                $region70: #{forward.7} parent=58 // loop_body
                  %v367 = vld [vmem:[%s365] sm:$0xf]
                  %368 = vst [vmem:[%s366] sm:$0xf] %v367
                  %v369 = vld [vmem:[%s365 + $0x8] sm:$0xf]
                  %370 = vst [vmem:[%s366 + $0x4] sm:$0xf] %v369
                  %v371 = vld [vmem:[%s365 + $0x10] sm:$0xf]
                  %372 = vst [vmem:[%s366 + $0x8] sm:$0xf] %v371
                  %v373 = vld [vmem:[%s365 + $0x18] sm:$0xf]
                  %374 = vst [vmem:[%s366 + $0xc] sm:$0xf] %v373
                  %v375 = vld [vmem:[%s365 + $0x20] sm:$0xf]
                  %376 = vst [vmem:[%s366 + $0x10] sm:$0xf] %v375
                  %v377 = vld [vmem:[%s365 + $0x28] sm:$0xf]
                  %378 = vst [vmem:[%s366 + $0x14] sm:$0xf] %v377
                  %v379 = vld [vmem:[%s365 + $0x30] sm:$0xf]
                  %380 = vst [vmem:[%s366 + $0x18] sm:$0xf] %v379
                  %v381 = vld [vmem:[%s365 + $0x38] sm:$0xf]
                  %382 = vst [vmem:[%s366 + $0x1c] sm:$0xf] %v381
                  %v383 = vld [vmem:[%s365 + $0x40] sm:$0xf]
                  %384 = vst [vmem:[%s366 + $0x20] sm:$0xf] %v383
                  %v385 = vld [vmem:[%s365 + $0x48] sm:$0xf]
                  %386 = vst [vmem:[%s366 + $0x24] sm:$0xf] %v385
                  %v387 = vld [vmem:[%s365 + $0x50] sm:$0xf]
                  %388 = vst [vmem:[%s366 + $0x28] sm:$0xf] %v387
                  %v389 = vld [vmem:[%s365 + $0x58] sm:$0xf]
                  %390 = vst [vmem:[%s366 + $0x2c] sm:$0xf] %v389
                  %v391 = vld [vmem:[%s365 + $0x60] sm:$0xf]
                  %392 = vst [vmem:[%s366 + $0x30] sm:$0xf] %v391
                  %v393 = vld [vmem:[%s365 + $0x68] sm:$0xf]
                  %394 = vst [vmem:[%s366 + $0x34] sm:$0xf] %v393
                  %v395 = vld [vmem:[%s365 + $0x70] sm:$0xf]
                  %396 = vst [vmem:[%s366 + $0x38] sm:$0xf] %v395
                  %v397 = vld [vmem:[%s365 + $0x78] sm:$0xf]
                  %398 = vst [vmem:[%s366 + $0x3c] sm:$0xf] %v397
                $region71: #{forward.7} parent=58 // loop_footer
                  %s364 = sadd.s32 1, %s360
                $region72: #{forward.7} parent=58 // loop_footer_branch
                  %359 = sbr.rel target = $region68
                $region73: #{forward.7} parent=58 // loop_exit
                  _
              $region59: #{forward.7} parent=43 // pred_fallthru
                _
            $region44: #{forward.7} parent=39 // pred_fallthru
              _
            // Predicated region
            $region45: #{forward.7} parent=39 // pred_check
              _
            $region46: #{forward.7} parent=39 // pred_check_branch
              %306 = sbr.rel (0) target = $region48
            $region47: #{forward.7} parent=39 // pred_region
              loop: start=0, step=1, limit=1
              $region49: #{forward.7} parent=47 // loop_pre_header
                _
              $region50: #{forward.7} parent=47 // loop_header
                %s309 = sphi 0, %s313
                %p310 = scmp.ge.s32.totalorder %s309, 1
                %s314 = sphi %s300, %s300
                %s315 = sphi %s295, %s295
              $region51: #{forward.7} parent=47 // loop_header_branch
                %312 = sbr.rel (%p310) target = $region55
              $region52: #{forward.7} parent=47 // loop_body
                %v316 = vld [vmem:[%s314] sm:$0xf]
                %317 = vst [vmem:[%s315] sm:$0xf] %v316
                %v318 = vld [vmem:[%s314 + $0x8] sm:$0xf]
                %319 = vst [vmem:[%s315 + $0x4] sm:$0xf] %v318
                %v320 = vld [vmem:[%s314 + $0x10] sm:$0xf]
                %321 = vst [vmem:[%s315 + $0x8] sm:$0xf] %v320
                %v322 = vld [vmem:[%s314 + $0x18] sm:$0xf]
                %323 = vst [vmem:[%s315 + $0xc] sm:$0xf] %v322
                %v324 = vld [vmem:[%s314 + $0x20] sm:$0xf]
                %325 = vst [vmem:[%s315 + $0x10] sm:$0xf] %v324
                %v326 = vld [vmem:[%s314 + $0x28] sm:$0xf]
                %327 = vst [vmem:[%s315 + $0x14] sm:$0xf] %v326
                %v328 = vld [vmem:[%s314 + $0x30] sm:$0xf]
                %329 = vst [vmem:[%s315 + $0x18] sm:$0xf] %v328
                %v330 = vld [vmem:[%s314 + $0x38] sm:$0xf]
                %331 = vst [vmem:[%s315 + $0x1c] sm:$0xf] %v330
                %v332 = vld [vmem:[%s314 + $0x40] sm:$0xf]
                %333 = vst [vmem:[%s315 + $0x20] sm:$0xf] %v332
                %v334 = vld [vmem:[%s314 + $0x48] sm:$0xf]
                %335 = vst [vmem:[%s315 + $0x24] sm:$0xf] %v334
                %v336 = vld [vmem:[%s314 + $0x50] sm:$0xf]
                %337 = vst [vmem:[%s315 + $0x28] sm:$0xf] %v336
                %v338 = vld [vmem:[%s314 + $0x58] sm:$0xf]
                %339 = vst [vmem:[%s315 + $0x2c] sm:$0xf] %v338
                %v340 = vld [vmem:[%s314 + $0x60] sm:$0xf]
                %341 = vst [vmem:[%s315 + $0x30] sm:$0xf] %v340
                %v342 = vld [vmem:[%s314 + $0x68] sm:$0xf]
                %343 = vst [vmem:[%s315 + $0x34] sm:$0xf] %v342
                %v344 = vld [vmem:[%s314 + $0x70] sm:$0xf]
                %345 = vst [vmem:[%s315 + $0x38] sm:$0xf] %v344
                %v346 = vld [vmem:[%s314 + $0x78] sm:$0xf]
                %347 = vst [vmem:[%s315 + $0x3c] sm:$0xf] %v346
              $region53: #{forward.7} parent=47 // loop_footer
                %s313 = sadd.s32 1, %s309
              $region54: #{forward.7} parent=47 // loop_footer_branch
                %308 = sbr.rel target = $region50
              $region55: #{forward.7} parent=47 // loop_exit
                _
            $region48: #{forward.7} parent=39 // pred_fallthru
              _
          $region40: #{forward.7} parent=35 // pred_fallthru
            _
          %399 = vnop
        $region36: #{forward.7} parent=27 // pred_fallthru
          _
        // Predicated region
        $region74: #{forward.7} parent=27 // pred_check
          %p400 = pneg %p166
        $region75: #{forward.7} parent=27 // pred_check_branch
          %402 = sbr.rel (%p400) target = $region77
        $region76: #{forward.7} parent=27 // pred_region
          %s403 = sand.u32 %s156, 1
          %s404 = sand.u32 %s156, 1
          %s405 = smul.addr %s404, 64
          %s406 = scalar_lea.vmem [#allocation6], %s405
          %s407 = smul.u32 16, %s22
          %s408 = smul.addr %s407, 2
          %s409 = sadd.s32 %s23, %s408
          %s410 = smul.addr %s409, 4
          %s411 = scalar_lea.vmem %s5, %s410
          // Predicated region
          $region78: #{forward.7} parent=76 // pred_check
            _
          $region79: #{forward.7} parent=76 // pred_check_branch
            %413 = sbr.rel (0) target = $region81
          $region80: #{forward.7} parent=76 // pred_region
            // Predicated region
            $region82: #{forward.7} parent=80 // pred_check
              _
            $region83: #{forward.7} parent=80 // pred_check_branch
              %415 = sbr.rel target = $region85
            $region84: #{forward.7} parent=80 // pred_region
              // Predicated region
              $region97: #{forward.7} parent=84 // pred_check
                _
              $region98: #{forward.7} parent=84 // pred_check_branch
                %460 = sbr.rel (0) target = $region100
              $region99: #{forward.7} parent=84 // pred_region
                loop: start=0, step=1, limit=1
                $region101: #{forward.7} parent=99 // loop_pre_header
                  _
                $region102: #{forward.7} parent=99 // loop_header
                  %s462 = sphi 0, %s466
                  %p463 = scmp.ge.s32.totalorder %s462, 1
                  %s467 = sphi %s411, %s411
                  %s468 = sphi %s406, %s406
                $region103: #{forward.7} parent=99 // loop_header_branch
                  %465 = sbr.rel (%p463) target = $region107
                $region104: #{forward.7} parent=99 // loop_body
                  _
                $region105: #{forward.7} parent=99 // loop_footer
                  %s466 = sadd.s32 1, %s462
                $region106: #{forward.7} parent=99 // loop_footer_branch
                  %461 = sbr.rel target = $region102
                $region107: #{forward.7} parent=99 // loop_exit
                  _
                loop: start=0, step=1, limit=1
                $region108: #{forward.7} parent=99 // loop_pre_header
                  _
                $region109: #{forward.7} parent=99 // loop_header
                  %s471 = sphi 0, %s475
                  %p472 = scmp.ge.s32.totalorder %s471, 1
                  %s476 = sphi %s411, %s411
                  %s477 = sphi %s406, %s406
                $region110: #{forward.7} parent=99 // loop_header_branch
                  %474 = sbr.rel (%p472) target = $region114
                $region111: #{forward.7} parent=99 // loop_body
                  %v478 = vld [vmem:[%s476] sm:$0xf]
                  %479 = vst [vmem:[%s477] sm:$0xf] %v478
                  %v480 = vld [vmem:[%s476 + $0x8] sm:$0xf]
                  %481 = vst [vmem:[%s477 + $0x4] sm:$0xf] %v480
                  %v482 = vld [vmem:[%s476 + $0x10] sm:$0xf]
                  %483 = vst [vmem:[%s477 + $0x8] sm:$0xf] %v482
                  %v484 = vld [vmem:[%s476 + $0x18] sm:$0xf]
                  %485 = vst [vmem:[%s477 + $0xc] sm:$0xf] %v484
                  %v486 = vld [vmem:[%s476 + $0x20] sm:$0xf]
                  %487 = vst [vmem:[%s477 + $0x10] sm:$0xf] %v486
                  %v488 = vld [vmem:[%s476 + $0x28] sm:$0xf]
                  %489 = vst [vmem:[%s477 + $0x14] sm:$0xf] %v488
                  %v490 = vld [vmem:[%s476 + $0x30] sm:$0xf]
                  %491 = vst [vmem:[%s477 + $0x18] sm:$0xf] %v490
                  %v492 = vld [vmem:[%s476 + $0x38] sm:$0xf]
                  %493 = vst [vmem:[%s477 + $0x1c] sm:$0xf] %v492
                  %v494 = vld [vmem:[%s476 + $0x40] sm:$0xf]
                  %495 = vst [vmem:[%s477 + $0x20] sm:$0xf] %v494
                  %v496 = vld [vmem:[%s476 + $0x48] sm:$0xf]
                  %497 = vst [vmem:[%s477 + $0x24] sm:$0xf] %v496
                  %v498 = vld [vmem:[%s476 + $0x50] sm:$0xf]
                  %499 = vst [vmem:[%s477 + $0x28] sm:$0xf] %v498
                  %v500 = vld [vmem:[%s476 + $0x58] sm:$0xf]
                  %501 = vst [vmem:[%s477 + $0x2c] sm:$0xf] %v500
                  %v502 = vld [vmem:[%s476 + $0x60] sm:$0xf]
                  %503 = vst [vmem:[%s477 + $0x30] sm:$0xf] %v502
                  %v504 = vld [vmem:[%s476 + $0x68] sm:$0xf]
                  %505 = vst [vmem:[%s477 + $0x34] sm:$0xf] %v504
                  %v506 = vld [vmem:[%s476 + $0x70] sm:$0xf]
                  %507 = vst [vmem:[%s477 + $0x38] sm:$0xf] %v506
                  %v508 = vld [vmem:[%s476 + $0x78] sm:$0xf]
                  %509 = vst [vmem:[%s477 + $0x3c] sm:$0xf] %v508
                $region112: #{forward.7} parent=99 // loop_footer
                  %s475 = sadd.s32 1, %s471
                $region113: #{forward.7} parent=99 // loop_footer_branch
                  %470 = sbr.rel target = $region109
                $region114: #{forward.7} parent=99 // loop_exit
                  _
              $region100: #{forward.7} parent=84 // pred_fallthru
                _
            $region85: #{forward.7} parent=80 // pred_fallthru
              _
            // Predicated region
            $region86: #{forward.7} parent=80 // pred_check
              _
            $region87: #{forward.7} parent=80 // pred_check_branch
              %417 = sbr.rel (0) target = $region89
            $region88: #{forward.7} parent=80 // pred_region
              loop: start=0, step=1, limit=1
              $region90: #{forward.7} parent=88 // loop_pre_header
                _
              $region91: #{forward.7} parent=88 // loop_header
                %s420 = sphi 0, %s424
                %p421 = scmp.ge.s32.totalorder %s420, 1
                %s425 = sphi %s411, %s411
                %s426 = sphi %s406, %s406
              $region92: #{forward.7} parent=88 // loop_header_branch
                %423 = sbr.rel (%p421) target = $region96
              $region93: #{forward.7} parent=88 // loop_body
                %v427 = vld [vmem:[%s425] sm:$0xf]
                %428 = vst [vmem:[%s426] sm:$0xf] %v427
                %v429 = vld [vmem:[%s425 + $0x8] sm:$0xf]
                %430 = vst [vmem:[%s426 + $0x4] sm:$0xf] %v429
                %v431 = vld [vmem:[%s425 + $0x10] sm:$0xf]
                %432 = vst [vmem:[%s426 + $0x8] sm:$0xf] %v431
                %v433 = vld [vmem:[%s425 + $0x18] sm:$0xf]
                %434 = vst [vmem:[%s426 + $0xc] sm:$0xf] %v433
                %v435 = vld [vmem:[%s425 + $0x20] sm:$0xf]
                %436 = vst [vmem:[%s426 + $0x10] sm:$0xf] %v435
                %v437 = vld [vmem:[%s425 + $0x28] sm:$0xf]
                %438 = vst [vmem:[%s426 + $0x14] sm:$0xf] %v437
                %v439 = vld [vmem:[%s425 + $0x30] sm:$0xf]
                %440 = vst [vmem:[%s426 + $0x18] sm:$0xf] %v439
                %v441 = vld [vmem:[%s425 + $0x38] sm:$0xf]
                %442 = vst [vmem:[%s426 + $0x1c] sm:$0xf] %v441
                %v443 = vld [vmem:[%s425 + $0x40] sm:$0xf]
                %444 = vst [vmem:[%s426 + $0x20] sm:$0xf] %v443
                %v445 = vld [vmem:[%s425 + $0x48] sm:$0xf]
                %446 = vst [vmem:[%s426 + $0x24] sm:$0xf] %v445
                %v447 = vld [vmem:[%s425 + $0x50] sm:$0xf]
                %448 = vst [vmem:[%s426 + $0x28] sm:$0xf] %v447
                %v449 = vld [vmem:[%s425 + $0x58] sm:$0xf]
                %450 = vst [vmem:[%s426 + $0x2c] sm:$0xf] %v449
                %v451 = vld [vmem:[%s425 + $0x60] sm:$0xf]
                %452 = vst [vmem:[%s426 + $0x30] sm:$0xf] %v451
                %v453 = vld [vmem:[%s425 + $0x68] sm:$0xf]
                %454 = vst [vmem:[%s426 + $0x34] sm:$0xf] %v453
                %v455 = vld [vmem:[%s425 + $0x70] sm:$0xf]
                %456 = vst [vmem:[%s426 + $0x38] sm:$0xf] %v455
                %v457 = vld [vmem:[%s425 + $0x78] sm:$0xf]
                %458 = vst [vmem:[%s426 + $0x3c] sm:$0xf] %v457
              $region94: #{forward.7} parent=88 // loop_footer
                %s424 = sadd.s32 1, %s420
              $region95: #{forward.7} parent=88 // loop_footer_branch
                %419 = sbr.rel target = $region91
              $region96: #{forward.7} parent=88 // loop_exit
                _
            $region89: #{forward.7} parent=80 // pred_fallthru
              _
          $region81: #{forward.7} parent=76 // pred_fallthru
            _
          %510 = vnop
        $region77: #{forward.7} parent=27 // pred_fallthru
          _
        // Predicated region
        $region115: #{forward.7} parent=27 // pred_check
          %p511 = pneg %p194
        $region116: #{forward.7} parent=27 // pred_check_branch
          %513 = sbr.rel (%p511) target = $region118
        $region117: #{forward.7} parent=27 // pred_region
          %s514 = sand.u32 %s184, 1
          %s515 = sand.u32 %s184, 1
          %s516 = smul.addr %s515, 64
          %s517 = scalar_lea.vmem [#allocation7], %s516
          %s518 = smul.u32 16, %s22
          %s519 = smul.addr %s518, 2
          %s520 = sadd.s32 %s23, %s519
          %s521 = smul.addr %s520, 4
          %s522 = scalar_lea.vmem %s6, %s521
          // Predicated region
          $region119: #{forward.7} parent=117 // pred_check
            _
          $region120: #{forward.7} parent=117 // pred_check_branch
            %524 = sbr.rel (0) target = $region122
          $region121: #{forward.7} parent=117 // pred_region
            // Predicated region
            $region123: #{forward.7} parent=121 // pred_check
              _
            $region124: #{forward.7} parent=121 // pred_check_branch
              %526 = sbr.rel target = $region126
            $region125: #{forward.7} parent=121 // pred_region
              // Predicated region
              $region138: #{forward.7} parent=125 // pred_check
                _
              $region139: #{forward.7} parent=125 // pred_check_branch
                %571 = sbr.rel (0) target = $region141
              $region140: #{forward.7} parent=125 // pred_region
                loop: start=0, step=1, limit=1
                $region142: #{forward.7} parent=140 // loop_pre_header
                  _
                $region143: #{forward.7} parent=140 // loop_header
                  %s573 = sphi 0, %s577
                  %p574 = scmp.ge.s32.totalorder %s573, 1
                  %s578 = sphi %s522, %s522
                  %s579 = sphi %s517, %s517
                $region144: #{forward.7} parent=140 // loop_header_branch
                  %576 = sbr.rel (%p574) target = $region148
                $region145: #{forward.7} parent=140 // loop_body
                  _
                $region146: #{forward.7} parent=140 // loop_footer
                  %s577 = sadd.s32 1, %s573
                $region147: #{forward.7} parent=140 // loop_footer_branch
                  %572 = sbr.rel target = $region143
                $region148: #{forward.7} parent=140 // loop_exit
                  _
                loop: start=0, step=1, limit=1
                $region149: #{forward.7} parent=140 // loop_pre_header
                  _
                $region150: #{forward.7} parent=140 // loop_header
                  %s582 = sphi 0, %s586
                  %p583 = scmp.ge.s32.totalorder %s582, 1
                  %s587 = sphi %s522, %s522
                  %s588 = sphi %s517, %s517
                $region151: #{forward.7} parent=140 // loop_header_branch
                  %585 = sbr.rel (%p583) target = $region155
                $region152: #{forward.7} parent=140 // loop_body
                  %v589 = vld [vmem:[%s587] sm:$0xf]
                  %590 = vst [vmem:[%s588] sm:$0xf] %v589
                  %v591 = vld [vmem:[%s587 + $0x8] sm:$0xf]
                  %592 = vst [vmem:[%s588 + $0x4] sm:$0xf] %v591
                  %v593 = vld [vmem:[%s587 + $0x10] sm:$0xf]
                  %594 = vst [vmem:[%s588 + $0x8] sm:$0xf] %v593
                  %v595 = vld [vmem:[%s587 + $0x18] sm:$0xf]
                  %596 = vst [vmem:[%s588 + $0xc] sm:$0xf] %v595
                  %v597 = vld [vmem:[%s587 + $0x20] sm:$0xf]
                  %598 = vst [vmem:[%s588 + $0x10] sm:$0xf] %v597
                  %v599 = vld [vmem:[%s587 + $0x28] sm:$0xf]
                  %600 = vst [vmem:[%s588 + $0x14] sm:$0xf] %v599
                  %v601 = vld [vmem:[%s587 + $0x30] sm:$0xf]
                  %602 = vst [vmem:[%s588 + $0x18] sm:$0xf] %v601
                  %v603 = vld [vmem:[%s587 + $0x38] sm:$0xf]
                  %604 = vst [vmem:[%s588 + $0x1c] sm:$0xf] %v603
                  %v605 = vld [vmem:[%s587 + $0x40] sm:$0xf]
                  %606 = vst [vmem:[%s588 + $0x20] sm:$0xf] %v605
                  %v607 = vld [vmem:[%s587 + $0x48] sm:$0xf]
                  %608 = vst [vmem:[%s588 + $0x24] sm:$0xf] %v607
                  %v609 = vld [vmem:[%s587 + $0x50] sm:$0xf]
                  %610 = vst [vmem:[%s588 + $0x28] sm:$0xf] %v609
                  %v611 = vld [vmem:[%s587 + $0x58] sm:$0xf]
                  %612 = vst [vmem:[%s588 + $0x2c] sm:$0xf] %v611
                  %v613 = vld [vmem:[%s587 + $0x60] sm:$0xf]
                  %614 = vst [vmem:[%s588 + $0x30] sm:$0xf] %v613
                  %v615 = vld [vmem:[%s587 + $0x68] sm:$0xf]
                  %616 = vst [vmem:[%s588 + $0x34] sm:$0xf] %v615
                  %v617 = vld [vmem:[%s587 + $0x70] sm:$0xf]
                  %618 = vst [vmem:[%s588 + $0x38] sm:$0xf] %v617
                  %v619 = vld [vmem:[%s587 + $0x78] sm:$0xf]
                  %620 = vst [vmem:[%s588 + $0x3c] sm:$0xf] %v619
                $region153: #{forward.7} parent=140 // loop_footer
                  %s586 = sadd.s32 1, %s582
                $region154: #{forward.7} parent=140 // loop_footer_branch
                  %581 = sbr.rel target = $region150
                $region155: #{forward.7} parent=140 // loop_exit
                  _
              $region141: #{forward.7} parent=125 // pred_fallthru
                _
            $region126: #{forward.7} parent=121 // pred_fallthru
              _
            // Predicated region
            $region127: #{forward.7} parent=121 // pred_check
              _
            $region128: #{forward.7} parent=121 // pred_check_branch
              %528 = sbr.rel (0) target = $region130
            $region129: #{forward.7} parent=121 // pred_region
              loop: start=0, step=1, limit=1
              $region131: #{forward.7} parent=129 // loop_pre_header
                _
              $region132: #{forward.7} parent=129 // loop_header
                %s531 = sphi 0, %s535
                %p532 = scmp.ge.s32.totalorder %s531, 1
                %s536 = sphi %s522, %s522
                %s537 = sphi %s517, %s517
              $region133: #{forward.7} parent=129 // loop_header_branch
                %534 = sbr.rel (%p532) target = $region137
              $region134: #{forward.7} parent=129 // loop_body
                %v538 = vld [vmem:[%s536] sm:$0xf]
                %539 = vst [vmem:[%s537] sm:$0xf] %v538
                %v540 = vld [vmem:[%s536 + $0x8] sm:$0xf]
                %541 = vst [vmem:[%s537 + $0x4] sm:$0xf] %v540
                %v542 = vld [vmem:[%s536 + $0x10] sm:$0xf]
                %543 = vst [vmem:[%s537 + $0x8] sm:$0xf] %v542
                %v544 = vld [vmem:[%s536 + $0x18] sm:$0xf]
                %545 = vst [vmem:[%s537 + $0xc] sm:$0xf] %v544
                %v546 = vld [vmem:[%s536 + $0x20] sm:$0xf]
                %547 = vst [vmem:[%s537 + $0x10] sm:$0xf] %v546
                %v548 = vld [vmem:[%s536 + $0x28] sm:$0xf]
                %549 = vst [vmem:[%s537 + $0x14] sm:$0xf] %v548
                %v550 = vld [vmem:[%s536 + $0x30] sm:$0xf]
                %551 = vst [vmem:[%s537 + $0x18] sm:$0xf] %v550
                %v552 = vld [vmem:[%s536 + $0x38] sm:$0xf]
                %553 = vst [vmem:[%s537 + $0x1c] sm:$0xf] %v552
                %v554 = vld [vmem:[%s536 + $0x40] sm:$0xf]
                %555 = vst [vmem:[%s537 + $0x20] sm:$0xf] %v554
                %v556 = vld [vmem:[%s536 + $0x48] sm:$0xf]
                %557 = vst [vmem:[%s537 + $0x24] sm:$0xf] %v556
                %v558 = vld [vmem:[%s536 + $0x50] sm:$0xf]
                %559 = vst [vmem:[%s537 + $0x28] sm:$0xf] %v558
                %v560 = vld [vmem:[%s536 + $0x58] sm:$0xf]
                %561 = vst [vmem:[%s537 + $0x2c] sm:$0xf] %v560
                %v562 = vld [vmem:[%s536 + $0x60] sm:$0xf]
                %563 = vst [vmem:[%s537 + $0x30] sm:$0xf] %v562
                %v564 = vld [vmem:[%s536 + $0x68] sm:$0xf]
                %565 = vst [vmem:[%s537 + $0x34] sm:$0xf] %v564
                %v566 = vld [vmem:[%s536 + $0x70] sm:$0xf]
                %567 = vst [vmem:[%s537 + $0x38] sm:$0xf] %v566
                %v568 = vld [vmem:[%s536 + $0x78] sm:$0xf]
                %569 = vst [vmem:[%s537 + $0x3c] sm:$0xf] %v568
              $region135: #{forward.7} parent=129 // loop_footer
                %s535 = sadd.s32 1, %s531
              $region136: #{forward.7} parent=129 // loop_footer_branch
                %530 = sbr.rel target = $region132
              $region137: #{forward.7} parent=129 // loop_exit
                _
            $region130: #{forward.7} parent=121 // pred_fallthru
              _
          $region122: #{forward.7} parent=117 // pred_fallthru
            _
          %621 = vnop
        $region118: #{forward.7} parent=27 // pred_fallthru
          _
      $region28: #{forward.7} parent=5 // pred_fallthru
        _
      %p622 = scmp.le.s32.totalorder 1, %s15
      %p623 = scmp.lt.s32.totalorder %s15, 5
      %p624 = pnand %p622, %p623
      %p625 = pneg %p624
      // Predicated region
      $region156: #{forward.7} parent=5 // pred_check
        _
      $region157: #{forward.7} parent=5 // pred_check_branch
        %627 = sbr.rel (%p624) target = $region159
      $region158: #{forward.7} parent=5 // pred_region
        %s628 = ssub.s32 %s15, 1
        %s629 = sand.u32 %s131, 1
        %s630 = sand.u32 %s131, 1
        %s631 = smul.addr %s630, 64
        %s632 = scalar_lea.vmem [#allocation5], %s631
        // Predicated region
        $region160: #{forward.7} parent=158 // pred_check
          %p633 = pneg %p144
        $region161: #{forward.7} parent=158 // pred_check_branch
          %635 = sbr.rel (%p633) target = $region163
        $region162: #{forward.7} parent=158 // pred_region
          _
        $region163: #{forward.7} parent=158 // pred_fallthru
          _
        %s636 = sand.u32 %s159, 1
        %s637 = sand.u32 %s159, 1
        %s638 = smul.addr %s637, 64
        %s639 = scalar_lea.vmem [#allocation6], %s638
        // Predicated region
        $region164: #{forward.7} parent=158 // pred_check
          %p640 = pneg %p172
        $region165: #{forward.7} parent=158 // pred_check_branch
          %642 = sbr.rel (%p640) target = $region167
        $region166: #{forward.7} parent=158 // pred_region
          _
        $region167: #{forward.7} parent=158 // pred_fallthru
          _
        %s643 = sand.u32 %s187, 1
        %s644 = sand.u32 %s187, 1
        %s645 = smul.addr %s644, 64
        %s646 = scalar_lea.vmem [#allocation7], %s645
        // Predicated region
        $region168: #{forward.7} parent=158 // pred_check
          %p647 = pneg %p200
        $region169: #{forward.7} parent=158 // pred_check_branch
          %649 = sbr.rel (%p647) target = $region171
        $region170: #{forward.7} parent=158 // pred_region
          _
        $region171: #{forward.7} parent=158 // pred_fallthru
          _
        %s650 = smul.u32 16, %s25
        %p651 = scmp.lt.s32.totalorder %s650, 31
        %s652 = scalar_select %p651, %s650, 31
        %s653 = smul.addr %s652, 4
        %s654 = scalar_lea.vmem %s0, %s653
        %p655 = pneg %p53
        %p656 = pneg %p50
        %p657 = pneg %p74
        %p658 = pneg %p71
        %p659 = pneg %p95
        %p660 = pneg %p92
        %p661 = pneg %p116
        %p662 = pneg %p113
        %s663 = sand.u32 %s131, 1
        %s664 = sand.u32 %s131, 1
        %s665 = smul.addr %s664, 64
        %s666 = scalar_lea.vmem [#allocation5], %s665
        %p667 = pneg %p144
        %p668 = pneg %p141
        %s669 = sand.u32 %s159, 1
        %s670 = sand.u32 %s159, 1
        %s671 = smul.addr %s670, 64
        %s672 = scalar_lea.vmem [#allocation6], %s671
        %p673 = pneg %p172
        %p674 = pneg %p169
        %s675 = sand.u32 %s187, 1
        %s676 = sand.u32 %s187, 1
        %s677 = smul.addr %s676, 64
        %s678 = scalar_lea.vmem [#allocation7], %s677
        %p679 = pneg %p200
        %p680 = pneg %p197
        %p681 = pneg %p226
        %p682 = pneg %p223
        %s683 = smul.u32 16, %s24
        %p684 = scmp.lt.s32.totalorder %s683, 31
        %s685 = scalar_select %p684, %s683, 31
        %s686 = smul.addr %s685, 8
        %s687 = scalar_lea.vmem %s7, %s686
        %p688 = pneg %p252
        %p689 = pneg %p249
        %s690 = smul.u32 16, %s24
        %p691 = scmp.lt.s32.totalorder %s690, 31
        %s692 = scalar_select %p691, %s690, 31
        %s693 = smul.addr %s692, 8
        %s694 = scalar_lea.vmem %s8, %s693
        %s695 = smul.u32 16, %s25
        %p696 = scmp.lt.s32.totalorder %s695, 31
        %s697 = scalar_select %p696, %s695, 31
        %s698 = smul.addr %s697, 4
        %s699 = scalar_lea.vmem %s0, %s698
        %s700 = smul.u32 16, %s25
        %s701 = smul.u32 16, %s24
        %s702 = smul.u32 16, %s24
        %s703 = smul.u32 16, %s24
        %s704 = smul.u32 16, %s24
        %p705 = scmp.lt.s32.totalorder %s704, 31
        %s706 = scalar_select %p705, %s704, 31
        %s707 = smul.addr %s706, 8
        %s708 = scalar_lea.vmem %s7, %s707
        %s709 = smul.u32 16, %s24
        %s710 = smul.u32 16, %s24
        %p711 = scmp.lt.s32.totalorder %s710, 31
        %s712 = scalar_select %p711, %s710, 31
        %s713 = smul.addr %s712, 8
        %s714 = scalar_lea.vmem %s8, %s713
        %s715 = smul.u32 16, %s24
        %p717 = scmp.eq.s32.totalorder %s25, 0
        // Predicated region
        $region172: #{forward.7} parent=158 // pred_check
          %p718 = pneg %p717
        $region173: #{forward.7} parent=158 // pred_check_branch
          %720 = sbr.rel (%p718) target = $region175
        $region174: #{forward.7} parent=158 // pred_region
          %721 = vst [vmem:[#allocation2] sm:$0xff] 0.0
          %722 = vst [vmem:[#allocation2 + $0x8] sm:$0xff] 0.0
          %723 = vst [vmem:[#allocation2 + $0x10] sm:$0xff] 0.0
          %724 = vst [vmem:[#allocation2 + $0x18] sm:$0xff] 0.0
          %725 = vst [vmem:[#allocation2 + $0x20] sm:$0xff] 0.0
          %726 = vst [vmem:[#allocation2 + $0x28] sm:$0xff] 0.0
          %727 = vst [vmem:[#allocation2 + $0x30] sm:$0xff] 0.0
          %728 = vst [vmem:[#allocation2 + $0x38] sm:$0xff] 0.0
          %729 = vst [vmem:[#allocation2 + $0x40] sm:$0xff] 0.0
          %730 = vst [vmem:[#allocation2 + $0x48] sm:$0xff] 0.0
          %731 = vst [vmem:[#allocation2 + $0x50] sm:$0xff] 0.0
          %732 = vst [vmem:[#allocation2 + $0x58] sm:$0xff] 0.0
          %733 = vst [vmem:[#allocation2 + $0x60] sm:$0xff] 0.0
          %734 = vst [vmem:[#allocation2 + $0x68] sm:$0xff] 0.0
          %735 = vst [vmem:[#allocation2 + $0x70] sm:$0xff] 0.0
          %736 = vst [vmem:[#allocation2 + $0x78] sm:$0xff] 0.0
          %737 = vst [vmem:[#allocation3] sm:$0xff] 0.0
          %738 = vst [vmem:[#allocation3 + $0x8] sm:$0xff] 0.0
          %739 = vst [vmem:[#allocation3 + $0x10] sm:$0xff] 0.0
          %740 = vst [vmem:[#allocation3 + $0x18] sm:$0xff] 0.0
          %741 = vst [vmem:[#allocation3 + $0x20] sm:$0xff] 0.0
          %742 = vst [vmem:[#allocation3 + $0x28] sm:$0xff] 0.0
          %743 = vst [vmem:[#allocation3 + $0x30] sm:$0xff] 0.0
          %744 = vst [vmem:[#allocation3 + $0x38] sm:$0xff] 0.0
          %745 = vst [vmem:[#allocation3 + $0x40] sm:$0xff] 0.0
          %746 = vst [vmem:[#allocation3 + $0x48] sm:$0xff] 0.0
          %747 = vst [vmem:[#allocation3 + $0x50] sm:$0xff] 0.0
          %748 = vst [vmem:[#allocation3 + $0x58] sm:$0xff] 0.0
          %749 = vst [vmem:[#allocation3 + $0x60] sm:$0xff] 0.0
          %750 = vst [vmem:[#allocation3 + $0x68] sm:$0xff] 0.0
          %751 = vst [vmem:[#allocation3 + $0x70] sm:$0xff] 0.0
          %752 = vst [vmem:[#allocation3 + $0x78] sm:$0xff] 0.0
          %753 = vst [vmem:[#allocation4] sm:$0xff] 0.0
          %754 = vst [vmem:[#allocation4 + $0x8] sm:$0xff] 0.0
          %755 = vst [vmem:[#allocation4 + $0x10] sm:$0xff] 0.0
          %756 = vst [vmem:[#allocation4 + $0x18] sm:$0xff] 0.0
          %757 = vst [vmem:[#allocation4 + $0x20] sm:$0xff] 0.0
          %758 = vst [vmem:[#allocation4 + $0x28] sm:$0xff] 0.0
          %759 = vst [vmem:[#allocation4 + $0x30] sm:$0xff] 0.0
          %760 = vst [vmem:[#allocation4 + $0x38] sm:$0xff] 0.0
          %761 = vst [vmem:[#allocation4 + $0x40] sm:$0xff] 0.0
          %762 = vst [vmem:[#allocation4 + $0x48] sm:$0xff] 0.0
          %763 = vst [vmem:[#allocation4 + $0x50] sm:$0xff] 0.0
          %764 = vst [vmem:[#allocation4 + $0x58] sm:$0xff] 0.0
          %765 = vst [vmem:[#allocation4 + $0x60] sm:$0xff] 0.0
          %766 = vst [vmem:[#allocation4 + $0x68] sm:$0xff] 0.0
          %767 = vst [vmem:[#allocation4 + $0x70] sm:$0xff] 0.0
          %768 = vst [vmem:[#allocation4 + $0x78] sm:$0xff] 0.0
        $region175: #{forward.7} parent=158 // pred_fallthru
          _
        %v769 = vld [vmem:[%s699] sm:$0xf]
        %v770 = vld [vmem:[%s699 + $0x4] sm:$0xf]
        %v771 = vld [vmem:[%s699 + $0x8] sm:$0xf]
        %v772 = vld [vmem:[%s699 + $0xc] sm:$0xf]
        %v773 = vld [vmem:[%s699 + $0x10] sm:$0xf]
        %v774 = vld [vmem:[%s699 + $0x14] sm:$0xf]
        %v775 = vld [vmem:[%s699 + $0x18] sm:$0xf]
        %v776 = vld [vmem:[%s699 + $0x1c] sm:$0xf]
        %v777 = vld [vmem:[%s699 + $0x20] sm:$0xf]
        %v778 = vld [vmem:[%s699 + $0x24] sm:$0xf]
        %v779 = vld [vmem:[%s699 + $0x28] sm:$0xf]
        %v780 = vld [vmem:[%s699 + $0x2c] sm:$0xf]
        %v781 = vld [vmem:[%s699 + $0x30] sm:$0xf]
        %v782 = vld [vmem:[%s699 + $0x34] sm:$0xf]
        %v783 = vld [vmem:[%s699 + $0x38] sm:$0xf]
        %v784 = vld [vmem:[%s699 + $0x3c] sm:$0xf]
        %v785 = vld [vmem:[%s1] sm:$0xff]
        %v786 = vld [vmem:[%s1 + $0x8] sm:$0xf]
        %v787 = vld [vmem:[%s1 + $0xc] sm:$0xff]
        %v788 = vld [vmem:[%s1 + $0x14] sm:$0xf]
        %v789 = vld [vmem:[%s1 + $0x18] sm:$0xff]
        %v790 = vld [vmem:[%s1 + $0x20] sm:$0xf]
        %v791 = vld [vmem:[%s1 + $0x24] sm:$0xff]
        %v792 = vld [vmem:[%s1 + $0x2c] sm:$0xf]
        %v793 = vld [vmem:[%s1 + $0x30] sm:$0xff]
        %v794 = vld [vmem:[%s1 + $0x38] sm:$0xf]
        %v795 = vld [vmem:[%s1 + $0x3c] sm:$0xff]
        %v796 = vld [vmem:[%s1 + $0x44] sm:$0xf]
        %v797 = vld [vmem:[%s1 + $0x48] sm:$0xff]
        %v798 = vld [vmem:[%s1 + $0x50] sm:$0xf]
        %v799 = vld [vmem:[%s1 + $0x54] sm:$0xff]
        %v800 = vld [vmem:[%s1 + $0x5c] sm:$0xf]
        %v801 = vld [vmem:[%s1 + $0x60] sm:$0xff]
        %v802 = vld [vmem:[%s1 + $0x68] sm:$0xf]
        %v803 = vld [vmem:[%s1 + $0x6c] sm:$0xff]
        %v804 = vld [vmem:[%s1 + $0x74] sm:$0xf]
        %v805 = vld [vmem:[%s1 + $0x78] sm:$0xff]
        %v806 = vld [vmem:[%s1 + $0x80] sm:$0xf]
        %v807 = vld [vmem:[%s1 + $0x84] sm:$0xff]
        %v808 = vld [vmem:[%s1 + $0x8c] sm:$0xf]
        %v809 = vld [vmem:[%s1 + $0x90] sm:$0xff]
        %v810 = vld [vmem:[%s1 + $0x98] sm:$0xf]
        %v811 = vld [vmem:[%s1 + $0x9c] sm:$0xff]
        %v812 = vld [vmem:[%s1 + $0xa4] sm:$0xf]
        %v813 = vld [vmem:[%s1 + $0xa8] sm:$0xff]
        %v814 = vld [vmem:[%s1 + $0xb0] sm:$0xf]
        %v815 = vld [vmem:[%s1 + $0xb4] sm:$0xff]
        %v816 = vld [vmem:[%s1 + $0xbc] sm:$0xf]
        %v833 = vunpack.c.l.b16 %v769
        %v834 = vunpack.c.l.b16 %v770
        %v835 = vunpack.c.l.b16 %v771
        %v836 = vunpack.c.l.b16 %v772
        %v837 = vunpack.c.l.b16 %v773
        %v838 = vunpack.c.l.b16 %v774
        %v839 = vunpack.c.l.b16 %v775
        %v840 = vunpack.c.l.b16 %v776
        %v841 = vunpack.c.l.b16 %v777
        %v842 = vunpack.c.l.b16 %v778
        %v843 = vunpack.c.l.b16 %v779
        %v844 = vunpack.c.l.b16 %v780
        %v845 = vunpack.c.l.b16 %v781
        %v846 = vunpack.c.l.b16 %v782
        %v847 = vunpack.c.l.b16 %v783
        %v848 = vunpack.c.l.b16 %v784
        %v849 = vpack.c.b16 %v834, %v833
        %v850 = vpack.c.b16 %v836, %v835
        %v851 = vpack.c.b16 %v838, %v837
        %v852 = vpack.c.b16 %v840, %v839
        %v853 = vpack.c.b16 %v842, %v841
        %v854 = vpack.c.b16 %v844, %v843
        %v855 = vpack.c.b16 %v846, %v845
        %v856 = vpack.c.b16 %v848, %v847
        %v897 = vunpack.c.l.b16 %v785
        %v898 = vunpack.c.h.b16 %v785
        %v899 = vunpack.c.l.b16 %v786
        %v900 = vunpack.c.l.b16 %v787
        %v901 = vunpack.c.h.b16 %v787
        %v902 = vunpack.c.l.b16 %v788
        %v903 = vunpack.c.l.b16 %v789
        %v904 = vunpack.c.h.b16 %v789
        %v905 = vunpack.c.l.b16 %v790
        %v906 = vunpack.c.l.b16 %v791
        %v907 = vunpack.c.h.b16 %v791
        %v908 = vunpack.c.l.b16 %v792
        %v909 = vunpack.c.l.b16 %v793
        %v910 = vunpack.c.h.b16 %v793
        %v911 = vunpack.c.l.b16 %v794
        %v912 = vunpack.c.l.b16 %v795
        %v913 = vunpack.c.h.b16 %v795
        %v914 = vunpack.c.l.b16 %v796
        %v915 = vunpack.c.l.b16 %v797
        %v916 = vunpack.c.h.b16 %v797
        %v917 = vunpack.c.l.b16 %v798
        %v918 = vunpack.c.l.b16 %v799
        %v919 = vunpack.c.h.b16 %v799
        %v920 = vunpack.c.l.b16 %v800
        %v921 = vunpack.c.l.b16 %v801
        %v922 = vunpack.c.h.b16 %v801
        %v923 = vunpack.c.l.b16 %v802
        %v924 = vunpack.c.l.b16 %v803
        %v925 = vunpack.c.h.b16 %v803
        %v926 = vunpack.c.l.b16 %v804
        %v927 = vunpack.c.l.b16 %v805
        %v928 = vunpack.c.h.b16 %v805
        %v929 = vunpack.c.l.b16 %v806
        %v930 = vunpack.c.l.b16 %v807
        %v931 = vunpack.c.h.b16 %v807
        %v932 = vunpack.c.l.b16 %v808
        %v933 = vunpack.c.l.b16 %v809
        %v934 = vunpack.c.h.b16 %v809
        %v935 = vunpack.c.l.b16 %v810
        %v936 = vunpack.c.l.b16 %v811
        %v937 = vunpack.c.h.b16 %v811
        %v938 = vunpack.c.l.b16 %v812
        %v939 = vunpack.c.l.b16 %v813
        %v940 = vunpack.c.h.b16 %v813
        %v941 = vunpack.c.l.b16 %v814
        %v942 = vunpack.c.l.b16 %v815
        %v943 = vunpack.c.h.b16 %v815
        %v944 = vunpack.c.l.b16 %v816
        %v945 = vpack.c.b16 %v900, %v897
        %v946 = vpack.c.b16 %v901, %v898
        %v947 = vpack.c.b16 %v902, %v899
        %v948 = vpack.c.b16 %v906, %v903
        %v949 = vpack.c.b16 %v907, %v904
        %v950 = vpack.c.b16 %v908, %v905
        %v951 = vpack.c.b16 %v912, %v909
        %v952 = vpack.c.b16 %v913, %v910
        %v953 = vpack.c.b16 %v914, %v911
        %v954 = vpack.c.b16 %v918, %v915
        %v955 = vpack.c.b16 %v919, %v916
        %v956 = vpack.c.b16 %v920, %v917
        %v957 = vpack.c.b16 %v924, %v921
        %v958 = vpack.c.b16 %v925, %v922
        %v959 = vpack.c.b16 %v926, %v923
        %v960 = vpack.c.b16 %v930, %v927
        %v961 = vpack.c.b16 %v931, %v928
        %v962 = vpack.c.b16 %v932, %v929
        %v963 = vpack.c.b16 %v936, %v933
        %v964 = vpack.c.b16 %v937, %v934
        %v965 = vpack.c.b16 %v938, %v935
        %v966 = vpack.c.b16 %v942, %v939
        %v967 = vpack.c.b16 %v943, %v940
        %v968 = vpack.c.b16 %v944, %v941
        %993 = vmatprep.subr.bf16.mxu0 %v946
        %994 = vmatpush1.bf16.msra.mxu0 %v945
        %995 = vmatprep.subr.bf16.mxu0 %v949
        %996 = vmatpush1.bf16.msra.mxu0 %v948
        %997 = vmatprep.subr.bf16.mxu0 %v952
        %998 = vmatpush1.bf16.msra.mxu0 %v951
        %999 = vmatprep.subr.bf16.mxu0 %v955
        %1000 = vmatpush1.bf16.msra.mxu0 %v954
        %1001 = vmatprep.subr.bf16.mxu0 %v958
        %1002 = vmatpush1.bf16.msra.mxu0 %v957
        %1003 = vmatprep.subr.bf16.mxu0 %v961
        %1004 = vmatpush1.bf16.msra.mxu0 %v960
        %1005 = vmatprep.subr.bf16.mxu0 %v964
        %1006 = vmatpush1.bf16.msra.mxu0 %v963
        %1007 = vmatprep.subr.bf16.mxu0 %v967
        %1008 = vmatpush1.bf16.msra.mxu0 %v966
        %1009 = vmatprep.subr.bf16.mxu0 0
        %1010 = vmatpush1.bf16.msra.mxu0 0
        %1011 = vmatprep.subr.bf16.mxu0 0
        %1012 = vmatpush1.bf16.msra.mxu0 0
        %1013 = vmatprep.subr.bf16.mxu0 0
        %1014 = vmatpush1.bf16.msra.mxu0 0
        %1015 = vmatprep.subr.bf16.mxu0 0
        %1016 = vmatpush1.bf16.msra.mxu0 0
        %1017 = vmatprep.subr.bf16.mxu0 0
        %1018 = vmatpush1.bf16.msra.mxu0 0
        %1019 = vmatprep.subr.bf16.mxu0 0
        %1020 = vmatpush1.bf16.msra.mxu0 0
        %1021 = vmatprep.subr.bf16.mxu0 0
        %1022 = vmatpush1.bf16.msra.mxu0 0
        %1023 = vmatprep.subr.bf16.mxu0 0
        %1024 = vmatpush1.bf16.msra.mxu0 0
        %1025 = vmatprep.mubr.bf16.mxu0 0
        %1026 = vmatmul.mubr.bf16.gmra.mrb[0].mxu0 %v849
        %v1027 = vpop.f32.mrb[0].mxu0
        %v1028 = vadd.f32 0.0, %v1027
        %v1029 = vpop.f32.mrb[0].mxu0
        %v1030 = vadd.f32 0.0, %v1029
        %v1031 = vpop.f32.mrb[0].mxu0
        %v1032 = vadd.f32 0.0, %v1031
        %v1033 = vpop.f32.mrb[0].mxu0
        %v1034 = vadd.f32 0.0, %v1033
        %1035 = vmatprep.mubr.bf16.mxu0 0
        %1036 = vmatmul.mubr.bf16.gmra.mrb[0].mxu0 %v850
        %v1037 = vpop.f32.mrb[0].mxu0
        %v1038 = vadd.f32 0.0, %v1037
        %v1039 = vpop.f32.mrb[0].mxu0
        %v1040 = vadd.f32 0.0, %v1039
        %v1041 = vpop.f32.mrb[0].mxu0
        %v1042 = vadd.f32 0.0, %v1041
        %v1043 = vpop.f32.mrb[0].mxu0
        %v1044 = vadd.f32 0.0, %v1043
        %1045 = vmatprep.mubr.bf16.mxu0 0
        %1046 = vmatmul.mubr.bf16.gmra.mrb[0].mxu0 %v851
        %v1047 = vpop.f32.mrb[0].mxu0
        %v1048 = vadd.f32 0.0, %v1047
        %v1049 = vpop.f32.mrb[0].mxu0
        %v1050 = vadd.f32 0.0, %v1049
        %v1051 = vpop.f32.mrb[0].mxu0
        %v1052 = vadd.f32 0.0, %v1051
        %v1053 = vpop.f32.mrb[0].mxu0
        %v1054 = vadd.f32 0.0, %v1053
        %1055 = vmatprep.mubr.bf16.mxu0 0
        %1056 = vmatmul.mubr.bf16.gmra.mrb[0].mxu0 %v852
        %v1057 = vpop.f32.mrb[0].mxu0
        %v1058 = vadd.f32 0.0, %v1057
        %v1059 = vpop.f32.mrb[0].mxu0
        %v1060 = vadd.f32 0.0, %v1059
        %v1061 = vpop.f32.mrb[0].mxu0
        %v1062 = vadd.f32 0.0, %v1061
        %v1063 = vpop.f32.mrb[0].mxu0
        %v1064 = vadd.f32 0.0, %v1063
        %1065 = vmatprep.mubr.bf16.mxu0 0
        %1066 = vmatmul.mubr.bf16.gmra.mrb[0].mxu0 %v853
        %v1067 = vpop.f32.mrb[0].mxu0
        %v1068 = vadd.f32 0.0, %v1067
        %v1069 = vpop.f32.mrb[0].mxu0
        %v1070 = vadd.f32 0.0, %v1069
        %v1071 = vpop.f32.mrb[0].mxu0
        %v1072 = vadd.f32 0.0, %v1071
        %v1073 = vpop.f32.mrb[0].mxu0
        %v1074 = vadd.f32 0.0, %v1073
        %1075 = vmatprep.mubr.bf16.mxu0 0
        %1076 = vmatmul.mubr.bf16.gmra.mrb[0].mxu0 %v854
        %v1077 = vpop.f32.mrb[0].mxu0
        %v1078 = vadd.f32 0.0, %v1077
        %v1079 = vpop.f32.mrb[0].mxu0
        %v1080 = vadd.f32 0.0, %v1079
        %v1081 = vpop.f32.mrb[0].mxu0
        %v1082 = vadd.f32 0.0, %v1081
        %v1083 = vpop.f32.mrb[0].mxu0
        %v1084 = vadd.f32 0.0, %v1083
        %1085 = vmatprep.mubr.bf16.mxu0 0
        %1086 = vmatmul.mubr.bf16.gmra.mrb[0].mxu0 %v855
        %v1087 = vpop.f32.mrb[0].mxu0
        %v1088 = vadd.f32 0.0, %v1087
        %v1089 = vpop.f32.mrb[0].mxu0
        %v1090 = vadd.f32 0.0, %v1089
        %v1091 = vpop.f32.mrb[0].mxu0
        %v1092 = vadd.f32 0.0, %v1091
        %v1093 = vpop.f32.mrb[0].mxu0
        %v1094 = vadd.f32 0.0, %v1093
        %1095 = vmatprep.mubr.bf16.mxu0 0
        %1096 = vmatmul.mubr.bf16.gmra.mrb[0].mxu0 %v856
        %v1097 = vpop.f32.mrb[0].mxu0
        %v1098 = vadd.f32 0.0, %v1097
        %v1099 = vpop.f32.mrb[0].mxu0
        %v1100 = vadd.f32 0.0, %v1099
        %v1101 = vpop.f32.mrb[0].mxu0
        %v1102 = vadd.f32 0.0, %v1101
        %v1103 = vpop.f32.mrb[0].mxu0
        %v1104 = vadd.f32 0.0, %v1103
        %1105 = vdwg.mxu0
        %1106 = vmatprep.subr.bf16.mxu0 0
        %1107 = vmatpush1.bf16.msra.mxu0 %v947
        %1108 = vmatprep.subr.bf16.mxu0 0
        %1109 = vmatpush1.bf16.msra.mxu0 %v950
        %1110 = vmatprep.subr.bf16.mxu0 0
        %1111 = vmatpush1.bf16.msra.mxu0 %v953
        %1112 = vmatprep.subr.bf16.mxu0 0
        %1113 = vmatpush1.bf16.msra.mxu0 %v956
        %1114 = vmatprep.subr.bf16.mxu0 0
        %1115 = vmatpush1.bf16.msra.mxu0 %v959
        %1116 = vmatprep.subr.bf16.mxu0 0
        %1117 = vmatpush1.bf16.msra.mxu0 %v962
        %1118 = vmatprep.subr.bf16.mxu0 0
        %1119 = vmatpush1.bf16.msra.mxu0 %v965
        %1120 = vmatprep.subr.bf16.mxu0 0
        %1121 = vmatpush1.bf16.msra.mxu0 %v968
        %1122 = vmatprep.subr.bf16.mxu0 0
        %1123 = vmatpush1.bf16.msra.mxu0 0
        %1124 = vmatprep.subr.bf16.mxu0 0
        %1125 = vmatpush1.bf16.msra.mxu0 0
        %1126 = vmatprep.subr.bf16.mxu0 0
        %1127 = vmatpush1.bf16.msra.mxu0 0
        %1128 = vmatprep.subr.bf16.mxu0 0
        %1129 = vmatpush1.bf16.msra.mxu0 0
        %1130 = vmatprep.subr.bf16.mxu0 0
        %1131 = vmatpush1.bf16.msra.mxu0 0
        %1132 = vmatprep.subr.bf16.mxu0 0
        %1133 = vmatpush1.bf16.msra.mxu0 0
        %1134 = vmatprep.subr.bf16.mxu0 0
        %1135 = vmatpush1.bf16.msra.mxu0 0
        %1136 = vmatprep.subr.bf16.mxu0 0
        %1137 = vmatpush1.bf16.msra.mxu0 0
        %1138 = vmatprep.mubr.bf16.mxu0 0
        %1139 = vmatmul.mubr.bf16.gmra.mrb[0].mxu0 %v849
        %v1140 = vpop.f32.mrb[0].mxu0
        %v1141 = vadd.f32 0.0, %v1140
        %v1142 = vpop.f32.mrb[0].mxu0
        %v1143 = vpop.f32.mrb[0].mxu0
        %v1144 = vadd.f32 0.0, %v1143
        %v1145 = vpop.f32.mrb[0].mxu0
        %1146 = vmatprep.mubr.bf16.mxu0 0
        %1147 = vmatmul.mubr.bf16.gmra.mrb[0].mxu0 %v850
        %v1148 = vpop.f32.mrb[0].mxu0
        %v1149 = vadd.f32 0.0, %v1148
        %v1150 = vpop.f32.mrb[0].mxu0
        %v1151 = vpop.f32.mrb[0].mxu0
        %v1152 = vadd.f32 0.0, %v1151
        %v1153 = vpop.f32.mrb[0].mxu0
        %1154 = vmatprep.mubr.bf16.mxu0 0
        %1155 = vmatmul.mubr.bf16.gmra.mrb[0].mxu0 %v851
        %v1156 = vpop.f32.mrb[0].mxu0
        %v1157 = vadd.f32 0.0, %v1156
        %v1158 = vpop.f32.mrb[0].mxu0
        %v1159 = vpop.f32.mrb[0].mxu0
        %v1160 = vadd.f32 0.0, %v1159
        %v1161 = vpop.f32.mrb[0].mxu0
        %1162 = vmatprep.mubr.bf16.mxu0 0
        %1163 = vmatmul.mubr.bf16.gmra.mrb[0].mxu0 %v852
        %v1164 = vpop.f32.mrb[0].mxu0
        %v1165 = vadd.f32 0.0, %v1164
        %v1166 = vpop.f32.mrb[0].mxu0
        %v1167 = vpop.f32.mrb[0].mxu0
        %v1168 = vadd.f32 0.0, %v1167
        %v1169 = vpop.f32.mrb[0].mxu0
        %1170 = vmatprep.mubr.bf16.mxu0 0
        %1171 = vmatmul.mubr.bf16.gmra.mrb[0].mxu0 %v853
        %v1172 = vpop.f32.mrb[0].mxu0
        %v1173 = vadd.f32 0.0, %v1172
        %v1174 = vpop.f32.mrb[0].mxu0
        %v1175 = vpop.f32.mrb[0].mxu0
        %v1176 = vadd.f32 0.0, %v1175
        %v1177 = vpop.f32.mrb[0].mxu0
        %1178 = vmatprep.mubr.bf16.mxu0 0
        %1179 = vmatmul.mubr.bf16.gmra.mrb[0].mxu0 %v854
        %v1180 = vpop.f32.mrb[0].mxu0
        %v1181 = vadd.f32 0.0, %v1180
        %v1182 = vpop.f32.mrb[0].mxu0
        %v1183 = vpop.f32.mrb[0].mxu0
        %v1184 = vadd.f32 0.0, %v1183
        %v1185 = vpop.f32.mrb[0].mxu0
        %1186 = vmatprep.mubr.bf16.mxu0 0
        %1187 = vmatmul.mubr.bf16.gmra.mrb[0].mxu0 %v855
        %v1188 = vpop.f32.mrb[0].mxu0
        %v1189 = vadd.f32 0.0, %v1188
        %v1190 = vpop.f32.mrb[0].mxu0
        %v1191 = vpop.f32.mrb[0].mxu0
        %v1192 = vadd.f32 0.0, %v1191
        %v1193 = vpop.f32.mrb[0].mxu0
        %1194 = vmatprep.mubr.bf16.mxu0 0
        %1195 = vmatmul.mubr.bf16.gmra.mrb[0].mxu0 %v856
        %v1196 = vpop.f32.mrb[0].mxu0
        %v1197 = vadd.f32 0.0, %v1196
        %v1198 = vpop.f32.mrb[0].mxu0
        %v1199 = vpop.f32.mrb[0].mxu0
        %v1200 = vadd.f32 0.0, %v1199
        %v1201 = vpop.f32.mrb[0].mxu0
        %1202 = vdwg.mxu0
        %v1203 = vpack.c.bf16 %v1032, %v1028
        %v1204 = vpack.c.bf16 %v1034, %v1030
        %v1205 = vpack.c.bf16 %v1144, %v1141
        %v1206 = vpack.c.bf16 %v1042, %v1038
        %v1207 = vpack.c.bf16 %v1044, %v1040
        %v1208 = vpack.c.bf16 %v1152, %v1149
        %v1209 = vpack.c.bf16 %v1052, %v1048
        %v1210 = vpack.c.bf16 %v1054, %v1050
        %v1211 = vpack.c.bf16 %v1160, %v1157
        %v1212 = vpack.c.bf16 %v1062, %v1058
        %v1213 = vpack.c.bf16 %v1064, %v1060
        %v1214 = vpack.c.bf16 %v1168, %v1165
        %v1215 = vpack.c.bf16 %v1072, %v1068
        %v1216 = vpack.c.bf16 %v1074, %v1070
        %v1217 = vpack.c.bf16 %v1176, %v1173
        %v1218 = vpack.c.bf16 %v1082, %v1078
        %v1219 = vpack.c.bf16 %v1084, %v1080
        %v1220 = vpack.c.bf16 %v1184, %v1181
        %v1221 = vpack.c.bf16 %v1092, %v1088
        %v1222 = vpack.c.bf16 %v1094, %v1090
        %v1223 = vpack.c.bf16 %v1192, %v1189
        %v1224 = vpack.c.bf16 %v1102, %v1098
        %v1225 = vpack.c.bf16 %v1104, %v1100
        %v1226 = vpack.c.bf16 %v1200, %v1197
        %v1227 = vld [vmem:[#allocation2] sm:$0xff]
        %v1228 = vld [vmem:[#allocation2 + $0x8] sm:$0xff]
        %v1229 = vld [vmem:[#allocation2 + $0x10] sm:$0xff]
        %v1230 = vld [vmem:[#allocation2 + $0x18] sm:$0xff]
        %v1231 = vld [vmem:[#allocation2 + $0x20] sm:$0xff]
        %v1232 = vld [vmem:[#allocation2 + $0x28] sm:$0xff]
        %v1233 = vld [vmem:[#allocation2 + $0x30] sm:$0xff]
        %v1234 = vld [vmem:[#allocation2 + $0x38] sm:$0xff]
        %v1235 = vld [vmem:[#allocation2 + $0x40] sm:$0xff]
        %v1236 = vld [vmem:[#allocation2 + $0x48] sm:$0xff]
        %v1237 = vld [vmem:[#allocation2 + $0x50] sm:$0xff]
        %v1238 = vld [vmem:[#allocation2 + $0x58] sm:$0xff]
        %v1239 = vld [vmem:[#allocation2 + $0x60] sm:$0xff]
        %v1240 = vld [vmem:[#allocation2 + $0x68] sm:$0xff]
        %v1241 = vld [vmem:[#allocation2 + $0x70] sm:$0xff]
        %v1242 = vld [vmem:[#allocation2 + $0x78] sm:$0xff]
        %v1243 = vld [vmem:[%s632] sm:$0xf]
        %v1244 = vld [vmem:[%s632 + $0x4] sm:$0xf]
        %v1245 = vld [vmem:[%s632 + $0x8] sm:$0xf]
        %v1246 = vld [vmem:[%s632 + $0xc] sm:$0xf]
        %v1247 = vld [vmem:[%s632 + $0x10] sm:$0xf]
        %v1248 = vld [vmem:[%s632 + $0x14] sm:$0xf]
        %v1249 = vld [vmem:[%s632 + $0x18] sm:$0xf]
        %v1250 = vld [vmem:[%s632 + $0x1c] sm:$0xf]
        %v1251 = vld [vmem:[%s632 + $0x20] sm:$0xf]
        %v1252 = vld [vmem:[%s632 + $0x24] sm:$0xf]
        %v1253 = vld [vmem:[%s632 + $0x28] sm:$0xf]
        %v1254 = vld [vmem:[%s632 + $0x2c] sm:$0xf]
        %v1255 = vld [vmem:[%s632 + $0x30] sm:$0xf]
        %v1256 = vld [vmem:[%s632 + $0x34] sm:$0xf]
        %v1257 = vld [vmem:[%s632 + $0x38] sm:$0xf]
        %v1258 = vld [vmem:[%s632 + $0x3c] sm:$0xf]
        %v1275 = vunpack.c.l.b16 %v1243
        %v1276 = vunpack.c.l.b16 %v1244
        %v1277 = vunpack.c.l.b16 %v1245
        %v1278 = vunpack.c.l.b16 %v1246
        %v1279 = vunpack.c.l.b16 %v1247
        %v1280 = vunpack.c.l.b16 %v1248
        %v1281 = vunpack.c.l.b16 %v1249
        %v1282 = vunpack.c.l.b16 %v1250
        %v1283 = vunpack.c.l.b16 %v1251
        %v1284 = vunpack.c.l.b16 %v1252
        %v1285 = vunpack.c.l.b16 %v1253
        %v1286 = vunpack.c.l.b16 %v1254
        %v1287 = vunpack.c.l.b16 %v1255
        %v1288 = vunpack.c.l.b16 %v1256
        %v1289 = vunpack.c.l.b16 %v1257
        %v1290 = vunpack.c.l.b16 %v1258
        %v1291 = vpack.c.b16 %v1276, %v1275
        %v1292 = vpack.c.b16 %v1278, %v1277
        %v1293 = vpack.c.b16 %v1280, %v1279
        %v1294 = vpack.c.b16 %v1282, %v1281
        %v1295 = vpack.c.b16 %v1284, %v1283
        %v1296 = vpack.c.b16 %v1286, %v1285
        %v1297 = vpack.c.b16 %v1288, %v1287
        %v1298 = vpack.c.b16 %v1290, %v1289
        %1307 = vmatprep.subr.bf16.mxu0 0
        %1308 = vmatpush1.bf16.msra.mxu0 %v1203
        %1309 = vmatprep.subr.bf16.mxu0 0
        %1310 = vmatpush1.bf16.msra.mxu0 %v1206
        %1311 = vmatprep.subr.bf16.mxu0 0
        %1312 = vmatpush1.bf16.msra.mxu0 %v1209
        %1313 = vmatprep.subr.bf16.mxu0 0
        %1314 = vmatpush1.bf16.msra.mxu0 %v1212
        %1315 = vmatprep.subr.bf16.mxu0 0
        %1316 = vmatpush1.bf16.msra.mxu0 %v1215
        %1317 = vmatprep.subr.bf16.mxu0 0
        %1318 = vmatpush1.bf16.msra.mxu0 %v1218
        %1319 = vmatprep.subr.bf16.mxu0 0
        %1320 = vmatpush1.bf16.msra.mxu0 %v1221
        %1321 = vmatprep.subr.bf16.mxu0 0
        %1322 = vmatpush1.bf16.msra.mxu0 %v1224
        %1323 = vmatprep.subr.bf16.mxu0 0
        %1324 = vmatpush1.bf16.msra.mxu0 0
        %1325 = vmatprep.subr.bf16.mxu0 0
        %1326 = vmatpush1.bf16.msra.mxu0 0
        %1327 = vmatprep.subr.bf16.mxu0 0
        %1328 = vmatpush1.bf16.msra.mxu0 0
        %1329 = vmatprep.subr.bf16.mxu0 0
        %1330 = vmatpush1.bf16.msra.mxu0 0
        %1331 = vmatprep.subr.bf16.mxu0 0
        %1332 = vmatpush1.bf16.msra.mxu0 0
        %1333 = vmatprep.subr.bf16.mxu0 0
        %1334 = vmatpush1.bf16.msra.mxu0 0
        %1335 = vmatprep.subr.bf16.mxu0 0
        %1336 = vmatpush1.bf16.msra.mxu0 0
        %1337 = vmatprep.subr.bf16.mxu0 0
        %1338 = vmatpush1.bf16.msra.mxu0 0
        %1339 = vmatprep.mubr.bf16.mxu0 0
        %1340 = vmatmul.mubr.bf16.gmra.mrb[0].mxu0 %v1291
        %v1341 = vpop.f32.mrb[0].mxu0
        %v1342 = vadd.f32 0.0, %v1341
        %v1343 = vpop.f32.mrb[0].mxu0
        %v1344 = vpop.f32.mrb[0].mxu0
        %v1345 = vadd.f32 0.0, %v1344
        %v1346 = vpop.f32.mrb[0].mxu0
        %1347 = vmatprep.mubr.bf16.mxu0 0
        %1348 = vmatmul.mubr.bf16.gmra.mrb[0].mxu0 %v1292
        %v1349 = vpop.f32.mrb[0].mxu0
        %v1350 = vadd.f32 0.0, %v1349
        %v1351 = vpop.f32.mrb[0].mxu0
        %v1352 = vpop.f32.mrb[0].mxu0
        %v1353 = vadd.f32 0.0, %v1352
        %v1354 = vpop.f32.mrb[0].mxu0
        %1355 = vmatprep.mubr.bf16.mxu0 0
        %1356 = vmatmul.mubr.bf16.gmra.mrb[0].mxu0 %v1293
        %v1357 = vpop.f32.mrb[0].mxu0
        %v1358 = vadd.f32 0.0, %v1357
        %v1359 = vpop.f32.mrb[0].mxu0
        %v1360 = vpop.f32.mrb[0].mxu0
        %v1361 = vadd.f32 0.0, %v1360
        %v1362 = vpop.f32.mrb[0].mxu0
        %1363 = vmatprep.mubr.bf16.mxu0 0
        %1364 = vmatmul.mubr.bf16.gmra.mrb[0].mxu0 %v1294
        %v1365 = vpop.f32.mrb[0].mxu0
        %v1366 = vadd.f32 0.0, %v1365
        %v1367 = vpop.f32.mrb[0].mxu0
        %v1368 = vpop.f32.mrb[0].mxu0
        %v1369 = vadd.f32 0.0, %v1368
        %v1370 = vpop.f32.mrb[0].mxu0
        %1371 = vmatprep.mubr.bf16.mxu0 0
        %1372 = vmatmul.mubr.bf16.gmra.mrb[0].mxu0 %v1295
        %v1373 = vpop.f32.mrb[0].mxu0
        %v1374 = vadd.f32 0.0, %v1373
        %v1375 = vpop.f32.mrb[0].mxu0
        %v1376 = vpop.f32.mrb[0].mxu0
        %v1377 = vadd.f32 0.0, %v1376
        %v1378 = vpop.f32.mrb[0].mxu0
        %1379 = vmatprep.mubr.bf16.mxu0 0
        %1380 = vmatmul.mubr.bf16.gmra.mrb[0].mxu0 %v1296
        %v1381 = vpop.f32.mrb[0].mxu0
        %v1382 = vadd.f32 0.0, %v1381
        %v1383 = vpop.f32.mrb[0].mxu0
        %v1384 = vpop.f32.mrb[0].mxu0
        %v1385 = vadd.f32 0.0, %v1384
        %v1386 = vpop.f32.mrb[0].mxu0
        %1387 = vmatprep.mubr.bf16.mxu0 0
        %1388 = vmatmul.mubr.bf16.gmra.mrb[0].mxu0 %v1297
        %v1389 = vpop.f32.mrb[0].mxu0
        %v1390 = vadd.f32 0.0, %v1389
        %v1391 = vpop.f32.mrb[0].mxu0
        %v1392 = vpop.f32.mrb[0].mxu0
        %v1393 = vadd.f32 0.0, %v1392
        %v1394 = vpop.f32.mrb[0].mxu0
        %1395 = vmatprep.mubr.bf16.mxu0 0
        %1396 = vmatmul.mubr.bf16.gmra.mrb[0].mxu0 %v1298
        %v1397 = vpop.f32.mrb[0].mxu0
        %v1398 = vadd.f32 0.0, %v1397
        %v1399 = vpop.f32.mrb[0].mxu0
        %v1400 = vpop.f32.mrb[0].mxu0
        %v1401 = vadd.f32 0.0, %v1400
        %v1402 = vpop.f32.mrb[0].mxu0
        %1403 = vdwg.mxu0
        %v1404 = vadd.f32 %v1227, %v1342
        %v1405 = vadd.f32 %v1228, %v1345
        %v1406 = vadd.f32 %v1229, %v1350
        %v1407 = vadd.f32 %v1230, %v1353
        %v1408 = vadd.f32 %v1231, %v1358
        %v1409 = vadd.f32 %v1232, %v1361
        %v1410 = vadd.f32 %v1233, %v1366
        %v1411 = vadd.f32 %v1234, %v1369
        %v1412 = vadd.f32 %v1235, %v1374
        %v1413 = vadd.f32 %v1236, %v1377
        %v1414 = vadd.f32 %v1237, %v1382
        %v1415 = vadd.f32 %v1238, %v1385
        %v1416 = vadd.f32 %v1239, %v1390
        %v1417 = vadd.f32 %v1240, %v1393
        %v1418 = vadd.f32 %v1241, %v1398
        %v1419 = vadd.f32 %v1242, %v1401
        %1420 = vst [vmem:[#allocation2] sm:$0xff] %v1404
        %1421 = vst [vmem:[#allocation2 + $0x8] sm:$0xff] %v1405
        %1422 = vst [vmem:[#allocation2 + $0x10] sm:$0xff] %v1406
        %1423 = vst [vmem:[#allocation2 + $0x18] sm:$0xff] %v1407
        %1424 = vst [vmem:[#allocation2 + $0x20] sm:$0xff] %v1408
        %1425 = vst [vmem:[#allocation2 + $0x28] sm:$0xff] %v1409
        %1426 = vst [vmem:[#allocation2 + $0x30] sm:$0xff] %v1410
        %1427 = vst [vmem:[#allocation2 + $0x38] sm:$0xff] %v1411
        %1428 = vst [vmem:[#allocation2 + $0x40] sm:$0xff] %v1412
        %1429 = vst [vmem:[#allocation2 + $0x48] sm:$0xff] %v1413
        %1430 = vst [vmem:[#allocation2 + $0x50] sm:$0xff] %v1414
        %1431 = vst [vmem:[#allocation2 + $0x58] sm:$0xff] %v1415
        %1432 = vst [vmem:[#allocation2 + $0x60] sm:$0xff] %v1416
        %1433 = vst [vmem:[#allocation2 + $0x68] sm:$0xff] %v1417
        %1434 = vst [vmem:[#allocation2 + $0x70] sm:$0xff] %v1418
        %1435 = vst [vmem:[#allocation2 + $0x78] sm:$0xff] %v1419
        %v1436 = vld [vmem:[#allocation3] sm:$0xff]
        %v1437 = vld [vmem:[#allocation3 + $0x8] sm:$0xff]
        %v1438 = vld [vmem:[#allocation3 + $0x10] sm:$0xff]
        %v1439 = vld [vmem:[#allocation3 + $0x18] sm:$0xff]
        %v1440 = vld [vmem:[#allocation3 + $0x20] sm:$0xff]
        %v1441 = vld [vmem:[#allocation3 + $0x28] sm:$0xff]
        %v1442 = vld [vmem:[#allocation3 + $0x30] sm:$0xff]
        %v1443 = vld [vmem:[#allocation3 + $0x38] sm:$0xff]
        %v1444 = vld [vmem:[#allocation3 + $0x40] sm:$0xff]
        %v1445 = vld [vmem:[#allocation3 + $0x48] sm:$0xff]
        %v1446 = vld [vmem:[#allocation3 + $0x50] sm:$0xff]
        %v1447 = vld [vmem:[#allocation3 + $0x58] sm:$0xff]
        %v1448 = vld [vmem:[#allocation3 + $0x60] sm:$0xff]
        %v1449 = vld [vmem:[#allocation3 + $0x68] sm:$0xff]
        %v1450 = vld [vmem:[#allocation3 + $0x70] sm:$0xff]
        %v1451 = vld [vmem:[#allocation3 + $0x78] sm:$0xff]
        %v1452 = vld [vmem:[%s639] sm:$0xf]
        %v1453 = vld [vmem:[%s639 + $0x4] sm:$0xf]
        %v1454 = vld [vmem:[%s639 + $0x8] sm:$0xf]
        %v1455 = vld [vmem:[%s639 + $0xc] sm:$0xf]
        %v1456 = vld [vmem:[%s639 + $0x10] sm:$0xf]
        %v1457 = vld [vmem:[%s639 + $0x14] sm:$0xf]
        %v1458 = vld [vmem:[%s639 + $0x18] sm:$0xf]
        %v1459 = vld [vmem:[%s639 + $0x1c] sm:$0xf]
        %v1460 = vld [vmem:[%s639 + $0x20] sm:$0xf]
        %v1461 = vld [vmem:[%s639 + $0x24] sm:$0xf]
        %v1462 = vld [vmem:[%s639 + $0x28] sm:$0xf]
        %v1463 = vld [vmem:[%s639 + $0x2c] sm:$0xf]
        %v1464 = vld [vmem:[%s639 + $0x30] sm:$0xf]
        %v1465 = vld [vmem:[%s639 + $0x34] sm:$0xf]
        %v1466 = vld [vmem:[%s639 + $0x38] sm:$0xf]
        %v1467 = vld [vmem:[%s639 + $0x3c] sm:$0xf]
        %v1484 = vunpack.c.l.b16 %v1452
        %v1485 = vunpack.c.l.b16 %v1453
        %v1486 = vunpack.c.l.b16 %v1454
        %v1487 = vunpack.c.l.b16 %v1455
        %v1488 = vunpack.c.l.b16 %v1456
        %v1489 = vunpack.c.l.b16 %v1457
        %v1490 = vunpack.c.l.b16 %v1458
        %v1491 = vunpack.c.l.b16 %v1459
        %v1492 = vunpack.c.l.b16 %v1460
        %v1493 = vunpack.c.l.b16 %v1461
        %v1494 = vunpack.c.l.b16 %v1462
        %v1495 = vunpack.c.l.b16 %v1463
        %v1496 = vunpack.c.l.b16 %v1464
        %v1497 = vunpack.c.l.b16 %v1465
        %v1498 = vunpack.c.l.b16 %v1466
        %v1499 = vunpack.c.l.b16 %v1467
        %v1500 = vpack.c.b16 %v1485, %v1484
        %v1501 = vpack.c.b16 %v1487, %v1486
        %v1502 = vpack.c.b16 %v1489, %v1488
        %v1503 = vpack.c.b16 %v1491, %v1490
        %v1504 = vpack.c.b16 %v1493, %v1492
        %v1505 = vpack.c.b16 %v1495, %v1494
        %v1506 = vpack.c.b16 %v1497, %v1496
        %v1507 = vpack.c.b16 %v1499, %v1498
        %1516 = vmatprep.subr.bf16.mxu0 0
        %1517 = vmatpush1.bf16.msra.mxu0 %v1204
        %1518 = vmatprep.subr.bf16.mxu0 0
        %1519 = vmatpush1.bf16.msra.mxu0 %v1207
        %1520 = vmatprep.subr.bf16.mxu0 0
        %1521 = vmatpush1.bf16.msra.mxu0 %v1210
        %1522 = vmatprep.subr.bf16.mxu0 0
        %1523 = vmatpush1.bf16.msra.mxu0 %v1213
        %1524 = vmatprep.subr.bf16.mxu0 0
        %1525 = vmatpush1.bf16.msra.mxu0 %v1216
        %1526 = vmatprep.subr.bf16.mxu0 0
        %1527 = vmatpush1.bf16.msra.mxu0 %v1219
        %1528 = vmatprep.subr.bf16.mxu0 0
        %1529 = vmatpush1.bf16.msra.mxu0 %v1222
        %1530 = vmatprep.subr.bf16.mxu0 0
        %1531 = vmatpush1.bf16.msra.mxu0 %v1225
        %1532 = vmatprep.subr.bf16.mxu0 0
        %1533 = vmatpush1.bf16.msra.mxu0 0
        %1534 = vmatprep.subr.bf16.mxu0 0
        %1535 = vmatpush1.bf16.msra.mxu0 0
        %1536 = vmatprep.subr.bf16.mxu0 0
        %1537 = vmatpush1.bf16.msra.mxu0 0
        %1538 = vmatprep.subr.bf16.mxu0 0
        %1539 = vmatpush1.bf16.msra.mxu0 0
        %1540 = vmatprep.subr.bf16.mxu0 0
        %1541 = vmatpush1.bf16.msra.mxu0 0
        %1542 = vmatprep.subr.bf16.mxu0 0
        %1543 = vmatpush1.bf16.msra.mxu0 0
        %1544 = vmatprep.subr.bf16.mxu0 0
        %1545 = vmatpush1.bf16.msra.mxu0 0
        %1546 = vmatprep.subr.bf16.mxu0 0
        %1547 = vmatpush1.bf16.msra.mxu0 0
        %1548 = vmatprep.mubr.bf16.mxu0 0
        %1549 = vmatmul.mubr.bf16.gmra.mrb[0].mxu0 %v1500
        %v1550 = vpop.f32.mrb[0].mxu0
        %v1551 = vadd.f32 0.0, %v1550
        %v1552 = vpop.f32.mrb[0].mxu0
        %v1553 = vpop.f32.mrb[0].mxu0
        %v1554 = vadd.f32 0.0, %v1553
        %v1555 = vpop.f32.mrb[0].mxu0
        %1556 = vmatprep.mubr.bf16.mxu0 0
        %1557 = vmatmul.mubr.bf16.gmra.mrb[0].mxu0 %v1501
        %v1558 = vpop.f32.mrb[0].mxu0
        %v1559 = vadd.f32 0.0, %v1558
        %v1560 = vpop.f32.mrb[0].mxu0
        %v1561 = vpop.f32.mrb[0].mxu0
        %v1562 = vadd.f32 0.0, %v1561
        %v1563 = vpop.f32.mrb[0].mxu0
        %1564 = vmatprep.mubr.bf16.mxu0 0
        %1565 = vmatmul.mubr.bf16.gmra.mrb[0].mxu0 %v1502
        %v1566 = vpop.f32.mrb[0].mxu0
        %v1567 = vadd.f32 0.0, %v1566
        %v1568 = vpop.f32.mrb[0].mxu0
        %v1569 = vpop.f32.mrb[0].mxu0
        %v1570 = vadd.f32 0.0, %v1569
        %v1571 = vpop.f32.mrb[0].mxu0
        %1572 = vmatprep.mubr.bf16.mxu0 0
        %1573 = vmatmul.mubr.bf16.gmra.mrb[0].mxu0 %v1503
        %v1574 = vpop.f32.mrb[0].mxu0
        %v1575 = vadd.f32 0.0, %v1574
        %v1576 = vpop.f32.mrb[0].mxu0
        %v1577 = vpop.f32.mrb[0].mxu0
        %v1578 = vadd.f32 0.0, %v1577
        %v1579 = vpop.f32.mrb[0].mxu0
        %1580 = vmatprep.mubr.bf16.mxu0 0
        %1581 = vmatmul.mubr.bf16.gmra.mrb[0].mxu0 %v1504
        %v1582 = vpop.f32.mrb[0].mxu0
        %v1583 = vadd.f32 0.0, %v1582
        %v1584 = vpop.f32.mrb[0].mxu0
        %v1585 = vpop.f32.mrb[0].mxu0
        %v1586 = vadd.f32 0.0, %v1585
        %v1587 = vpop.f32.mrb[0].mxu0
        %1588 = vmatprep.mubr.bf16.mxu0 0
        %1589 = vmatmul.mubr.bf16.gmra.mrb[0].mxu0 %v1505
        %v1590 = vpop.f32.mrb[0].mxu0
        %v1591 = vadd.f32 0.0, %v1590
        %v1592 = vpop.f32.mrb[0].mxu0
        %v1593 = vpop.f32.mrb[0].mxu0
        %v1594 = vadd.f32 0.0, %v1593
        %v1595 = vpop.f32.mrb[0].mxu0
        %1596 = vmatprep.mubr.bf16.mxu0 0
        %1597 = vmatmul.mubr.bf16.gmra.mrb[0].mxu0 %v1506
        %v1598 = vpop.f32.mrb[0].mxu0
        %v1599 = vadd.f32 0.0, %v1598
        %v1600 = vpop.f32.mrb[0].mxu0
        %v1601 = vpop.f32.mrb[0].mxu0
        %v1602 = vadd.f32 0.0, %v1601
        %v1603 = vpop.f32.mrb[0].mxu0
        %1604 = vmatprep.mubr.bf16.mxu0 0
        %1605 = vmatmul.mubr.bf16.gmra.mrb[0].mxu0 %v1507
        %v1606 = vpop.f32.mrb[0].mxu0
        %v1607 = vadd.f32 0.0, %v1606
        %v1608 = vpop.f32.mrb[0].mxu0
        %v1609 = vpop.f32.mrb[0].mxu0
        %v1610 = vadd.f32 0.0, %v1609
        %v1611 = vpop.f32.mrb[0].mxu0
        %1612 = vdwg.mxu0
        %v1613 = vadd.f32 %v1436, %v1551
        %v1614 = vadd.f32 %v1437, %v1554
        %v1615 = vadd.f32 %v1438, %v1559
        %v1616 = vadd.f32 %v1439, %v1562
        %v1617 = vadd.f32 %v1440, %v1567
        %v1618 = vadd.f32 %v1441, %v1570
        %v1619 = vadd.f32 %v1442, %v1575
        %v1620 = vadd.f32 %v1443, %v1578
        %v1621 = vadd.f32 %v1444, %v1583
        %v1622 = vadd.f32 %v1445, %v1586
        %v1623 = vadd.f32 %v1446, %v1591
        %v1624 = vadd.f32 %v1447, %v1594
        %v1625 = vadd.f32 %v1448, %v1599
        %v1626 = vadd.f32 %v1449, %v1602
        %v1627 = vadd.f32 %v1450, %v1607
        %v1628 = vadd.f32 %v1451, %v1610
        %1629 = vst [vmem:[#allocation3] sm:$0xff] %v1613
        %1630 = vst [vmem:[#allocation3 + $0x8] sm:$0xff] %v1614
        %1631 = vst [vmem:[#allocation3 + $0x10] sm:$0xff] %v1615
        %1632 = vst [vmem:[#allocation3 + $0x18] sm:$0xff] %v1616
        %1633 = vst [vmem:[#allocation3 + $0x20] sm:$0xff] %v1617
        %1634 = vst [vmem:[#allocation3 + $0x28] sm:$0xff] %v1618
        %1635 = vst [vmem:[#allocation3 + $0x30] sm:$0xff] %v1619
        %1636 = vst [vmem:[#allocation3 + $0x38] sm:$0xff] %v1620
        %1637 = vst [vmem:[#allocation3 + $0x40] sm:$0xff] %v1621
        %1638 = vst [vmem:[#allocation3 + $0x48] sm:$0xff] %v1622
        %1639 = vst [vmem:[#allocation3 + $0x50] sm:$0xff] %v1623
        %1640 = vst [vmem:[#allocation3 + $0x58] sm:$0xff] %v1624
        %1641 = vst [vmem:[#allocation3 + $0x60] sm:$0xff] %v1625
        %1642 = vst [vmem:[#allocation3 + $0x68] sm:$0xff] %v1626
        %1643 = vst [vmem:[#allocation3 + $0x70] sm:$0xff] %v1627
        %1644 = vst [vmem:[#allocation3 + $0x78] sm:$0xff] %v1628
        %v1645 = vld [vmem:[#allocation4] sm:$0xff]
        %v1646 = vld [vmem:[#allocation4 + $0x8] sm:$0xff]
        %v1647 = vld [vmem:[#allocation4 + $0x10] sm:$0xff]
        %v1648 = vld [vmem:[#allocation4 + $0x18] sm:$0xff]
        %v1649 = vld [vmem:[#allocation4 + $0x20] sm:$0xff]
        %v1650 = vld [vmem:[#allocation4 + $0x28] sm:$0xff]
        %v1651 = vld [vmem:[#allocation4 + $0x30] sm:$0xff]
        %v1652 = vld [vmem:[#allocation4 + $0x38] sm:$0xff]
        %v1653 = vld [vmem:[#allocation4 + $0x40] sm:$0xff]
        %v1654 = vld [vmem:[#allocation4 + $0x48] sm:$0xff]
        %v1655 = vld [vmem:[#allocation4 + $0x50] sm:$0xff]
        %v1656 = vld [vmem:[#allocation4 + $0x58] sm:$0xff]
        %v1657 = vld [vmem:[#allocation4 + $0x60] sm:$0xff]
        %v1658 = vld [vmem:[#allocation4 + $0x68] sm:$0xff]
        %v1659 = vld [vmem:[#allocation4 + $0x70] sm:$0xff]
        %v1660 = vld [vmem:[#allocation4 + $0x78] sm:$0xff]
        %v1661 = vld [vmem:[%s646] sm:$0xf]
        %v1662 = vld [vmem:[%s646 + $0x4] sm:$0xf]
        %v1663 = vld [vmem:[%s646 + $0x8] sm:$0xf]
        %v1664 = vld [vmem:[%s646 + $0xc] sm:$0xf]
        %v1665 = vld [vmem:[%s646 + $0x10] sm:$0xf]
        %v1666 = vld [vmem:[%s646 + $0x14] sm:$0xf]
        %v1667 = vld [vmem:[%s646 + $0x18] sm:$0xf]
        %v1668 = vld [vmem:[%s646 + $0x1c] sm:$0xf]
        %v1669 = vld [vmem:[%s646 + $0x20] sm:$0xf]
        %v1670 = vld [vmem:[%s646 + $0x24] sm:$0xf]
        %v1671 = vld [vmem:[%s646 + $0x28] sm:$0xf]
        %v1672 = vld [vmem:[%s646 + $0x2c] sm:$0xf]
        %v1673 = vld [vmem:[%s646 + $0x30] sm:$0xf]
        %v1674 = vld [vmem:[%s646 + $0x34] sm:$0xf]
        %v1675 = vld [vmem:[%s646 + $0x38] sm:$0xf]
        %v1676 = vld [vmem:[%s646 + $0x3c] sm:$0xf]
        %v1693 = vunpack.c.l.b16 %v1661
        %v1694 = vunpack.c.l.b16 %v1662
        %v1695 = vunpack.c.l.b16 %v1663
        %v1696 = vunpack.c.l.b16 %v1664
        %v1697 = vunpack.c.l.b16 %v1665
        %v1698 = vunpack.c.l.b16 %v1666
        %v1699 = vunpack.c.l.b16 %v1667
        %v1700 = vunpack.c.l.b16 %v1668
        %v1701 = vunpack.c.l.b16 %v1669
        %v1702 = vunpack.c.l.b16 %v1670
        %v1703 = vunpack.c.l.b16 %v1671
        %v1704 = vunpack.c.l.b16 %v1672
        %v1705 = vunpack.c.l.b16 %v1673
        %v1706 = vunpack.c.l.b16 %v1674
        %v1707 = vunpack.c.l.b16 %v1675
        %v1708 = vunpack.c.l.b16 %v1676
        %v1709 = vpack.c.b16 %v1694, %v1693
        %v1710 = vpack.c.b16 %v1696, %v1695
        %v1711 = vpack.c.b16 %v1698, %v1697
        %v1712 = vpack.c.b16 %v1700, %v1699
        %v1713 = vpack.c.b16 %v1702, %v1701
        %v1714 = vpack.c.b16 %v1704, %v1703
        %v1715 = vpack.c.b16 %v1706, %v1705
        %v1716 = vpack.c.b16 %v1708, %v1707
        %1725 = vmatprep.subr.bf16.mxu0 0
        %1726 = vmatpush1.bf16.msra.mxu0 %v1205
        %1727 = vmatprep.subr.bf16.mxu0 0
        %1728 = vmatpush1.bf16.msra.mxu0 %v1208
        %1729 = vmatprep.subr.bf16.mxu0 0
        %1730 = vmatpush1.bf16.msra.mxu0 %v1211
        %1731 = vmatprep.subr.bf16.mxu0 0
        %1732 = vmatpush1.bf16.msra.mxu0 %v1214
        %1733 = vmatprep.subr.bf16.mxu0 0
        %1734 = vmatpush1.bf16.msra.mxu0 %v1217
        %1735 = vmatprep.subr.bf16.mxu0 0
        %1736 = vmatpush1.bf16.msra.mxu0 %v1220
        %1737 = vmatprep.subr.bf16.mxu0 0
        %1738 = vmatpush1.bf16.msra.mxu0 %v1223
        %1739 = vmatprep.subr.bf16.mxu0 0
        %1740 = vmatpush1.bf16.msra.mxu0 %v1226
        %1741 = vmatprep.subr.bf16.mxu0 0
        %1742 = vmatpush1.bf16.msra.mxu0 0
        %1743 = vmatprep.subr.bf16.mxu0 0
        %1744 = vmatpush1.bf16.msra.mxu0 0
        %1745 = vmatprep.subr.bf16.mxu0 0
        %1746 = vmatpush1.bf16.msra.mxu0 0
        %1747 = vmatprep.subr.bf16.mxu0 0
        %1748 = vmatpush1.bf16.msra.mxu0 0
        %1749 = vmatprep.subr.bf16.mxu0 0
        %1750 = vmatpush1.bf16.msra.mxu0 0
        %1751 = vmatprep.subr.bf16.mxu0 0
        %1752 = vmatpush1.bf16.msra.mxu0 0
        %1753 = vmatprep.subr.bf16.mxu0 0
        %1754 = vmatpush1.bf16.msra.mxu0 0
        %1755 = vmatprep.subr.bf16.mxu0 0
        %1756 = vmatpush1.bf16.msra.mxu0 0
        %1757 = vmatprep.mubr.bf16.mxu0 0
        %1758 = vmatmul.mubr.bf16.gmra.mrb[0].mxu0 %v1709
        %v1759 = vpop.f32.mrb[0].mxu0
        %v1760 = vadd.f32 0.0, %v1759
        %v1761 = vpop.f32.mrb[0].mxu0
        %v1762 = vpop.f32.mrb[0].mxu0
        %v1763 = vadd.f32 0.0, %v1762
        %v1764 = vpop.f32.mrb[0].mxu0
        %1765 = vmatprep.mubr.bf16.mxu0 0
        %1766 = vmatmul.mubr.bf16.gmra.mrb[0].mxu0 %v1710
        %v1767 = vpop.f32.mrb[0].mxu0
        %v1768 = vadd.f32 0.0, %v1767
        %v1769 = vpop.f32.mrb[0].mxu0
        %v1770 = vpop.f32.mrb[0].mxu0
        %v1771 = vadd.f32 0.0, %v1770
        %v1772 = vpop.f32.mrb[0].mxu0
        %1773 = vmatprep.mubr.bf16.mxu0 0
        %1774 = vmatmul.mubr.bf16.gmra.mrb[0].mxu0 %v1711
        %v1775 = vpop.f32.mrb[0].mxu0
        %v1776 = vadd.f32 0.0, %v1775
        %v1777 = vpop.f32.mrb[0].mxu0
        %v1778 = vpop.f32.mrb[0].mxu0
        %v1779 = vadd.f32 0.0, %v1778
        %v1780 = vpop.f32.mrb[0].mxu0
        %1781 = vmatprep.mubr.bf16.mxu0 0
        %1782 = vmatmul.mubr.bf16.gmra.mrb[0].mxu0 %v1712
        %v1783 = vpop.f32.mrb[0].mxu0
        %v1784 = vadd.f32 0.0, %v1783
        %v1785 = vpop.f32.mrb[0].mxu0
        %v1786 = vpop.f32.mrb[0].mxu0
        %v1787 = vadd.f32 0.0, %v1786
        %v1788 = vpop.f32.mrb[0].mxu0
        %1789 = vmatprep.mubr.bf16.mxu0 0
        %1790 = vmatmul.mubr.bf16.gmra.mrb[0].mxu0 %v1713
        %v1791 = vpop.f32.mrb[0].mxu0
        %v1792 = vadd.f32 0.0, %v1791
        %v1793 = vpop.f32.mrb[0].mxu0
        %v1794 = vpop.f32.mrb[0].mxu0
        %v1795 = vadd.f32 0.0, %v1794
        %v1796 = vpop.f32.mrb[0].mxu0
        %1797 = vmatprep.mubr.bf16.mxu0 0
        %1798 = vmatmul.mubr.bf16.gmra.mrb[0].mxu0 %v1714
        %v1799 = vpop.f32.mrb[0].mxu0
        %v1800 = vadd.f32 0.0, %v1799
        %v1801 = vpop.f32.mrb[0].mxu0
        %v1802 = vpop.f32.mrb[0].mxu0
        %v1803 = vadd.f32 0.0, %v1802
        %v1804 = vpop.f32.mrb[0].mxu0
        %1805 = vmatprep.mubr.bf16.mxu0 0
        %1806 = vmatmul.mubr.bf16.gmra.mrb[0].mxu0 %v1715
        %v1807 = vpop.f32.mrb[0].mxu0
        %v1808 = vadd.f32 0.0, %v1807
        %v1809 = vpop.f32.mrb[0].mxu0
        %v1810 = vpop.f32.mrb[0].mxu0
        %v1811 = vadd.f32 0.0, %v1810
        %v1812 = vpop.f32.mrb[0].mxu0
        %1813 = vmatprep.mubr.bf16.mxu0 0
        %1814 = vmatmul.mubr.bf16.gmra.mrb[0].mxu0 %v1716
        %v1815 = vpop.f32.mrb[0].mxu0
        %v1816 = vadd.f32 0.0, %v1815
        %v1817 = vpop.f32.mrb[0].mxu0
        %v1818 = vpop.f32.mrb[0].mxu0
        %v1819 = vadd.f32 0.0, %v1818
        %v1820 = vpop.f32.mrb[0].mxu0
        %1821 = vdwg.mxu0
        %v1822 = vadd.f32 %v1645, %v1760
        %v1823 = vadd.f32 %v1646, %v1763
        %v1824 = vadd.f32 %v1647, %v1768
        %v1825 = vadd.f32 %v1648, %v1771
        %v1826 = vadd.f32 %v1649, %v1776
        %v1827 = vadd.f32 %v1650, %v1779
        %v1828 = vadd.f32 %v1651, %v1784
        %v1829 = vadd.f32 %v1652, %v1787
        %v1830 = vadd.f32 %v1653, %v1792
        %v1831 = vadd.f32 %v1654, %v1795
        %v1832 = vadd.f32 %v1655, %v1800
        %v1833 = vadd.f32 %v1656, %v1803
        %v1834 = vadd.f32 %v1657, %v1808
        %v1835 = vadd.f32 %v1658, %v1811
        %v1836 = vadd.f32 %v1659, %v1816
        %v1837 = vadd.f32 %v1660, %v1819
        %1838 = vst [vmem:[#allocation4] sm:$0xff] %v1822
        %1839 = vst [vmem:[#allocation4 + $0x8] sm:$0xff] %v1823
        %1840 = vst [vmem:[#allocation4 + $0x10] sm:$0xff] %v1824
        %1841 = vst [vmem:[#allocation4 + $0x18] sm:$0xff] %v1825
        %1842 = vst [vmem:[#allocation4 + $0x20] sm:$0xff] %v1826
        %1843 = vst [vmem:[#allocation4 + $0x28] sm:$0xff] %v1827
        %1844 = vst [vmem:[#allocation4 + $0x30] sm:$0xff] %v1828
        %1845 = vst [vmem:[#allocation4 + $0x38] sm:$0xff] %v1829
        %1846 = vst [vmem:[#allocation4 + $0x40] sm:$0xff] %v1830
        %1847 = vst [vmem:[#allocation4 + $0x48] sm:$0xff] %v1831
        %1848 = vst [vmem:[#allocation4 + $0x50] sm:$0xff] %v1832
        %1849 = vst [vmem:[#allocation4 + $0x58] sm:$0xff] %v1833
        %1850 = vst [vmem:[#allocation4 + $0x60] sm:$0xff] %v1834
        %1851 = vst [vmem:[#allocation4 + $0x68] sm:$0xff] %v1835
        %1852 = vst [vmem:[#allocation4 + $0x70] sm:$0xff] %v1836
        %1853 = vst [vmem:[#allocation4 + $0x78] sm:$0xff] %v1837
        %p1854 = scmp.eq.s32.totalorder %s25, 1
        // Predicated region
        $region176: #{forward.7} parent=158 // pred_check
          %p1855 = pneg %p1854
        $region177: #{forward.7} parent=158 // pred_check_branch
          %1857 = sbr.rel (%p1855) target = $region179
        $region178: #{forward.7} parent=158 // pred_region
          %v1858 = vld [vmem:[#allocation2] sm:$0xff]
          %v1859 = vld [vmem:[#allocation2 + $0x8] sm:$0xff]
          %v1860 = vld [vmem:[#allocation2 + $0x10] sm:$0xff]
          %v1861 = vld [vmem:[#allocation2 + $0x18] sm:$0xff]
          %v1862 = vld [vmem:[#allocation2 + $0x20] sm:$0xff]
          %v1863 = vld [vmem:[#allocation2 + $0x28] sm:$0xff]
          %v1864 = vld [vmem:[#allocation2 + $0x30] sm:$0xff]
          %v1865 = vld [vmem:[#allocation2 + $0x38] sm:$0xff]
          %v1866 = vld [vmem:[#allocation2 + $0x40] sm:$0xff]
          %v1867 = vld [vmem:[#allocation2 + $0x48] sm:$0xff]
          %v1868 = vld [vmem:[#allocation2 + $0x50] sm:$0xff]
          %v1869 = vld [vmem:[#allocation2 + $0x58] sm:$0xff]
          %v1870 = vld [vmem:[#allocation2 + $0x60] sm:$0xff]
          %v1871 = vld [vmem:[#allocation2 + $0x68] sm:$0xff]
          %v1872 = vld [vmem:[#allocation2 + $0x70] sm:$0xff]
          %v1873 = vld [vmem:[#allocation2 + $0x78] sm:$0xff]
          %v1874 = vmax.f32 %v1858, 0.0
          %v1875 = vmax.f32 %v1859, 0.0
          %v1876 = vmax.f32 %v1860, 0.0
          %v1877 = vmax.f32 %v1861, 0.0
          %v1878 = vmax.f32 %v1862, 0.0
          %v1879 = vmax.f32 %v1863, 0.0
          %v1880 = vmax.f32 %v1864, 0.0
          %v1881 = vmax.f32 %v1865, 0.0
          %v1882 = vmax.f32 %v1866, 0.0
          %v1883 = vmax.f32 %v1867, 0.0
          %v1884 = vmax.f32 %v1868, 0.0
          %v1885 = vmax.f32 %v1869, 0.0
          %v1886 = vmax.f32 %v1870, 0.0
          %v1887 = vmax.f32 %v1871, 0.0
          %v1888 = vmax.f32 %v1872, 0.0
          %v1889 = vmax.f32 %v1873, 0.0
          %v1890 = vld [vmem:[#allocation3] sm:$0xff]
          %v1891 = vld [vmem:[#allocation3 + $0x8] sm:$0xff]
          %v1892 = vld [vmem:[#allocation3 + $0x10] sm:$0xff]
          %v1893 = vld [vmem:[#allocation3 + $0x18] sm:$0xff]
          %v1894 = vld [vmem:[#allocation3 + $0x20] sm:$0xff]
          %v1895 = vld [vmem:[#allocation3 + $0x28] sm:$0xff]
          %v1896 = vld [vmem:[#allocation3 + $0x30] sm:$0xff]
          %v1897 = vld [vmem:[#allocation3 + $0x38] sm:$0xff]
          %v1898 = vld [vmem:[#allocation3 + $0x40] sm:$0xff]
          %v1899 = vld [vmem:[#allocation3 + $0x48] sm:$0xff]
          %v1900 = vld [vmem:[#allocation3 + $0x50] sm:$0xff]
          %v1901 = vld [vmem:[#allocation3 + $0x58] sm:$0xff]
          %v1902 = vld [vmem:[#allocation3 + $0x60] sm:$0xff]
          %v1903 = vld [vmem:[#allocation3 + $0x68] sm:$0xff]
          %v1904 = vld [vmem:[#allocation3 + $0x70] sm:$0xff]
          %v1905 = vld [vmem:[#allocation3 + $0x78] sm:$0xff]
          %v1906 = vmax.f32 %v1890, 0.0
          %v1907 = vmax.f32 %v1891, 0.0
          %v1908 = vmax.f32 %v1892, 0.0
          %v1909 = vmax.f32 %v1893, 0.0
          %v1910 = vmax.f32 %v1894, 0.0
          %v1911 = vmax.f32 %v1895, 0.0
          %v1912 = vmax.f32 %v1896, 0.0
          %v1913 = vmax.f32 %v1897, 0.0
          %v1914 = vmax.f32 %v1898, 0.0
          %v1915 = vmax.f32 %v1899, 0.0
          %v1916 = vmax.f32 %v1900, 0.0
          %v1917 = vmax.f32 %v1901, 0.0
          %v1918 = vmax.f32 %v1902, 0.0
          %v1919 = vmax.f32 %v1903, 0.0
          %v1920 = vmax.f32 %v1904, 0.0
          %v1921 = vmax.f32 %v1905, 0.0
          %v1922 = vadd.f32 %v1874, %v1906
          %v1923 = vadd.f32 %v1875, %v1907
          %v1924 = vadd.f32 %v1876, %v1908
          %v1925 = vadd.f32 %v1877, %v1909
          %v1926 = vadd.f32 %v1878, %v1910
          %v1927 = vadd.f32 %v1879, %v1911
          %v1928 = vadd.f32 %v1880, %v1912
          %v1929 = vadd.f32 %v1881, %v1913
          %v1930 = vadd.f32 %v1882, %v1914
          %v1931 = vadd.f32 %v1883, %v1915
          %v1932 = vadd.f32 %v1884, %v1916
          %v1933 = vadd.f32 %v1885, %v1917
          %v1934 = vadd.f32 %v1886, %v1918
          %v1935 = vadd.f32 %v1887, %v1919
          %v1936 = vadd.f32 %v1888, %v1920
          %v1937 = vadd.f32 %v1889, %v1921
          %v1938 = vld [vmem:[#allocation4] sm:$0xff]
          %v1939 = vld [vmem:[#allocation4 + $0x8] sm:$0xff]
          %v1940 = vld [vmem:[#allocation4 + $0x10] sm:$0xff]
          %v1941 = vld [vmem:[#allocation4 + $0x18] sm:$0xff]
          %v1942 = vld [vmem:[#allocation4 + $0x20] sm:$0xff]
          %v1943 = vld [vmem:[#allocation4 + $0x28] sm:$0xff]
          %v1944 = vld [vmem:[#allocation4 + $0x30] sm:$0xff]
          %v1945 = vld [vmem:[#allocation4 + $0x38] sm:$0xff]
          %v1946 = vld [vmem:[#allocation4 + $0x40] sm:$0xff]
          %v1947 = vld [vmem:[#allocation4 + $0x48] sm:$0xff]
          %v1948 = vld [vmem:[#allocation4 + $0x50] sm:$0xff]
          %v1949 = vld [vmem:[#allocation4 + $0x58] sm:$0xff]
          %v1950 = vld [vmem:[#allocation4 + $0x60] sm:$0xff]
          %v1951 = vld [vmem:[#allocation4 + $0x68] sm:$0xff]
          %v1952 = vld [vmem:[#allocation4 + $0x70] sm:$0xff]
          %v1953 = vld [vmem:[#allocation4 + $0x78] sm:$0xff]
          %v1954 = vmax.f32 %v1938, 0.0
          %v1955 = vmax.f32 %v1939, 0.0
          %v1956 = vmax.f32 %v1940, 0.0
          %v1957 = vmax.f32 %v1941, 0.0
          %v1958 = vmax.f32 %v1942, 0.0
          %v1959 = vmax.f32 %v1943, 0.0
          %v1960 = vmax.f32 %v1944, 0.0
          %v1961 = vmax.f32 %v1945, 0.0
          %v1962 = vmax.f32 %v1946, 0.0
          %v1963 = vmax.f32 %v1947, 0.0
          %v1964 = vmax.f32 %v1948, 0.0
          %v1965 = vmax.f32 %v1949, 0.0
          %v1966 = vmax.f32 %v1950, 0.0
          %v1967 = vmax.f32 %v1951, 0.0
          %v1968 = vmax.f32 %v1952, 0.0
          %v1969 = vmax.f32 %v1953, 0.0
          %v1970 = vadd.f32 %v1922, %v1954
          %v1971 = vadd.f32 %v1923, %v1955
          %v1972 = vadd.f32 %v1924, %v1956
          %v1973 = vadd.f32 %v1925, %v1957
          %v1974 = vadd.f32 %v1926, %v1958
          %v1975 = vadd.f32 %v1927, %v1959
          %v1976 = vadd.f32 %v1928, %v1960
          %v1977 = vadd.f32 %v1929, %v1961
          %v1978 = vadd.f32 %v1930, %v1962
          %v1979 = vadd.f32 %v1931, %v1963
          %v1980 = vadd.f32 %v1932, %v1964
          %v1981 = vadd.f32 %v1933, %v1965
          %v1982 = vadd.f32 %v1934, %v1966
          %v1983 = vadd.f32 %v1935, %v1967
          %v1984 = vadd.f32 %v1936, %v1968
          %v1985 = vadd.f32 %v1937, %v1969
          %v1986 = vmul.f32 %v1970, 0.33333334
          %v1987 = vmul.f32 %v1971, 0.33333334
          %v1988 = vmul.f32 %v1972, 0.33333334
          %v1989 = vmul.f32 %v1973, 0.33333334
          %v1990 = vmul.f32 %v1974, 0.33333334
          %v1991 = vmul.f32 %v1975, 0.33333334
          %v1992 = vmul.f32 %v1976, 0.33333334
          %v1993 = vmul.f32 %v1977, 0.33333334
          %v1994 = vmul.f32 %v1978, 0.33333334
          %v1995 = vmul.f32 %v1979, 0.33333334
          %v1996 = vmul.f32 %v1980, 0.33333334
          %v1997 = vmul.f32 %v1981, 0.33333334
          %v1998 = vmul.f32 %v1982, 0.33333334
          %v1999 = vmul.f32 %v1983, 0.33333334
          %v2000 = vmul.f32 %v1984, 0.33333334
          %v2001 = vmul.f32 %v1985, 0.33333334
          %2002 = vst [vmem:[%s708] sm:$0xff] %v1986
          %2003 = vst [vmem:[%s708 + $0x8] sm:$0xff] %v1987
          %2004 = vst [vmem:[%s708 + $0x10] sm:$0xff] %v1988
          %2005 = vst [vmem:[%s708 + $0x18] sm:$0xff] %v1989
          %2006 = vst [vmem:[%s708 + $0x20] sm:$0xff] %v1990
          %2007 = vst [vmem:[%s708 + $0x28] sm:$0xff] %v1991
          %2008 = vst [vmem:[%s708 + $0x30] sm:$0xff] %v1992
          %2009 = vst [vmem:[%s708 + $0x38] sm:$0xff] %v1993
          %2010 = vst [vmem:[%s708 + $0x40] sm:$0xff] %v1994
          %2011 = vst [vmem:[%s708 + $0x48] sm:$0xff] %v1995
          %2012 = vst [vmem:[%s708 + $0x50] sm:$0xff] %v1996
          %2013 = vst [vmem:[%s708 + $0x58] sm:$0xff] %v1997
          %2014 = vst [vmem:[%s708 + $0x60] sm:$0xff] %v1998
          %2015 = vst [vmem:[%s708 + $0x68] sm:$0xff] %v1999
          %2016 = vst [vmem:[%s708 + $0x70] sm:$0xff] %v2000
          %2017 = vst [vmem:[%s708 + $0x78] sm:$0xff] %v2001
          %v2018 = vld [vmem:[%s2] sm:$0xff]
          %v2019 = vld [vmem:[%s2 + $0x8] sm:$0xff]
          %v2020 = vld [vmem:[%s2 + $0x10] sm:$0xff]
          %v2021 = vld [vmem:[%s2 + $0x18] sm:$0xff]
          %v2022 = vld [vmem:[%s2 + $0x20] sm:$0xff]
          %v2023 = vld [vmem:[%s2 + $0x28] sm:$0xff]
          %v2024 = vld [vmem:[%s2 + $0x30] sm:$0xff]
          %v2025 = vld [vmem:[%s2 + $0x38] sm:$0xff]
          %v2026 = vld [vmem:[%s2 + $0x40] sm:$0xff]
          %v2027 = vld [vmem:[%s2 + $0x48] sm:$0xff]
          %v2028 = vld [vmem:[%s2 + $0x50] sm:$0xff]
          %v2029 = vld [vmem:[%s2 + $0x58] sm:$0xff]
          %v2030 = vld [vmem:[%s2 + $0x60] sm:$0xff]
          %v2031 = vld [vmem:[%s2 + $0x68] sm:$0xff]
          %v2032 = vld [vmem:[%s2 + $0x70] sm:$0xff]
          %v2033 = vld [vmem:[%s2 + $0x78] sm:$0xff]
          %2034 = vmatprep.subr.mxu0 0.0
          %2035 = vmatpush1.msra.mxu0 %v2018
          %2036 = vmatprep.subr.mxu0 0.0
          %2037 = vmatpush1.msra.mxu0 %v2019
          %2038 = vmatprep.subr.mxu0 0.0
          %2039 = vmatpush1.msra.mxu0 %v2020
          %2040 = vmatprep.subr.mxu0 0.0
          %2041 = vmatpush1.msra.mxu0 %v2021
          %2042 = vmatprep.subr.mxu0 0.0
          %2043 = vmatpush1.msra.mxu0 %v2022
          %2044 = vmatprep.subr.mxu0 0.0
          %2045 = vmatpush1.msra.mxu0 %v2023
          %2046 = vmatprep.subr.mxu0 0.0
          %2047 = vmatpush1.msra.mxu0 %v2024
          %2048 = vmatprep.subr.mxu0 0.0
          %2049 = vmatpush1.msra.mxu0 %v2025
          %2050 = vmatprep.subr.mxu0 0.0
          %2051 = vmatpush1.msra.mxu0 %v2026
          %2052 = vmatprep.subr.mxu0 0.0
          %2053 = vmatpush1.msra.mxu0 %v2027
          %2054 = vmatprep.subr.mxu0 0.0
          %2055 = vmatpush1.msra.mxu0 %v2028
          %2056 = vmatprep.subr.mxu0 0.0
          %2057 = vmatpush1.msra.mxu0 %v2029
          %2058 = vmatprep.subr.mxu0 0.0
          %2059 = vmatpush1.msra.mxu0 %v2030
          %2060 = vmatprep.subr.mxu0 0.0
          %2061 = vmatpush1.msra.mxu0 %v2031
          %2062 = vmatprep.subr.mxu0 0.0
          %2063 = vmatpush1.msra.mxu0 %v2032
          %2064 = vmatprep.subr.mxu0 0.0
          %2065 = vmatpush1.msra.mxu0 %v2033
          %2066 = vmatprep.subr.mxu0 0.0
          %2067 = vmatpush1.msra.mxu0 0.0
          %2068 = vmatprep.subr.mxu0 0.0
          %2069 = vmatpush1.msra.mxu0 0.0
          %2070 = vmatprep.subr.mxu0 0.0
          %2071 = vmatpush1.msra.mxu0 0.0
          %2072 = vmatprep.subr.mxu0 0.0
          %2073 = vmatpush1.msra.mxu0 0.0
          %2074 = vmatprep.subr.mxu0 0.0
          %2075 = vmatpush1.msra.mxu0 0.0
          %2076 = vmatprep.subr.mxu0 0.0
          %2077 = vmatpush1.msra.mxu0 0.0
          %2078 = vmatprep.subr.mxu0 0.0
          %2079 = vmatpush1.msra.mxu0 0.0
          %2080 = vmatprep.subr.mxu0 0.0
          %2081 = vmatpush1.msra.mxu0 0.0
          %2082 = vmatprep.subr.mxu0 0.0
          %2083 = vmatpush1.msra.mxu0 0.0
          %2084 = vmatprep.subr.mxu0 0.0
          %2085 = vmatpush1.msra.mxu0 0.0
          %2086 = vmatprep.subr.mxu0 0.0
          %2087 = vmatpush1.msra.mxu0 0.0
          %2088 = vmatprep.subr.mxu0 0.0
          %2089 = vmatpush1.msra.mxu0 0.0
          %2090 = vmatprep.subr.mxu0 0.0
          %2091 = vmatpush1.msra.mxu0 0.0
          %2092 = vmatprep.subr.mxu0 0.0
          %2093 = vmatpush1.msra.mxu0 0.0
          %2094 = vmatprep.subr.mxu0 0.0
          %2095 = vmatpush1.msra.mxu0 0.0
          %2096 = vmatprep.subr.mxu0 0.0
          %2097 = vmatpush1.msra.mxu0 0.0
          %2098 = vmatprep.mubr.f32.mxu0 0.0
          %2099 = vmatmul.mubr.f32.gmra.mrb[0].mxu0 %v1986
          %v2100 = vpop.f32.mrb[0].mxu0
          %v2101 = vadd.f32 0.0, %v2100
          %v2102 = vpop.f32.mrb[0].mxu0
          %2103 = vmatprep.mubr.f32.mxu0 0.0
          %2104 = vmatmul.mubr.f32.gmra.mrb[0].mxu0 %v1987
          %v2105 = vpop.f32.mrb[0].mxu0
          %v2106 = vadd.f32 0.0, %v2105
          %v2107 = vpop.f32.mrb[0].mxu0
          %2108 = vmatprep.mubr.f32.mxu0 0.0
          %2109 = vmatmul.mubr.f32.gmra.mrb[0].mxu0 %v1988
          %v2110 = vpop.f32.mrb[0].mxu0
          %v2111 = vadd.f32 0.0, %v2110
          %v2112 = vpop.f32.mrb[0].mxu0
          %2113 = vmatprep.mubr.f32.mxu0 0.0
          %2114 = vmatmul.mubr.f32.gmra.mrb[0].mxu0 %v1989
          %v2115 = vpop.f32.mrb[0].mxu0
          %v2116 = vadd.f32 0.0, %v2115
          %v2117 = vpop.f32.mrb[0].mxu0
          %2118 = vmatprep.mubr.f32.mxu0 0.0
          %2119 = vmatmul.mubr.f32.gmra.mrb[0].mxu0 %v1990
          %v2120 = vpop.f32.mrb[0].mxu0
          %v2121 = vadd.f32 0.0, %v2120
          %v2122 = vpop.f32.mrb[0].mxu0
          %2123 = vmatprep.mubr.f32.mxu0 0.0
          %2124 = vmatmul.mubr.f32.gmra.mrb[0].mxu0 %v1991
          %v2125 = vpop.f32.mrb[0].mxu0
          %v2126 = vadd.f32 0.0, %v2125
          %v2127 = vpop.f32.mrb[0].mxu0
          %2128 = vmatprep.mubr.f32.mxu0 0.0
          %2129 = vmatmul.mubr.f32.gmra.mrb[0].mxu0 %v1992
          %v2130 = vpop.f32.mrb[0].mxu0
          %v2131 = vadd.f32 0.0, %v2130
          %v2132 = vpop.f32.mrb[0].mxu0
          %2133 = vmatprep.mubr.f32.mxu0 0.0
          %2134 = vmatmul.mubr.f32.gmra.mrb[0].mxu0 %v1993
          %v2135 = vpop.f32.mrb[0].mxu0
          %v2136 = vadd.f32 0.0, %v2135
          %v2137 = vpop.f32.mrb[0].mxu0
          %2138 = vmatprep.mubr.f32.mxu0 0.0
          %2139 = vmatmul.mubr.f32.gmra.mrb[0].mxu0 %v1994
          %v2140 = vpop.f32.mrb[0].mxu0
          %v2141 = vadd.f32 0.0, %v2140
          %v2142 = vpop.f32.mrb[0].mxu0
          %2143 = vmatprep.mubr.f32.mxu0 0.0
          %2144 = vmatmul.mubr.f32.gmra.mrb[0].mxu0 %v1995
          %v2145 = vpop.f32.mrb[0].mxu0
          %v2146 = vadd.f32 0.0, %v2145
          %v2147 = vpop.f32.mrb[0].mxu0
          %2148 = vmatprep.mubr.f32.mxu0 0.0
          %2149 = vmatmul.mubr.f32.gmra.mrb[0].mxu0 %v1996
          %v2150 = vpop.f32.mrb[0].mxu0
          %v2151 = vadd.f32 0.0, %v2150
          %v2152 = vpop.f32.mrb[0].mxu0
          %2153 = vmatprep.mubr.f32.mxu0 0.0
          %2154 = vmatmul.mubr.f32.gmra.mrb[0].mxu0 %v1997
          %v2155 = vpop.f32.mrb[0].mxu0
          %v2156 = vadd.f32 0.0, %v2155
          %v2157 = vpop.f32.mrb[0].mxu0
          %2158 = vmatprep.mubr.f32.mxu0 0.0
          %2159 = vmatmul.mubr.f32.gmra.mrb[0].mxu0 %v1998
          %v2160 = vpop.f32.mrb[0].mxu0
          %v2161 = vadd.f32 0.0, %v2160
          %v2162 = vpop.f32.mrb[0].mxu0
          %2163 = vmatprep.mubr.f32.mxu0 0.0
          %2164 = vmatmul.mubr.f32.gmra.mrb[0].mxu0 %v1999
          %v2165 = vpop.f32.mrb[0].mxu0
          %v2166 = vadd.f32 0.0, %v2165
          %v2167 = vpop.f32.mrb[0].mxu0
          %2168 = vmatprep.mubr.f32.mxu0 0.0
          %2169 = vmatmul.mubr.f32.gmra.mrb[0].mxu0 %v2000
          %v2170 = vpop.f32.mrb[0].mxu0
          %v2171 = vadd.f32 0.0, %v2170
          %v2172 = vpop.f32.mrb[0].mxu0
          %2173 = vmatprep.mubr.f32.mxu0 0.0
          %2174 = vmatmul.mubr.f32.gmra.mrb[0].mxu0 %v2001
          %v2175 = vpop.f32.mrb[0].mxu0
          %v2176 = vadd.f32 0.0, %v2175
          %v2177 = vpop.f32.mrb[0].mxu0
          %2178 = vdwg.mxu0
          %v2179 = vmul.f32 %v1986, %v1986
          %v2180 = vmul.f32 %v1987, %v1987
          %v2181 = vmul.f32 %v1988, %v1988
          %v2182 = vmul.f32 %v1989, %v1989
          %v2183 = vmul.f32 %v1990, %v1990
          %v2184 = vmul.f32 %v1991, %v1991
          %v2185 = vmul.f32 %v1992, %v1992
          %v2186 = vmul.f32 %v1993, %v1993
          %v2187 = vmul.f32 %v1994, %v1994
          %v2188 = vmul.f32 %v1995, %v1995
          %v2189 = vmul.f32 %v1996, %v1996
          %v2190 = vmul.f32 %v1997, %v1997
          %v2191 = vmul.f32 %v1998, %v1998
          %v2192 = vmul.f32 %v1999, %v1999
          %v2193 = vmul.f32 %v2000, %v2000
          %v2194 = vmul.f32 %v2001, %v2001
          %2195 = vadd.xlane.f32.xlu0 %v2179
          %v2196 = vpop.xlane.xlu0 %2195
          %2197 = vadd.xlane.f32.xlu0 %v2180
          %v2198 = vpop.xlane.xlu0 %2197
          %2199 = vadd.xlane.f32.xlu0 %v2181
          %v2200 = vpop.xlane.xlu0 %2199
          %2201 = vadd.xlane.f32.xlu0 %v2182
          %v2202 = vpop.xlane.xlu0 %2201
          %2203 = vadd.xlane.f32.xlu0 %v2183
          %v2204 = vpop.xlane.xlu0 %2203
          %2205 = vadd.xlane.f32.xlu0 %v2184
          %v2206 = vpop.xlane.xlu0 %2205
          %2207 = vadd.xlane.f32.xlu0 %v2185
          %v2208 = vpop.xlane.xlu0 %2207
          %2209 = vadd.xlane.f32.xlu0 %v2186
          %v2210 = vpop.xlane.xlu0 %2209
          %2211 = vadd.xlane.f32.xlu0 %v2187
          %v2212 = vpop.xlane.xlu0 %2211
          %2213 = vadd.xlane.f32.xlu0 %v2188
          %v2214 = vpop.xlane.xlu0 %2213
          %2215 = vadd.xlane.f32.xlu0 %v2189
          %v2216 = vpop.xlane.xlu0 %2215
          %2217 = vadd.xlane.f32.xlu0 %v2190
          %v2218 = vpop.xlane.xlu0 %2217
          %2219 = vadd.xlane.f32.xlu0 %v2191
          %v2220 = vpop.xlane.xlu0 %2219
          %2221 = vadd.xlane.f32.xlu0 %v2192
          %v2222 = vpop.xlane.xlu0 %2221
          %2223 = vadd.xlane.f32.xlu0 %v2193
          %v2224 = vpop.xlane.xlu0 %2223
          %2225 = vadd.xlane.f32.xlu0 %v2194
          %v2226 = vpop.xlane.xlu0 %2225
          %v2227 = vld [vmem:[%s3] sm:$0x1]
          %v2229 = vlaneseq
          %v2230 = vshrl.u32 %v2229, 7
          %v2231 = vsub.s32 0, %v2230
          %v2232 = vrot.slane %v2227, %v2231
          %v2234 = vadd.f32 %v2196, %v2232
          %v2235 = vadd.f32 %v2198, %v2232
          %v2236 = vadd.f32 %v2200, %v2232
          %v2237 = vadd.f32 %v2202, %v2232
          %v2238 = vadd.f32 %v2204, %v2232
          %v2239 = vadd.f32 %v2206, %v2232
          %v2240 = vadd.f32 %v2208, %v2232
          %v2241 = vadd.f32 %v2210, %v2232
          %v2242 = vadd.f32 %v2212, %v2232
          %v2243 = vadd.f32 %v2214, %v2232
          %v2244 = vadd.f32 %v2216, %v2232
          %v2245 = vadd.f32 %v2218, %v2232
          %v2246 = vadd.f32 %v2220, %v2232
          %v2247 = vadd.f32 %v2222, %v2232
          %v2248 = vadd.f32 %v2224, %v2232
          %v2249 = vadd.f32 %v2226, %v2232
          %v2250 = vmul.f32 %v2101, 2.0
          %v2251 = vmul.f32 %v2106, 2.0
          %v2252 = vmul.f32 %v2111, 2.0
          %v2253 = vmul.f32 %v2116, 2.0
          %v2254 = vmul.f32 %v2121, 2.0
          %v2255 = vmul.f32 %v2126, 2.0
          %v2256 = vmul.f32 %v2131, 2.0
          %v2257 = vmul.f32 %v2136, 2.0
          %v2258 = vmul.f32 %v2141, 2.0
          %v2259 = vmul.f32 %v2146, 2.0
          %v2260 = vmul.f32 %v2151, 2.0
          %v2261 = vmul.f32 %v2156, 2.0
          %v2262 = vmul.f32 %v2161, 2.0
          %v2263 = vmul.f32 %v2166, 2.0
          %v2264 = vmul.f32 %v2171, 2.0
          %v2265 = vmul.f32 %v2176, 2.0
          %v2266 = vsub.f32 %v2234, %v2250
          %v2267 = vsub.f32 %v2235, %v2251
          %v2268 = vsub.f32 %v2236, %v2252
          %v2269 = vsub.f32 %v2237, %v2253
          %v2270 = vsub.f32 %v2238, %v2254
          %v2271 = vsub.f32 %v2239, %v2255
          %v2272 = vsub.f32 %v2240, %v2256
          %v2273 = vsub.f32 %v2241, %v2257
          %v2274 = vsub.f32 %v2242, %v2258
          %v2275 = vsub.f32 %v2243, %v2259
          %v2276 = vsub.f32 %v2244, %v2260
          %v2277 = vsub.f32 %v2245, %v2261
          %v2278 = vsub.f32 %v2246, %v2262
          %v2279 = vsub.f32 %v2247, %v2263
          %v2280 = vsub.f32 %v2248, %v2264
          %v2281 = vsub.f32 %v2249, %v2265
          %v2282 = vmax.f32 %v2266, 0.0
          %v2283 = vmax.f32 %v2267, 0.0
          %v2284 = vmax.f32 %v2268, 0.0
          %v2285 = vmax.f32 %v2269, 0.0
          %v2286 = vmax.f32 %v2270, 0.0
          %v2287 = vmax.f32 %v2271, 0.0
          %v2288 = vmax.f32 %v2272, 0.0
          %v2289 = vmax.f32 %v2273, 0.0
          %v2290 = vmax.f32 %v2274, 0.0
          %v2291 = vmax.f32 %v2275, 0.0
          %v2292 = vmax.f32 %v2276, 0.0
          %v2293 = vmax.f32 %v2277, 0.0
          %v2294 = vmax.f32 %v2278, 0.0
          %v2295 = vmax.f32 %v2279, 0.0
          %v2296 = vmax.f32 %v2280, 0.0
          %v2297 = vmax.f32 %v2281, 0.0
          %v2298 = vadd.f32 %v2282, 1.0
          %v2299 = vadd.f32 %v2283, 1.0
          %v2300 = vadd.f32 %v2284, 1.0
          %v2301 = vadd.f32 %v2285, 1.0
          %v2302 = vadd.f32 %v2286, 1.0
          %v2303 = vadd.f32 %v2287, 1.0
          %v2304 = vadd.f32 %v2288, 1.0
          %v2305 = vadd.f32 %v2289, 1.0
          %v2306 = vadd.f32 %v2290, 1.0
          %v2307 = vadd.f32 %v2291, 1.0
          %v2308 = vadd.f32 %v2292, 1.0
          %v2309 = vadd.f32 %v2293, 1.0
          %v2310 = vadd.f32 %v2294, 1.0
          %v2311 = vadd.f32 %v2295, 1.0
          %v2312 = vadd.f32 %v2296, 1.0
          %v2313 = vadd.f32 %v2297, 1.0
          %v2314 = vrcp.pop %v2298
          %v2315 = vmul.f32 1.0, %v2314
          %v2316 = vrcp.pop %v2299
          %v2317 = vmul.f32 1.0, %v2316
          %v2318 = vrcp.pop %v2300
          %v2319 = vmul.f32 1.0, %v2318
          %v2320 = vrcp.pop %v2301
          %v2321 = vmul.f32 1.0, %v2320
          %v2322 = vrcp.pop %v2302
          %v2323 = vmul.f32 1.0, %v2322
          %v2324 = vrcp.pop %v2303
          %v2325 = vmul.f32 1.0, %v2324
          %v2326 = vrcp.pop %v2304
          %v2327 = vmul.f32 1.0, %v2326
          %v2328 = vrcp.pop %v2305
          %v2329 = vmul.f32 1.0, %v2328
          %v2330 = vrcp.pop %v2306
          %v2331 = vmul.f32 1.0, %v2330
          %v2332 = vrcp.pop %v2307
          %v2333 = vmul.f32 1.0, %v2332
          %v2334 = vrcp.pop %v2308
          %v2335 = vmul.f32 1.0, %v2334
          %v2336 = vrcp.pop %v2309
          %v2337 = vmul.f32 1.0, %v2336
          %v2338 = vrcp.pop %v2310
          %v2339 = vmul.f32 1.0, %v2338
          %v2340 = vrcp.pop %v2311
          %v2341 = vmul.f32 1.0, %v2340
          %v2342 = vrcp.pop %v2312
          %v2343 = vmul.f32 1.0, %v2342
          %v2344 = vrcp.pop %v2313
          %v2345 = vmul.f32 1.0, %v2344
          %v2346 = vlaneseq
          %v2347 = vand.u32 %v2346, 127
          %vm2348 = vcmp.lt.s32.totalorder %v2347, 4
          %v2349 = vsel %vm2348, %v2315, 0.0
          %v2350 = vsel %vm2348, %v2317, 0.0
          %v2351 = vsel %vm2348, %v2319, 0.0
          %v2352 = vsel %vm2348, %v2321, 0.0
          %v2353 = vsel %vm2348, %v2323, 0.0
          %v2354 = vsel %vm2348, %v2325, 0.0
          %v2355 = vsel %vm2348, %v2327, 0.0
          %v2356 = vsel %vm2348, %v2329, 0.0
          %v2357 = vsel %vm2348, %v2331, 0.0
          %v2358 = vsel %vm2348, %v2333, 0.0
          %v2359 = vsel %vm2348, %v2335, 0.0
          %v2360 = vsel %vm2348, %v2337, 0.0
          %v2361 = vsel %vm2348, %v2339, 0.0
          %v2362 = vsel %vm2348, %v2341, 0.0
          %v2363 = vsel %vm2348, %v2343, 0.0
          %v2364 = vsel %vm2348, %v2345, 0.0
          %2365 = vadd.xlane.f32.xlu0 %v2349
          %v2366 = vpop.xlane.xlu0 %2365
          %2367 = vadd.xlane.f32.xlu0 %v2350
          %v2368 = vpop.xlane.xlu0 %2367
          %2369 = vadd.xlane.f32.xlu0 %v2351
          %v2370 = vpop.xlane.xlu0 %2369
          %2371 = vadd.xlane.f32.xlu0 %v2352
          %v2372 = vpop.xlane.xlu0 %2371
          %2373 = vadd.xlane.f32.xlu0 %v2353
          %v2374 = vpop.xlane.xlu0 %2373
          %2375 = vadd.xlane.f32.xlu0 %v2354
          %v2376 = vpop.xlane.xlu0 %2375
          %2377 = vadd.xlane.f32.xlu0 %v2355
          %v2378 = vpop.xlane.xlu0 %2377
          %2379 = vadd.xlane.f32.xlu0 %v2356
          %v2380 = vpop.xlane.xlu0 %2379
          %2381 = vadd.xlane.f32.xlu0 %v2357
          %v2382 = vpop.xlane.xlu0 %2381
          %2383 = vadd.xlane.f32.xlu0 %v2358
          %v2384 = vpop.xlane.xlu0 %2383
          %2385 = vadd.xlane.f32.xlu0 %v2359
          %v2386 = vpop.xlane.xlu0 %2385
          %2387 = vadd.xlane.f32.xlu0 %v2360
          %v2388 = vpop.xlane.xlu0 %2387
          %2389 = vadd.xlane.f32.xlu0 %v2361
          %v2390 = vpop.xlane.xlu0 %2389
          %2391 = vadd.xlane.f32.xlu0 %v2362
          %v2392 = vpop.xlane.xlu0 %2391
          %2393 = vadd.xlane.f32.xlu0 %v2363
          %v2394 = vpop.xlane.xlu0 %2393
          %2395 = vadd.xlane.f32.xlu0 %v2364
          %v2396 = vpop.xlane.xlu0 %2395
          %v2397 = vrcp.pop %v2366
          %v2398 = vmul.f32 %v2349, %v2397
          %v2399 = vrcp.pop %v2368
          %v2400 = vmul.f32 %v2350, %v2399
          %v2401 = vrcp.pop %v2370
          %v2402 = vmul.f32 %v2351, %v2401
          %v2403 = vrcp.pop %v2372
          %v2404 = vmul.f32 %v2352, %v2403
          %v2405 = vrcp.pop %v2374
          %v2406 = vmul.f32 %v2353, %v2405
          %v2407 = vrcp.pop %v2376
          %v2408 = vmul.f32 %v2354, %v2407
          %v2409 = vrcp.pop %v2378
          %v2410 = vmul.f32 %v2355, %v2409
          %v2411 = vrcp.pop %v2380
          %v2412 = vmul.f32 %v2356, %v2411
          %v2413 = vrcp.pop %v2382
          %v2414 = vmul.f32 %v2357, %v2413
          %v2415 = vrcp.pop %v2384
          %v2416 = vmul.f32 %v2358, %v2415
          %v2417 = vrcp.pop %v2386
          %v2418 = vmul.f32 %v2359, %v2417
          %v2419 = vrcp.pop %v2388
          %v2420 = vmul.f32 %v2360, %v2419
          %v2421 = vrcp.pop %v2390
          %v2422 = vmul.f32 %v2361, %v2421
          %v2423 = vrcp.pop %v2392
          %v2424 = vmul.f32 %v2362, %v2423
          %v2425 = vrcp.pop %v2394
          %v2426 = vmul.f32 %v2363, %v2425
          %v2427 = vrcp.pop %v2396
          %v2428 = vmul.f32 %v2364, %v2427
          %2429 = vst [vmem:[%s714] sm:$0xff] %v2398
          %2430 = vst [vmem:[%s714 + $0x8] sm:$0xff] %v2400
          %2431 = vst [vmem:[%s714 + $0x10] sm:$0xff] %v2402
          %2432 = vst [vmem:[%s714 + $0x18] sm:$0xff] %v2404
          %2433 = vst [vmem:[%s714 + $0x20] sm:$0xff] %v2406
          %2434 = vst [vmem:[%s714 + $0x28] sm:$0xff] %v2408
          %2435 = vst [vmem:[%s714 + $0x30] sm:$0xff] %v2410
          %2436 = vst [vmem:[%s714 + $0x38] sm:$0xff] %v2412
          %2437 = vst [vmem:[%s714 + $0x40] sm:$0xff] %v2414
          %2438 = vst [vmem:[%s714 + $0x48] sm:$0xff] %v2416
          %2439 = vst [vmem:[%s714 + $0x50] sm:$0xff] %v2418
          %2440 = vst [vmem:[%s714 + $0x58] sm:$0xff] %v2420
          %2441 = vst [vmem:[%s714 + $0x60] sm:$0xff] %v2422
          %2442 = vst [vmem:[%s714 + $0x68] sm:$0xff] %v2424
          %2443 = vst [vmem:[%s714 + $0x70] sm:$0xff] %v2426
          %2444 = vst [vmem:[%s714 + $0x78] sm:$0xff] %v2428
        $region179: #{forward.7} parent=158 // pred_fallthru
          _
        %s2445 = smul.u32 16, %s24
        %p2446 = scmp.lt.s32.totalorder %s2445, 31
        %s2447 = scalar_select %p2446, %s2445, 31
        %s2448 = smul.addr %s2447, 8
        %s2449 = scalar_lea.vmem %s7, %s2448
        %s2450 = smul.u32 16, %s24
        %p2451 = scmp.lt.s32.totalorder %s2450, 31
        %s2452 = scalar_select %p2451, %s2450, 31
        %s2453 = smul.addr %s2452, 8
        %s2454 = scalar_lea.vmem %s8, %s2453
        // Predicated region
        $region180: #{forward.7} parent=158 // pred_check
          %p2455 = pneg %p223
        $region181: #{forward.7} parent=158 // pred_check_branch
          %2457 = sbr.rel (%p2455) target = $region183
        $region182: #{forward.7} parent=158 // pred_region
          %s2458 = smul.u32 16, %s24
        $region183: #{forward.7} parent=158 // pred_fallthru
          _
        // Predicated region
        $region184: #{forward.7} parent=158 // pred_check
          %p2459 = pneg %p249
        $region185: #{forward.7} parent=158 // pred_check_branch
          %2461 = sbr.rel (%p2459) target = $region187
        $region186: #{forward.7} parent=158 // pred_region
          %s2462 = smul.u32 16, %s24
        $region187: #{forward.7} parent=158 // pred_fallthru
          _
      $region159: #{forward.7} parent=5 // pred_fallthru
        _
      %p2463 = scmp.le.s32.totalorder 2, %s15
      // Predicated region
      $region188: #{forward.7} parent=5 // pred_check
        %p2464 = pneg %p2463
      $region189: #{forward.7} parent=5 // pred_check_branch
        %2466 = sbr.rel (%p2464) target = $region191
      $region190: #{forward.7} parent=5 // pred_region
        %s2467 = ssub.s32 %s15, 2
        // Predicated region
        $region192: #{forward.7} parent=190 // pred_check
          %p2468 = pneg %p229
        $region193: #{forward.7} parent=190 // pred_check_branch
          %2470 = sbr.rel (%p2468) target = $region195
        $region194: #{forward.7} parent=190 // pred_region
          %s2471 = smul.u32 16, %s26
          %p2472 = scmp.lt.s32.totalorder %s2471, 31
          %s2473 = scalar_select %p2472, %s2471, 31
          %s2474 = smul.addr %s2473, 8
          %s2475 = scalar_lea.vmem %s7, %s2474
        $region195: #{forward.7} parent=190 // pred_fallthru
          _
        // Predicated region
        $region196: #{forward.7} parent=190 // pred_check
          %p2476 = pneg %p255
        $region197: #{forward.7} parent=190 // pred_check_branch
          %2478 = sbr.rel (%p2476) target = $region199
        $region198: #{forward.7} parent=190 // pred_region
          %s2479 = smul.u32 16, %s26
          %p2480 = scmp.lt.s32.totalorder %s2479, 31
          %s2481 = scalar_select %p2480, %s2479, 31
          %s2482 = smul.addr %s2481, 8
          %s2483 = scalar_lea.vmem %s8, %s2482
        $region199: #{forward.7} parent=190 // pred_fallthru
          _
      $region191: #{forward.7} parent=5 // pred_fallthru
        _
    $region6: #{forward.7} parent=1 // loop_footer
      %s19 = sadd.s32 1, %s15
    $region7: #{forward.7} parent=1 // loop_footer_branch
      %14 = sbr.rel target = $region3
    $region8: #{forward.7} parent=1 // loop_exit
      _

</llo_original>
